<compile_context>
chip_gen: v7x
topology: tpu7x:2x2x1
jax: 0.10.0
libtpu: 0.0.40
codegen_flags: <defaults>
</compile_context>

<pallas_src>
import functools

import jax
import jax.numpy as jnp
from jax import lax
from jax.experimental import pallas as pl
from jax.experimental.pallas import tpu as pltpu

EPS_LN = 1e-5
EPS_IN = 1e-5


def _layernorm(x, gamma, beta):
    mean = jnp.mean(x, axis=-1, keepdims=True)
    var = jnp.mean((x - mean) ** 2, axis=-1, keepdims=True)
    return (x - mean) * lax.rsqrt(var + EPS_LN) * gamma + beta


def _bridge_kernel(
    x_ref,                       # (1, C, S)   f32  raw tokens (NCHW flattened)
    convw_ref, convb_ref,        # (C, E) bf16, (1, E) f32
    wqkv_ref, bqkv_ref,          # (1, E, 3E) bf16, (1, 1, 3E) f32
    wo_ref, bo_ref,              # (1, E, E)  bf16, (1, 1, E)  f32
    w1_ref, b1_ref,              # (1, E, F)  bf16, (1, 1, F)  f32
    w2_ref, b2_ref,              # (1, F, E)  bf16, (1, 1, E)  f32
    g1_ref, be1_ref,             # (1, 1, E)  f32
    g2_ref, be2_ref,             # (1, 1, E)  f32
    o_ref,                       # (1, E, S)  f32
    res_ref,                     # VMEM scratch (S, E) f32 : residual stream
    ctx_ref,                     # VMEM scratch (S, E) f32 : attention context
    *, num_heads,
):
    layer = pl.program_id(1)
    n_layers = pl.num_programs(1)

    # ---- fused 1x1 conv: once per batch element, at layer step 0 ----------
    @pl.when(layer == 0)
    def _():
        x_cs = x_ref[0].astype(jnp.bfloat16)            # (C, S)
        res_ref[...] = lax.dot_general(
            x_cs, convw_ref[...],
            dimension_numbers=(((0,), (0,)), ((), ())),  # contract over C
            preferred_element_type=jnp.float32,
        ) + convb_ref[...]

    x = res_ref[...]                                     # (S, E) f32 residual
    S, E = x.shape
    D = E // num_heads
    scale = 1.0 / float(D) ** 0.5
    x_bf = x.astype(jnp.bfloat16)

    # ---- multi-head self-attention (post-LN TransformerEncoderLayer) ------
    qkv = jnp.dot(x_bf, wqkv_ref[0],
                  preferred_element_type=jnp.float32) + bqkv_ref[0]
    qb = (qkv[:, :E] * scale).astype(jnp.bfloat16)
    kb = qkv[:, E:2 * E].astype(jnp.bfloat16)
    vb = qkv[:, 2 * E:].astype(jnp.bfloat16)

    # Each head writes directly into its ctx scratch slice, so only one
    # head's (S, S) score matrix is live at a time (no concatenate, no .T).
    # TODO(synk): for large S (>~2k) tile the KV axis with an online softmax
    # so the (S, S) scores never materialize (needed for v7x's 64 MiB VMEM).
    for h in range(num_heads):
        sl = slice(h * D, (h + 1) * D)
        s = lax.dot_general(qb[:, sl], kb[:, sl],
                            dimension_numbers=(((1,), (1,)), ((), ())),
                            preferred_element_type=jnp.float32)      # (S, S)
        s = s - jnp.max(s, axis=-1, keepdims=True)
        p = jnp.exp(s)
        p = p * pl.reciprocal(jnp.sum(p, axis=-1, keepdims=True), approx=True)
        ctx_ref[:, sl] = jnp.dot(p.astype(jnp.bfloat16), vb[:, sl],
                                 preferred_element_type=jnp.float32)

    attn = jnp.dot(ctx_ref[...].astype(jnp.bfloat16), wo_ref[0],
                   preferred_element_type=jnp.float32) + bo_ref[0]

    x1 = _layernorm(x + attn, g1_ref[0], be1_ref[0])

    # ---- feed-forward (relu) -----------------------------------------------
    h1 = jnp.dot(x1.astype(jnp.bfloat16), w1_ref[0],
                 preferred_element_type=jnp.float32) + b1_ref[0]
    h1 = jnp.maximum(h1, 0.0)
    ff = jnp.dot(h1.astype(jnp.bfloat16), w2_ref[0],
                 preferred_element_type=jnp.float32) + b2_ref[0]

    res_ref[...] = _layernorm(x1 + ff, g2_ref[0], be2_ref[0])

    # ---- fused InstanceNorm2d, emitted lane-dense as (E, S) ----------------
    @pl.when(layer == n_layers - 1)
    def _():
        y = res_ref[...].T                               # (E, S)
        mean = jnp.mean(y, axis=-1, keepdims=True)
        var = jnp.mean((y - mean) ** 2, axis=-1, keepdims=True)
        o_ref[0] = (y - mean) * lax.rsqrt(var + EPS_IN)


# ----------------------------------------------------------------------------
# Wrapper
# ----------------------------------------------------------------------------
def transformer_bridge(x, params, num_heads):
    """x: (B, C, H, W) f32 -> (B, E, H, W) f32."""
    B, C, H, W = x.shape
    S = H * W
    E = params["conv_w"].shape[1]
    L = params["wqkv"].shape[0]

    x_tokens = x.reshape(B, C, S)                 # free reshape of NCHW

    def fixed(a):
        nd = a.ndim
        return pl.BlockSpec(a.shape, lambda b, l: (0,) * nd)

    def per_layer(a):
        nd = a.ndim
        return pl.BlockSpec((1,) + a.shape[1:],
                            lambda b, l: (l,) + (0,) * (nd - 1))

    p = params
    layer_keys = ("wqkv", "bqkv", "wo", "bo", "w1", "b1", "w2", "b2",
                  "g1", "be1", "g2", "be2")
    operands = (x_tokens, p["conv_w"], p["conv_b"]) + tuple(p[k] for k in layer_keys)

    in_specs = ([pl.BlockSpec((1, C, S), lambda b, l: (b, 0, 0)),
                 fixed(p["conv_w"]), fixed(p["conv_b"])]
                + [per_layer(p[k]) for k in layer_keys])

    out = pl.pallas_call(
        functools.partial(_bridge_kernel, num_heads=num_heads),
        out_shape=jax.ShapeDtypeStruct((B, E, S), jnp.float32),
        grid=(B, L),
        in_specs=in_specs,
        out_specs=pl.BlockSpec((1, E, S), lambda b, l: (b, 0, 0)),
        scratch_shapes=[pltpu.VMEM((S, E), jnp.float32),
                        pltpu.VMEM((S, E), jnp.float32)],
        compiler_params=pltpu.CompilerParams(
            dimension_semantics=("parallel", "arbitrary")),
    )(*operands)

    return out.reshape(B, E, H, W)


# ----------------------------------------------------------------------------
# Deterministic parameter init (matmul weights in (in, out) layout, bf16;
# biases / norm affines in f32; per-layer tensors stacked on a leading L axis)
# ----------------------------------------------------------------------------
def init_params(key, in_channels, embed_dim, ff_dim, num_layers):
    keys = jax.random.split(key, 2 + num_layers)
    bf16, f32 = jnp.bfloat16, jnp.float32
    E, F = embed_dim, ff_dim

    def w(k, shape, dtype):
        return (0.02 * jax.random.normal(k, shape, dtype=f32)).astype(dtype)

    params = {
        "conv_w": w(keys[0], (in_channels, E), bf16),
        "conv_b": w(keys[1], (1, E), f32),
    }
    acc = {k: [] for k in ("wqkv", "bqkv", "wo", "bo", "w1", "b1", "w2", "b2",
                           "g1", "be1", "g2", "be2")}
    for l in range(num_layers):
        lk = jax.random.split(keys[2 + l], 6)
        acc["wqkv"].append(w(lk[0], (E, 3 * E), bf16))
        acc["bqkv"].append(w(lk[1], (1, 3 * E), f32))
        acc["wo"].append(w(lk[2], (E, E), bf16))
        acc["bo"].append(jnp.zeros((1, E), f32))
        acc["w1"].append(w(lk[3], (E, F), bf16))
        acc["b1"].append(w(lk[4], (1, F), f32))
        acc["w2"].append(w(lk[5], (F, E), bf16))
        acc["b2"].append(jnp.zeros((1, E), f32))
        acc["g1"].append(jnp.ones((1, E), f32))
        acc["be1"].append(jnp.zeros((1, E), f32))
        acc["g2"].append(jnp.ones((1, E), f32))
        acc["be2"].append(jnp.zeros((1, E), f32))
    for k, v in acc.items():
        params[k] = jnp.stack(v, axis=0)
    return params


if __name__ == "__main__":
    B, C_in, H, W = 2, 4, 16, 16          # S = 256 tokens (lane-dense output)
    embed_dim, num_heads, num_layers, ff_dim = 32, 4, 2, 64

    key = jax.random.PRNGKey(0)
    kx, kp = jax.random.split(key)
    x = jax.random.normal(kx, (B, C_in, H, W), dtype=jnp.float32)
    params = init_params(kp, C_in, embed_dim, ff_dim, num_layers)

    out = transformer_bridge(x, params, num_heads)
    out = jax.block_until_ready(out)
    assert out.shape == (B, embed_dim, H, W), out.shape
    print("KERNEL_OK")
</pallas_src>

<mosaic_0001>
module attributes {stable_mosaic.version = 11 : i64} {
  func.func @_bridge_kernel(%arg0: i32, %arg1: i32, %arg2: memref<1x4x256xf32, #tpu.memory_space<vmem>>, %arg3: memref<4x32xbf16, #tpu.memory_space<vmem>>, %arg4: memref<1x32xf32, #tpu.memory_space<vmem>>, %arg5: memref<1x32x96xbf16, #tpu.memory_space<vmem>>, %arg6: memref<1x1x96xf32, #tpu.memory_space<vmem>>, %arg7: memref<1x32x32xbf16, #tpu.memory_space<vmem>>, %arg8: memref<1x1x32xf32, #tpu.memory_space<vmem>>, %arg9: memref<1x32x64xbf16, #tpu.memory_space<vmem>>, %arg10: memref<1x1x64xf32, #tpu.memory_space<vmem>>, %arg11: memref<1x64x32xbf16, #tpu.memory_space<vmem>>, %arg12: memref<1x1x32xf32, #tpu.memory_space<vmem>>, %arg13: memref<1x1x32xf32, #tpu.memory_space<vmem>>, %arg14: memref<1x1x32xf32, #tpu.memory_space<vmem>>, %arg15: memref<1x1x32xf32, #tpu.memory_space<vmem>>, %arg16: memref<1x1x32xf32, #tpu.memory_space<vmem>>, %arg17: memref<1x32x256xf32, #tpu.memory_space<vmem>>, %arg18: memref<256x32xf32, #tpu.memory_space<vmem>>, %arg19: memref<256x32xf32, #tpu.memory_space<vmem>>) attributes {dimension_semantics = [#tpu.dimension_semantics<parallel>, #tpu.dimension_semantics<arbitrary>], iteration_bounds = array<i64: 2, 2>, scalar_prefetch = 0 : i64, scratch_operands = 2 : i64, tpu.core_type = #tpu.core_type<tc>, window_params = [{transform_indices = @transform_0, window_bounds = array<i64: 1, 4, 256>}, {pipeline_mode = #tpu.pipeline_mode<synchronous>, transform_indices = @transform_1, window_bounds = array<i64: 4, 32>}, {pipeline_mode = #tpu.pipeline_mode<synchronous>, transform_indices = @transform_2, window_bounds = array<i64: 1, 32>}, {transform_indices = @transform_3, window_bounds = array<i64: 1, 32, 96>}, {transform_indices = @transform_4, window_bounds = array<i64: 1, 1, 96>}, {transform_indices = @transform_5, window_bounds = array<i64: 1, 32, 32>}, {transform_indices = @transform_6, window_bounds = array<i64: 1, 1, 32>}, {transform_indices = @transform_7, window_bounds = array<i64: 1, 32, 64>}, {transform_indices = @transform_8, window_bounds = array<i64: 1, 1, 64>}, {transform_indices = @transform_9, window_bounds = array<i64: 1, 64, 32>}, {transform_indices = @transform_10, window_bounds = array<i64: 1, 1, 32>}, {transform_indices = @transform_11, window_bounds = array<i64: 1, 1, 32>}, {transform_indices = @transform_12, window_bounds = array<i64: 1, 1, 32>}, {transform_indices = @transform_13, window_bounds = array<i64: 1, 1, 32>}, {transform_indices = @transform_14, window_bounds = array<i64: 1, 1, 32>}, {transform_indices = @transform_15, window_bounds = array<i64: 1, 32, 256>}]} {
    %c0_i32 = arith.constant 0 : i32
    %0 = arith.cmpi eq, %arg1, %c0_i32 : i32
    %1 = arith.extui %0 : i1 to i32
    %c0_i32_0 = arith.constant 0 : i32
    %2 = arith.cmpi ne, %1, %c0_i32_0 : i32
    scf.if %2 {
      %c0_79 = arith.constant 0 : index
      %c0_80 = arith.constant 0 : index
      %c0_81 = arith.constant 0 : index
      %173 = vector.load %arg2[%c0_79, %c0_80, %c0_81] : memref<1x4x256xf32, #tpu.memory_space<vmem>>, vector<1x4x256xf32>
      %174 = vector.shape_cast %173 : vector<1x4x256xf32> to vector<4x256xf32>
      %175 = arith.truncf %174 : vector<4x256xf32> to vector<4x256xbf16>
      %c0_82 = arith.constant 0 : index
      %c0_83 = arith.constant 0 : index
      %176 = vector.load %arg3[%c0_82, %c0_83] : memref<4x32xbf16, #tpu.memory_space<vmem>>, vector<4x32xbf16>
      %cst_84 = arith.constant dense<0.000000e+00> : vector<256x32xf32>
      %177 = tpu.matmul %175, %176, %cst_84 {dimension_numbers = #tpu.dot_dimension_numbers<[0], [0], [1], [1], [0, 1, 1, 1], [], []>} : vector<4x256xbf16>, vector<4x32xbf16>, vector<256x32xf32> -> vector<256x32xf32>
      %c0_85 = arith.constant 0 : index
      %c0_86 = arith.constant 0 : index
      %178 = vector.load %arg4[%c0_85, %c0_86] : memref<1x32xf32, #tpu.memory_space<vmem>>, vector<1x32xf32>
      %179 = vector.broadcast %178 : vector<1x32xf32> to vector<256x32xf32>
      %180 = arith.addf %177, %179 : vector<256x32xf32>
      %c0_87 = arith.constant 0 : index
      %c0_88 = arith.constant 0 : index
      %181 = vector.load %arg18[%c0_87, %c0_88] : memref<256x32xf32, #tpu.memory_space<vmem>>, vector<256x32xf32>
      tpu.vector_store %arg18[%c0_87, %c0_88], %180 {strides = array<i32>} : memref<256x32xf32, #tpu.memory_space<vmem>>, vector<256x32xf32>,
    } else {
    }
    %c0 = arith.constant 0 : index
    %c0_1 = arith.constant 0 : index
    %3 = vector.load %arg18[%c0, %c0_1] : memref<256x32xf32, #tpu.memory_space<vmem>>, vector<256x32xf32>
    %4 = arith.truncf %3 : vector<256x32xf32> to vector<256x32xbf16>
    %c0_2 = arith.constant 0 : index
    %c0_3 = arith.constant 0 : index
    %c0_4 = arith.constant 0 : index
    %5 = vector.load %arg5[%c0_2, %c0_3, %c0_4] : memref<1x32x96xbf16, #tpu.memory_space<vmem>>, vector<1x32x96xbf16>
    %6 = vector.shape_cast %5 : vector<1x32x96xbf16> to vector<32x96xbf16>
    %cst = arith.constant dense<0.000000e+00> : vector<256x96xf32>
    %7 = tpu.matmul %4, %6, %cst {dimension_numbers = #tpu.dot_dimension_numbers<[1], [0], [0], [1], [0, 0, 1, 1], [], []>} : vector<256x32xbf16>, vector<32x96xbf16>, vector<256x96xf32> -> vector<256x96xf32>
    %c0_5 = arith.constant 0 : index
    %c0_6 = arith.constant 0 : index
    %c0_7 = arith.constant 0 : index
    %8 = vector.load %arg6[%c0_5, %c0_6, %c0_7] : memref<1x1x96xf32, #tpu.memory_space<vmem>>, vector<1x1x96xf32>
    %9 = vector.shape_cast %8 : vector<1x1x96xf32> to vector<1x96xf32>
    %10 = vector.broadcast %9 : vector<1x96xf32> to vector<256x96xf32>
    %11 = arith.addf %7, %10 : vector<256x96xf32>
    %12 = vector.extract_strided_slice %11 {offsets = [0, 0], sizes = [256, 32], strides = [1, 1]} : vector<256x96xf32> to vector<256x32xf32>
    %cst_8 = arith.constant 0.353553385 : f32
    %13 = vector.broadcast %cst_8 : f32 to vector<256x32xf32>
    %14 = arith.mulf %12, %13 : vector<256x32xf32>
    %15 = arith.truncf %14 : vector<256x32xf32> to vector<256x32xbf16>
    %16 = vector.extract_strided_slice %11 {offsets = [0, 32], sizes = [256, 32], strides = [1, 1]} : vector<256x96xf32> to vector<256x32xf32>
    %17 = arith.truncf %16 : vector<256x32xf32> to vector<256x32xbf16>
    %18 = vector.extract_strided_slice %11 {offsets = [0, 64], sizes = [256, 32], strides = [1, 1]} : vector<256x96xf32> to vector<256x32xf32>
    %19 = arith.truncf %18 : vector<256x32xf32> to vector<256x32xbf16>
    %20 = vector.extract_strided_slice %15 {offsets = [0, 0], sizes = [256, 8], strides = [1, 1]} : vector<256x32xbf16> to vector<256x8xbf16>
    %21 = vector.extract_strided_slice %17 {offsets = [0, 0], sizes = [256, 8], strides = [1, 1]} : vector<256x32xbf16> to vector<256x8xbf16>
    %cst_9 = arith.constant dense<0.000000e+00> : vector<256x256xf32>
    %22 = tpu.matmul %20, %21, %cst_9 {dimension_numbers = #tpu.dot_dimension_numbers<[1], [1], [0], [0], [0, 0, 1, 0], [], []>} : vector<256x8xbf16>, vector<256x8xbf16>, vector<256x256xf32> -> vector<256x256xf32>
    %cst_10 = arith.constant dense<0xFF800000> : vector<256xf32>
    %23 = vector.multi_reduction <maximumf>, %22, %cst_10 [1] : vector<256x256xf32> to vector<256xf32>
    %24 = vector.shape_cast %23 : vector<256xf32> to vector<256x1xf32>
    %25 = vector.broadcast %24 : vector<256x1xf32> to vector<256x256xf32>
    %26 = arith.subf %22, %25 : vector<256x256xf32>
    %27 = math.exp %26 : vector<256x256xf32>
    %cst_11 = arith.constant dense<0.000000e+00> : vector<256xf32>
    %28 = vector.multi_reduction <add>, %27, %cst_11 [1] : vector<256x256xf32> to vector<256xf32>
    %29 = vector.shape_cast %28 : vector<256xf32> to vector<256x1xf32>
    %30 = tpu.reciprocal %29 {approx = true} : vector<256x1xf32> -> vector<256x1xf32>
    %31 = vector.broadcast %30 : vector<256x1xf32> to vector<256x256xf32>
    %32 = arith.mulf %27, %31 : vector<256x256xf32>
    %33 = arith.truncf %32 : vector<256x256xf32> to vector<256x256xbf16>
    %34 = vector.extract_strided_slice %19 {offsets = [0, 0], sizes = [256, 8], strides = [1, 1]} : vector<256x32xbf16> to vector<256x8xbf16>
    %cst_12 = arith.constant dense<0.000000e+00> : vector<256x8xf32>
    %35 = tpu.matmul %33, %34, %cst_12 {dimension_numbers = #tpu.dot_dimension_numbers<[1], [0], [0], [1], [0, 0, 1, 1], [], []>} : vector<256x256xbf16>, vector<256x8xbf16>, vector<256x8xf32> -> vector<256x8xf32>
    %c0_13 = arith.constant 0 : index
    %c0_14 = arith.constant 0 : index
    %36 = vector.load %arg19[%c0_13, %c0_14] : memref<256x32xf32, #tpu.memory_space<vmem>>, vector<256x8xf32>
    tpu.vector_store %arg19[%c0_13, %c0_14], %35 {strides = array<i32>} : memref<256x32xf32, #tpu.memory_space<vmem>>, vector<256x8xf32>,
    %37 = vector.extract_strided_slice %15 {offsets = [0, 8], sizes = [256, 8], strides = [1, 1]} : vector<256x32xbf16> to vector<256x8xbf16>
    %38 = vector.extract_strided_slice %17 {offsets = [0, 8], sizes = [256, 8], strides = [1, 1]} : vector<256x32xbf16> to vector<256x8xbf16>
    %cst_15 = arith.constant dense<0.000000e+00> : vector<256x256xf32>
    %39 = tpu.matmul %37, %38, %cst_15 {dimension_numbers = #tpu.dot_dimension_numbers<[1], [1], [0], [0], [0, 0, 1, 0], [], []>} : vector<256x8xbf16>, vector<256x8xbf16>, vector<256x256xf32> -> vector<256x256xf32>
    %cst_16 = arith.constant dense<0xFF800000> : vector<256xf32>
    %40 = vector.multi_reduction <maximumf>, %39, %cst_16 [1] : vector<256x256xf32> to vector<256xf32>
    %41 = vector.shape_cast %40 : vector<256xf32> to vector<256x1xf32>
    %42 = vector.broadcast %41 : vector<256x1xf32> to vector<256x256xf32>
    %43 = arith.subf %39, %42 : vector<256x256xf32>
    %44 = math.exp %43 : vector<256x256xf32>
    %cst_17 = arith.constant dense<0.000000e+00> : vector<256xf32>
    %45 = vector.multi_reduction <add>, %44, %cst_17 [1] : vector<256x256xf32> to vector<256xf32>
    %46 = vector.shape_cast %45 : vector<256xf32> to vector<256x1xf32>
    %47 = tpu.reciprocal %46 {approx = true} : vector<256x1xf32> -> vector<256x1xf32>
    %48 = vector.broadcast %47 : vector<256x1xf32> to vector<256x256xf32>
    %49 = arith.mulf %44, %48 : vector<256x256xf32>
    %50 = arith.truncf %49 : vector<256x256xf32> to vector<256x256xbf16>
    %51 = vector.extract_strided_slice %19 {offsets = [0, 8], sizes = [256, 8], strides = [1, 1]} : vector<256x32xbf16> to vector<256x8xbf16>
    %cst_18 = arith.constant dense<0.000000e+00> : vector<256x8xf32>
    %52 = tpu.matmul %50, %51, %cst_18 {dimension_numbers = #tpu.dot_dimension_numbers<[1], [0], [0], [1], [0, 0, 1, 1], [], []>} : vector<256x256xbf16>, vector<256x8xbf16>, vector<256x8xf32> -> vector<256x8xf32>
    %c0_19 = arith.constant 0 : index
    %c8 = arith.constant 8 : index
    %53 = vector.load %arg19[%c0_19, %c8] : memref<256x32xf32, #tpu.memory_space<vmem>>, vector<256x8xf32>
    tpu.vector_store %arg19[%c0_19, %c8], %52 {strides = array<i32>} : memref<256x32xf32, #tpu.memory_space<vmem>>, vector<256x8xf32>,
    %54 = vector.extract_strided_slice %15 {offsets = [0, 16], sizes = [256, 8], strides = [1, 1]} : vector<256x32xbf16> to vector<256x8xbf16>
    %55 = vector.extract_strided_slice %17 {offsets = [0, 16], sizes = [256, 8], strides = [1, 1]} : vector<256x32xbf16> to vector<256x8xbf16>
    %cst_20 = arith.constant dense<0.000000e+00> : vector<256x256xf32>
    %56 = tpu.matmul %54, %55, %cst_20 {dimension_numbers = #tpu.dot_dimension_numbers<[1], [1], [0], [0], [0, 0, 1, 0], [], []>} : vector<256x8xbf16>, vector<256x8xbf16>, vector<256x256xf32> -> vector<256x256xf32>
    %cst_21 = arith.constant dense<0xFF800000> : vector<256xf32>
    %57 = vector.multi_reduction <maximumf>, %56, %cst_21 [1] : vector<256x256xf32> to vector<256xf32>
    %58 = vector.shape_cast %57 : vector<256xf32> to vector<256x1xf32>
    %59 = vector.broadcast %58 : vector<256x1xf32> to vector<256x256xf32>
    %60 = arith.subf %56, %59 : vector<256x256xf32>
    %61 = math.exp %60 : vector<256x256xf32>
    %cst_22 = arith.constant dense<0.000000e+00> : vector<256xf32>
    %62 = vector.multi_reduction <add>, %61, %cst_22 [1] : vector<256x256xf32> to vector<256xf32>
    %63 = vector.shape_cast %62 : vector<256xf32> to vector<256x1xf32>
    %64 = tpu.reciprocal %63 {approx = true} : vector<256x1xf32> -> vector<256x1xf32>
    %65 = vector.broadcast %64 : vector<256x1xf32> to vector<256x256xf32>
    %66 = arith.mulf %61, %65 : vector<256x256xf32>
    %67 = arith.truncf %66 : vector<256x256xf32> to vector<256x256xbf16>
    %68 = vector.extract_strided_slice %19 {offsets = [0, 16], sizes = [256, 8], strides = [1, 1]} : vector<256x32xbf16> to vector<256x8xbf16>
    %cst_23 = arith.constant dense<0.000000e+00> : vector<256x8xf32>
    %69 = tpu.matmul %67, %68, %cst_23 {dimension_numbers = #tpu.dot_dimension_numbers<[1], [0], [0], [1], [0, 0, 1, 1], [], []>} : vector<256x256xbf16>, vector<256x8xbf16>, vector<256x8xf32> -> vector<256x8xf32>
    %c0_24 = arith.constant 0 : index
    %c16 = arith.constant 16 : index
    %70 = vector.load %arg19[%c0_24, %c16] : memref<256x32xf32, #tpu.memory_space<vmem>>, vector<256x8xf32>
    tpu.vector_store %arg19[%c0_24, %c16], %69 {strides = array<i32>} : memref<256x32xf32, #tpu.memory_space<vmem>>, vector<256x8xf32>,
    %71 = vector.extract_strided_slice %15 {offsets = [0, 24], sizes = [256, 8], strides = [1, 1]} : vector<256x32xbf16> to vector<256x8xbf16>
    %72 = vector.extract_strided_slice %17 {offsets = [0, 24], sizes = [256, 8], strides = [1, 1]} : vector<256x32xbf16> to vector<256x8xbf16>
    %cst_25 = arith.constant dense<0.000000e+00> : vector<256x256xf32>
    %73 = tpu.matmul %71, %72, %cst_25 {dimension_numbers = #tpu.dot_dimension_numbers<[1], [1], [0], [0], [0, 0, 1, 0], [], []>} : vector<256x8xbf16>, vector<256x8xbf16>, vector<256x256xf32> -> vector<256x256xf32>
    %cst_26 = arith.constant dense<0xFF800000> : vector<256xf32>
    %74 = vector.multi_reduction <maximumf>, %73, %cst_26 [1] : vector<256x256xf32> to vector<256xf32>
    %75 = vector.shape_cast %74 : vector<256xf32> to vector<256x1xf32>
    %76 = vector.broadcast %75 : vector<256x1xf32> to vector<256x256xf32>
    %77 = arith.subf %73, %76 : vector<256x256xf32>
    %78 = math.exp %77 : vector<256x256xf32>
    %cst_27 = arith.constant dense<0.000000e+00> : vector<256xf32>
    %79 = vector.multi_reduction <add>, %78, %cst_27 [1] : vector<256x256xf32> to vector<256xf32>
    %80 = vector.shape_cast %79 : vector<256xf32> to vector<256x1xf32>
    %81 = tpu.reciprocal %80 {approx = true} : vector<256x1xf32> -> vector<256x1xf32>
    %82 = vector.broadcast %81 : vector<256x1xf32> to vector<256x256xf32>
    %83 = arith.mulf %78, %82 : vector<256x256xf32>
    %84 = arith.truncf %83 : vector<256x256xf32> to vector<256x256xbf16>
    %85 = vector.extract_strided_slice %19 {offsets = [0, 24], sizes = [256, 8], strides = [1, 1]} : vector<256x32xbf16> to vector<256x8xbf16>
    %cst_28 = arith.constant dense<0.000000e+00> : vector<256x8xf32>
    %86 = tpu.matmul %84, %85, %cst_28 {dimension_numbers = #tpu.dot_dimension_numbers<[1], [0], [0], [1], [0, 0, 1, 1], [], []>} : vector<256x256xbf16>, vector<256x8xbf16>, vector<256x8xf32> -> vector<256x8xf32>
    %c0_29 = arith.constant 0 : index
    %c24 = arith.constant 24 : index
    %87 = vector.load %arg19[%c0_29, %c24] : memref<256x32xf32, #tpu.memory_space<vmem>>, vector<256x8xf32>
    tpu.vector_store %arg19[%c0_29, %c24], %86 {strides = array<i32>} : memref<256x32xf32, #tpu.memory_space<vmem>>, vector<256x8xf32>,
    %c0_30 = arith.constant 0 : index
    %c0_31 = arith.constant 0 : index
    %88 = vector.load %arg19[%c0_30, %c0_31] : memref<256x32xf32, #tpu.memory_space<vmem>>, vector<256x32xf32>
    %89 = arith.truncf %88 : vector<256x32xf32> to vector<256x32xbf16>
    %c0_32 = arith.constant 0 : index
    %c0_33 = arith.constant 0 : index
    %c0_34 = arith.constant 0 : index
    %90 = vector.load %arg7[%c0_32, %c0_33, %c0_34] : memref<1x32x32xbf16, #tpu.memory_space<vmem>>, vector<1x32x32xbf16>
    %91 = vector.shape_cast %90 : vector<1x32x32xbf16> to vector<32x32xbf16>
    %cst_35 = arith.constant dense<0.000000e+00> : vector<256x32xf32>
    %92 = tpu.matmul %89, %91, %cst_35 {dimension_numbers = #tpu.dot_dimension_numbers<[1], [0], [0], [1], [0, 0, 1, 1], [], []>} : vector<256x32xbf16>, vector<32x32xbf16>, vector<256x32xf32> -> vector<256x32xf32>
    %c0_36 = arith.constant 0 : index
    %c0_37 = arith.constant 0 : index
    %c0_38 = arith.constant 0 : index
    %93 = vector.load %arg8[%c0_36, %c0_37, %c0_38] : memref<1x1x32xf32, #tpu.memory_space<vmem>>, vector<1x1x32xf32>
    %94 = vector.shape_cast %93 : vector<1x1x32xf32> to vector<1x32xf32>
    %95 = vector.broadcast %94 : vector<1x32xf32> to vector<256x32xf32>
    %96 = arith.addf %92, %95 : vector<256x32xf32>
    %97 = arith.addf %3, %96 : vector<256x32xf32>
    %c0_39 = arith.constant 0 : index
    %c0_40 = arith.constant 0 : index
    %c0_41 = arith.constant 0 : index
    %98 = vector.load %arg13[%c0_39, %c0_40, %c0_41] : memref<1x1x32xf32, #tpu.memory_space<vmem>>, vector<1x1x32xf32>
    %99 = vector.shape_cast %98 : vector<1x1x32xf32> to vector<1x32xf32>
    %c0_42 = arith.constant 0 : index
    %c0_43 = arith.constant 0 : index
    %c0_44 = arith.constant 0 : index
    %100 = vector.load %arg14[%c0_42, %c0_43, %c0_44] : memref<1x1x32xf32, #tpu.memory_space<vmem>>, vector<1x1x32xf32>
    %101 = vector.shape_cast %100 : vector<1x1x32xf32> to vector<1x32xf32>
    %cst_45 = arith.constant dense<0.000000e+00> : vector<256xf32>
    %102 = vector.multi_reduction <add>, %97, %cst_45 [1] : vector<256x32xf32> to vector<256xf32>
    %103 = vector.shape_cast %102 : vector<256xf32> to vector<256x1xf32>
    %cst_46 = arith.constant 3.200000e+01 : f32
    %104 = vector.broadcast %cst_46 : f32 to vector<256x1xf32>
    %105 = arith.divf %103, %104 : vector<256x1xf32>
    %106 = vector.broadcast %105 : vector<256x1xf32> to vector<256x32xf32>
    %107 = arith.subf %97, %106 : vector<256x32xf32>
    %108 = arith.mulf %107, %107 : vector<256x32xf32>
    %cst_47 = arith.constant dense<0.000000e+00> : vector<256xf32>
    %109 = vector.multi_reduction <add>, %108, %cst_47 [1] : vector<256x32xf32> to vector<256xf32>
    %110 = vector.shape_cast %109 : vector<256xf32> to vector<256x1xf32>
    %cst_48 = arith.constant 3.200000e+01 : f32
    %111 = vector.broadcast %cst_48 : f32 to vector<256x1xf32>
    %112 = arith.divf %110, %111 : vector<256x1xf32>
    %113 = vector.broadcast %105 : vector<256x1xf32> to vector<256x32xf32>
    %114 = arith.subf %97, %113 : vector<256x32xf32>
    %cst_49 = arith.constant 9.99999974E-6 : f32
    %115 = vector.broadcast %cst_49 : f32 to vector<256x1xf32>
    %116 = arith.addf %112, %115 : vector<256x1xf32>
    %117 = math.rsqrt %116 : vector<256x1xf32>
    %118 = vector.broadcast %117 : vector<256x1xf32> to vector<256x32xf32>
    %119 = arith.mulf %114, %118 : vector<256x32xf32>
    %120 = vector.broadcast %99 : vector<1x32xf32> to vector<256x32xf32>
    %121 = arith.mulf %119, %120 : vector<256x32xf32>
    %122 = vector.broadcast %101 : vector<1x32xf32> to vector<256x32xf32>
    %123 = arith.addf %121, %122 : vector<256x32xf32>
    %124 = arith.truncf %123 : vector<256x32xf32> to vector<256x32xbf16>
    %c0_50 = arith.constant 0 : index
    %c0_51 = arith.constant 0 : index
    %c0_52 = arith.constant 0 : index
    %125 = vector.load %arg9[%c0_50, %c0_51, %c0_52] : memref<1x32x64xbf16, #tpu.memory_space<vmem>>, vector<1x32x64xbf16>
    %126 = vector.shape_cast %125 : vector<1x32x64xbf16> to vector<32x64xbf16>
    %cst_53 = arith.constant dense<0.000000e+00> : vector<256x64xf32>
    %127 = tpu.matmul %124, %126, %cst_53 {dimension_numbers = #tpu.dot_dimension_numbers<[1], [0], [0], [1], [0, 0, 1, 1], [], []>} : vector<256x32xbf16>, vector<32x64xbf16>, vector<256x64xf32> -> vector<256x64xf32>
    %c0_54 = arith.constant 0 : index
    %c0_55 = arith.constant 0 : index
    %c0_56 = arith.constant 0 : index
    %128 = vector.load %arg10[%c0_54, %c0_55, %c0_56] : memref<1x1x64xf32, #tpu.memory_space<vmem>>, vector<1x1x64xf32>
    %129 = vector.shape_cast %128 : vector<1x1x64xf32> to vector<1x64xf32>
    %130 = vector.broadcast %129 : vector<1x64xf32> to vector<256x64xf32>
    %131 = arith.addf %127, %130 : vector<256x64xf32>
    %cst_57 = arith.constant 0.000000e+00 : f32
    %132 = vector.broadcast %cst_57 : f32 to vector<256x64xf32>
    %133 = arith.maximumf %131, %132 : vector<256x64xf32>
    %134 = arith.truncf %133 : vector<256x64xf32> to vector<256x64xbf16>
    %c0_58 = arith.constant 0 : index
    %c0_59 = arith.constant 0 : index
    %c0_60 = arith.constant 0 : index
    %135 = vector.load %arg11[%c0_58, %c0_59, %c0_60] : memref<1x64x32xbf16, #tpu.memory_space<vmem>>, vector<1x64x32xbf16>
    %136 = vector.shape_cast %135 : vector<1x64x32xbf16> to vector<64x32xbf16>
    %cst_61 = arith.constant dense<0.000000e+00> : vector<256x32xf32>
    %137 = tpu.matmul %134, %136, %cst_61 {dimension_numbers = #tpu.dot_dimension_numbers<[1], [0], [0], [1], [0, 0, 1, 1], [], []>} : vector<256x64xbf16>, vector<64x32xbf16>, vector<256x32xf32> -> vector<256x32xf32>
    %c0_62 = arith.constant 0 : index
    %c0_63 = arith.constant 0 : index
    %c0_64 = arith.constant 0 : index
    %138 = vector.load %arg12[%c0_62, %c0_63, %c0_64] : memref<1x1x32xf32, #tpu.memory_space<vmem>>, vector<1x1x32xf32>
    %139 = vector.shape_cast %138 : vector<1x1x32xf32> to vector<1x32xf32>
    %140 = vector.broadcast %139 : vector<1x32xf32> to vector<256x32xf32>
    %141 = arith.addf %137, %140 : vector<256x32xf32>
    %142 = arith.addf %123, %141 : vector<256x32xf32>
    %c0_65 = arith.constant 0 : index
    %c0_66 = arith.constant 0 : index
    %c0_67 = arith.constant 0 : index
    %143 = vector.load %arg15[%c0_65, %c0_66, %c0_67] : memref<1x1x32xf32, #tpu.memory_space<vmem>>, vector<1x1x32xf32>
    %144 = vector.shape_cast %143 : vector<1x1x32xf32> to vector<1x32xf32>
    %c0_68 = arith.constant 0 : index
    %c0_69 = arith.constant 0 : index
    %c0_70 = arith.constant 0 : index
    %145 = vector.load %arg16[%c0_68, %c0_69, %c0_70] : memref<1x1x32xf32, #tpu.memory_space<vmem>>, vector<1x1x32xf32>
    %146 = vector.shape_cast %145 : vector<1x1x32xf32> to vector<1x32xf32>
    %cst_71 = arith.constant dense<0.000000e+00> : vector<256xf32>
    %147 = vector.multi_reduction <add>, %142, %cst_71 [1] : vector<256x32xf32> to vector<256xf32>
    %148 = vector.shape_cast %147 : vector<256xf32> to vector<256x1xf32>
    %cst_72 = arith.constant 3.200000e+01 : f32
    %149 = vector.broadcast %cst_72 : f32 to vector<256x1xf32>
    %150 = arith.divf %148, %149 : vector<256x1xf32>
    %151 = vector.broadcast %150 : vector<256x1xf32> to vector<256x32xf32>
    %152 = arith.subf %142, %151 : vector<256x32xf32>
    %153 = arith.mulf %152, %152 : vector<256x32xf32>
    %cst_73 = arith.constant dense<0.000000e+00> : vector<256xf32>
    %154 = vector.multi_reduction <add>, %153, %cst_73 [1] : vector<256x32xf32> to vector<256xf32>
    %155 = vector.shape_cast %154 : vector<256xf32> to vector<256x1xf32>
    %cst_74 = arith.constant 3.200000e+01 : f32
    %156 = vector.broadcast %cst_74 : f32 to vector<256x1xf32>
    %157 = arith.divf %155, %156 : vector<256x1xf32>
    %158 = vector.broadcast %150 : vector<256x1xf32> to vector<256x32xf32>
    %159 = arith.subf %142, %158 : vector<256x32xf32>
    %cst_75 = arith.constant 9.99999974E-6 : f32
    %160 = vector.broadcast %cst_75 : f32 to vector<256x1xf32>
    %161 = arith.addf %157, %160 : vector<256x1xf32>
    %162 = math.rsqrt %161 : vector<256x1xf32>
    %163 = vector.broadcast %162 : vector<256x1xf32> to vector<256x32xf32>
    %164 = arith.mulf %159, %163 : vector<256x32xf32>
    %165 = vector.broadcast %144 : vector<1x32xf32> to vector<256x32xf32>
    %166 = arith.mulf %164, %165 : vector<256x32xf32>
    %167 = vector.broadcast %146 : vector<1x32xf32> to vector<256x32xf32>
    %168 = arith.addf %166, %167 : vector<256x32xf32>
    %c0_76 = arith.constant 0 : index
    %c0_77 = arith.constant 0 : index
    %169 = vector.load %arg18[%c0_76, %c0_77] : memref<256x32xf32, #tpu.memory_space<vmem>>, vector<256x32xf32>
    tpu.vector_store %arg18[%c0_76, %c0_77], %168 {strides = array<i32>} : memref<256x32xf32, #tpu.memory_space<vmem>>, vector<256x32xf32>,
    %c1_i32 = arith.constant 1 : i32
    %170 = arith.cmpi eq, %arg1, %c1_i32 : i32
    %171 = arith.extui %170 : i1 to i32
    %c0_i32_78 = arith.constant 0 : i32
    %172 = arith.cmpi ne, %171, %c0_i32_78 : i32
    scf.if %172 {
      %c0_79 = arith.constant 0 : index
      %c0_80 = arith.constant 0 : index
      %173 = vector.load %arg18[%c0_79, %c0_80] : memref<256x32xf32, #tpu.memory_space<vmem>>, vector<256x32xf32>
      %174 = tpu.transpose %173, [1, 0] : vector<256x32xf32> -> vector<32x256xf32>
      %cst_81 = arith.constant dense<0.000000e+00> : vector<32xf32>
      %175 = vector.multi_reduction <add>, %174, %cst_81 [1] : vector<32x256xf32> to vector<32xf32>
      %176 = vector.shape_cast %175 : vector<32xf32> to vector<32x1xf32>
      %cst_82 = arith.constant 2.560000e+02 : f32
      %177 = vector.broadcast %cst_82 : f32 to vector<32x1xf32>
      %178 = arith.divf %176, %177 : vector<32x1xf32>
      %179 = vector.broadcast %178 : vector<32x1xf32> to vector<32x256xf32>
      %180 = arith.subf %174, %179 : vector<32x256xf32>
      %181 = arith.mulf %180, %180 : vector<32x256xf32>
      %cst_83 = arith.constant dense<0.000000e+00> : vector<32xf32>
      %182 = vector.multi_reduction <add>, %181, %cst_83 [1] : vector<32x256xf32> to vector<32xf32>
      %183 = vector.shape_cast %182 : vector<32xf32> to vector<32x1xf32>
      %cst_84 = arith.constant 2.560000e+02 : f32
      %184 = vector.broadcast %cst_84 : f32 to vector<32x1xf32>
      %185 = arith.divf %183, %184 : vector<32x1xf32>
      %186 = vector.broadcast %178 : vector<32x1xf32> to vector<32x256xf32>
      %187 = arith.subf %174, %186 : vector<32x256xf32>
      %cst_85 = arith.constant 9.99999974E-6 : f32
      %188 = vector.broadcast %cst_85 : f32 to vector<32x1xf32>
      %189 = arith.addf %185, %188 : vector<32x1xf32>
      %190 = math.rsqrt %189 : vector<32x1xf32>
      %191 = vector.broadcast %190 : vector<32x1xf32> to vector<32x256xf32>
      %192 = arith.mulf %187, %191 : vector<32x256xf32>
      %c0_86 = arith.constant 0 : index
      %c0_87 = arith.constant 0 : index
      %c0_88 = arith.constant 0 : index
      %193 = vector.load %arg17[%c0_86, %c0_87, %c0_88] : memref<1x32x256xf32, #tpu.memory_space<vmem>>, vector<1x32x256xf32>
      %194 = vector.shape_cast %193 : vector<1x32x256xf32> to vector<32x256xf32>
      %195 = vector.shape_cast %192 : vector<32x256xf32> to vector<1x32x256xf32>
      tpu.vector_store %arg17[%c0_86, %c0_87, %c0_88], %195 {strides = array<i32>} : memref<1x32x256xf32, #tpu.memory_space<vmem>>, vector<1x32x256xf32>,
    } else {
    }
    return
  }
  func.func @transform_0(%arg0: i32, %arg1: i32) -> (i32, i32, i32) {
    %c0_i32 = arith.constant 0 : i32
    %c0_i32_0 = arith.constant 0 : i32
    %c0_i32_1 = arith.constant 0 : i32
    return %arg0, %c0_i32, %c0_i32_0 : i32, i32, i32
  }
  func.func @transform_1(%arg0: i32, %arg1: i32) -> (i32, i32) {
    %c0_i32 = arith.constant 0 : i32
    %c0_i32_0 = arith.constant 0 : i32
    %c0_i32_1 = arith.constant 0 : i32
    return %c0_i32, %c0_i32_0 : i32, i32
  }
  func.func @transform_2(%arg0: i32, %arg1: i32) -> (i32, i32) {
    %c0_i32 = arith.constant 0 : i32
    %c0_i32_0 = arith.constant 0 : i32
    %c0_i32_1 = arith.constant 0 : i32
    return %c0_i32, %c0_i32_0 : i32, i32
  }
  func.func @transform_3(%arg0: i32, %arg1: i32) -> (i32, i32, i32) {
    %c0_i32 = arith.constant 0 : i32
    %c0_i32_0 = arith.constant 0 : i32
    %c0_i32_1 = arith.constant 0 : i32
    return %arg1, %c0_i32, %c0_i32_0 : i32, i32, i32
  }
  func.func @transform_4(%arg0: i32, %arg1: i32) -> (i32, i32, i32) {
    %c0_i32 = arith.constant 0 : i32
    %c0_i32_0 = arith.constant 0 : i32
    %c0_i32_1 = arith.constant 0 : i32
    return %arg1, %c0_i32, %c0_i32_0 : i32, i32, i32
  }
  func.func @transform_5(%arg0: i32, %arg1: i32) -> (i32, i32, i32) {
    %c0_i32 = arith.constant 0 : i32
    %c0_i32_0 = arith.constant 0 : i32
    %c0_i32_1 = arith.constant 0 : i32
    return %arg1, %c0_i32, %c0_i32_0 : i32, i32, i32
  }
  func.func @transform_6(%arg0: i32, %arg1: i32) -> (i32, i32, i32) {
    %c0_i32 = arith.constant 0 : i32
    %c0_i32_0 = arith.constant 0 : i32
    %c0_i32_1 = arith.constant 0 : i32
    return %arg1, %c0_i32, %c0_i32_0 : i32, i32, i32
  }
  func.func @transform_7(%arg0: i32, %arg1: i32) -> (i32, i32, i32) {
    %c0_i32 = arith.constant 0 : i32
    %c0_i32_0 = arith.constant 0 : i32
    %c0_i32_1 = arith.constant 0 : i32
    return %arg1, %c0_i32, %c0_i32_0 : i32, i32, i32
  }
  func.func @transform_8(%arg0: i32, %arg1: i32) -> (i32, i32, i32) {
    %c0_i32 = arith.constant 0 : i32
    %c0_i32_0 = arith.constant 0 : i32
    %c0_i32_1 = arith.constant 0 : i32
    return %arg1, %c0_i32, %c0_i32_0 : i32, i32, i32
  }
  func.func @transform_9(%arg0: i32, %arg1: i32) -> (i32, i32, i32) {
    %c0_i32 = arith.constant 0 : i32
    %c0_i32_0 = arith.constant 0 : i32
    %c0_i32_1 = arith.constant 0 : i32
    return %arg1, %c0_i32, %c0_i32_0 : i32, i32, i32
  }
  func.func @transform_10(%arg0: i32, %arg1: i32) -> (i32, i32, i32) {
    %c0_i32 = arith.constant 0 : i32
    %c0_i32_0 = arith.constant 0 : i32
    %c0_i32_1 = arith.constant 0 : i32
    return %arg1, %c0_i32, %c0_i32_0 : i32, i32, i32
  }
  func.func @transform_11(%arg0: i32, %arg1: i32) -> (i32, i32, i32) {
    %c0_i32 = arith.constant 0 : i32
    %c0_i32_0 = arith.constant 0 : i32
    %c0_i32_1 = arith.constant 0 : i32
    return %arg1, %c0_i32, %c0_i32_0 : i32, i32, i32
  }
  func.func @transform_12(%arg0: i32, %arg1: i32) -> (i32, i32, i32) {
    %c0_i32 = arith.constant 0 : i32
    %c0_i32_0 = arith.constant 0 : i32
    %c0_i32_1 = arith.constant 0 : i32
    return %arg1, %c0_i32, %c0_i32_0 : i32, i32, i32
  }
  func.func @transform_13(%arg0: i32, %arg1: i32) -> (i32, i32, i32) {
    %c0_i32 = arith.constant 0 : i32
    %c0_i32_0 = arith.constant 0 : i32
    %c0_i32_1 = arith.constant 0 : i32
    return %arg1, %c0_i32, %c0_i32_0 : i32, i32, i32
  }
  func.func @transform_14(%arg0: i32, %arg1: i32) -> (i32, i32, i32) {
    %c0_i32 = arith.constant 0 : i32
    %c0_i32_0 = arith.constant 0 : i32
    %c0_i32_1 = arith.constant 0 : i32
    return %arg1, %c0_i32, %c0_i32_0 : i32, i32, i32
  }
  func.func @transform_15(%arg0: i32, %arg1: i32) -> (i32, i32, i32) {
    %c0_i32 = arith.constant 0 : i32
    %c0_i32_0 = arith.constant 0 : i32
    %c0_i32_1 = arith.constant 0 : i32
    return %arg0, %c0_i32, %c0_i32_0 : i32, i32, i32
  }
}

</mosaic_0001>

<llo_original>
// kernel: tpu_custom_call.1
$region0: #{tpu_custom_call.1}
  #allocation0 [shape = 'u32[]', space=smem, size = 0x4, offset = 0x4, fixed_abs, tag = 'smem constant byte address 0x4 - core index']
  #allocation1 [shape = 'u32[144,128]{1,0:T(1,128)}', space=vmem, size = 0x12000, scoped, tag = 'internal scratch']
  #allocation2 [shape = 'f32[256,32]{1,0:T(8,128)}', space=vmem, size = 0x20000, scoped, tag = 'scratch operand']
  #allocation3 [shape = 'f32[256,32]{1,0:T(8,128)}', space=vmem, size = 0x20000, scoped, tag = 'scratch operand']
  %s0 = inlined_call_operand.hbm [shape: f32[2,4,256], index: 0, kind: input, shape index: {}]
  %s1 = inlined_call_operand.vmem [shape: bf16[4,32], index: 1, kind: input, shape index: {}]
  %s2 = inlined_call_operand.hbm [shape: f32[1,32], index: 2, kind: input, shape index: {}]
  %s3 = inlined_call_operand.vmem [shape: bf16[2,32,96], index: 3, kind: input, shape index: {}]
  %s4 = inlined_call_operand.hbm [shape: f32[2,1,96], index: 4, kind: input, shape index: {}]
  %s5 = inlined_call_operand.vmem [shape: bf16[2,32,32], index: 5, kind: input, shape index: {}]
  %s6 = inlined_call_operand.hbm [shape: f32[2,1,32], index: 6, kind: input, shape index: {}]
  %s7 = inlined_call_operand.vmem [shape: bf16[2,32,64], index: 7, kind: input, shape index: {}]
  %s8 = inlined_call_operand.hbm [shape: f32[2,1,64], index: 8, kind: input, shape index: {}]
  %s9 = inlined_call_operand.vmem [shape: bf16[2,64,32], index: 9, kind: input, shape index: {}]
  %s10 = inlined_call_operand.vmem [shape: f32[2,1,32], index: 10, kind: input, shape index: {}]
  %s11 = inlined_call_operand.vmem [shape: f32[2,1,32], index: 11, kind: input, shape index: {}]
  %s12 = inlined_call_operand.vmem [shape: f32[2,1,32], index: 12, kind: input, shape index: {}]
  %s13 = inlined_call_operand.vmem [shape: f32[2,1,32], index: 13, kind: input, shape index: {}]
  %s14 = inlined_call_operand.vmem [shape: f32[2,1,32], index: 14, kind: input, shape index: {}]
  %s15 = inlined_call_operand.hbm [shape: f32[2,32,256], index: 15, kind: output, shape index: {}]
  %s16 = sld [smem:[#allocation0]]
  $region121: #{tpu_custom_call.1} parent=0
    _
  %s18 = ssub.s32 1, %s16
  %s19 = scalar_select 0, %s18, %s16
  $region1: #{tpu_custom_call.1} parent=0
    #allocation4 [shape = 'u8[8192]{0}', space=vmem, size = 0x2000, scoped, tag = 'input window, operand 0']
    #allocation5 [shape = 's32[2]{0}', space=sflag, size = 0x8, scoped, tag = 'scoped memory for tpu_custom_call.1']
    #allocation6 [shape = 's32[2]{0}', space=sflag, size = 0x8, scoped, tag = 'scoped memory for tpu_custom_call.1']
    #allocation7 [shape = 'u8[512]{0}', space=vmem, size = 0x400, scoped, tag = 'input window, operand 2, single buffered']
    #allocation8 [shape = 's32[1]{0}', space=sflag, size = 0x4, scoped, tag = 'scoped memory for tpu_custom_call.1']
    #allocation9 [shape = 'u8[1024]{0}', space=vmem, size = 0x400, scoped, tag = 'input window, operand 4']
    #allocation10 [shape = 'u8[1024]{0}', space=vmem, size = 0x400, scoped, tag = 'input window, operand 6']
    #allocation11 [shape = 'u8[1024]{0}', space=vmem, size = 0x400, scoped, tag = 'input window, operand 8']
    #allocation12 [shape = 'u8[65536]{0}', space=vmem, size = 0x10000, scoped, tag = 'output window, operand 0']
    %20 = vsyncpa [#allocation5], 0
    %s21 = scalar_lea.sflag [#allocation5], 1
    %22 = vsyncpa %s21, 0
    %23 = vsyncpa [#allocation8], 0
    %24 = vsyncpa [#allocation6], 0
    %s25 = scalar_lea.sflag [#allocation6], 1
    %26 = vsyncpa %s25, 0
    loop: start=0, step=1, limit=6
    $region2: #{tpu_custom_call.1} parent=1 // loop_pre_header
      _
    $region3: #{tpu_custom_call.1} parent=1 // loop_header
      %s28 = sphi 0, %s32
      %p29 = scmp.ge.s32.totalorder %s28, 6
      %s35 = sphi 0, %s47
      %s36 = sphi 0, %s43
      %s37 = sphi 0, %s35
      %s38 = sphi 0, %s36
      %s39 = sphi 0, %s37
      %s40 = sphi 0, %s38
      %s50 = sphi 0, %s52
      %s53 = sphi 0, %s50
      %s54 = sphi 0, %s53
      %s70 = sphi 0, %s54
      %s74 = sphi 0, %s74
      %s76 = sphi 0, %s74
      %s77 = sphi 0, %s76
      %s91 = sphi 0, %s77
      %s95 = sphi 0, %s95
      %s97 = sphi 0, %s95
      %s98 = sphi 0, %s97
      %s112 = sphi 0, %s98
      %s118 = sphi 0, %s120
      %s121 = sphi 0, %s118
      %s122 = sphi 0, %s121
      %s138 = sphi 0, %s122
      %s144 = sphi 0, %s146
      %s147 = sphi 0, %s144
      %s148 = sphi 0, %s147
      %s164 = sphi 0, %s148
      %s170 = sphi 0, %s172
      %s173 = sphi 0, %s170
      %s174 = sphi 0, %s173
      %s190 = sphi 0, %s174
      %s196 = sphi 0, %s198
      %s199 = sphi 0, %s196
      %s200 = sphi 0, %s199
      %s216 = sphi 0, %s200
      %s222 = sphi 0, %s224
      %s225 = sphi 0, %s222
      %s226 = sphi 0, %s225
      %s242 = sphi 0, %s226
      %s248 = sphi 0, %s250
      %s251 = sphi 0, %s248
      %s252 = sphi 0, %s251
      %s268 = sphi 0, %s252
      %s274 = sphi 0, %s276
      %s277 = sphi 0, %s274
      %s278 = sphi 0, %s277
      %s294 = sphi 0, %s278
      %s300 = sphi 0, %s302
      %s303 = sphi 0, %s300
      %s304 = sphi 0, %s303
      %s320 = sphi 0, %s304
      %s326 = sphi 0, %s328
      %s329 = sphi 0, %s326
      %s330 = sphi 0, %s329
      %s346 = sphi 0, %s330
      %s352 = sphi 0, %s354
      %s355 = sphi 0, %s352
      %s356 = sphi 0, %s355
      %s372 = sphi 0, %s356
      %s378 = sphi 0, %s380
      %s381 = sphi 0, %s378
      %s382 = sphi 0, %s381
      %s398 = sphi 0, %s382
      %s404 = sphi 0, %s406
      %s407 = sphi 0, %s404
      %s408 = sphi 0, %s407
      %s424 = sphi 0, %s408
      %s430 = sphi 0, %s432
      %s433 = sphi 0, %s430
      %s434 = sphi 0, %s433
      %s450 = sphi 0, %s434
    $region4: #{tpu_custom_call.1} parent=1 // loop_header_branch
      %31 = sbr.rel (%p29) target = $region8
    $region5: #{tpu_custom_call.1} parent=1 // loop_body
      %s33 = ssub.s32 %s28, 1
      %s34 = ssub.s32 %s28, 2
      %s41 = sadd.s32 1, %s36
      %p42 = scmp.ge.s32.totalorder %s41, 2
      %s43 = scalar_select %p42, 0, %s41
      %s44 = sadd.s32 1, %s35
      %s45 = scalar_select %p42, %s44, %s35
      %p46 = scmp.ge.s32.totalorder %s45, 2
      %s47 = scalar_select %p46, 0, %s45
      %s48 = ssub.s32 %s35, %s47
      %p49 = scmp.eq.s32.totalorder %s48, 0
      %s51 = sadd.s32 %s50, 1
      %s52 = scalar_select %p49, %s50, %s51
      %p55 = pneg %p49
      %p56 = scmp.eq.s32.totalorder %s28, 3
      %p57 = por %p55, %p56
      %p58 = scmp.ne.s32.totalorder %s50, %s53
      %p59 = scmp.eq.s32.totalorder %s28, 0
      %p60 = por %p58, %p59
      %p61 = scmp.ne.s32.totalorder %s50, %s53
      %p62 = scmp.eq.s32.totalorder %s33, 3
      %p63 = por %p61, %p62
      %p64 = scmp.ne.s32.totalorder %s53, %s54
      %p65 = scmp.eq.s32.totalorder %s33, 0
      %p66 = por %p64, %p65
      %p67 = scmp.ne.s32.totalorder %s53, %s54
      %p68 = scmp.eq.s32.totalorder %s34, 3
      %p69 = por %p67, %p68
      %p71 = scmp.ne.s32.totalorder %s54, %s70
      %p72 = scmp.eq.s32.totalorder %s34, 0
      %p73 = por %p71, %p72
      %s75 = sadd.s32 %s74, 1
      %p78 = scmp.eq.s32.totalorder %s28, 3
      %p79 = scmp.ne.s32.totalorder %s74, %s76
      %p80 = scmp.eq.s32.totalorder %s28, 0
      %p81 = por %p79, %p80
      %p82 = scmp.ne.s32.totalorder %s74, %s76
      %p83 = scmp.eq.s32.totalorder %s33, 3
      %p84 = por %p82, %p83
      %p85 = scmp.ne.s32.totalorder %s76, %s77
      %p86 = scmp.eq.s32.totalorder %s33, 0
      %p87 = por %p85, %p86
      %p88 = scmp.ne.s32.totalorder %s76, %s77
      %p89 = scmp.eq.s32.totalorder %s34, 3
      %p90 = por %p88, %p89
      %p92 = scmp.ne.s32.totalorder %s77, %s91
      %p93 = scmp.eq.s32.totalorder %s34, 0
      %p94 = por %p92, %p93
      %s96 = sadd.s32 %s95, 1
      %p99 = scmp.eq.s32.totalorder %s28, 3
      %p100 = scmp.ne.s32.totalorder %s95, %s97
      %p101 = scmp.eq.s32.totalorder %s28, 0
      %p102 = por %p100, %p101
      %p103 = scmp.ne.s32.totalorder %s95, %s97
      %p104 = scmp.eq.s32.totalorder %s33, 3
      %p105 = por %p103, %p104
      %p106 = scmp.ne.s32.totalorder %s97, %s98
      %p107 = scmp.eq.s32.totalorder %s33, 0
      %p108 = por %p106, %p107
      %p109 = scmp.ne.s32.totalorder %s97, %s98
      %p110 = scmp.eq.s32.totalorder %s34, 3
      %p111 = por %p109, %p110
      %p113 = scmp.ne.s32.totalorder %s98, %s112
      %p114 = scmp.eq.s32.totalorder %s34, 0
      %p115 = por %p113, %p114
      %s116 = ssub.s32 %s36, %s43
      %p117 = scmp.eq.s32.totalorder %s116, 0
      %s119 = sadd.s32 %s118, 1
      %s120 = scalar_select %p117, %s118, %s119
      %p123 = pneg %p117
      %p124 = scmp.eq.s32.totalorder %s28, 3
      %p125 = por %p123, %p124
      %p126 = scmp.ne.s32.totalorder %s118, %s121
      %p127 = scmp.eq.s32.totalorder %s28, 0
      %p128 = por %p126, %p127
      %p129 = scmp.ne.s32.totalorder %s118, %s121
      %p130 = scmp.eq.s32.totalorder %s33, 3
      %p131 = por %p129, %p130
      %p132 = scmp.ne.s32.totalorder %s121, %s122
      %p133 = scmp.eq.s32.totalorder %s33, 0
      %p134 = por %p132, %p133
      %p135 = scmp.ne.s32.totalorder %s121, %s122
      %p136 = scmp.eq.s32.totalorder %s34, 3
      %p137 = por %p135, %p136
      %p139 = scmp.ne.s32.totalorder %s122, %s138
      %p140 = scmp.eq.s32.totalorder %s34, 0
      %p141 = por %p139, %p140
      %s142 = ssub.s32 %s36, %s43
      %p143 = scmp.eq.s32.totalorder %s142, 0
      %s145 = sadd.s32 %s144, 1
      %s146 = scalar_select %p143, %s144, %s145
      %p149 = pneg %p143
      %p150 = scmp.eq.s32.totalorder %s28, 3
      %p151 = por %p149, %p150
      %p152 = scmp.ne.s32.totalorder %s144, %s147
      %p153 = scmp.eq.s32.totalorder %s28, 0
      %p154 = por %p152, %p153
      %p155 = scmp.ne.s32.totalorder %s144, %s147
      %p156 = scmp.eq.s32.totalorder %s33, 3
      %p157 = por %p155, %p156
      %p158 = scmp.ne.s32.totalorder %s147, %s148
      %p159 = scmp.eq.s32.totalorder %s33, 0
      %p160 = por %p158, %p159
      %p161 = scmp.ne.s32.totalorder %s147, %s148
      %p162 = scmp.eq.s32.totalorder %s34, 3
      %p163 = por %p161, %p162
      %p165 = scmp.ne.s32.totalorder %s148, %s164
      %p166 = scmp.eq.s32.totalorder %s34, 0
      %p167 = por %p165, %p166
      %s168 = ssub.s32 %s36, %s43
      %p169 = scmp.eq.s32.totalorder %s168, 0
      %s171 = sadd.s32 %s170, 1
      %s172 = scalar_select %p169, %s170, %s171
      %p175 = pneg %p169
      %p176 = scmp.eq.s32.totalorder %s28, 3
      %p177 = por %p175, %p176
      %p178 = scmp.ne.s32.totalorder %s170, %s173
      %p179 = scmp.eq.s32.totalorder %s28, 0
      %p180 = por %p178, %p179
      %p181 = scmp.ne.s32.totalorder %s170, %s173
      %p182 = scmp.eq.s32.totalorder %s33, 3
      %p183 = por %p181, %p182
      %p184 = scmp.ne.s32.totalorder %s173, %s174
      %p185 = scmp.eq.s32.totalorder %s33, 0
      %p186 = por %p184, %p185
      %p187 = scmp.ne.s32.totalorder %s173, %s174
      %p188 = scmp.eq.s32.totalorder %s34, 3
      %p189 = por %p187, %p188
      %p191 = scmp.ne.s32.totalorder %s174, %s190
      %p192 = scmp.eq.s32.totalorder %s34, 0
      %p193 = por %p191, %p192
      %s194 = ssub.s32 %s36, %s43
      %p195 = scmp.eq.s32.totalorder %s194, 0
      %s197 = sadd.s32 %s196, 1
      %s198 = scalar_select %p195, %s196, %s197
      %p201 = pneg %p195
      %p202 = scmp.eq.s32.totalorder %s28, 3
      %p203 = por %p201, %p202
      %p204 = scmp.ne.s32.totalorder %s196, %s199
      %p205 = scmp.eq.s32.totalorder %s28, 0
      %p206 = por %p204, %p205
      %p207 = scmp.ne.s32.totalorder %s196, %s199
      %p208 = scmp.eq.s32.totalorder %s33, 3
      %p209 = por %p207, %p208
      %p210 = scmp.ne.s32.totalorder %s199, %s200
      %p211 = scmp.eq.s32.totalorder %s33, 0
      %p212 = por %p210, %p211
      %p213 = scmp.ne.s32.totalorder %s199, %s200
      %p214 = scmp.eq.s32.totalorder %s34, 3
      %p215 = por %p213, %p214
      %p217 = scmp.ne.s32.totalorder %s200, %s216
      %p218 = scmp.eq.s32.totalorder %s34, 0
      %p219 = por %p217, %p218
      %s220 = ssub.s32 %s36, %s43
      %p221 = scmp.eq.s32.totalorder %s220, 0
      %s223 = sadd.s32 %s222, 1
      %s224 = scalar_select %p221, %s222, %s223
      %p227 = pneg %p221
      %p228 = scmp.eq.s32.totalorder %s28, 3
      %p229 = por %p227, %p228
      %p230 = scmp.ne.s32.totalorder %s222, %s225
      %p231 = scmp.eq.s32.totalorder %s28, 0
      %p232 = por %p230, %p231
      %p233 = scmp.ne.s32.totalorder %s222, %s225
      %p234 = scmp.eq.s32.totalorder %s33, 3
      %p235 = por %p233, %p234
      %p236 = scmp.ne.s32.totalorder %s225, %s226
      %p237 = scmp.eq.s32.totalorder %s33, 0
      %p238 = por %p236, %p237
      %p239 = scmp.ne.s32.totalorder %s225, %s226
      %p240 = scmp.eq.s32.totalorder %s34, 3
      %p241 = por %p239, %p240
      %p243 = scmp.ne.s32.totalorder %s226, %s242
      %p244 = scmp.eq.s32.totalorder %s34, 0
      %p245 = por %p243, %p244
      %s246 = ssub.s32 %s36, %s43
      %p247 = scmp.eq.s32.totalorder %s246, 0
      %s249 = sadd.s32 %s248, 1
      %s250 = scalar_select %p247, %s248, %s249
      %p253 = pneg %p247
      %p254 = scmp.eq.s32.totalorder %s28, 3
      %p255 = por %p253, %p254
      %p256 = scmp.ne.s32.totalorder %s248, %s251
      %p257 = scmp.eq.s32.totalorder %s28, 0
      %p258 = por %p256, %p257
      %p259 = scmp.ne.s32.totalorder %s248, %s251
      %p260 = scmp.eq.s32.totalorder %s33, 3
      %p261 = por %p259, %p260
      %p262 = scmp.ne.s32.totalorder %s251, %s252
      %p263 = scmp.eq.s32.totalorder %s33, 0
      %p264 = por %p262, %p263
      %p265 = scmp.ne.s32.totalorder %s251, %s252
      %p266 = scmp.eq.s32.totalorder %s34, 3
      %p267 = por %p265, %p266
      %p269 = scmp.ne.s32.totalorder %s252, %s268
      %p270 = scmp.eq.s32.totalorder %s34, 0
      %p271 = por %p269, %p270
      %s272 = ssub.s32 %s36, %s43
      %p273 = scmp.eq.s32.totalorder %s272, 0
      %s275 = sadd.s32 %s274, 1
      %s276 = scalar_select %p273, %s274, %s275
      %p279 = pneg %p273
      %p280 = scmp.eq.s32.totalorder %s28, 3
      %p281 = por %p279, %p280
      %p282 = scmp.ne.s32.totalorder %s274, %s277
      %p283 = scmp.eq.s32.totalorder %s28, 0
      %p284 = por %p282, %p283
      %p285 = scmp.ne.s32.totalorder %s274, %s277
      %p286 = scmp.eq.s32.totalorder %s33, 3
      %p287 = por %p285, %p286
      %p288 = scmp.ne.s32.totalorder %s277, %s278
      %p289 = scmp.eq.s32.totalorder %s33, 0
      %p290 = por %p288, %p289
      %p291 = scmp.ne.s32.totalorder %s277, %s278
      %p292 = scmp.eq.s32.totalorder %s34, 3
      %p293 = por %p291, %p292
      %p295 = scmp.ne.s32.totalorder %s278, %s294
      %p296 = scmp.eq.s32.totalorder %s34, 0
      %p297 = por %p295, %p296
      %s298 = ssub.s32 %s36, %s43
      %p299 = scmp.eq.s32.totalorder %s298, 0
      %s301 = sadd.s32 %s300, 1
      %s302 = scalar_select %p299, %s300, %s301
      %p305 = pneg %p299
      %p306 = scmp.eq.s32.totalorder %s28, 3
      %p307 = por %p305, %p306
      %p308 = scmp.ne.s32.totalorder %s300, %s303
      %p309 = scmp.eq.s32.totalorder %s28, 0
      %p310 = por %p308, %p309
      %p311 = scmp.ne.s32.totalorder %s300, %s303
      %p312 = scmp.eq.s32.totalorder %s33, 3
      %p313 = por %p311, %p312
      %p314 = scmp.ne.s32.totalorder %s303, %s304
      %p315 = scmp.eq.s32.totalorder %s33, 0
      %p316 = por %p314, %p315
      %p317 = scmp.ne.s32.totalorder %s303, %s304
      %p318 = scmp.eq.s32.totalorder %s34, 3
      %p319 = por %p317, %p318
      %p321 = scmp.ne.s32.totalorder %s304, %s320
      %p322 = scmp.eq.s32.totalorder %s34, 0
      %p323 = por %p321, %p322
      %s324 = ssub.s32 %s36, %s43
      %p325 = scmp.eq.s32.totalorder %s324, 0
      %s327 = sadd.s32 %s326, 1
      %s328 = scalar_select %p325, %s326, %s327
      %p331 = pneg %p325
      %p332 = scmp.eq.s32.totalorder %s28, 3
      %p333 = por %p331, %p332
      %p334 = scmp.ne.s32.totalorder %s326, %s329
      %p335 = scmp.eq.s32.totalorder %s28, 0
      %p336 = por %p334, %p335
      %p337 = scmp.ne.s32.totalorder %s326, %s329
      %p338 = scmp.eq.s32.totalorder %s33, 3
      %p339 = por %p337, %p338
      %p340 = scmp.ne.s32.totalorder %s329, %s330
      %p341 = scmp.eq.s32.totalorder %s33, 0
      %p342 = por %p340, %p341
      %p343 = scmp.ne.s32.totalorder %s329, %s330
      %p344 = scmp.eq.s32.totalorder %s34, 3
      %p345 = por %p343, %p344
      %p347 = scmp.ne.s32.totalorder %s330, %s346
      %p348 = scmp.eq.s32.totalorder %s34, 0
      %p349 = por %p347, %p348
      %s350 = ssub.s32 %s36, %s43
      %p351 = scmp.eq.s32.totalorder %s350, 0
      %s353 = sadd.s32 %s352, 1
      %s354 = scalar_select %p351, %s352, %s353
      %p357 = pneg %p351
      %p358 = scmp.eq.s32.totalorder %s28, 3
      %p359 = por %p357, %p358
      %p360 = scmp.ne.s32.totalorder %s352, %s355
      %p361 = scmp.eq.s32.totalorder %s28, 0
      %p362 = por %p360, %p361
      %p363 = scmp.ne.s32.totalorder %s352, %s355
      %p364 = scmp.eq.s32.totalorder %s33, 3
      %p365 = por %p363, %p364
      %p366 = scmp.ne.s32.totalorder %s355, %s356
      %p367 = scmp.eq.s32.totalorder %s33, 0
      %p368 = por %p366, %p367
      %p369 = scmp.ne.s32.totalorder %s355, %s356
      %p370 = scmp.eq.s32.totalorder %s34, 3
      %p371 = por %p369, %p370
      %p373 = scmp.ne.s32.totalorder %s356, %s372
      %p374 = scmp.eq.s32.totalorder %s34, 0
      %p375 = por %p373, %p374
      %s376 = ssub.s32 %s36, %s43
      %p377 = scmp.eq.s32.totalorder %s376, 0
      %s379 = sadd.s32 %s378, 1
      %s380 = scalar_select %p377, %s378, %s379
      %p383 = pneg %p377
      %p384 = scmp.eq.s32.totalorder %s28, 3
      %p385 = por %p383, %p384
      %p386 = scmp.ne.s32.totalorder %s378, %s381
      %p387 = scmp.eq.s32.totalorder %s28, 0
      %p388 = por %p386, %p387
      %p389 = scmp.ne.s32.totalorder %s378, %s381
      %p390 = scmp.eq.s32.totalorder %s33, 3
      %p391 = por %p389, %p390
      %p392 = scmp.ne.s32.totalorder %s381, %s382
      %p393 = scmp.eq.s32.totalorder %s33, 0
      %p394 = por %p392, %p393
      %p395 = scmp.ne.s32.totalorder %s381, %s382
      %p396 = scmp.eq.s32.totalorder %s34, 3
      %p397 = por %p395, %p396
      %p399 = scmp.ne.s32.totalorder %s382, %s398
      %p400 = scmp.eq.s32.totalorder %s34, 0
      %p401 = por %p399, %p400
      %s402 = ssub.s32 %s36, %s43
      %p403 = scmp.eq.s32.totalorder %s402, 0
      %s405 = sadd.s32 %s404, 1
      %s406 = scalar_select %p403, %s404, %s405
      %p409 = pneg %p403
      %p410 = scmp.eq.s32.totalorder %s28, 3
      %p411 = por %p409, %p410
      %p412 = scmp.ne.s32.totalorder %s404, %s407
      %p413 = scmp.eq.s32.totalorder %s28, 0
      %p414 = por %p412, %p413
      %p415 = scmp.ne.s32.totalorder %s404, %s407
      %p416 = scmp.eq.s32.totalorder %s33, 3
      %p417 = por %p415, %p416
      %p418 = scmp.ne.s32.totalorder %s407, %s408
      %p419 = scmp.eq.s32.totalorder %s33, 0
      %p420 = por %p418, %p419
      %p421 = scmp.ne.s32.totalorder %s407, %s408
      %p422 = scmp.eq.s32.totalorder %s34, 3
      %p423 = por %p421, %p422
      %p425 = scmp.ne.s32.totalorder %s408, %s424
      %p426 = scmp.eq.s32.totalorder %s34, 0
      %p427 = por %p425, %p426
      %s428 = ssub.s32 %s35, %s47
      %p429 = scmp.eq.s32.totalorder %s428, 0
      %s431 = sadd.s32 %s430, 1
      %s432 = scalar_select %p429, %s430, %s431
      %p435 = pneg %p429
      %p436 = scmp.eq.s32.totalorder %s28, 3
      %p437 = por %p435, %p436
      %p438 = scmp.ne.s32.totalorder %s430, %s433
      %p439 = scmp.eq.s32.totalorder %s28, 0
      %p440 = por %p438, %p439
      %p441 = scmp.ne.s32.totalorder %s430, %s433
      %p442 = scmp.eq.s32.totalorder %s33, 3
      %p443 = por %p441, %p442
      %p444 = scmp.ne.s32.totalorder %s433, %s434
      %p445 = scmp.eq.s32.totalorder %s33, 0
      %p446 = por %p444, %p445
      %p447 = scmp.ne.s32.totalorder %s433, %s434
      %p448 = scmp.eq.s32.totalorder %s34, 3
      %p449 = por %p447, %p448
      %p451 = scmp.ne.s32.totalorder %s434, %s450
      %p452 = scmp.eq.s32.totalorder %s34, 0
      %p453 = por %p451, %p452
      %p454 = scmp.le.s32.totalorder 1, %s28
      %p455 = scmp.lt.s32.totalorder %s28, 5
      %p456 = pnand %p454, %p455
      %p457 = pneg %p456
      // Predicated region
      $region9: #{tpu_custom_call.1} parent=5 // pred_check
        _
      $region10: #{tpu_custom_call.1} parent=5 // pred_check_branch
        %459 = sbr.rel (%p456) target = $region12
      $region11: #{tpu_custom_call.1} parent=5 // pred_region
        %s460 = ssub.s32 %s28, 1
        // Predicated region
        $region13: #{tpu_custom_call.1} parent=11 // pred_check
          %p461 = pneg %p87
        $region14: #{tpu_custom_call.1} parent=11 // pred_check_branch
          %463 = sbr.rel (%p461) target = $region16
        $region15: #{tpu_custom_call.1} parent=11 // pred_region
          _
        $region16: #{tpu_custom_call.1} parent=11 // pred_fallthru
          _
        // Predicated region
        $region17: #{tpu_custom_call.1} parent=11 // pred_check
          %p464 = pneg %p108
        $region18: #{tpu_custom_call.1} parent=11 // pred_check_branch
          %466 = sbr.rel (%p464) target = $region20
        $region19: #{tpu_custom_call.1} parent=11 // pred_region
          %s468 = ssub.s32 16, 16
          %469 = vsyncadd [#allocation8], %s468
          %s471 = sshll.u32 [#allocation7], 4
          %s472 = int_to_ptr.vmem [resolvable:$true] %s471
          %474 = dma.hbm_to_vmem [thread:$0]  %s2, 16, %s472, [#allocation8]
        $region20: #{tpu_custom_call.1} parent=11 // pred_fallthru
          _
      $region12: #{tpu_custom_call.1} parent=5 // pred_fallthru
        _
      %p475 = scmp.lt.s32.totalorder %s28, 4
      // Predicated region
      $region21: #{tpu_custom_call.1} parent=5 // pred_check
        %p476 = pneg %p475
      $region22: #{tpu_custom_call.1} parent=5 // pred_check_branch
        %478 = sbr.rel (%p476) target = $region24
      $region23: #{tpu_custom_call.1} parent=5 // pred_region
        // Predicated region
        $region25: #{tpu_custom_call.1} parent=23 // pred_check
          %p479 = pneg %p60
        $region26: #{tpu_custom_call.1} parent=23 // pred_check_branch
          %481 = sbr.rel (%p479) target = $region28
        $region27: #{tpu_custom_call.1} parent=23 // pred_region
          %s482 = sand.u32 %s28, 1
          %s483 = scalar_lea.sflag [#allocation5], %s482
          %s484 = sand.u32 %s50, 1
          %s485 = smul.addr %s484, 8
          %s486 = scalar_lea.vmem [#allocation4], %s485
          %s488 = ssub.s32 128, 128
          %489 = vsyncadd %s483, %s488
          %s490 = smul.addr %s35, 2
          %s491 = smul.addr %s490, 64
          %s492 = scalar_lea.hbm %s0, %s491
          %s494 = sshll.u32 %s486, 4
          %s495 = int_to_ptr.vmem [resolvable:$true] %s494
          %497 = dma.hbm_to_vmem [thread:$0]  %s492, 128, %s495, %s483
        $region28: #{tpu_custom_call.1} parent=23 // pred_fallthru
          _
        // Predicated region
        $region29: #{tpu_custom_call.1} parent=23 // pred_check
          %p498 = pneg %p128
        $region30: #{tpu_custom_call.1} parent=23 // pred_check_branch
          %500 = sbr.rel (%p498) target = $region32
        $region31: #{tpu_custom_call.1} parent=23 // pred_region
          %p501 = scmp.lt.s32.totalorder %s36, 1
          %s502 = scalar_select %p501, %s36, 1
          %s503 = smul.addr %s502, 4
          %s504 = smul.addr %s503, 4
          %s505 = scalar_lea.vmem %s3, %s504
        $region32: #{tpu_custom_call.1} parent=23 // pred_fallthru
          _
        // Predicated region
        $region33: #{tpu_custom_call.1} parent=23 // pred_check
          %p506 = pneg %p154
        $region34: #{tpu_custom_call.1} parent=23 // pred_check_branch
          %508 = sbr.rel (%p506) target = $region36
        $region35: #{tpu_custom_call.1} parent=23 // pred_region
          %s509 = sand.u32 %s28, 1
          %s510 = scalar_lea.sflag [#allocation5], %s509
          %s511 = sand.u32 %s144, 1
          %s512 = scalar_lea.vmem [#allocation9], %s511
          %s514 = ssub.s32 16, 16
          %515 = vsyncadd %s510, %s514
          %s516 = smul.addr %s36, 16
          %s517 = scalar_lea.hbm %s4, %s516
          %s519 = sshll.u32 %s512, 4
          %s520 = int_to_ptr.vmem [resolvable:$true] %s519
          %522 = dma.hbm_to_vmem [thread:$0]  %s517, 16, %s520, %s510
        $region36: #{tpu_custom_call.1} parent=23 // pred_fallthru
          _
        // Predicated region
        $region37: #{tpu_custom_call.1} parent=23 // pred_check
          %p523 = pneg %p180
        $region38: #{tpu_custom_call.1} parent=23 // pred_check_branch
          %525 = sbr.rel (%p523) target = $region40
        $region39: #{tpu_custom_call.1} parent=23 // pred_region
          %p526 = scmp.lt.s32.totalorder %s36, 1
          %s527 = scalar_select %p526, %s36, 1
          %s528 = smul.addr %s527, 4
          %s529 = smul.addr %s528, 4
          %s530 = scalar_lea.vmem %s5, %s529
        $region40: #{tpu_custom_call.1} parent=23 // pred_fallthru
          _
        // Predicated region
        $region41: #{tpu_custom_call.1} parent=23 // pred_check
          %p531 = pneg %p206
        $region42: #{tpu_custom_call.1} parent=23 // pred_check_branch
          %533 = sbr.rel (%p531) target = $region44
        $region43: #{tpu_custom_call.1} parent=23 // pred_region
          %s534 = sand.u32 %s28, 1
          %s535 = scalar_lea.sflag [#allocation5], %s534
          %s536 = sand.u32 %s196, 1
          %s537 = scalar_lea.vmem [#allocation10], %s536
          %s539 = ssub.s32 16, 16
          %540 = vsyncadd %s535, %s539
          %s541 = smul.addr %s36, 16
          %s542 = scalar_lea.hbm %s6, %s541
          %s544 = sshll.u32 %s537, 4
          %s545 = int_to_ptr.vmem [resolvable:$true] %s544
          %547 = dma.hbm_to_vmem [thread:$0]  %s542, 16, %s545, %s535
        $region44: #{tpu_custom_call.1} parent=23 // pred_fallthru
          _
        // Predicated region
        $region45: #{tpu_custom_call.1} parent=23 // pred_check
          %p548 = pneg %p232
        $region46: #{tpu_custom_call.1} parent=23 // pred_check_branch
          %550 = sbr.rel (%p548) target = $region48
        $region47: #{tpu_custom_call.1} parent=23 // pred_region
          %p551 = scmp.lt.s32.totalorder %s36, 1
          %s552 = scalar_select %p551, %s36, 1
          %s553 = smul.addr %s552, 4
          %s554 = smul.addr %s553, 4
          %s555 = scalar_lea.vmem %s7, %s554
        $region48: #{tpu_custom_call.1} parent=23 // pred_fallthru
          _
        // Predicated region
        $region49: #{tpu_custom_call.1} parent=23 // pred_check
          %p556 = pneg %p258
        $region50: #{tpu_custom_call.1} parent=23 // pred_check_branch
          %558 = sbr.rel (%p556) target = $region52
        $region51: #{tpu_custom_call.1} parent=23 // pred_region
          %s559 = sand.u32 %s28, 1
          %s560 = scalar_lea.sflag [#allocation5], %s559
          %s561 = sand.u32 %s248, 1
          %s562 = scalar_lea.vmem [#allocation11], %s561
          %s564 = ssub.s32 16, 16
          %565 = vsyncadd %s560, %s564
          %s566 = smul.addr %s36, 16
          %s567 = scalar_lea.hbm %s8, %s566
          %s569 = sshll.u32 %s562, 4
          %s570 = int_to_ptr.vmem [resolvable:$true] %s569
          %572 = dma.hbm_to_vmem [thread:$0]  %s567, 16, %s570, %s560
        $region52: #{tpu_custom_call.1} parent=23 // pred_fallthru
          _
        // Predicated region
        $region53: #{tpu_custom_call.1} parent=23 // pred_check
          %p573 = pneg %p284
        $region54: #{tpu_custom_call.1} parent=23 // pred_check_branch
          %575 = sbr.rel (%p573) target = $region56
        $region55: #{tpu_custom_call.1} parent=23 // pred_region
          %p576 = scmp.lt.s32.totalorder %s36, 1
          %s577 = scalar_select %p576, %s36, 1
          %s578 = smul.addr %s577, 8
          %s579 = smul.addr %s578, 4
          %s580 = scalar_lea.vmem %s9, %s579
        $region56: #{tpu_custom_call.1} parent=23 // pred_fallthru
          _
        // Predicated region
        $region57: #{tpu_custom_call.1} parent=23 // pred_check
          %p581 = pneg %p310
        $region58: #{tpu_custom_call.1} parent=23 // pred_check_branch
          %583 = sbr.rel (%p581) target = $region60
        $region59: #{tpu_custom_call.1} parent=23 // pred_region
          %p584 = scmp.lt.s32.totalorder %s36, 1
          %s585 = scalar_select %p584, %s36, 1
          %s586 = scalar_lea.vmem %s10, %s585
        $region60: #{tpu_custom_call.1} parent=23 // pred_fallthru
          _
        // Predicated region
        $region61: #{tpu_custom_call.1} parent=23 // pred_check
          %p587 = pneg %p336
        $region62: #{tpu_custom_call.1} parent=23 // pred_check_branch
          %589 = sbr.rel (%p587) target = $region64
        $region63: #{tpu_custom_call.1} parent=23 // pred_region
          %p590 = scmp.lt.s32.totalorder %s36, 1
          %s591 = scalar_select %p590, %s36, 1
          %s592 = scalar_lea.vmem %s11, %s591
        $region64: #{tpu_custom_call.1} parent=23 // pred_fallthru
          _
        // Predicated region
        $region65: #{tpu_custom_call.1} parent=23 // pred_check
          %p593 = pneg %p362
        $region66: #{tpu_custom_call.1} parent=23 // pred_check_branch
          %595 = sbr.rel (%p593) target = $region68
        $region67: #{tpu_custom_call.1} parent=23 // pred_region
          %p596 = scmp.lt.s32.totalorder %s36, 1
          %s597 = scalar_select %p596, %s36, 1
          %s598 = scalar_lea.vmem %s12, %s597
        $region68: #{tpu_custom_call.1} parent=23 // pred_fallthru
          _
        // Predicated region
        $region69: #{tpu_custom_call.1} parent=23 // pred_check
          %p599 = pneg %p388
        $region70: #{tpu_custom_call.1} parent=23 // pred_check_branch
          %601 = sbr.rel (%p599) target = $region72
        $region71: #{tpu_custom_call.1} parent=23 // pred_region
          %p602 = scmp.lt.s32.totalorder %s36, 1
          %s603 = scalar_select %p602, %s36, 1
          %s604 = scalar_lea.vmem %s13, %s603
        $region72: #{tpu_custom_call.1} parent=23 // pred_fallthru
          _
        // Predicated region
        $region73: #{tpu_custom_call.1} parent=23 // pred_check
          %p605 = pneg %p414
        $region74: #{tpu_custom_call.1} parent=23 // pred_check_branch
          %607 = sbr.rel (%p605) target = $region76
        $region75: #{tpu_custom_call.1} parent=23 // pred_region
          %p608 = scmp.lt.s32.totalorder %s36, 1
          %s609 = scalar_select %p608, %s36, 1
          %s610 = scalar_lea.vmem %s14, %s609
        $region76: #{tpu_custom_call.1} parent=23 // pred_fallthru
          _
      $region24: #{tpu_custom_call.1} parent=5 // pred_fallthru
        _
      %p611 = scmp.le.s32.totalorder 1, %s28
      %p612 = scmp.lt.s32.totalorder %s28, 5
      %p613 = pnand %p611, %p612
      %p614 = pneg %p613
      // Predicated region
      $region77: #{tpu_custom_call.1} parent=5 // pred_check
        _
      $region78: #{tpu_custom_call.1} parent=5 // pred_check_branch
        %616 = sbr.rel (%p613) target = $region80
      $region79: #{tpu_custom_call.1} parent=5 // pred_region
        %s617 = ssub.s32 %s28, 1
        %s618 = sand.u32 %s33, 1
        %s619 = scalar_lea.sflag [#allocation5], %s618
        %s620 = sand.u32 %s53, 1
        %s621 = smul.addr %s620, 8
        %s622 = scalar_lea.vmem [#allocation4], %s621
        // Predicated region
        $region81: #{tpu_custom_call.1} parent=79 // pred_check
          %p623 = pneg %p66
        $region82: #{tpu_custom_call.1} parent=79 // pred_check_branch
          %625 = sbr.rel (%p623) target = $region84
        $region83: #{tpu_custom_call.1} parent=79 // pred_region
          %626 = dma.done %s619, 128
        $region84: #{tpu_custom_call.1} parent=79 // pred_fallthru
          _
        // Predicated region
        $region85: #{tpu_custom_call.1} parent=79 // pred_check
          %p627 = pneg %p108
        $region86: #{tpu_custom_call.1} parent=79 // pred_check_branch
          %629 = sbr.rel (%p627) target = $region88
        $region87: #{tpu_custom_call.1} parent=79 // pred_region
          %630 = dma.done [#allocation8], 16
        $region88: #{tpu_custom_call.1} parent=79 // pred_fallthru
          _
        %s631 = sand.u32 %s33, 1
        %s632 = scalar_lea.sflag [#allocation5], %s631
        %s633 = sand.u32 %s147, 1
        %s634 = scalar_lea.vmem [#allocation9], %s633
        // Predicated region
        $region89: #{tpu_custom_call.1} parent=79 // pred_check
          %p635 = pneg %p160
        $region90: #{tpu_custom_call.1} parent=79 // pred_check_branch
          %637 = sbr.rel (%p635) target = $region92
        $region91: #{tpu_custom_call.1} parent=79 // pred_region
          %638 = dma.done %s632, 16
        $region92: #{tpu_custom_call.1} parent=79 // pred_fallthru
          _
        %s639 = sand.u32 %s33, 1
        %s640 = scalar_lea.sflag [#allocation5], %s639
        %s641 = sand.u32 %s199, 1
        %s642 = scalar_lea.vmem [#allocation10], %s641
        // Predicated region
        $region93: #{tpu_custom_call.1} parent=79 // pred_check
          %p643 = pneg %p212
        $region94: #{tpu_custom_call.1} parent=79 // pred_check_branch
          %645 = sbr.rel (%p643) target = $region96
        $region95: #{tpu_custom_call.1} parent=79 // pred_region
          %646 = dma.done %s640, 16
        $region96: #{tpu_custom_call.1} parent=79 // pred_fallthru
          _
        %s647 = sand.u32 %s33, 1
        %s648 = scalar_lea.sflag [#allocation5], %s647
        %s649 = sand.u32 %s251, 1
        %s650 = scalar_lea.vmem [#allocation11], %s649
        // Predicated region
        $region97: #{tpu_custom_call.1} parent=79 // pred_check
          %p651 = pneg %p264
        $region98: #{tpu_custom_call.1} parent=79 // pred_check_branch
          %653 = sbr.rel (%p651) target = $region100
        $region99: #{tpu_custom_call.1} parent=79 // pred_region
          %654 = dma.done %s648, 16
        $region100: #{tpu_custom_call.1} parent=79 // pred_fallthru
          _
        %s655 = sand.u32 %s33, 1
        %s656 = scalar_lea.sflag [#allocation5], %s655
        %s657 = sand.u32 %s53, 1
        %s658 = smul.addr %s657, 8
        %s659 = scalar_lea.vmem [#allocation4], %s658
        %p660 = pneg %p66
        %p661 = pneg %p63
        %p662 = pneg %p87
        %p663 = pneg %p84
        %p664 = pneg %p108
        %p665 = pneg %p105
        %p666 = scmp.lt.s32.totalorder %s38, 1
        %s667 = scalar_select %p666, %s38, 1
        %s668 = smul.addr %s667, 4
        %s669 = smul.addr %s668, 4
        %s670 = scalar_lea.vmem %s3, %s669
        %p671 = pneg %p134
        %p672 = pneg %p131
        %s673 = sand.u32 %s33, 1
        %s674 = scalar_lea.sflag [#allocation5], %s673
        %s675 = sand.u32 %s147, 1
        %s676 = scalar_lea.vmem [#allocation9], %s675
        %p677 = pneg %p160
        %p678 = pneg %p157
        %p679 = scmp.lt.s32.totalorder %s38, 1
        %s680 = scalar_select %p679, %s38, 1
        %s681 = smul.addr %s680, 4
        %s682 = smul.addr %s681, 4
        %s683 = scalar_lea.vmem %s5, %s682
        %p684 = pneg %p186
        %p685 = pneg %p183
        %s686 = sand.u32 %s33, 1
        %s687 = scalar_lea.sflag [#allocation5], %s686
        %s688 = sand.u32 %s199, 1
        %s689 = scalar_lea.vmem [#allocation10], %s688
        %p690 = pneg %p212
        %p691 = pneg %p209
        %p692 = scmp.lt.s32.totalorder %s38, 1
        %s693 = scalar_select %p692, %s38, 1
        %s694 = smul.addr %s693, 4
        %s695 = smul.addr %s694, 4
        %s696 = scalar_lea.vmem %s7, %s695
        %p697 = pneg %p238
        %p698 = pneg %p235
        %s699 = sand.u32 %s33, 1
        %s700 = scalar_lea.sflag [#allocation5], %s699
        %s701 = sand.u32 %s251, 1
        %s702 = scalar_lea.vmem [#allocation11], %s701
        %p703 = pneg %p264
        %p704 = pneg %p261
        %p705 = scmp.lt.s32.totalorder %s38, 1
        %s706 = scalar_select %p705, %s38, 1
        %s707 = smul.addr %s706, 8
        %s708 = smul.addr %s707, 4
        %s709 = scalar_lea.vmem %s9, %s708
        %p710 = pneg %p290
        %p711 = pneg %p287
        %p712 = scmp.lt.s32.totalorder %s38, 1
        %s713 = scalar_select %p712, %s38, 1
        %s714 = scalar_lea.vmem %s10, %s713
        %p715 = pneg %p316
        %p716 = pneg %p313
        %p717 = scmp.lt.s32.totalorder %s38, 1
        %s718 = scalar_select %p717, %s38, 1
        %s719 = scalar_lea.vmem %s11, %s718
        %p720 = pneg %p342
        %p721 = pneg %p339
        %p722 = scmp.lt.s32.totalorder %s38, 1
        %s723 = scalar_select %p722, %s38, 1
        %s724 = scalar_lea.vmem %s12, %s723
        %p725 = pneg %p368
        %p726 = pneg %p365
        %p727 = scmp.lt.s32.totalorder %s38, 1
        %s728 = scalar_select %p727, %s38, 1
        %s729 = scalar_lea.vmem %s13, %s728
        %p730 = pneg %p394
        %p731 = pneg %p391
        %p732 = scmp.lt.s32.totalorder %s38, 1
        %s733 = scalar_select %p732, %s38, 1
        %s734 = scalar_lea.vmem %s14, %s733
        %p735 = pneg %p420
        %p736 = pneg %p417
        %p737 = pneg %p446
        %p738 = pneg %p443
        %s739 = sand.u32 %s433, 1
        %s740 = scalar_lea.sflag [#allocation6], %s739
        %s741 = sand.u32 %s433, 1
        %s742 = smul.addr %s741, 64
        %s743 = scalar_lea.vmem [#allocation12], %s742
        %p744 = scmp.lt.s32.totalorder %s38, 1
        %s745 = scalar_select %p744, %s38, 1
        %s746 = smul.addr %s745, 4
        %s747 = smul.addr %s746, 4
        %s748 = scalar_lea.vmem %s3, %s747
        %p749 = scmp.lt.s32.totalorder %s38, 1
        %s750 = scalar_select %p749, %s38, 1
        %s751 = smul.addr %s750, 4
        %s752 = smul.addr %s751, 4
        %s753 = scalar_lea.vmem %s5, %s752
        %p754 = scmp.lt.s32.totalorder %s38, 1
        %s755 = scalar_select %p754, %s38, 1
        %s756 = smul.addr %s755, 4
        %s757 = smul.addr %s756, 4
        %s758 = scalar_lea.vmem %s7, %s757
        %p759 = scmp.lt.s32.totalorder %s38, 1
        %s760 = scalar_select %p759, %s38, 1
        %s761 = smul.addr %s760, 8
        %s762 = smul.addr %s761, 4
        %s763 = scalar_lea.vmem %s9, %s762
        %p764 = scmp.lt.s32.totalorder %s38, 1
        %s765 = scalar_select %p764, %s38, 1
        %s766 = scalar_lea.vmem %s10, %s765
        %p767 = scmp.lt.s32.totalorder %s38, 1
        %s768 = scalar_select %p767, %s38, 1
        %s769 = scalar_lea.vmem %s11, %s768
        %p770 = scmp.lt.s32.totalorder %s38, 1
        %s771 = scalar_select %p770, %s38, 1
        %s772 = scalar_lea.vmem %s12, %s771
        %p773 = scmp.lt.s32.totalorder %s38, 1
        %s774 = scalar_select %p773, %s38, 1
        %s775 = scalar_lea.vmem %s13, %s774
        %p776 = scmp.lt.s32.totalorder %s38, 1
        %s777 = scalar_select %p776, %s38, 1
        %s778 = scalar_lea.vmem %s14, %s777
        %p780 = scmp.eq.s32.totalorder %s38, 0
        // Predicated region
        $region101: #{tpu_custom_call.1} parent=79 // pred_check
          %p781 = pneg %p780
        $region102: #{tpu_custom_call.1} parent=79 // pred_check_branch
          %783 = sbr.rel (%p781) target = $region104
        $region103: #{tpu_custom_call.1} parent=79 // pred_region
          %v784 = vld [vmem:[%s622] sm:$0xff]
          %v786 = vcombine.high %v784, %v784
          %v788 = vpack.c.bf16 %v784, %v784
          %v789 = vpack.c.bf16 %v786, %v786
          %v790 = vld [vmem:[%s1] sm:$0x3]
          %v791 = vld [vmem:[#allocation7] sm:$0x1]
          %v793 = vlaneseq
          %v794 = vshrl.u32 %v793, 7
          %v795 = vsub.s32 0, %v794
          %v796 = vrot.slane %v791, %v795
          %798 = vxpose.xlu0.c.b16.start [1/8] %v788, 128
          %799 = vxpose.xlu0.c.b16.cont [2/8] 0, 128
          %800 = vxpose.xlu0.c.b16.cont [3/8] 0, 128
          %801 = vxpose.xlu0.c.b16.cont [4/8] 0, 128
          %802 = vxpose.xlu0.c.b16.cont [5/8] 0, 128
          %803 = vxpose.xlu0.c.b16.cont [6/8] 0, 128
          %804 = vxpose.xlu0.c.b16.cont [7/8] 0, 128
          %805 = vxpose.xlu0.c.b16.end [8/8] 0, 128
          %v806 = vpop.trf.xlu0
          %v807 = vpop.trf.xlu0
          %v808 = vpop.trf.xlu0
          %v809 = vpop.trf.xlu0
          %v810 = vpop.trf.xlu0
          %v811 = vpop.trf.xlu0
          %v812 = vpop.trf.xlu0
          %v813 = vpop.trf.xlu0
          %814 = vxpose.xlu0.c.b16.start [1/8] %v789, 128
          %815 = vxpose.xlu0.c.b16.cont [2/8] 0, 128
          %816 = vxpose.xlu0.c.b16.cont [3/8] 0, 128
          %817 = vxpose.xlu0.c.b16.cont [4/8] 0, 128
          %818 = vxpose.xlu0.c.b16.cont [5/8] 0, 128
          %819 = vxpose.xlu0.c.b16.cont [6/8] 0, 128
          %820 = vxpose.xlu0.c.b16.cont [7/8] 0, 128
          %821 = vxpose.xlu0.c.b16.end [8/8] 0, 128
          %v822 = vpop.trf.xlu0
          %v823 = vpop.trf.xlu0
          %v824 = vpop.trf.xlu0
          %v825 = vpop.trf.xlu0
          %v826 = vpop.trf.xlu0
          %v827 = vpop.trf.xlu0
          %v828 = vpop.trf.xlu0
          %v829 = vpop.trf.xlu0
          %vm830 = vcmask 31744
          %v832 = vsel %vm830, %v806, 0
          %v835 = vsel %vm830, %v807, 0
          %v838 = vsel %vm830, %v808, 0
          %v841 = vsel %vm830, %v809, 0
          %v844 = vsel %vm830, %v810, 0
          %v847 = vsel %vm830, %v811, 0
          %v850 = vsel %vm830, %v812, 0
          %v853 = vsel %vm830, %v813, 0
          %v856 = vsel %vm830, %v822, 0
          %v859 = vsel %vm830, %v823, 0
          %v862 = vsel %vm830, %v824, 0
          %v865 = vsel %vm830, %v825, 0
          %v868 = vsel %vm830, %v826, 0
          %v871 = vsel %vm830, %v827, 0
          %v874 = vsel %vm830, %v828, 0
          %v877 = vsel %vm830, %v829, 0
          %vm879 = vcmask 1041408
          %v881 = vsel %vm879, %v790, 0
          %883 = vmatprep.subr.bf16.mxu0 0
          %884 = vmatpush1.bf16.msra.mxu0 %v881
          %885 = vmatprep.subr.bf16.mxu0 0
          %886 = vmatpush1.bf16.msra.mxu0 0
          %887 = vmatprep.subr.bf16.mxu0 0
          %888 = vmatpush1.bf16.msra.mxu0 0
          %889 = vmatprep.subr.bf16.mxu0 0
          %890 = vmatpush1.bf16.msra.mxu0 0
          %891 = vmatprep.subr.bf16.mxu0 0
          %892 = vmatpush1.bf16.msra.mxu0 0
          %893 = vmatprep.subr.bf16.mxu0 0
          %894 = vmatpush1.bf16.msra.mxu0 0
          %895 = vmatprep.subr.bf16.mxu0 0
          %896 = vmatpush1.bf16.msra.mxu0 0
          %897 = vmatprep.subr.bf16.mxu0 0
          %898 = vmatpush1.bf16.msra.mxu0 0
          %899 = vmatprep.subr.bf16.mxu0 0
          %900 = vmatpush1.bf16.msra.mxu0 0
          %901 = vmatprep.subr.bf16.mxu0 0
          %902 = vmatpush1.bf16.msra.mxu0 0
          %903 = vmatprep.subr.bf16.mxu0 0
          %904 = vmatpush1.bf16.msra.mxu0 0
          %905 = vmatprep.subr.bf16.mxu0 0
          %906 = vmatpush1.bf16.msra.mxu0 0
          %907 = vmatprep.subr.bf16.mxu0 0
          %908 = vmatpush1.bf16.msra.mxu0 0
          %909 = vmatprep.subr.bf16.mxu0 0
          %910 = vmatpush1.bf16.msra.mxu0 0
          %911 = vmatprep.subr.bf16.mxu0 0
          %912 = vmatpush1.bf16.msra.mxu0 0
          %913 = vmatprep.subr.bf16.mxu0 0
          %914 = vmatpush1.bf16.msra.mxu0 0
          %915 = vmatprep.mubr.bf16.mxu0 0
          %916 = vmatmul.mubr.bf16.gmra.mrb[0].mxu0 %v832
          %v917 = vpop.f32.mrb[0].mxu0
          %v918 = vadd.f32 %v796, %v917
          %v919 = vpop.f32.mrb[0].mxu0
          %v920 = vpop.f32.mrb[0].mxu0
          %v921 = vadd.f32 %v796, %v920
          %v922 = vpop.f32.mrb[0].mxu0
          %923 = vmatprep.mubr.bf16.mxu0 0
          %924 = vmatmul.mubr.bf16.gmra.mrb[0].mxu0 %v835
          %v925 = vpop.f32.mrb[0].mxu0
          %v926 = vadd.f32 %v796, %v925
          %v927 = vpop.f32.mrb[0].mxu0
          %v928 = vpop.f32.mrb[0].mxu0
          %v929 = vadd.f32 %v796, %v928
          %v930 = vpop.f32.mrb[0].mxu0
          %931 = vmatprep.mubr.bf16.mxu0 0
          %932 = vmatmul.mubr.bf16.gmra.mrb[0].mxu0 %v838
          %v933 = vpop.f32.mrb[0].mxu0
          %v934 = vadd.f32 %v796, %v933
          %v935 = vpop.f32.mrb[0].mxu0
          %v936 = vpop.f32.mrb[0].mxu0
          %v937 = vadd.f32 %v796, %v936
          %v938 = vpop.f32.mrb[0].mxu0
          %939 = vmatprep.mubr.bf16.mxu0 0
          %940 = vmatmul.mubr.bf16.gmra.mrb[0].mxu0 %v841
          %v941 = vpop.f32.mrb[0].mxu0
          %v942 = vadd.f32 %v796, %v941
          %v943 = vpop.f32.mrb[0].mxu0
          %v944 = vpop.f32.mrb[0].mxu0
          %v945 = vadd.f32 %v796, %v944
          %v946 = vpop.f32.mrb[0].mxu0
          %947 = vmatprep.mubr.bf16.mxu0 0
          %948 = vmatmul.mubr.bf16.gmra.mrb[0].mxu0 %v844
          %v949 = vpop.f32.mrb[0].mxu0
          %v950 = vadd.f32 %v796, %v949
          %v951 = vpop.f32.mrb[0].mxu0
          %v952 = vpop.f32.mrb[0].mxu0
          %v953 = vadd.f32 %v796, %v952
          %v954 = vpop.f32.mrb[0].mxu0
          %955 = vmatprep.mubr.bf16.mxu0 0
          %956 = vmatmul.mubr.bf16.gmra.mrb[0].mxu0 %v847
          %v957 = vpop.f32.mrb[0].mxu0
          %v958 = vadd.f32 %v796, %v957
          %v959 = vpop.f32.mrb[0].mxu0
          %v960 = vpop.f32.mrb[0].mxu0
          %v961 = vadd.f32 %v796, %v960
          %v962 = vpop.f32.mrb[0].mxu0
          %963 = vmatprep.mubr.bf16.mxu0 0
          %964 = vmatmul.mubr.bf16.gmra.mrb[0].mxu0 %v850
          %v965 = vpop.f32.mrb[0].mxu0
          %v966 = vadd.f32 %v796, %v965
          %v967 = vpop.f32.mrb[0].mxu0
          %v968 = vpop.f32.mrb[0].mxu0
          %v969 = vadd.f32 %v796, %v968
          %v970 = vpop.f32.mrb[0].mxu0
          %971 = vmatprep.mubr.bf16.mxu0 0
          %972 = vmatmul.mubr.bf16.gmra.mrb[0].mxu0 %v853
          %v973 = vpop.f32.mrb[0].mxu0
          %v974 = vadd.f32 %v796, %v973
          %v975 = vpop.f32.mrb[0].mxu0
          %v976 = vpop.f32.mrb[0].mxu0
          %v977 = vadd.f32 %v796, %v976
          %v978 = vpop.f32.mrb[0].mxu0
          %979 = vmatprep.mubr.bf16.mxu0 0
          %980 = vmatmul.mubr.bf16.gmra.mrb[0].mxu0 %v856
          %v981 = vpop.f32.mrb[0].mxu0
          %v982 = vadd.f32 %v796, %v981
          %v983 = vpop.f32.mrb[0].mxu0
          %v984 = vpop.f32.mrb[0].mxu0
          %v985 = vadd.f32 %v796, %v984
          %v986 = vpop.f32.mrb[0].mxu0
          %987 = vmatprep.mubr.bf16.mxu0 0
          %988 = vmatmul.mubr.bf16.gmra.mrb[0].mxu0 %v859
          %v989 = vpop.f32.mrb[0].mxu0
          %v990 = vadd.f32 %v796, %v989
          %v991 = vpop.f32.mrb[0].mxu0
          %v992 = vpop.f32.mrb[0].mxu0
          %v993 = vadd.f32 %v796, %v992
          %v994 = vpop.f32.mrb[0].mxu0
          %995 = vmatprep.mubr.bf16.mxu0 0
          %996 = vmatmul.mubr.bf16.gmra.mrb[0].mxu0 %v862
          %v997 = vpop.f32.mrb[0].mxu0
          %v998 = vadd.f32 %v796, %v997
          %v999 = vpop.f32.mrb[0].mxu0
          %v1000 = vpop.f32.mrb[0].mxu0
          %v1001 = vadd.f32 %v796, %v1000
          %v1002 = vpop.f32.mrb[0].mxu0
          %1003 = vmatprep.mubr.bf16.mxu0 0
          %1004 = vmatmul.mubr.bf16.gmra.mrb[0].mxu0 %v865
          %v1005 = vpop.f32.mrb[0].mxu0
          %v1006 = vadd.f32 %v796, %v1005
          %v1007 = vpop.f32.mrb[0].mxu0
          %v1008 = vpop.f32.mrb[0].mxu0
          %v1009 = vadd.f32 %v796, %v1008
          %v1010 = vpop.f32.mrb[0].mxu0
          %1011 = vmatprep.mubr.bf16.mxu0 0
          %1012 = vmatmul.mubr.bf16.gmra.mrb[0].mxu0 %v868
          %v1013 = vpop.f32.mrb[0].mxu0
          %v1014 = vadd.f32 %v796, %v1013
          %v1015 = vpop.f32.mrb[0].mxu0
          %v1016 = vpop.f32.mrb[0].mxu0
          %v1017 = vadd.f32 %v796, %v1016
          %v1018 = vpop.f32.mrb[0].mxu0
          %1019 = vmatprep.mubr.bf16.mxu0 0
          %1020 = vmatmul.mubr.bf16.gmra.mrb[0].mxu0 %v871
          %v1021 = vpop.f32.mrb[0].mxu0
          %v1022 = vadd.f32 %v796, %v1021
          %v1023 = vpop.f32.mrb[0].mxu0
          %v1024 = vpop.f32.mrb[0].mxu0
          %v1025 = vadd.f32 %v796, %v1024
          %v1026 = vpop.f32.mrb[0].mxu0
          %1027 = vmatprep.mubr.bf16.mxu0 0
          %1028 = vmatmul.mubr.bf16.gmra.mrb[0].mxu0 %v874
          %v1029 = vpop.f32.mrb[0].mxu0
          %v1030 = vadd.f32 %v796, %v1029
          %v1031 = vpop.f32.mrb[0].mxu0
          %v1032 = vpop.f32.mrb[0].mxu0
          %v1033 = vadd.f32 %v796, %v1032
          %v1034 = vpop.f32.mrb[0].mxu0
          %1035 = vmatprep.mubr.bf16.mxu0 0
          %1036 = vmatmul.mubr.bf16.gmra.mrb[0].mxu0 %v877
          %v1037 = vpop.f32.mrb[0].mxu0
          %v1038 = vadd.f32 %v796, %v1037
          %v1039 = vpop.f32.mrb[0].mxu0
          %v1040 = vpop.f32.mrb[0].mxu0
          %v1041 = vadd.f32 %v796, %v1040
          %v1042 = vpop.f32.mrb[0].mxu0
          %1043 = vdwg.mxu0
          %vm1044 = vcmask 261120
          %1045 = vst.msk [vmem:[#allocation2] sm:$0xff] %vm1044, %v918
          %1046 = vst.msk [vmem:[#allocation2 + $0x8] sm:$0xff] %vm1044, %v921
          %1047 = vst.msk [vmem:[#allocation2 + $0x10] sm:$0xff] %vm1044, %v926
          %1048 = vst.msk [vmem:[#allocation2 + $0x18] sm:$0xff] %vm1044, %v929
          %1049 = vst.msk [vmem:[#allocation2 + $0x20] sm:$0xff] %vm1044, %v934
          %1050 = vst.msk [vmem:[#allocation2 + $0x28] sm:$0xff] %vm1044, %v937
          %1051 = vst.msk [vmem:[#allocation2 + $0x30] sm:$0xff] %vm1044, %v942
          %1052 = vst.msk [vmem:[#allocation2 + $0x38] sm:$0xff] %vm1044, %v945
          %1053 = vst.msk [vmem:[#allocation2 + $0x40] sm:$0xff] %vm1044, %v950
          %1054 = vst.msk [vmem:[#allocation2 + $0x48] sm:$0xff] %vm1044, %v953
          %1055 = vst.msk [vmem:[#allocation2 + $0x50] sm:$0xff] %vm1044, %v958
          %1056 = vst.msk [vmem:[#allocation2 + $0x58] sm:$0xff] %vm1044, %v961
          %1057 = vst.msk [vmem:[#allocation2 + $0x60] sm:$0xff] %vm1044, %v966
          %1058 = vst.msk [vmem:[#allocation2 + $0x68] sm:$0xff] %vm1044, %v969
          %1059 = vst.msk [vmem:[#allocation2 + $0x70] sm:$0xff] %vm1044, %v974
          %1060 = vst.msk [vmem:[#allocation2 + $0x78] sm:$0xff] %vm1044, %v977
          %1061 = vst.msk [vmem:[#allocation2 + $0x80] sm:$0xff] %vm1044, %v982
          %1062 = vst.msk [vmem:[#allocation2 + $0x88] sm:$0xff] %vm1044, %v985
          %1063 = vst.msk [vmem:[#allocation2 + $0x90] sm:$0xff] %vm1044, %v990
          %1064 = vst.msk [vmem:[#allocation2 + $0x98] sm:$0xff] %vm1044, %v993
          %1065 = vst.msk [vmem:[#allocation2 + $0xa0] sm:$0xff] %vm1044, %v998
          %1066 = vst.msk [vmem:[#allocation2 + $0xa8] sm:$0xff] %vm1044, %v1001
          %1067 = vst.msk [vmem:[#allocation2 + $0xb0] sm:$0xff] %vm1044, %v1006
          %1068 = vst.msk [vmem:[#allocation2 + $0xb8] sm:$0xff] %vm1044, %v1009
          %1069 = vst.msk [vmem:[#allocation2 + $0xc0] sm:$0xff] %vm1044, %v1014
          %1070 = vst.msk [vmem:[#allocation2 + $0xc8] sm:$0xff] %vm1044, %v1017
          %1071 = vst.msk [vmem:[#allocation2 + $0xd0] sm:$0xff] %vm1044, %v1022
          %1072 = vst.msk [vmem:[#allocation2 + $0xd8] sm:$0xff] %vm1044, %v1025
          %1073 = vst.msk [vmem:[#allocation2 + $0xe0] sm:$0xff] %vm1044, %v1030
          %1074 = vst.msk [vmem:[#allocation2 + $0xe8] sm:$0xff] %vm1044, %v1033
          %1075 = vst.msk [vmem:[#allocation2 + $0xf0] sm:$0xff] %vm1044, %v1038
          %1076 = vst.msk [vmem:[#allocation2 + $0xf8] sm:$0xff] %vm1044, %v1041
        $region104: #{tpu_custom_call.1} parent=79 // pred_fallthru
          _
        %v1077 = vld [vmem:[#allocation2] sm:$0xff]
        %v1078 = vld [vmem:[#allocation2 + $0x8] sm:$0xff]
        %v1079 = vld [vmem:[#allocation2 + $0x10] sm:$0xff]
        %v1080 = vld [vmem:[#allocation2 + $0x18] sm:$0xff]
        %v1081 = vld [vmem:[#allocation2 + $0x20] sm:$0xff]
        %v1082 = vld [vmem:[#allocation2 + $0x28] sm:$0xff]
        %v1083 = vld [vmem:[#allocation2 + $0x30] sm:$0xff]
        %v1084 = vld [vmem:[#allocation2 + $0x38] sm:$0xff]
        %v1085 = vld [vmem:[#allocation2 + $0x40] sm:$0xff]
        %v1086 = vld [vmem:[#allocation2 + $0x48] sm:$0xff]
        %v1087 = vld [vmem:[#allocation2 + $0x50] sm:$0xff]
        %v1088 = vld [vmem:[#allocation2 + $0x58] sm:$0xff]
        %v1089 = vld [vmem:[#allocation2 + $0x60] sm:$0xff]
        %v1090 = vld [vmem:[#allocation2 + $0x68] sm:$0xff]
        %v1091 = vld [vmem:[#allocation2 + $0x70] sm:$0xff]
        %v1092 = vld [vmem:[#allocation2 + $0x78] sm:$0xff]
        %v1093 = vld [vmem:[#allocation2 + $0x80] sm:$0xff]
        %v1094 = vld [vmem:[#allocation2 + $0x88] sm:$0xff]
        %v1095 = vld [vmem:[#allocation2 + $0x90] sm:$0xff]
        %v1096 = vld [vmem:[#allocation2 + $0x98] sm:$0xff]
        %v1097 = vld [vmem:[#allocation2 + $0xa0] sm:$0xff]
        %v1098 = vld [vmem:[#allocation2 + $0xa8] sm:$0xff]
        %v1099 = vld [vmem:[#allocation2 + $0xb0] sm:$0xff]
        %v1100 = vld [vmem:[#allocation2 + $0xb8] sm:$0xff]
        %v1101 = vld [vmem:[#allocation2 + $0xc0] sm:$0xff]
        %v1102 = vld [vmem:[#allocation2 + $0xc8] sm:$0xff]
        %v1103 = vld [vmem:[#allocation2 + $0xd0] sm:$0xff]
        %v1104 = vld [vmem:[#allocation2 + $0xd8] sm:$0xff]
        %v1105 = vld [vmem:[#allocation2 + $0xe0] sm:$0xff]
        %v1106 = vld [vmem:[#allocation2 + $0xe8] sm:$0xff]
        %v1107 = vld [vmem:[#allocation2 + $0xf0] sm:$0xff]
        %v1108 = vld [vmem:[#allocation2 + $0xf8] sm:$0xff]
        %v1109 = vpack.c.bf16 %v1078, %v1077
        %v1110 = vpack.c.bf16 %v1080, %v1079
        %v1111 = vpack.c.bf16 %v1082, %v1081
        %v1112 = vpack.c.bf16 %v1084, %v1083
        %v1113 = vpack.c.bf16 %v1086, %v1085
        %v1114 = vpack.c.bf16 %v1088, %v1087
        %v1115 = vpack.c.bf16 %v1090, %v1089
        %v1116 = vpack.c.bf16 %v1092, %v1091
        %v1117 = vpack.c.bf16 %v1094, %v1093
        %v1118 = vpack.c.bf16 %v1096, %v1095
        %v1119 = vpack.c.bf16 %v1098, %v1097
        %v1120 = vpack.c.bf16 %v1100, %v1099
        %v1121 = vpack.c.bf16 %v1102, %v1101
        %v1122 = vpack.c.bf16 %v1104, %v1103
        %v1123 = vpack.c.bf16 %v1106, %v1105
        %v1124 = vpack.c.bf16 %v1108, %v1107
        %v1125 = vld [vmem:[%s748] sm:$0xf]
        %v1126 = vld [vmem:[%s748 + $0x4] sm:$0xf]
        %v1127 = vld [vmem:[%s748 + $0x8] sm:$0xf]
        %v1128 = vld [vmem:[%s748 + $0xc] sm:$0xf]
        %v1129 = vld [vmem:[%s634] sm:$0x1]
        %v1131 = vlaneseq
        %v1132 = vshrl.u32 %v1131, 7
        %v1133 = vsub.s32 0, %v1132
        %v1134 = vrot.slane %v1129, %v1133
        %v1140 = vunpack.c.l.b16 %v1125
        %v1141 = vunpack.c.l.b16 %v1126
        %v1142 = vunpack.c.l.b16 %v1127
        %v1143 = vunpack.c.l.b16 %v1128
        %v1144 = vpack.c.b16 %v1141, %v1140
        %v1145 = vpack.c.b16 %v1143, %v1142
        %vm1148 = vcmask 261120
        %v1150 = vsel %vm1148, %v1109, 0
        %v1153 = vsel %vm1148, %v1110, 0
        %v1156 = vsel %vm1148, %v1111, 0
        %v1159 = vsel %vm1148, %v1112, 0
        %v1162 = vsel %vm1148, %v1113, 0
        %v1165 = vsel %vm1148, %v1114, 0
        %v1168 = vsel %vm1148, %v1115, 0
        %v1171 = vsel %vm1148, %v1116, 0
        %v1174 = vsel %vm1148, %v1117, 0
        %v1177 = vsel %vm1148, %v1118, 0
        %v1180 = vsel %vm1148, %v1119, 0
        %v1183 = vsel %vm1148, %v1120, 0
        %v1186 = vsel %vm1148, %v1121, 0
        %v1189 = vsel %vm1148, %v1122, 0
        %v1192 = vsel %vm1148, %v1123, 0
        %v1195 = vsel %vm1148, %v1124, 0
        %1197 = vmatprep.subr.bf16.mxu0 0
        %1198 = vmatpush1.bf16.msra.mxu0 %v1144
        %1199 = vmatprep.subr.bf16.mxu0 0
        %1200 = vmatpush1.bf16.msra.mxu0 %v1145
        %1201 = vmatprep.subr.bf16.mxu0 0
        %1202 = vmatpush1.bf16.msra.mxu0 0
        %1203 = vmatprep.subr.bf16.mxu0 0
        %1204 = vmatpush1.bf16.msra.mxu0 0
        %1205 = vmatprep.subr.bf16.mxu0 0
        %1206 = vmatpush1.bf16.msra.mxu0 0
        %1207 = vmatprep.subr.bf16.mxu0 0
        %1208 = vmatpush1.bf16.msra.mxu0 0
        %1209 = vmatprep.subr.bf16.mxu0 0
        %1210 = vmatpush1.bf16.msra.mxu0 0
        %1211 = vmatprep.subr.bf16.mxu0 0
        %1212 = vmatpush1.bf16.msra.mxu0 0
        %1213 = vmatprep.subr.bf16.mxu0 0
        %1214 = vmatpush1.bf16.msra.mxu0 0
        %1215 = vmatprep.subr.bf16.mxu0 0
        %1216 = vmatpush1.bf16.msra.mxu0 0
        %1217 = vmatprep.subr.bf16.mxu0 0
        %1218 = vmatpush1.bf16.msra.mxu0 0
        %1219 = vmatprep.subr.bf16.mxu0 0
        %1220 = vmatpush1.bf16.msra.mxu0 0
        %1221 = vmatprep.subr.bf16.mxu0 0
        %1222 = vmatpush1.bf16.msra.mxu0 0
        %1223 = vmatprep.subr.bf16.mxu0 0
        %1224 = vmatpush1.bf16.msra.mxu0 0
        %1225 = vmatprep.subr.bf16.mxu0 0
        %1226 = vmatpush1.bf16.msra.mxu0 0
        %1227 = vmatprep.subr.bf16.mxu0 0
        %1228 = vmatpush1.bf16.msra.mxu0 0
        %1229 = vmatprep.mubr.bf16.mxu0 0
        %1230 = vmatmul.mubr.bf16.gmra.mrb[0].mxu0 %v1150
        %v1231 = vpop.f32.mrb[0].mxu0
        %v1232 = vadd.f32 %v1134, %v1231
        %v1233 = vpop.f32.mrb[0].mxu0
        %v1234 = vpop.f32.mrb[0].mxu0
        %v1235 = vadd.f32 %v1134, %v1234
        %v1236 = vpop.f32.mrb[0].mxu0
        %1237 = vmatprep.mubr.bf16.mxu0 0
        %1238 = vmatmul.mubr.bf16.gmra.mrb[0].mxu0 %v1153
        %v1239 = vpop.f32.mrb[0].mxu0
        %v1240 = vadd.f32 %v1134, %v1239
        %v1241 = vpop.f32.mrb[0].mxu0
        %v1242 = vpop.f32.mrb[0].mxu0
        %v1243 = vadd.f32 %v1134, %v1242
        %v1244 = vpop.f32.mrb[0].mxu0
        %1245 = vmatprep.mubr.bf16.mxu0 0
        %1246 = vmatmul.mubr.bf16.gmra.mrb[0].mxu0 %v1156
        %v1247 = vpop.f32.mrb[0].mxu0
        %v1248 = vadd.f32 %v1134, %v1247
        %v1249 = vpop.f32.mrb[0].mxu0
        %v1250 = vpop.f32.mrb[0].mxu0
        %v1251 = vadd.f32 %v1134, %v1250
        %v1252 = vpop.f32.mrb[0].mxu0
        %1253 = vmatprep.mubr.bf16.mxu0 0
        %1254 = vmatmul.mubr.bf16.gmra.mrb[0].mxu0 %v1159
        %v1255 = vpop.f32.mrb[0].mxu0
        %v1256 = vadd.f32 %v1134, %v1255
        %v1257 = vpop.f32.mrb[0].mxu0
        %v1258 = vpop.f32.mrb[0].mxu0
        %v1259 = vadd.f32 %v1134, %v1258
        %v1260 = vpop.f32.mrb[0].mxu0
        %1261 = vmatprep.mubr.bf16.mxu0 0
        %1262 = vmatmul.mubr.bf16.gmra.mrb[0].mxu0 %v1162
        %v1263 = vpop.f32.mrb[0].mxu0
        %v1264 = vadd.f32 %v1134, %v1263
        %v1265 = vpop.f32.mrb[0].mxu0
        %v1266 = vpop.f32.mrb[0].mxu0
        %v1267 = vadd.f32 %v1134, %v1266
        %v1268 = vpop.f32.mrb[0].mxu0
        %1269 = vmatprep.mubr.bf16.mxu0 0
        %1270 = vmatmul.mubr.bf16.gmra.mrb[0].mxu0 %v1165
        %v1271 = vpop.f32.mrb[0].mxu0
        %v1272 = vadd.f32 %v1134, %v1271
        %v1273 = vpop.f32.mrb[0].mxu0
        %v1274 = vpop.f32.mrb[0].mxu0
        %v1275 = vadd.f32 %v1134, %v1274
        %v1276 = vpop.f32.mrb[0].mxu0
        %1277 = vmatprep.mubr.bf16.mxu0 0
        %1278 = vmatmul.mubr.bf16.gmra.mrb[0].mxu0 %v1168
        %v1279 = vpop.f32.mrb[0].mxu0
        %v1280 = vadd.f32 %v1134, %v1279
        %v1281 = vpop.f32.mrb[0].mxu0
        %v1282 = vpop.f32.mrb[0].mxu0
        %v1283 = vadd.f32 %v1134, %v1282
        %v1284 = vpop.f32.mrb[0].mxu0
        %1285 = vmatprep.mubr.bf16.mxu0 0
        %1286 = vmatmul.mubr.bf16.gmra.mrb[0].mxu0 %v1171
        %v1287 = vpop.f32.mrb[0].mxu0
        %v1288 = vadd.f32 %v1134, %v1287
        %v1289 = vpop.f32.mrb[0].mxu0
        %v1290 = vpop.f32.mrb[0].mxu0
        %v1291 = vadd.f32 %v1134, %v1290
        %v1292 = vpop.f32.mrb[0].mxu0
        %1293 = vmatprep.mubr.bf16.mxu0 0
        %1294 = vmatmul.mubr.bf16.gmra.mrb[0].mxu0 %v1174
        %v1295 = vpop.f32.mrb[0].mxu0
        %v1296 = vadd.f32 %v1134, %v1295
        %v1297 = vpop.f32.mrb[0].mxu0
        %v1298 = vpop.f32.mrb[0].mxu0
        %v1299 = vadd.f32 %v1134, %v1298
        %v1300 = vpop.f32.mrb[0].mxu0
        %1301 = vmatprep.mubr.bf16.mxu0 0
        %1302 = vmatmul.mubr.bf16.gmra.mrb[0].mxu0 %v1177
        %v1303 = vpop.f32.mrb[0].mxu0
        %v1304 = vadd.f32 %v1134, %v1303
        %v1305 = vpop.f32.mrb[0].mxu0
        %v1306 = vpop.f32.mrb[0].mxu0
        %v1307 = vadd.f32 %v1134, %v1306
        %v1308 = vpop.f32.mrb[0].mxu0
        %1309 = vmatprep.mubr.bf16.mxu0 0
        %1310 = vmatmul.mubr.bf16.gmra.mrb[0].mxu0 %v1180
        %v1311 = vpop.f32.mrb[0].mxu0
        %v1312 = vadd.f32 %v1134, %v1311
        %v1313 = vpop.f32.mrb[0].mxu0
        %v1314 = vpop.f32.mrb[0].mxu0
        %v1315 = vadd.f32 %v1134, %v1314
        %v1316 = vpop.f32.mrb[0].mxu0
        %1317 = vmatprep.mubr.bf16.mxu0 0
        %1318 = vmatmul.mubr.bf16.gmra.mrb[0].mxu0 %v1183
        %v1319 = vpop.f32.mrb[0].mxu0
        %v1320 = vadd.f32 %v1134, %v1319
        %v1321 = vpop.f32.mrb[0].mxu0
        %v1322 = vpop.f32.mrb[0].mxu0
        %v1323 = vadd.f32 %v1134, %v1322
        %v1324 = vpop.f32.mrb[0].mxu0
        %1325 = vmatprep.mubr.bf16.mxu0 0
        %1326 = vmatmul.mubr.bf16.gmra.mrb[0].mxu0 %v1186
        %v1327 = vpop.f32.mrb[0].mxu0
        %v1328 = vadd.f32 %v1134, %v1327
        %v1329 = vpop.f32.mrb[0].mxu0
        %v1330 = vpop.f32.mrb[0].mxu0
        %v1331 = vadd.f32 %v1134, %v1330
        %v1332 = vpop.f32.mrb[0].mxu0
        %1333 = vmatprep.mubr.bf16.mxu0 0
        %1334 = vmatmul.mubr.bf16.gmra.mrb[0].mxu0 %v1189
        %v1335 = vpop.f32.mrb[0].mxu0
        %v1336 = vadd.f32 %v1134, %v1335
        %v1337 = vpop.f32.mrb[0].mxu0
        %v1338 = vpop.f32.mrb[0].mxu0
        %v1339 = vadd.f32 %v1134, %v1338
        %v1340 = vpop.f32.mrb[0].mxu0
        %1341 = vmatprep.mubr.bf16.mxu0 0
        %1342 = vmatmul.mubr.bf16.gmra.mrb[0].mxu0 %v1192
        %v1343 = vpop.f32.mrb[0].mxu0
        %v1344 = vadd.f32 %v1134, %v1343
        %v1345 = vpop.f32.mrb[0].mxu0
        %v1346 = vpop.f32.mrb[0].mxu0
        %v1347 = vadd.f32 %v1134, %v1346
        %v1348 = vpop.f32.mrb[0].mxu0
        %1349 = vmatprep.mubr.bf16.mxu0 0
        %1350 = vmatmul.mubr.bf16.gmra.mrb[0].mxu0 %v1195
        %v1351 = vpop.f32.mrb[0].mxu0
        %v1352 = vadd.f32 %v1134, %v1351
        %v1353 = vpop.f32.mrb[0].mxu0
        %v1354 = vpop.f32.mrb[0].mxu0
        %v1355 = vadd.f32 %v1134, %v1354
        %v1356 = vpop.f32.mrb[0].mxu0
        %1357 = vdwg.mxu0
        %v1358 = vmul.f32 %v1232, 0.35355338
        %v1359 = vmul.f32 %v1235, 0.35355338
        %v1360 = vmul.f32 %v1240, 0.35355338
        %v1361 = vmul.f32 %v1243, 0.35355338
        %v1362 = vmul.f32 %v1248, 0.35355338
        %v1363 = vmul.f32 %v1251, 0.35355338
        %v1364 = vmul.f32 %v1256, 0.35355338
        %v1365 = vmul.f32 %v1259, 0.35355338
        %v1366 = vmul.f32 %v1264, 0.35355338
        %v1367 = vmul.f32 %v1267, 0.35355338
        %v1368 = vmul.f32 %v1272, 0.35355338
        %v1369 = vmul.f32 %v1275, 0.35355338
        %v1370 = vmul.f32 %v1280, 0.35355338
        %v1371 = vmul.f32 %v1283, 0.35355338
        %v1372 = vmul.f32 %v1288, 0.35355338
        %v1373 = vmul.f32 %v1291, 0.35355338
        %v1374 = vmul.f32 %v1296, 0.35355338
        %v1375 = vmul.f32 %v1299, 0.35355338
        %v1376 = vmul.f32 %v1304, 0.35355338
        %v1377 = vmul.f32 %v1307, 0.35355338
        %v1378 = vmul.f32 %v1312, 0.35355338
        %v1379 = vmul.f32 %v1315, 0.35355338
        %v1380 = vmul.f32 %v1320, 0.35355338
        %v1381 = vmul.f32 %v1323, 0.35355338
        %v1382 = vmul.f32 %v1328, 0.35355338
        %v1383 = vmul.f32 %v1331, 0.35355338
        %v1384 = vmul.f32 %v1336, 0.35355338
        %v1385 = vmul.f32 %v1339, 0.35355338
        %v1386 = vmul.f32 %v1344, 0.35355338
        %v1387 = vmul.f32 %v1347, 0.35355338
        %v1388 = vmul.f32 %v1352, 0.35355338
        %v1389 = vmul.f32 %v1355, 0.35355338
        %v1390 = vpack.c.bf16 %v1359, %v1358
        %v1391 = vpack.c.bf16 %v1361, %v1360
        %v1392 = vpack.c.bf16 %v1363, %v1362
        %v1393 = vpack.c.bf16 %v1365, %v1364
        %v1394 = vpack.c.bf16 %v1367, %v1366
        %v1395 = vpack.c.bf16 %v1369, %v1368
        %v1396 = vpack.c.bf16 %v1371, %v1370
        %v1397 = vpack.c.bf16 %v1373, %v1372
        %v1398 = vpack.c.bf16 %v1375, %v1374
        %v1399 = vpack.c.bf16 %v1377, %v1376
        %v1400 = vpack.c.bf16 %v1379, %v1378
        %v1401 = vpack.c.bf16 %v1381, %v1380
        %v1402 = vpack.c.bf16 %v1383, %v1382
        %v1403 = vpack.c.bf16 %v1385, %v1384
        %v1404 = vpack.c.bf16 %v1387, %v1386
        %v1405 = vpack.c.bf16 %v1389, %v1388
        %v1406 = vpack.c.bf16 %v1235, %v1232
        %v1407 = vpack.c.bf16 %v1243, %v1240
        %v1408 = vpack.c.bf16 %v1251, %v1248
        %v1409 = vpack.c.bf16 %v1259, %v1256
        %v1410 = vpack.c.bf16 %v1267, %v1264
        %v1411 = vpack.c.bf16 %v1275, %v1272
        %v1412 = vpack.c.bf16 %v1283, %v1280
        %v1413 = vpack.c.bf16 %v1291, %v1288
        %v1414 = vpack.c.bf16 %v1299, %v1296
        %v1415 = vpack.c.bf16 %v1307, %v1304
        %v1416 = vpack.c.bf16 %v1315, %v1312
        %v1417 = vpack.c.bf16 %v1323, %v1320
        %v1418 = vpack.c.bf16 %v1331, %v1328
        %v1419 = vpack.c.bf16 %v1339, %v1336
        %v1420 = vpack.c.bf16 %v1347, %v1344
        %v1421 = vpack.c.bf16 %v1355, %v1352
        %1438 = vrot.lane.b32.xlu0 %v1406, 96
        %v1439 = vpop.permute.xlu0 %1438
        %1440 = vrot.lane.b32.xlu0 %v1407, 96
        %v1441 = vpop.permute.xlu0 %1440
        %1442 = vrot.lane.b32.xlu0 %v1408, 96
        %v1443 = vpop.permute.xlu0 %1442
        %1444 = vrot.lane.b32.xlu0 %v1409, 96
        %v1445 = vpop.permute.xlu0 %1444
        %1446 = vrot.lane.b32.xlu0 %v1410, 96
        %v1447 = vpop.permute.xlu0 %1446
        %1448 = vrot.lane.b32.xlu0 %v1411, 96
        %v1449 = vpop.permute.xlu0 %1448
        %1450 = vrot.lane.b32.xlu0 %v1412, 96
        %v1451 = vpop.permute.xlu0 %1450
        %1452 = vrot.lane.b32.xlu0 %v1413, 96
        %v1453 = vpop.permute.xlu0 %1452
        %1454 = vrot.lane.b32.xlu0 %v1414, 96
        %v1455 = vpop.permute.xlu0 %1454
        %1456 = vrot.lane.b32.xlu0 %v1415, 96
        %v1457 = vpop.permute.xlu0 %1456
        %1458 = vrot.lane.b32.xlu0 %v1416, 96
        %v1459 = vpop.permute.xlu0 %1458
        %1460 = vrot.lane.b32.xlu0 %v1417, 96
        %v1461 = vpop.permute.xlu0 %1460
        %1462 = vrot.lane.b32.xlu0 %v1418, 96
        %v1463 = vpop.permute.xlu0 %1462
        %1464 = vrot.lane.b32.xlu0 %v1419, 96
        %v1465 = vpop.permute.xlu0 %1464
        %1466 = vrot.lane.b32.xlu0 %v1420, 96
        %v1467 = vpop.permute.xlu0 %1466
        %1468 = vrot.lane.b32.xlu0 %v1421, 96
        %v1469 = vpop.permute.xlu0 %1468
        %vm1470 = vcmask 64512
        %v1472 = vsel %vm1470, %v1390, 0
        %v1475 = vsel %vm1470, %v1391, 0
        %v1478 = vsel %vm1470, %v1392, 0
        %v1481 = vsel %vm1470, %v1393, 0
        %v1484 = vsel %vm1470, %v1394, 0
        %v1487 = vsel %vm1470, %v1395, 0
        %v1490 = vsel %vm1470, %v1396, 0
        %v1493 = vsel %vm1470, %v1397, 0
        %v1496 = vsel %vm1470, %v1398, 0
        %v1499 = vsel %vm1470, %v1399, 0
        %v1502 = vsel %vm1470, %v1400, 0
        %v1505 = vsel %vm1470, %v1401, 0
        %v1508 = vsel %vm1470, %v1402, 0
        %v1511 = vsel %vm1470, %v1403, 0
        %v1514 = vsel %vm1470, %v1404, 0
        %v1517 = vsel %vm1470, %v1405, 0
        %v1520 = vsel %vm1470, %v1439, 0
        %v1523 = vsel %vm1470, %v1441, 0
        %v1526 = vsel %vm1470, %v1443, 0
        %v1529 = vsel %vm1470, %v1445, 0
        %v1532 = vsel %vm1470, %v1447, 0
        %v1535 = vsel %vm1470, %v1449, 0
        %v1538 = vsel %vm1470, %v1451, 0
        %v1541 = vsel %vm1470, %v1453, 0
        %v1544 = vsel %vm1470, %v1455, 0
        %v1547 = vsel %vm1470, %v1457, 0
        %v1550 = vsel %vm1470, %v1459, 0
        %v1553 = vsel %vm1470, %v1461, 0
        %v1556 = vsel %vm1470, %v1463, 0
        %v1559 = vsel %vm1470, %v1465, 0
        %v1562 = vsel %vm1470, %v1467, 0
        %v1565 = vsel %vm1470, %v1469, 0
        %1567 = vmatprep.subr.bf16.mxu0 0
        %1568 = vmatpush1.bf16.xpose.msra.mxu0 %v1520
        %1569 = vmatprep.subr.bf16.mxu0 0
        %1570 = vmatpush1.bf16.xpose.msra.mxu0 %v1523
        %1571 = vmatprep.subr.bf16.mxu0 0
        %1572 = vmatpush1.bf16.xpose.msra.mxu0 %v1526
        %1573 = vmatprep.subr.bf16.mxu0 0
        %1574 = vmatpush1.bf16.xpose.msra.mxu0 %v1529
        %1575 = vmatprep.subr.bf16.mxu0 0
        %1576 = vmatpush1.bf16.xpose.msra.mxu0 %v1532
        %1577 = vmatprep.subr.bf16.mxu0 0
        %1578 = vmatpush1.bf16.xpose.msra.mxu0 %v1535
        %1579 = vmatprep.subr.bf16.mxu0 0
        %1580 = vmatpush1.bf16.xpose.msra.mxu0 %v1538
        %1581 = vmatprep.subr.bf16.mxu0 0
        %1582 = vmatpush1.bf16.xpose.msra.mxu0 %v1541
        %1583 = vmatprep.subr.bf16.mxu0 0
        %1584 = vmatpush1.bf16.xpose.msra.mxu0 %v1544
        %1585 = vmatprep.subr.bf16.mxu0 0
        %1586 = vmatpush1.bf16.xpose.msra.mxu0 %v1547
        %1587 = vmatprep.subr.bf16.mxu0 0
        %1588 = vmatpush1.bf16.xpose.msra.mxu0 %v1550
        %1589 = vmatprep.subr.bf16.mxu0 0
        %1590 = vmatpush1.bf16.xpose.msra.mxu0 %v1553
        %1591 = vmatprep.subr.bf16.mxu0 0
        %1592 = vmatpush1.bf16.xpose.msra.mxu0 %v1556
        %1593 = vmatprep.subr.bf16.mxu0 0
        %1594 = vmatpush1.bf16.xpose.msra.mxu0 %v1559
        %1595 = vmatprep.subr.bf16.mxu0 0
        %1596 = vmatpush1.bf16.xpose.msra.mxu0 %v1562
        %1597 = vmatprep.subr.bf16.mxu0 0
        %1598 = vmatpush1.bf16.xpose.msra.mxu0 %v1565
        %1599 = vmatprep.mubr.bf16.mxu0 0
        %1600 = vmatmul.mubr.bf16.gmra.mrb[0].mxu0 %v1472
        %v1601 = vpop.f32.mrb[0].mxu0
        %v1602 = vadd.f32 0.0, %v1601
        %v1603 = vpop.f32.mrb[0].mxu0
        %v1604 = vadd.f32 0.0, %v1603
        %v1605 = vpop.f32.mrb[0].mxu0
        %v1606 = vadd.f32 0.0, %v1605
        %v1607 = vpop.f32.mrb[0].mxu0
        %v1608 = vadd.f32 0.0, %v1607
        %1609 = vmatprep.mubr.bf16.mxu0 0
        %1610 = vmatmul.mubr.bf16.gmra.mrb[0].mxu0 %v1475
        %v1611 = vpop.f32.mrb[0].mxu0
        %v1612 = vadd.f32 0.0, %v1611
        %v1613 = vpop.f32.mrb[0].mxu0
        %v1614 = vadd.f32 0.0, %v1613
        %v1615 = vpop.f32.mrb[0].mxu0
        %v1616 = vadd.f32 0.0, %v1615
        %v1617 = vpop.f32.mrb[0].mxu0
        %v1618 = vadd.f32 0.0, %v1617
        %1619 = vmatprep.mubr.bf16.mxu0 0
        %1620 = vmatmul.mubr.bf16.gmra.mrb[0].mxu0 %v1478
        %v1621 = vpop.f32.mrb[0].mxu0
        %v1622 = vadd.f32 0.0, %v1621
        %v1623 = vpop.f32.mrb[0].mxu0
        %v1624 = vadd.f32 0.0, %v1623
        %v1625 = vpop.f32.mrb[0].mxu0
        %v1626 = vadd.f32 0.0, %v1625
        %v1627 = vpop.f32.mrb[0].mxu0
        %v1628 = vadd.f32 0.0, %v1627
        %1629 = vmatprep.mubr.bf16.mxu0 0
        %1630 = vmatmul.mubr.bf16.gmra.mrb[0].mxu0 %v1481
        %v1631 = vpop.f32.mrb[0].mxu0
        %v1632 = vadd.f32 0.0, %v1631
        %v1633 = vpop.f32.mrb[0].mxu0
        %v1634 = vadd.f32 0.0, %v1633
        %v1635 = vpop.f32.mrb[0].mxu0
        %v1636 = vadd.f32 0.0, %v1635
        %v1637 = vpop.f32.mrb[0].mxu0
        %v1638 = vadd.f32 0.0, %v1637
        %1639 = vmatprep.mubr.bf16.mxu0 0
        %1640 = vmatmul.mubr.bf16.gmra.mrb[0].mxu0 %v1484
        %v1641 = vpop.f32.mrb[0].mxu0
        %v1642 = vadd.f32 0.0, %v1641
        %v1643 = vpop.f32.mrb[0].mxu0
        %v1644 = vadd.f32 0.0, %v1643
        %v1645 = vpop.f32.mrb[0].mxu0
        %v1646 = vadd.f32 0.0, %v1645
        %v1647 = vpop.f32.mrb[0].mxu0
        %v1648 = vadd.f32 0.0, %v1647
        %1649 = vmatprep.mubr.bf16.mxu0 0
        %1650 = vmatmul.mubr.bf16.gmra.mrb[0].mxu0 %v1487
        %v1651 = vpop.f32.mrb[0].mxu0
        %v1652 = vadd.f32 0.0, %v1651
        %v1653 = vpop.f32.mrb[0].mxu0
        %v1654 = vadd.f32 0.0, %v1653
        %v1655 = vpop.f32.mrb[0].mxu0
        %v1656 = vadd.f32 0.0, %v1655
        %v1657 = vpop.f32.mrb[0].mxu0
        %v1658 = vadd.f32 0.0, %v1657
        %1659 = vmatprep.mubr.bf16.mxu0 0
        %1660 = vmatmul.mubr.bf16.gmra.mrb[0].mxu0 %v1490
        %v1661 = vpop.f32.mrb[0].mxu0
        %v1662 = vadd.f32 0.0, %v1661
        %v1663 = vpop.f32.mrb[0].mxu0
        %v1664 = vadd.f32 0.0, %v1663
        %v1665 = vpop.f32.mrb[0].mxu0
        %v1666 = vadd.f32 0.0, %v1665
        %v1667 = vpop.f32.mrb[0].mxu0
        %v1668 = vadd.f32 0.0, %v1667
        %1669 = vmatprep.mubr.bf16.mxu0 0
        %1670 = vmatmul.mubr.bf16.gmra.mrb[0].mxu0 %v1493
        %v1671 = vpop.f32.mrb[0].mxu0
        %v1672 = vadd.f32 0.0, %v1671
        %v1673 = vpop.f32.mrb[0].mxu0
        %v1674 = vadd.f32 0.0, %v1673
        %v1675 = vpop.f32.mrb[0].mxu0
        %v1676 = vadd.f32 0.0, %v1675
        %v1677 = vpop.f32.mrb[0].mxu0
        %v1678 = vadd.f32 0.0, %v1677
        %1679 = vmatprep.mubr.bf16.mxu0 0
        %1680 = vmatmul.mubr.bf16.gmra.mrb[0].mxu0 %v1496
        %v1681 = vpop.f32.mrb[0].mxu0
        %v1682 = vadd.f32 0.0, %v1681
        %v1683 = vpop.f32.mrb[0].mxu0
        %v1684 = vadd.f32 0.0, %v1683
        %v1685 = vpop.f32.mrb[0].mxu0
        %v1686 = vadd.f32 0.0, %v1685
        %v1687 = vpop.f32.mrb[0].mxu0
        %v1688 = vadd.f32 0.0, %v1687
        %1689 = vmatprep.mubr.bf16.mxu0 0
        %1690 = vmatmul.mubr.bf16.gmra.mrb[0].mxu0 %v1499
        %v1691 = vpop.f32.mrb[0].mxu0
        %v1692 = vadd.f32 0.0, %v1691
        %v1693 = vpop.f32.mrb[0].mxu0
        %v1694 = vadd.f32 0.0, %v1693
        %v1695 = vpop.f32.mrb[0].mxu0
        %v1696 = vadd.f32 0.0, %v1695
        %v1697 = vpop.f32.mrb[0].mxu0
        %v1698 = vadd.f32 0.0, %v1697
        %1699 = vmatprep.mubr.bf16.mxu0 0
        %1700 = vmatmul.mubr.bf16.gmra.mrb[0].mxu0 %v1502
        %v1701 = vpop.f32.mrb[0].mxu0
        %v1702 = vadd.f32 0.0, %v1701
        %v1703 = vpop.f32.mrb[0].mxu0
        %v1704 = vadd.f32 0.0, %v1703
        %v1705 = vpop.f32.mrb[0].mxu0
        %v1706 = vadd.f32 0.0, %v1705
        %v1707 = vpop.f32.mrb[0].mxu0
        %v1708 = vadd.f32 0.0, %v1707
        %1709 = vmatprep.mubr.bf16.mxu0 0
        %1710 = vmatmul.mubr.bf16.gmra.mrb[0].mxu0 %v1505
        %v1711 = vpop.f32.mrb[0].mxu0
        %v1712 = vadd.f32 0.0, %v1711
        %v1713 = vpop.f32.mrb[0].mxu0
        %v1714 = vadd.f32 0.0, %v1713
        %v1715 = vpop.f32.mrb[0].mxu0
        %v1716 = vadd.f32 0.0, %v1715
        %v1717 = vpop.f32.mrb[0].mxu0
        %v1718 = vadd.f32 0.0, %v1717
        %1719 = vmatprep.mubr.bf16.mxu0 0
        %1720 = vmatmul.mubr.bf16.gmra.mrb[0].mxu0 %v1508
        %v1721 = vpop.f32.mrb[0].mxu0
        %v1722 = vadd.f32 0.0, %v1721
        %v1723 = vpop.f32.mrb[0].mxu0
        %v1724 = vadd.f32 0.0, %v1723
        %v1725 = vpop.f32.mrb[0].mxu0
        %v1726 = vadd.f32 0.0, %v1725
        %v1727 = vpop.f32.mrb[0].mxu0
        %v1728 = vadd.f32 0.0, %v1727
        %1729 = vmatprep.mubr.bf16.mxu0 0
        %1730 = vmatmul.mubr.bf16.gmra.mrb[0].mxu0 %v1511
        %v1731 = vpop.f32.mrb[0].mxu0
        %v1732 = vadd.f32 0.0, %v1731
        %v1733 = vpop.f32.mrb[0].mxu0
        %v1734 = vadd.f32 0.0, %v1733
        %v1735 = vpop.f32.mrb[0].mxu0
        %v1736 = vadd.f32 0.0, %v1735
        %v1737 = vpop.f32.mrb[0].mxu0
        %v1738 = vadd.f32 0.0, %v1737
        %1739 = vmatprep.mubr.bf16.mxu0 0
        %1740 = vmatmul.mubr.bf16.gmra.mrb[0].mxu0 %v1514
        %v1741 = vpop.f32.mrb[0].mxu0
        %v1742 = vadd.f32 0.0, %v1741
        %v1743 = vpop.f32.mrb[0].mxu0
        %v1744 = vadd.f32 0.0, %v1743
        %v1745 = vpop.f32.mrb[0].mxu0
        %v1746 = vadd.f32 0.0, %v1745
        %v1747 = vpop.f32.mrb[0].mxu0
        %v1748 = vadd.f32 0.0, %v1747
        %1749 = vmatprep.mubr.bf16.mxu0 0
        %1750 = vmatmul.mubr.bf16.gmra.mrb[0].mxu0 %v1517
        %v1751 = vpop.f32.mrb[0].mxu0
        %v1752 = vadd.f32 0.0, %v1751
        %v1753 = vpop.f32.mrb[0].mxu0
        %v1754 = vadd.f32 0.0, %v1753
        %v1755 = vpop.f32.mrb[0].mxu0
        %v1756 = vadd.f32 0.0, %v1755
        %v1757 = vpop.f32.mrb[0].mxu0
        %v1758 = vadd.f32 0.0, %v1757
        %1759 = vdwg.mxu0
        %v1760 = vmax.f32 %v1602, %v1604
        %1761 = vmax.xlane.f32.xlu0 %v1760
        %v1762 = vpop.xlane.xlu0 %1761
        %v1763 = vmax.f32 %v1606, %v1608
        %1764 = vmax.xlane.f32.xlu0 %v1763
        %v1765 = vpop.xlane.xlu0 %1764
        %v1766 = vmax.f32 %v1612, %v1614
        %1767 = vmax.xlane.f32.xlu0 %v1766
        %v1768 = vpop.xlane.xlu0 %1767
        %v1769 = vmax.f32 %v1616, %v1618
        %1770 = vmax.xlane.f32.xlu0 %v1769
        %v1771 = vpop.xlane.xlu0 %1770
        %v1772 = vmax.f32 %v1622, %v1624
        %1773 = vmax.xlane.f32.xlu0 %v1772
        %v1774 = vpop.xlane.xlu0 %1773
        %v1775 = vmax.f32 %v1626, %v1628
        %1776 = vmax.xlane.f32.xlu0 %v1775
        %v1777 = vpop.xlane.xlu0 %1776
        %v1778 = vmax.f32 %v1632, %v1634
        %1779 = vmax.xlane.f32.xlu0 %v1778
        %v1780 = vpop.xlane.xlu0 %1779
        %v1781 = vmax.f32 %v1636, %v1638
        %1782 = vmax.xlane.f32.xlu0 %v1781
        %v1783 = vpop.xlane.xlu0 %1782
        %v1784 = vmax.f32 %v1642, %v1644
        %1785 = vmax.xlane.f32.xlu0 %v1784
        %v1786 = vpop.xlane.xlu0 %1785
        %v1787 = vmax.f32 %v1646, %v1648
        %1788 = vmax.xlane.f32.xlu0 %v1787
        %v1789 = vpop.xlane.xlu0 %1788
        %v1790 = vmax.f32 %v1652, %v1654
        %1791 = vmax.xlane.f32.xlu0 %v1790
        %v1792 = vpop.xlane.xlu0 %1791
        %v1793 = vmax.f32 %v1656, %v1658
        %1794 = vmax.xlane.f32.xlu0 %v1793
        %v1795 = vpop.xlane.xlu0 %1794
        %v1796 = vmax.f32 %v1662, %v1664
        %1797 = vmax.xlane.f32.xlu0 %v1796
        %v1798 = vpop.xlane.xlu0 %1797
        %v1799 = vmax.f32 %v1666, %v1668
        %1800 = vmax.xlane.f32.xlu0 %v1799
        %v1801 = vpop.xlane.xlu0 %1800
        %v1802 = vmax.f32 %v1672, %v1674
        %1803 = vmax.xlane.f32.xlu0 %v1802
        %v1804 = vpop.xlane.xlu0 %1803
        %v1805 = vmax.f32 %v1676, %v1678
        %1806 = vmax.xlane.f32.xlu0 %v1805
        %v1807 = vpop.xlane.xlu0 %1806
        %v1808 = vmax.f32 %v1682, %v1684
        %1809 = vmax.xlane.f32.xlu0 %v1808
        %v1810 = vpop.xlane.xlu0 %1809
        %v1811 = vmax.f32 %v1686, %v1688
        %1812 = vmax.xlane.f32.xlu0 %v1811
        %v1813 = vpop.xlane.xlu0 %1812
        %v1814 = vmax.f32 %v1692, %v1694
        %1815 = vmax.xlane.f32.xlu0 %v1814
        %v1816 = vpop.xlane.xlu0 %1815
        %v1817 = vmax.f32 %v1696, %v1698
        %1818 = vmax.xlane.f32.xlu0 %v1817
        %v1819 = vpop.xlane.xlu0 %1818
        %v1820 = vmax.f32 %v1702, %v1704
        %1821 = vmax.xlane.f32.xlu0 %v1820
        %v1822 = vpop.xlane.xlu0 %1821
        %v1823 = vmax.f32 %v1706, %v1708
        %1824 = vmax.xlane.f32.xlu0 %v1823
        %v1825 = vpop.xlane.xlu0 %1824
        %v1826 = vmax.f32 %v1712, %v1714
        %1827 = vmax.xlane.f32.xlu0 %v1826
        %v1828 = vpop.xlane.xlu0 %1827
        %v1829 = vmax.f32 %v1716, %v1718
        %1830 = vmax.xlane.f32.xlu0 %v1829
        %v1831 = vpop.xlane.xlu0 %1830
        %v1832 = vmax.f32 %v1722, %v1724
        %1833 = vmax.xlane.f32.xlu0 %v1832
        %v1834 = vpop.xlane.xlu0 %1833
        %v1835 = vmax.f32 %v1726, %v1728
        %1836 = vmax.xlane.f32.xlu0 %v1835
        %v1837 = vpop.xlane.xlu0 %1836
        %v1838 = vmax.f32 %v1732, %v1734
        %1839 = vmax.xlane.f32.xlu0 %v1838
        %v1840 = vpop.xlane.xlu0 %1839
        %v1841 = vmax.f32 %v1736, %v1738
        %1842 = vmax.xlane.f32.xlu0 %v1841
        %v1843 = vpop.xlane.xlu0 %1842
        %v1844 = vmax.f32 %v1742, %v1744
        %1845 = vmax.xlane.f32.xlu0 %v1844
        %v1846 = vpop.xlane.xlu0 %1845
        %v1847 = vmax.f32 %v1746, %v1748
        %1848 = vmax.xlane.f32.xlu0 %v1847
        %v1849 = vpop.xlane.xlu0 %1848
        %v1850 = vmax.f32 %v1752, %v1754
        %1851 = vmax.xlane.f32.xlu0 %v1850
        %v1852 = vpop.xlane.xlu0 %1851
        %v1853 = vmax.f32 %v1756, %v1758
        %1854 = vmax.xlane.f32.xlu0 %v1853
        %v1855 = vpop.xlane.xlu0 %1854
        %v1856 = vsub.f32 %v1602, %v1762
        %v1857 = vsub.f32 %v1604, %v1762
        %v1858 = vsub.f32 %v1606, %v1765
        %v1859 = vsub.f32 %v1608, %v1765
        %v1860 = vsub.f32 %v1612, %v1768
        %v1861 = vsub.f32 %v1614, %v1768
        %v1862 = vsub.f32 %v1616, %v1771
        %v1863 = vsub.f32 %v1618, %v1771
        %v1864 = vsub.f32 %v1622, %v1774
        %v1865 = vsub.f32 %v1624, %v1774
        %v1866 = vsub.f32 %v1626, %v1777
        %v1867 = vsub.f32 %v1628, %v1777
        %v1868 = vsub.f32 %v1632, %v1780
        %v1869 = vsub.f32 %v1634, %v1780
        %v1870 = vsub.f32 %v1636, %v1783
        %v1871 = vsub.f32 %v1638, %v1783
        %v1872 = vsub.f32 %v1642, %v1786
        %v1873 = vsub.f32 %v1644, %v1786
        %v1874 = vsub.f32 %v1646, %v1789
        %v1875 = vsub.f32 %v1648, %v1789
        %v1876 = vsub.f32 %v1652, %v1792
        %v1877 = vsub.f32 %v1654, %v1792
        %v1878 = vsub.f32 %v1656, %v1795
        %v1879 = vsub.f32 %v1658, %v1795
        %v1880 = vsub.f32 %v1662, %v1798
        %v1881 = vsub.f32 %v1664, %v1798
        %v1882 = vsub.f32 %v1666, %v1801
        %v1883 = vsub.f32 %v1668, %v1801
        %v1884 = vsub.f32 %v1672, %v1804
        %v1885 = vsub.f32 %v1674, %v1804
        %v1886 = vsub.f32 %v1676, %v1807
        %v1887 = vsub.f32 %v1678, %v1807
        %v1888 = vsub.f32 %v1682, %v1810
        %v1889 = vsub.f32 %v1684, %v1810
        %v1890 = vsub.f32 %v1686, %v1813
        %v1891 = vsub.f32 %v1688, %v1813
        %v1892 = vsub.f32 %v1692, %v1816
        %v1893 = vsub.f32 %v1694, %v1816
        %v1894 = vsub.f32 %v1696, %v1819
        %v1895 = vsub.f32 %v1698, %v1819
        %v1896 = vsub.f32 %v1702, %v1822
        %v1897 = vsub.f32 %v1704, %v1822
        %v1898 = vsub.f32 %v1706, %v1825
        %v1899 = vsub.f32 %v1708, %v1825
        %v1900 = vsub.f32 %v1712, %v1828
        %v1901 = vsub.f32 %v1714, %v1828
        %v1902 = vsub.f32 %v1716, %v1831
        %v1903 = vsub.f32 %v1718, %v1831
        %v1904 = vsub.f32 %v1722, %v1834
        %v1905 = vsub.f32 %v1724, %v1834
        %v1906 = vsub.f32 %v1726, %v1837
        %v1907 = vsub.f32 %v1728, %v1837
        %v1908 = vsub.f32 %v1732, %v1840
        %v1909 = vsub.f32 %v1734, %v1840
        %v1910 = vsub.f32 %v1736, %v1843
        %v1911 = vsub.f32 %v1738, %v1843
        %v1912 = vsub.f32 %v1742, %v1846
        %v1913 = vsub.f32 %v1744, %v1846
        %v1914 = vsub.f32 %v1746, %v1849
        %v1915 = vsub.f32 %v1748, %v1849
        %v1916 = vsub.f32 %v1752, %v1852
        %v1917 = vsub.f32 %v1754, %v1852
        %v1918 = vsub.f32 %v1756, %v1855
        %v1919 = vsub.f32 %v1758, %v1855
        %v1920 = vmul.f32 %v1856, 1.442695
        %v1921 = vpow.pop %v1920
        %v1922 = vmul.f32 %v1857, 1.442695
        %v1923 = vpow.pop %v1922
        %v1924 = vmul.f32 %v1858, 1.442695
        %v1925 = vpow.pop %v1924
        %v1926 = vmul.f32 %v1859, 1.442695
        %v1927 = vpow.pop %v1926
        %v1928 = vmul.f32 %v1860, 1.442695
        %v1929 = vpow.pop %v1928
        %v1930 = vmul.f32 %v1861, 1.442695
        %v1931 = vpow.pop %v1930
        %v1932 = vmul.f32 %v1862, 1.442695
        %v1933 = vpow.pop %v1932
        %v1934 = vmul.f32 %v1863, 1.442695
        %v1935 = vpow.pop %v1934
        %v1936 = vmul.f32 %v1864, 1.442695
        %v1937 = vpow.pop %v1936
        %v1938 = vmul.f32 %v1865, 1.442695
        %v1939 = vpow.pop %v1938
        %v1940 = vmul.f32 %v1866, 1.442695
        %v1941 = vpow.pop %v1940
        %v1942 = vmul.f32 %v1867, 1.442695
        %v1943 = vpow.pop %v1942
        %v1944 = vmul.f32 %v1868, 1.442695
        %v1945 = vpow.pop %v1944
        %v1946 = vmul.f32 %v1869, 1.442695
        %v1947 = vpow.pop %v1946
        %v1948 = vmul.f32 %v1870, 1.442695
        %v1949 = vpow.pop %v1948
        %v1950 = vmul.f32 %v1871, 1.442695
        %v1951 = vpow.pop %v1950
        %v1952 = vmul.f32 %v1872, 1.442695
        %v1953 = vpow.pop %v1952
        %v1954 = vmul.f32 %v1873, 1.442695
        %v1955 = vpow.pop %v1954
        %v1956 = vmul.f32 %v1874, 1.442695
        %v1957 = vpow.pop %v1956
        %v1958 = vmul.f32 %v1875, 1.442695
        %v1959 = vpow.pop %v1958
        %v1960 = vmul.f32 %v1876, 1.442695
        %v1961 = vpow.pop %v1960
        %v1962 = vmul.f32 %v1877, 1.442695
        %v1963 = vpow.pop %v1962
        %v1964 = vmul.f32 %v1878, 1.442695
        %v1965 = vpow.pop %v1964
        %v1966 = vmul.f32 %v1879, 1.442695
        %v1967 = vpow.pop %v1966
        %v1968 = vmul.f32 %v1880, 1.442695
        %v1969 = vpow.pop %v1968
        %v1970 = vmul.f32 %v1881, 1.442695
        %v1971 = vpow.pop %v1970
        %v1972 = vmul.f32 %v1882, 1.442695
        %v1973 = vpow.pop %v1972
        %v1974 = vmul.f32 %v1883, 1.442695
        %v1975 = vpow.pop %v1974
        %v1976 = vmul.f32 %v1884, 1.442695
        %v1977 = vpow.pop %v1976
        %v1978 = vmul.f32 %v1885, 1.442695
        %v1979 = vpow.pop %v1978
        %v1980 = vmul.f32 %v1886, 1.442695
        %v1981 = vpow.pop %v1980
        %v1982 = vmul.f32 %v1887, 1.442695
        %v1983 = vpow.pop %v1982
        %v1984 = vmul.f32 %v1888, 1.442695
        %v1985 = vpow.pop %v1984
        %v1986 = vmul.f32 %v1889, 1.442695
        %v1987 = vpow.pop %v1986
        %v1988 = vmul.f32 %v1890, 1.442695
        %v1989 = vpow.pop %v1988
        %v1990 = vmul.f32 %v1891, 1.442695
        %v1991 = vpow.pop %v1990
        %v1992 = vmul.f32 %v1892, 1.442695
        %v1993 = vpow.pop %v1992
        %v1994 = vmul.f32 %v1893, 1.442695
        %v1995 = vpow.pop %v1994
        %v1996 = vmul.f32 %v1894, 1.442695
        %v1997 = vpow.pop %v1996
        %v1998 = vmul.f32 %v1895, 1.442695
        %v1999 = vpow.pop %v1998
        %v2000 = vmul.f32 %v1896, 1.442695
        %v2001 = vpow.pop %v2000
        %v2002 = vmul.f32 %v1897, 1.442695
        %v2003 = vpow.pop %v2002
        %v2004 = vmul.f32 %v1898, 1.442695
        %v2005 = vpow.pop %v2004
        %v2006 = vmul.f32 %v1899, 1.442695
        %v2007 = vpow.pop %v2006
        %v2008 = vmul.f32 %v1900, 1.442695
        %v2009 = vpow.pop %v2008
        %v2010 = vmul.f32 %v1901, 1.442695
        %v2011 = vpow.pop %v2010
        %v2012 = vmul.f32 %v1902, 1.442695
        %v2013 = vpow.pop %v2012
        %v2014 = vmul.f32 %v1903, 1.442695
        %v2015 = vpow.pop %v2014
        %v2016 = vmul.f32 %v1904, 1.442695
        %v2017 = vpow.pop %v2016
        %v2018 = vmul.f32 %v1905, 1.442695
        %v2019 = vpow.pop %v2018
        %v2020 = vmul.f32 %v1906, 1.442695
        %v2021 = vpow.pop %v2020
        %v2022 = vmul.f32 %v1907, 1.442695
        %v2023 = vpow.pop %v2022
        %v2024 = vmul.f32 %v1908, 1.442695
        %v2025 = vpow.pop %v2024
        %v2026 = vmul.f32 %v1909, 1.442695
        %v2027 = vpow.pop %v2026
        %v2028 = vmul.f32 %v1910, 1.442695
        %v2029 = vpow.pop %v2028
        %v2030 = vmul.f32 %v1911, 1.442695
        %v2031 = vpow.pop %v2030
        %v2032 = vmul.f32 %v1912, 1.442695
        %v2033 = vpow.pop %v2032
        %v2034 = vmul.f32 %v1913, 1.442695
        %v2035 = vpow.pop %v2034
        %v2036 = vmul.f32 %v1914, 1.442695
        %v2037 = vpow.pop %v2036
        %v2038 = vmul.f32 %v1915, 1.442695
        %v2039 = vpow.pop %v2038
        %v2040 = vmul.f32 %v1916, 1.442695
        %v2041 = vpow.pop %v2040
        %v2042 = vmul.f32 %v1917, 1.442695
        %v2043 = vpow.pop %v2042
        %v2044 = vmul.f32 %v1918, 1.442695
        %v2045 = vpow.pop %v2044
        %v2046 = vmul.f32 %v1919, 1.442695
        %v2047 = vpow.pop %v2046
        %v2048 = vadd.f32 %v1921, %v1923
        %2049 = vadd.xlane.f32.xlu0 %v2048
        %v2050 = vpop.xlane.xlu0 %2049
        %v2051 = vadd.f32 %v1925, %v1927
        %2052 = vadd.xlane.f32.xlu0 %v2051
        %v2053 = vpop.xlane.xlu0 %2052
        %v2054 = vadd.f32 %v1929, %v1931
        %2055 = vadd.xlane.f32.xlu0 %v2054
        %v2056 = vpop.xlane.xlu0 %2055
        %v2057 = vadd.f32 %v1933, %v1935
        %2058 = vadd.xlane.f32.xlu0 %v2057
        %v2059 = vpop.xlane.xlu0 %2058
        %v2060 = vadd.f32 %v1937, %v1939
        %2061 = vadd.xlane.f32.xlu0 %v2060
        %v2062 = vpop.xlane.xlu0 %2061
        %v2063 = vadd.f32 %v1941, %v1943
        %2064 = vadd.xlane.f32.xlu0 %v2063
        %v2065 = vpop.xlane.xlu0 %2064
        %v2066 = vadd.f32 %v1945, %v1947
        %2067 = vadd.xlane.f32.xlu0 %v2066
        %v2068 = vpop.xlane.xlu0 %2067
        %v2069 = vadd.f32 %v1949, %v1951
        %2070 = vadd.xlane.f32.xlu0 %v2069
        %v2071 = vpop.xlane.xlu0 %2070
        %v2072 = vadd.f32 %v1953, %v1955
        %2073 = vadd.xlane.f32.xlu0 %v2072
        %v2074 = vpop.xlane.xlu0 %2073
        %v2075 = vadd.f32 %v1957, %v1959
        %2076 = vadd.xlane.f32.xlu0 %v2075
        %v2077 = vpop.xlane.xlu0 %2076
        %v2078 = vadd.f32 %v1961, %v1963
        %2079 = vadd.xlane.f32.xlu0 %v2078
        %v2080 = vpop.xlane.xlu0 %2079
        %v2081 = vadd.f32 %v1965, %v1967
        %2082 = vadd.xlane.f32.xlu0 %v2081
        %v2083 = vpop.xlane.xlu0 %2082
        %v2084 = vadd.f32 %v1969, %v1971
        %2085 = vadd.xlane.f32.xlu0 %v2084
        %v2086 = vpop.xlane.xlu0 %2085
        %v2087 = vadd.f32 %v1973, %v1975
        %2088 = vadd.xlane.f32.xlu0 %v2087
        %v2089 = vpop.xlane.xlu0 %2088
        %v2090 = vadd.f32 %v1977, %v1979
        %2091 = vadd.xlane.f32.xlu0 %v2090
        %v2092 = vpop.xlane.xlu0 %2091
        %v2093 = vadd.f32 %v1981, %v1983
        %2094 = vadd.xlane.f32.xlu0 %v2093
        %v2095 = vpop.xlane.xlu0 %2094
        %v2096 = vadd.f32 %v1985, %v1987
        %2097 = vadd.xlane.f32.xlu0 %v2096
        %v2098 = vpop.xlane.xlu0 %2097
        %v2099 = vadd.f32 %v1989, %v1991
        %2100 = vadd.xlane.f32.xlu0 %v2099
        %v2101 = vpop.xlane.xlu0 %2100
        %v2102 = vadd.f32 %v1993, %v1995
        %2103 = vadd.xlane.f32.xlu0 %v2102
        %v2104 = vpop.xlane.xlu0 %2103
        %v2105 = vadd.f32 %v1997, %v1999
        %2106 = vadd.xlane.f32.xlu0 %v2105
        %v2107 = vpop.xlane.xlu0 %2106
        %v2108 = vadd.f32 %v2001, %v2003
        %2109 = vadd.xlane.f32.xlu0 %v2108
        %v2110 = vpop.xlane.xlu0 %2109
        %v2111 = vadd.f32 %v2005, %v2007
        %2112 = vadd.xlane.f32.xlu0 %v2111
        %v2113 = vpop.xlane.xlu0 %2112
        %v2114 = vadd.f32 %v2009, %v2011
        %2115 = vadd.xlane.f32.xlu0 %v2114
        %v2116 = vpop.xlane.xlu0 %2115
        %v2117 = vadd.f32 %v2013, %v2015
        %2118 = vadd.xlane.f32.xlu0 %v2117
        %v2119 = vpop.xlane.xlu0 %2118
        %v2120 = vadd.f32 %v2017, %v2019
        %2121 = vadd.xlane.f32.xlu0 %v2120
        %v2122 = vpop.xlane.xlu0 %2121
        %v2123 = vadd.f32 %v2021, %v2023
        %2124 = vadd.xlane.f32.xlu0 %v2123
        %v2125 = vpop.xlane.xlu0 %2124
        %v2126 = vadd.f32 %v2025, %v2027
        %2127 = vadd.xlane.f32.xlu0 %v2126
        %v2128 = vpop.xlane.xlu0 %2127
        %v2129 = vadd.f32 %v2029, %v2031
        %2130 = vadd.xlane.f32.xlu0 %v2129
        %v2131 = vpop.xlane.xlu0 %2130
        %v2132 = vadd.f32 %v2033, %v2035
        %2133 = vadd.xlane.f32.xlu0 %v2132
        %v2134 = vpop.xlane.xlu0 %2133
        %v2135 = vadd.f32 %v2037, %v2039
        %2136 = vadd.xlane.f32.xlu0 %v2135
        %v2137 = vpop.xlane.xlu0 %2136
        %v2138 = vadd.f32 %v2041, %v2043
        %2139 = vadd.xlane.f32.xlu0 %v2138
        %v2140 = vpop.xlane.xlu0 %2139
        %v2141 = vadd.f32 %v2045, %v2047
        %2142 = vadd.xlane.f32.xlu0 %v2141
        %v2143 = vpop.xlane.xlu0 %2142
        %v2144 = vrcp.pop %v2050
        %v2145 = vrcp.pop %v2053
        %v2146 = vrcp.pop %v2056
        %v2147 = vrcp.pop %v2059
        %v2148 = vrcp.pop %v2062
        %v2149 = vrcp.pop %v2065
        %v2150 = vrcp.pop %v2068
        %v2151 = vrcp.pop %v2071
        %v2152 = vrcp.pop %v2074
        %v2153 = vrcp.pop %v2077
        %v2154 = vrcp.pop %v2080
        %v2155 = vrcp.pop %v2083
        %v2156 = vrcp.pop %v2086
        %v2157 = vrcp.pop %v2089
        %v2158 = vrcp.pop %v2092
        %v2159 = vrcp.pop %v2095
        %v2160 = vrcp.pop %v2098
        %v2161 = vrcp.pop %v2101
        %v2162 = vrcp.pop %v2104
        %v2163 = vrcp.pop %v2107
        %v2164 = vrcp.pop %v2110
        %v2165 = vrcp.pop %v2113
        %v2166 = vrcp.pop %v2116
        %v2167 = vrcp.pop %v2119
        %v2168 = vrcp.pop %v2122
        %v2169 = vrcp.pop %v2125
        %v2170 = vrcp.pop %v2128
        %v2171 = vrcp.pop %v2131
        %v2172 = vrcp.pop %v2134
        %v2173 = vrcp.pop %v2137
        %v2174 = vrcp.pop %v2140
        %v2175 = vrcp.pop %v2143
        %v2176 = vmul.f32 %v1921, %v2144
        %v2177 = vmul.f32 %v1923, %v2144
        %v2178 = vmul.f32 %v1925, %v2145
        %v2179 = vmul.f32 %v1927, %v2145
        %v2180 = vmul.f32 %v1929, %v2146
        %v2181 = vmul.f32 %v1931, %v2146
        %v2182 = vmul.f32 %v1933, %v2147
        %v2183 = vmul.f32 %v1935, %v2147
        %v2184 = vmul.f32 %v1937, %v2148
        %v2185 = vmul.f32 %v1939, %v2148
        %v2186 = vmul.f32 %v1941, %v2149
        %v2187 = vmul.f32 %v1943, %v2149
        %v2188 = vmul.f32 %v1945, %v2150
        %v2189 = vmul.f32 %v1947, %v2150
        %v2190 = vmul.f32 %v1949, %v2151
        %v2191 = vmul.f32 %v1951, %v2151
        %v2192 = vmul.f32 %v1953, %v2152
        %v2193 = vmul.f32 %v1955, %v2152
        %v2194 = vmul.f32 %v1957, %v2153
        %v2195 = vmul.f32 %v1959, %v2153
        %v2196 = vmul.f32 %v1961, %v2154
        %v2197 = vmul.f32 %v1963, %v2154
        %v2198 = vmul.f32 %v1965, %v2155
        %v2199 = vmul.f32 %v1967, %v2155
        %v2200 = vmul.f32 %v1969, %v2156
        %v2201 = vmul.f32 %v1971, %v2156
        %v2202 = vmul.f32 %v1973, %v2157
        %v2203 = vmul.f32 %v1975, %v2157
        %v2204 = vmul.f32 %v1977, %v2158
        %v2205 = vmul.f32 %v1979, %v2158
        %v2206 = vmul.f32 %v1981, %v2159
        %v2207 = vmul.f32 %v1983, %v2159
        %v2208 = vmul.f32 %v1985, %v2160
        %v2209 = vmul.f32 %v1987, %v2160
        %v2210 = vmul.f32 %v1989, %v2161
        %v2211 = vmul.f32 %v1991, %v2161
        %v2212 = vmul.f32 %v1993, %v2162
        %v2213 = vmul.f32 %v1995, %v2162
        %v2214 = vmul.f32 %v1997, %v2163
        %v2215 = vmul.f32 %v1999, %v2163
        %v2216 = vmul.f32 %v2001, %v2164
        %v2217 = vmul.f32 %v2003, %v2164
        %v2218 = vmul.f32 %v2005, %v2165
        %v2219 = vmul.f32 %v2007, %v2165
        %v2220 = vmul.f32 %v2009, %v2166
        %v2221 = vmul.f32 %v2011, %v2166
        %v2222 = vmul.f32 %v2013, %v2167
        %v2223 = vmul.f32 %v2015, %v2167
        %v2224 = vmul.f32 %v2017, %v2168
        %v2225 = vmul.f32 %v2019, %v2168
        %v2226 = vmul.f32 %v2021, %v2169
        %v2227 = vmul.f32 %v2023, %v2169
        %v2228 = vmul.f32 %v2025, %v2170
        %v2229 = vmul.f32 %v2027, %v2170
        %v2230 = vmul.f32 %v2029, %v2171
        %v2231 = vmul.f32 %v2031, %v2171
        %v2232 = vmul.f32 %v2033, %v2172
        %v2233 = vmul.f32 %v2035, %v2172
        %v2234 = vmul.f32 %v2037, %v2173
        %v2235 = vmul.f32 %v2039, %v2173
        %v2236 = vmul.f32 %v2041, %v2174
        %v2237 = vmul.f32 %v2043, %v2174
        %v2238 = vmul.f32 %v2045, %v2175
        %v2239 = vmul.f32 %v2047, %v2175
        %v2240 = vpack.c.bf16 %v2178, %v2176
        %v2241 = vpack.c.bf16 %v2179, %v2177
        %v2242 = vpack.c.bf16 %v2182, %v2180
        %v2243 = vpack.c.bf16 %v2183, %v2181
        %v2244 = vpack.c.bf16 %v2186, %v2184
        %v2245 = vpack.c.bf16 %v2187, %v2185
        %v2246 = vpack.c.bf16 %v2190, %v2188
        %v2247 = vpack.c.bf16 %v2191, %v2189
        %v2248 = vpack.c.bf16 %v2194, %v2192
        %v2249 = vpack.c.bf16 %v2195, %v2193
        %v2250 = vpack.c.bf16 %v2198, %v2196
        %v2251 = vpack.c.bf16 %v2199, %v2197
        %v2252 = vpack.c.bf16 %v2202, %v2200
        %v2253 = vpack.c.bf16 %v2203, %v2201
        %v2254 = vpack.c.bf16 %v2206, %v2204
        %v2255 = vpack.c.bf16 %v2207, %v2205
        %v2256 = vpack.c.bf16 %v2210, %v2208
        %v2257 = vpack.c.bf16 %v2211, %v2209
        %v2258 = vpack.c.bf16 %v2214, %v2212
        %v2259 = vpack.c.bf16 %v2215, %v2213
        %v2260 = vpack.c.bf16 %v2218, %v2216
        %v2261 = vpack.c.bf16 %v2219, %v2217
        %v2262 = vpack.c.bf16 %v2222, %v2220
        %v2263 = vpack.c.bf16 %v2223, %v2221
        %v2264 = vpack.c.bf16 %v2226, %v2224
        %v2265 = vpack.c.bf16 %v2227, %v2225
        %v2266 = vpack.c.bf16 %v2230, %v2228
        %v2267 = vpack.c.bf16 %v2231, %v2229
        %v2268 = vpack.c.bf16 %v2234, %v2232
        %v2269 = vpack.c.bf16 %v2235, %v2233
        %v2270 = vpack.c.bf16 %v2238, %v2236
        %v2271 = vpack.c.bf16 %v2239, %v2237
        %2272 = vrot.lane.b32.xlu0 %v1406, 64
        %v2273 = vpop.permute.xlu0 %2272
        %2274 = vrot.lane.b32.xlu0 %v1407, 64
        %v2275 = vpop.permute.xlu0 %2274
        %2276 = vrot.lane.b32.xlu0 %v1408, 64
        %v2277 = vpop.permute.xlu0 %2276
        %2278 = vrot.lane.b32.xlu0 %v1409, 64
        %v2279 = vpop.permute.xlu0 %2278
        %2280 = vrot.lane.b32.xlu0 %v1410, 64
        %v2281 = vpop.permute.xlu0 %2280
        %2282 = vrot.lane.b32.xlu0 %v1411, 64
        %v2283 = vpop.permute.xlu0 %2282
        %2284 = vrot.lane.b32.xlu0 %v1412, 64
        %v2285 = vpop.permute.xlu0 %2284
        %2286 = vrot.lane.b32.xlu0 %v1413, 64
        %v2287 = vpop.permute.xlu0 %2286
        %2288 = vrot.lane.b32.xlu0 %v1414, 64
        %v2289 = vpop.permute.xlu0 %2288
        %2290 = vrot.lane.b32.xlu0 %v1415, 64
        %v2291 = vpop.permute.xlu0 %2290
        %2292 = vrot.lane.b32.xlu0 %v1416, 64
        %v2293 = vpop.permute.xlu0 %2292
        %2294 = vrot.lane.b32.xlu0 %v1417, 64
        %v2295 = vpop.permute.xlu0 %2294
        %2296 = vrot.lane.b32.xlu0 %v1418, 64
        %v2297 = vpop.permute.xlu0 %2296
        %2298 = vrot.lane.b32.xlu0 %v1419, 64
        %v2299 = vpop.permute.xlu0 %2298
        %2300 = vrot.lane.b32.xlu0 %v1420, 64
        %v2301 = vpop.permute.xlu0 %2300
        %2302 = vrot.lane.b32.xlu0 %v1421, 64
        %v2303 = vpop.permute.xlu0 %2302
        %2320 = vmatprep.subr.bf16.mxu0 0
        %2321 = vmatpush1.bf16.msra.mxu0 %v2273
        %2322 = vmatprep.subr.bf16.mxu0 0
        %2323 = vmatpush1.bf16.msra.mxu0 %v2275
        %2324 = vmatprep.subr.bf16.mxu0 0
        %2325 = vmatpush1.bf16.msra.mxu0 %v2277
        %2326 = vmatprep.subr.bf16.mxu0 0
        %2327 = vmatpush1.bf16.msra.mxu0 %v2279
        %2328 = vmatprep.subr.bf16.mxu0 0
        %2329 = vmatpush1.bf16.msra.mxu0 %v2281
        %2330 = vmatprep.subr.bf16.mxu0 0
        %2331 = vmatpush1.bf16.msra.mxu0 %v2283
        %2332 = vmatprep.subr.bf16.mxu0 0
        %2333 = vmatpush1.bf16.msra.mxu0 %v2285
        %2334 = vmatprep.subr.bf16.mxu0 0
        %2335 = vmatpush1.bf16.msra.mxu0 %v2287
        %2336 = vmatprep.subr.bf16.mxu0 0
        %2337 = vmatpush1.bf16.msra.mxu0 %v2289
        %2338 = vmatprep.subr.bf16.mxu0 0
        %2339 = vmatpush1.bf16.msra.mxu0 %v2291
        %2340 = vmatprep.subr.bf16.mxu0 0
        %2341 = vmatpush1.bf16.msra.mxu0 %v2293
        %2342 = vmatprep.subr.bf16.mxu0 0
        %2343 = vmatpush1.bf16.msra.mxu0 %v2295
        %2344 = vmatprep.subr.bf16.mxu0 0
        %2345 = vmatpush1.bf16.msra.mxu0 %v2297
        %2346 = vmatprep.subr.bf16.mxu0 0
        %2347 = vmatpush1.bf16.msra.mxu0 %v2299
        %2348 = vmatprep.subr.bf16.mxu0 0
        %2349 = vmatpush1.bf16.msra.mxu0 %v2301
        %2350 = vmatprep.subr.bf16.mxu0 0
        %2351 = vmatpush1.bf16.msra.mxu0 %v2303
        %2352 = vmatprep.mubr.bf16.mxu0 %v2241
        %2353 = vmatmul.mubr.bf16.gmra.mrb[0].mxu0 %v2240
        %v2354 = vpop.f32.mrb[0].mxu0
        %v2355 = vadd.f32 0.0, %v2354
        %v2356 = vpop.f32.mrb[0].mxu0
        %v2357 = vpop.f32.mrb[0].mxu0
        %v2358 = vadd.f32 0.0, %v2357
        %v2359 = vpop.f32.mrb[0].mxu0
        %2360 = vmatprep.mubr.bf16.mxu0 %v2243
        %2361 = vmatmul.mubr.bf16.gmra.mrb[0].mxu0 %v2242
        %v2362 = vpop.f32.mrb[0].mxu0
        %v2363 = vadd.f32 0.0, %v2362
        %v2364 = vpop.f32.mrb[0].mxu0
        %v2365 = vpop.f32.mrb[0].mxu0
        %v2366 = vadd.f32 0.0, %v2365
        %v2367 = vpop.f32.mrb[0].mxu0
        %2368 = vmatprep.mubr.bf16.mxu0 %v2245
        %2369 = vmatmul.mubr.bf16.gmra.mrb[0].mxu0 %v2244
        %v2370 = vpop.f32.mrb[0].mxu0
        %v2371 = vadd.f32 0.0, %v2370
        %v2372 = vpop.f32.mrb[0].mxu0
        %v2373 = vpop.f32.mrb[0].mxu0
        %v2374 = vadd.f32 0.0, %v2373
        %v2375 = vpop.f32.mrb[0].mxu0
        %2376 = vmatprep.mubr.bf16.mxu0 %v2247
        %2377 = vmatmul.mubr.bf16.gmra.mrb[0].mxu0 %v2246
        %v2378 = vpop.f32.mrb[0].mxu0
        %v2379 = vadd.f32 0.0, %v2378
        %v2380 = vpop.f32.mrb[0].mxu0
        %v2381 = vpop.f32.mrb[0].mxu0
        %v2382 = vadd.f32 0.0, %v2381
        %v2383 = vpop.f32.mrb[0].mxu0
        %2384 = vmatprep.mubr.bf16.mxu0 %v2249
        %2385 = vmatmul.mubr.bf16.gmra.mrb[0].mxu0 %v2248
        %v2386 = vpop.f32.mrb[0].mxu0
        %v2387 = vadd.f32 0.0, %v2386
        %v2388 = vpop.f32.mrb[0].mxu0
        %v2389 = vpop.f32.mrb[0].mxu0
        %v2390 = vadd.f32 0.0, %v2389
        %v2391 = vpop.f32.mrb[0].mxu0
        %2392 = vmatprep.mubr.bf16.mxu0 %v2251
        %2393 = vmatmul.mubr.bf16.gmra.mrb[0].mxu0 %v2250
        %v2394 = vpop.f32.mrb[0].mxu0
        %v2395 = vadd.f32 0.0, %v2394
        %v2396 = vpop.f32.mrb[0].mxu0
        %v2397 = vpop.f32.mrb[0].mxu0
        %v2398 = vadd.f32 0.0, %v2397
        %v2399 = vpop.f32.mrb[0].mxu0
        %2400 = vmatprep.mubr.bf16.mxu0 %v2253
        %2401 = vmatmul.mubr.bf16.gmra.mrb[0].mxu0 %v2252
        %v2402 = vpop.f32.mrb[0].mxu0
        %v2403 = vadd.f32 0.0, %v2402
        %v2404 = vpop.f32.mrb[0].mxu0
        %v2405 = vpop.f32.mrb[0].mxu0
        %v2406 = vadd.f32 0.0, %v2405
        %v2407 = vpop.f32.mrb[0].mxu0
        %2408 = vmatprep.mubr.bf16.mxu0 %v2255
        %2409 = vmatmul.mubr.bf16.gmra.mrb[0].mxu0 %v2254
        %v2410 = vpop.f32.mrb[0].mxu0
        %v2411 = vadd.f32 0.0, %v2410
        %v2412 = vpop.f32.mrb[0].mxu0
        %v2413 = vpop.f32.mrb[0].mxu0
        %v2414 = vadd.f32 0.0, %v2413
        %v2415 = vpop.f32.mrb[0].mxu0
        %2416 = vmatprep.mubr.bf16.mxu0 %v2257
        %2417 = vmatmul.mubr.bf16.gmra.mrb[0].mxu0 %v2256
        %v2418 = vpop.f32.mrb[0].mxu0
        %v2419 = vadd.f32 0.0, %v2418
        %v2420 = vpop.f32.mrb[0].mxu0
        %v2421 = vpop.f32.mrb[0].mxu0
        %v2422 = vadd.f32 0.0, %v2421
        %v2423 = vpop.f32.mrb[0].mxu0
        %2424 = vmatprep.mubr.bf16.mxu0 %v2259
        %2425 = vmatmul.mubr.bf16.gmra.mrb[0].mxu0 %v2258
        %v2426 = vpop.f32.mrb[0].mxu0
        %v2427 = vadd.f32 0.0, %v2426
        %v2428 = vpop.f32.mrb[0].mxu0
        %v2429 = vpop.f32.mrb[0].mxu0
        %v2430 = vadd.f32 0.0, %v2429
        %v2431 = vpop.f32.mrb[0].mxu0
        %2432 = vmatprep.mubr.bf16.mxu0 %v2261
        %2433 = vmatmul.mubr.bf16.gmra.mrb[0].mxu0 %v2260
        %v2434 = vpop.f32.mrb[0].mxu0
        %v2435 = vadd.f32 0.0, %v2434
        %v2436 = vpop.f32.mrb[0].mxu0
        %v2437 = vpop.f32.mrb[0].mxu0
        %v2438 = vadd.f32 0.0, %v2437
        %v2439 = vpop.f32.mrb[0].mxu0
        %2440 = vmatprep.mubr.bf16.mxu0 %v2263
        %2441 = vmatmul.mubr.bf16.gmra.mrb[0].mxu0 %v2262
        %v2442 = vpop.f32.mrb[0].mxu0
        %v2443 = vadd.f32 0.0, %v2442
        %v2444 = vpop.f32.mrb[0].mxu0
        %v2445 = vpop.f32.mrb[0].mxu0
        %v2446 = vadd.f32 0.0, %v2445
        %v2447 = vpop.f32.mrb[0].mxu0
        %2448 = vmatprep.mubr.bf16.mxu0 %v2265
        %2449 = vmatmul.mubr.bf16.gmra.mrb[0].mxu0 %v2264
        %v2450 = vpop.f32.mrb[0].mxu0
        %v2451 = vadd.f32 0.0, %v2450
        %v2452 = vpop.f32.mrb[0].mxu0
        %v2453 = vpop.f32.mrb[0].mxu0
        %v2454 = vadd.f32 0.0, %v2453
        %v2455 = vpop.f32.mrb[0].mxu0
        %2456 = vmatprep.mubr.bf16.mxu0 %v2267
        %2457 = vmatmul.mubr.bf16.gmra.mrb[0].mxu0 %v2266
        %v2458 = vpop.f32.mrb[0].mxu0
        %v2459 = vadd.f32 0.0, %v2458
        %v2460 = vpop.f32.mrb[0].mxu0
        %v2461 = vpop.f32.mrb[0].mxu0
        %v2462 = vadd.f32 0.0, %v2461
        %v2463 = vpop.f32.mrb[0].mxu0
        %2464 = vmatprep.mubr.bf16.mxu0 %v2269
        %2465 = vmatmul.mubr.bf16.gmra.mrb[0].mxu0 %v2268
        %v2466 = vpop.f32.mrb[0].mxu0
        %v2467 = vadd.f32 0.0, %v2466
        %v2468 = vpop.f32.mrb[0].mxu0
        %v2469 = vpop.f32.mrb[0].mxu0
        %v2470 = vadd.f32 0.0, %v2469
        %v2471 = vpop.f32.mrb[0].mxu0
        %2472 = vmatprep.mubr.bf16.mxu0 %v2271
        %2473 = vmatmul.mubr.bf16.gmra.mrb[0].mxu0 %v2270
        %v2474 = vpop.f32.mrb[0].mxu0
        %v2475 = vadd.f32 0.0, %v2474
        %v2476 = vpop.f32.mrb[0].mxu0
        %v2477 = vpop.f32.mrb[0].mxu0
        %v2478 = vadd.f32 0.0, %v2477
        %v2479 = vpop.f32.mrb[0].mxu0
        %2480 = vdwg.mxu0
        %2481 = vst.msk [vmem:[#allocation3] sm:$0xff] %vm1470, %v2355
        %2482 = vst.msk [vmem:[#allocation3 + $0x8] sm:$0xff] %vm1470, %v2358
        %2483 = vst.msk [vmem:[#allocation3 + $0x10] sm:$0xff] %vm1470, %v2363
        %2484 = vst.msk [vmem:[#allocation3 + $0x18] sm:$0xff] %vm1470, %v2366
        %2485 = vst.msk [vmem:[#allocation3 + $0x20] sm:$0xff] %vm1470, %v2371
        %2486 = vst.msk [vmem:[#allocation3 + $0x28] sm:$0xff] %vm1470, %v2374
        %2487 = vst.msk [vmem:[#allocation3 + $0x30] sm:$0xff] %vm1470, %v2379
        %2488 = vst.msk [vmem:[#allocation3 + $0x38] sm:$0xff] %vm1470, %v2382
        %2489 = vst.msk [vmem:[#allocation3 + $0x40] sm:$0xff] %vm1470, %v2387
        %2490 = vst.msk [vmem:[#allocation3 + $0x48] sm:$0xff] %vm1470, %v2390
        %2491 = vst.msk [vmem:[#allocation3 + $0x50] sm:$0xff] %vm1470, %v2395
        %2492 = vst.msk [vmem:[#allocation3 + $0x58] sm:$0xff] %vm1470, %v2398
        %2493 = vst.msk [vmem:[#allocation3 + $0x60] sm:$0xff] %vm1470, %v2403
        %2494 = vst.msk [vmem:[#allocation3 + $0x68] sm:$0xff] %vm1470, %v2406
        %2495 = vst.msk [vmem:[#allocation3 + $0x70] sm:$0xff] %vm1470, %v2411
        %2496 = vst.msk [vmem:[#allocation3 + $0x78] sm:$0xff] %vm1470, %v2414
        %2497 = vst.msk [vmem:[#allocation3 + $0x80] sm:$0xff] %vm1470, %v2419
        %2498 = vst.msk [vmem:[#allocation3 + $0x88] sm:$0xff] %vm1470, %v2422
        %2499 = vst.msk [vmem:[#allocation3 + $0x90] sm:$0xff] %vm1470, %v2427
        %2500 = vst.msk [vmem:[#allocation3 + $0x98] sm:$0xff] %vm1470, %v2430
        %2501 = vst.msk [vmem:[#allocation3 + $0xa0] sm:$0xff] %vm1470, %v2435
        %2502 = vst.msk [vmem:[#allocation3 + $0xa8] sm:$0xff] %vm1470, %v2438
        %2503 = vst.msk [vmem:[#allocation3 + $0xb0] sm:$0xff] %vm1470, %v2443
        %2504 = vst.msk [vmem:[#allocation3 + $0xb8] sm:$0xff] %vm1470, %v2446
        %2505 = vst.msk [vmem:[#allocation3 + $0xc0] sm:$0xff] %vm1470, %v2451
        %2506 = vst.msk [vmem:[#allocation3 + $0xc8] sm:$0xff] %vm1470, %v2454
        %2507 = vst.msk [vmem:[#allocation3 + $0xd0] sm:$0xff] %vm1470, %v2459
        %2508 = vst.msk [vmem:[#allocation3 + $0xd8] sm:$0xff] %vm1470, %v2462
        %2509 = vst.msk [vmem:[#allocation3 + $0xe0] sm:$0xff] %vm1470, %v2467
        %2510 = vst.msk [vmem:[#allocation3 + $0xe8] sm:$0xff] %vm1470, %v2470
        %2511 = vst.msk [vmem:[#allocation3 + $0xf0] sm:$0xff] %vm1470, %v2475
        %2512 = vst.msk [vmem:[#allocation3 + $0xf8] sm:$0xff] %vm1470, %v2478
        %2529 = vrot.lane.b32.xlu0 %v1390, 120
        %v2530 = vpop.permute.xlu0 %2529
        %2531 = vrot.lane.b32.xlu0 %v1391, 120
        %v2532 = vpop.permute.xlu0 %2531
        %2533 = vrot.lane.b32.xlu0 %v1392, 120
        %v2534 = vpop.permute.xlu0 %2533
        %2535 = vrot.lane.b32.xlu0 %v1393, 120
        %v2536 = vpop.permute.xlu0 %2535
        %2537 = vrot.lane.b32.xlu0 %v1394, 120
        %v2538 = vpop.permute.xlu0 %2537
        %2539 = vrot.lane.b32.xlu0 %v1395, 120
        %v2540 = vpop.permute.xlu0 %2539
        %2541 = vrot.lane.b32.xlu0 %v1396, 120
        %v2542 = vpop.permute.xlu0 %2541
        %2543 = vrot.lane.b32.xlu0 %v1397, 120
        %v2544 = vpop.permute.xlu0 %2543
        %2545 = vrot.lane.b32.xlu0 %v1398, 120
        %v2546 = vpop.permute.xlu0 %2545
        %2547 = vrot.lane.b32.xlu0 %v1399, 120
        %v2548 = vpop.permute.xlu0 %2547
        %2549 = vrot.lane.b32.xlu0 %v1400, 120
        %v2550 = vpop.permute.xlu0 %2549
        %2551 = vrot.lane.b32.xlu0 %v1401, 120
        %v2552 = vpop.permute.xlu0 %2551
        %2553 = vrot.lane.b32.xlu0 %v1402, 120
        %v2554 = vpop.permute.xlu0 %2553
        %2555 = vrot.lane.b32.xlu0 %v1403, 120
        %v2556 = vpop.permute.xlu0 %2555
        %2557 = vrot.lane.b32.xlu0 %v1404, 120
        %v2558 = vpop.permute.xlu0 %2557
        %2559 = vrot.lane.b32.xlu0 %v1405, 120
        %v2560 = vpop.permute.xlu0 %2559
        %2561 = vrot.lane.b32.xlu0 %v1406, 88
        %v2562 = vpop.permute.xlu0 %2561
        %2563 = vrot.lane.b32.xlu0 %v1407, 88
        %v2564 = vpop.permute.xlu0 %2563
        %2565 = vrot.lane.b32.xlu0 %v1408, 88
        %v2566 = vpop.permute.xlu0 %2565
        %2567 = vrot.lane.b32.xlu0 %v1409, 88
        %v2568 = vpop.permute.xlu0 %2567
        %2569 = vrot.lane.b32.xlu0 %v1410, 88
        %v2570 = vpop.permute.xlu0 %2569
        %2571 = vrot.lane.b32.xlu0 %v1411, 88
        %v2572 = vpop.permute.xlu0 %2571
        %2573 = vrot.lane.b32.xlu0 %v1412, 88
        %v2574 = vpop.permute.xlu0 %2573
        %2575 = vrot.lane.b32.xlu0 %v1413, 88
        %v2576 = vpop.permute.xlu0 %2575
        %2577 = vrot.lane.b32.xlu0 %v1414, 88
        %v2578 = vpop.permute.xlu0 %2577
        %2579 = vrot.lane.b32.xlu0 %v1415, 88
        %v2580 = vpop.permute.xlu0 %2579
        %2581 = vrot.lane.b32.xlu0 %v1416, 88
        %v2582 = vpop.permute.xlu0 %2581
        %2583 = vrot.lane.b32.xlu0 %v1417, 88
        %v2584 = vpop.permute.xlu0 %2583
        %2585 = vrot.lane.b32.xlu0 %v1418, 88
        %v2586 = vpop.permute.xlu0 %2585
        %2587 = vrot.lane.b32.xlu0 %v1419, 88
        %v2588 = vpop.permute.xlu0 %2587
        %2589 = vrot.lane.b32.xlu0 %v1420, 88
        %v2590 = vpop.permute.xlu0 %2589
        %2591 = vrot.lane.b32.xlu0 %v1421, 88
        %v2592 = vpop.permute.xlu0 %2591
        %v2594 = vsel %vm1470, %v2530, 0
        %v2597 = vsel %vm1470, %v2532, 0
        %v2600 = vsel %vm1470, %v2534, 0
        %v2603 = vsel %vm1470, %v2536, 0
        %v2606 = vsel %vm1470, %v2538, 0
        %v2609 = vsel %vm1470, %v2540, 0
        %v2612 = vsel %vm1470, %v2542, 0
        %v2615 = vsel %vm1470, %v2544, 0
        %v2618 = vsel %vm1470, %v2546, 0
        %v2621 = vsel %vm1470, %v2548, 0
        %v2624 = vsel %vm1470, %v2550, 0
        %v2627 = vsel %vm1470, %v2552, 0
        %v2630 = vsel %vm1470, %v2554, 0
        %v2633 = vsel %vm1470, %v2556, 0
        %v2636 = vsel %vm1470, %v2558, 0
        %v2639 = vsel %vm1470, %v2560, 0
        %v2642 = vsel %vm1470, %v2562, 0
        %v2645 = vsel %vm1470, %v2564, 0
        %v2648 = vsel %vm1470, %v2566, 0
        %v2651 = vsel %vm1470, %v2568, 0
        %v2654 = vsel %vm1470, %v2570, 0
        %v2657 = vsel %vm1470, %v2572, 0
        %v2660 = vsel %vm1470, %v2574, 0
        %v2663 = vsel %vm1470, %v2576, 0
        %v2666 = vsel %vm1470, %v2578, 0
        %v2669 = vsel %vm1470, %v2580, 0
        %v2672 = vsel %vm1470, %v2582, 0
        %v2675 = vsel %vm1470, %v2584, 0
        %v2678 = vsel %vm1470, %v2586, 0
        %v2681 = vsel %vm1470, %v2588, 0
        %v2684 = vsel %vm1470, %v2590, 0
        %v2687 = vsel %vm1470, %v2592, 0
        %2689 = vmatprep.subr.bf16.mxu0 0
        %2690 = vmatpush1.bf16.xpose.msra.mxu0 %v2642
        %2691 = vmatprep.subr.bf16.mxu0 0
        %2692 = vmatpush1.bf16.xpose.msra.mxu0 %v2645
        %2693 = vmatprep.subr.bf16.mxu0 0
        %2694 = vmatpush1.bf16.xpose.msra.mxu0 %v2648
        %2695 = vmatprep.subr.bf16.mxu0 0
        %2696 = vmatpush1.bf16.xpose.msra.mxu0 %v2651
        %2697 = vmatprep.subr.bf16.mxu0 0
        %2698 = vmatpush1.bf16.xpose.msra.mxu0 %v2654
        %2699 = vmatprep.subr.bf16.mxu0 0
        %2700 = vmatpush1.bf16.xpose.msra.mxu0 %v2657
        %2701 = vmatprep.subr.bf16.mxu0 0
        %2702 = vmatpush1.bf16.xpose.msra.mxu0 %v2660
        %2703 = vmatprep.subr.bf16.mxu0 0
        %2704 = vmatpush1.bf16.xpose.msra.mxu0 %v2663
        %2705 = vmatprep.subr.bf16.mxu0 0
        %2706 = vmatpush1.bf16.xpose.msra.mxu0 %v2666
        %2707 = vmatprep.subr.bf16.mxu0 0
        %2708 = vmatpush1.bf16.xpose.msra.mxu0 %v2669
        %2709 = vmatprep.subr.bf16.mxu0 0
        %2710 = vmatpush1.bf16.xpose.msra.mxu0 %v2672
        %2711 = vmatprep.subr.bf16.mxu0 0
        %2712 = vmatpush1.bf16.xpose.msra.mxu0 %v2675
        %2713 = vmatprep.subr.bf16.mxu0 0
        %2714 = vmatpush1.bf16.xpose.msra.mxu0 %v2678
        %2715 = vmatprep.subr.bf16.mxu0 0
        %2716 = vmatpush1.bf16.xpose.msra.mxu0 %v2681
        %2717 = vmatprep.subr.bf16.mxu0 0
        %2718 = vmatpush1.bf16.xpose.msra.mxu0 %v2684
        %2719 = vmatprep.subr.bf16.mxu0 0
        %2720 = vmatpush1.bf16.xpose.msra.mxu0 %v2687
        %2721 = vmatprep.mubr.bf16.mxu0 0
        %2722 = vmatmul.mubr.bf16.gmra.mrb[0].mxu0 %v2594
        %v2723 = vpop.f32.mrb[0].mxu0
        %v2724 = vadd.f32 0.0, %v2723
        %v2725 = vpop.f32.mrb[0].mxu0
        %v2726 = vadd.f32 0.0, %v2725
        %v2727 = vpop.f32.mrb[0].mxu0
        %v2728 = vadd.f32 0.0, %v2727
        %v2729 = vpop.f32.mrb[0].mxu0
        %v2730 = vadd.f32 0.0, %v2729
        %2731 = vmatprep.mubr.bf16.mxu0 0
        %2732 = vmatmul.mubr.bf16.gmra.mrb[0].mxu0 %v2597
        %v2733 = vpop.f32.mrb[0].mxu0
        %v2734 = vadd.f32 0.0, %v2733
        %v2735 = vpop.f32.mrb[0].mxu0
        %v2736 = vadd.f32 0.0, %v2735
        %v2737 = vpop.f32.mrb[0].mxu0
        %v2738 = vadd.f32 0.0, %v2737
        %v2739 = vpop.f32.mrb[0].mxu0
        %v2740 = vadd.f32 0.0, %v2739
        %2741 = vmatprep.mubr.bf16.mxu0 0
        %2742 = vmatmul.mubr.bf16.gmra.mrb[0].mxu0 %v2600
        %v2743 = vpop.f32.mrb[0].mxu0
        %v2744 = vadd.f32 0.0, %v2743
        %v2745 = vpop.f32.mrb[0].mxu0
        %v2746 = vadd.f32 0.0, %v2745
        %v2747 = vpop.f32.mrb[0].mxu0
        %v2748 = vadd.f32 0.0, %v2747
        %v2749 = vpop.f32.mrb[0].mxu0
        %v2750 = vadd.f32 0.0, %v2749
        %2751 = vmatprep.mubr.bf16.mxu0 0
        %2752 = vmatmul.mubr.bf16.gmra.mrb[0].mxu0 %v2603
        %v2753 = vpop.f32.mrb[0].mxu0
        %v2754 = vadd.f32 0.0, %v2753
        %v2755 = vpop.f32.mrb[0].mxu0
        %v2756 = vadd.f32 0.0, %v2755
        %v2757 = vpop.f32.mrb[0].mxu0
        %v2758 = vadd.f32 0.0, %v2757
        %v2759 = vpop.f32.mrb[0].mxu0
        %v2760 = vadd.f32 0.0, %v2759
        %2761 = vmatprep.mubr.bf16.mxu0 0
        %2762 = vmatmul.mubr.bf16.gmra.mrb[0].mxu0 %v2606
        %v2763 = vpop.f32.mrb[0].mxu0
        %v2764 = vadd.f32 0.0, %v2763
        %v2765 = vpop.f32.mrb[0].mxu0
        %v2766 = vadd.f32 0.0, %v2765
        %v2767 = vpop.f32.mrb[0].mxu0
        %v2768 = vadd.f32 0.0, %v2767
        %v2769 = vpop.f32.mrb[0].mxu0
        %v2770 = vadd.f32 0.0, %v2769
        %2771 = vmatprep.mubr.bf16.mxu0 0
        %2772 = vmatmul.mubr.bf16.gmra.mrb[0].mxu0 %v2609
        %v2773 = vpop.f32.mrb[0].mxu0
        %v2774 = vadd.f32 0.0, %v2773
        %v2775 = vpop.f32.mrb[0].mxu0
        %v2776 = vadd.f32 0.0, %v2775
        %v2777 = vpop.f32.mrb[0].mxu0
        %v2778 = vadd.f32 0.0, %v2777
        %v2779 = vpop.f32.mrb[0].mxu0
        %v2780 = vadd.f32 0.0, %v2779
        %2781 = vmatprep.mubr.bf16.mxu0 0
        %2782 = vmatmul.mubr.bf16.gmra.mrb[0].mxu0 %v2612
        %v2783 = vpop.f32.mrb[0].mxu0
        %v2784 = vadd.f32 0.0, %v2783
        %v2785 = vpop.f32.mrb[0].mxu0
        %v2786 = vadd.f32 0.0, %v2785
        %v2787 = vpop.f32.mrb[0].mxu0
        %v2788 = vadd.f32 0.0, %v2787
        %v2789 = vpop.f32.mrb[0].mxu0
        %v2790 = vadd.f32 0.0, %v2789
        %2791 = vmatprep.mubr.bf16.mxu0 0
        %2792 = vmatmul.mubr.bf16.gmra.mrb[0].mxu0 %v2615
        %v2793 = vpop.f32.mrb[0].mxu0
        %v2794 = vadd.f32 0.0, %v2793
        %v2795 = vpop.f32.mrb[0].mxu0
        %v2796 = vadd.f32 0.0, %v2795
        %v2797 = vpop.f32.mrb[0].mxu0
        %v2798 = vadd.f32 0.0, %v2797
        %v2799 = vpop.f32.mrb[0].mxu0
        %v2800 = vadd.f32 0.0, %v2799
        %2801 = vmatprep.mubr.bf16.mxu0 0
        %2802 = vmatmul.mubr.bf16.gmra.mrb[0].mxu0 %v2618
        %v2803 = vpop.f32.mrb[0].mxu0
        %v2804 = vadd.f32 0.0, %v2803
        %v2805 = vpop.f32.mrb[0].mxu0
        %v2806 = vadd.f32 0.0, %v2805
        %v2807 = vpop.f32.mrb[0].mxu0
        %v2808 = vadd.f32 0.0, %v2807
        %v2809 = vpop.f32.mrb[0].mxu0
        %v2810 = vadd.f32 0.0, %v2809
        %2811 = vmatprep.mubr.bf16.mxu0 0
        %2812 = vmatmul.mubr.bf16.gmra.mrb[0].mxu0 %v2621
        %v2813 = vpop.f32.mrb[0].mxu0
        %v2814 = vadd.f32 0.0, %v2813
        %v2815 = vpop.f32.mrb[0].mxu0
        %v2816 = vadd.f32 0.0, %v2815
        %v2817 = vpop.f32.mrb[0].mxu0
        %v2818 = vadd.f32 0.0, %v2817
        %v2819 = vpop.f32.mrb[0].mxu0
        %v2820 = vadd.f32 0.0, %v2819
        %2821 = vmatprep.mubr.bf16.mxu0 0
        %2822 = vmatmul.mubr.bf16.gmra.mrb[0].mxu0 %v2624
        %v2823 = vpop.f32.mrb[0].mxu0
        %v2824 = vadd.f32 0.0, %v2823
        %v2825 = vpop.f32.mrb[0].mxu0
        %v2826 = vadd.f32 0.0, %v2825
        %v2827 = vpop.f32.mrb[0].mxu0
        %v2828 = vadd.f32 0.0, %v2827
        %v2829 = vpop.f32.mrb[0].mxu0
        %v2830 = vadd.f32 0.0, %v2829
        %2831 = vmatprep.mubr.bf16.mxu0 0
        %2832 = vmatmul.mubr.bf16.gmra.mrb[0].mxu0 %v2627
        %v2833 = vpop.f32.mrb[0].mxu0
        %v2834 = vadd.f32 0.0, %v2833
        %v2835 = vpop.f32.mrb[0].mxu0
        %v2836 = vadd.f32 0.0, %v2835
        %v2837 = vpop.f32.mrb[0].mxu0
        %v2838 = vadd.f32 0.0, %v2837
        %v2839 = vpop.f32.mrb[0].mxu0
        %v2840 = vadd.f32 0.0, %v2839
        %2841 = vmatprep.mubr.bf16.mxu0 0
        %2842 = vmatmul.mubr.bf16.gmra.mrb[0].mxu0 %v2630
        %v2843 = vpop.f32.mrb[0].mxu0
        %v2844 = vadd.f32 0.0, %v2843
        %v2845 = vpop.f32.mrb[0].mxu0
        %v2846 = vadd.f32 0.0, %v2845
        %v2847 = vpop.f32.mrb[0].mxu0
        %v2848 = vadd.f32 0.0, %v2847
        %v2849 = vpop.f32.mrb[0].mxu0
        %v2850 = vadd.f32 0.0, %v2849
        %2851 = vmatprep.mubr.bf16.mxu0 0
        %2852 = vmatmul.mubr.bf16.gmra.mrb[0].mxu0 %v2633
        %v2853 = vpop.f32.mrb[0].mxu0
        %v2854 = vadd.f32 0.0, %v2853
        %v2855 = vpop.f32.mrb[0].mxu0
        %v2856 = vadd.f32 0.0, %v2855
        %v2857 = vpop.f32.mrb[0].mxu0
        %v2858 = vadd.f32 0.0, %v2857
        %v2859 = vpop.f32.mrb[0].mxu0
        %v2860 = vadd.f32 0.0, %v2859
        %2861 = vmatprep.mubr.bf16.mxu0 0
        %2862 = vmatmul.mubr.bf16.gmra.mrb[0].mxu0 %v2636
        %v2863 = vpop.f32.mrb[0].mxu0
        %v2864 = vadd.f32 0.0, %v2863
        %v2865 = vpop.f32.mrb[0].mxu0
        %v2866 = vadd.f32 0.0, %v2865
        %v2867 = vpop.f32.mrb[0].mxu0
        %v2868 = vadd.f32 0.0, %v2867
        %v2869 = vpop.f32.mrb[0].mxu0
        %v2870 = vadd.f32 0.0, %v2869
        %2871 = vmatprep.mubr.bf16.mxu0 0
        %2872 = vmatmul.mubr.bf16.gmra.mrb[0].mxu0 %v2639
        %v2873 = vpop.f32.mrb[0].mxu0
        %v2874 = vadd.f32 0.0, %v2873
        %v2875 = vpop.f32.mrb[0].mxu0
        %v2876 = vadd.f32 0.0, %v2875
        %v2877 = vpop.f32.mrb[0].mxu0
        %v2878 = vadd.f32 0.0, %v2877
        %v2879 = vpop.f32.mrb[0].mxu0
        %v2880 = vadd.f32 0.0, %v2879
        %2881 = vdwg.mxu0
        %v2882 = vmax.f32 %v2724, %v2726
        %2883 = vmax.xlane.f32.xlu0 %v2882
        %v2884 = vpop.xlane.xlu0 %2883
        %v2885 = vmax.f32 %v2728, %v2730
        %2886 = vmax.xlane.f32.xlu0 %v2885
        %v2887 = vpop.xlane.xlu0 %2886
        %v2888 = vmax.f32 %v2734, %v2736
        %2889 = vmax.xlane.f32.xlu0 %v2888
        %v2890 = vpop.xlane.xlu0 %2889
        %v2891 = vmax.f32 %v2738, %v2740
        %2892 = vmax.xlane.f32.xlu0 %v2891
        %v2893 = vpop.xlane.xlu0 %2892
        %v2894 = vmax.f32 %v2744, %v2746
        %2895 = vmax.xlane.f32.xlu0 %v2894
        %v2896 = vpop.xlane.xlu0 %2895
        %v2897 = vmax.f32 %v2748, %v2750
        %2898 = vmax.xlane.f32.xlu0 %v2897
        %v2899 = vpop.xlane.xlu0 %2898
        %v2900 = vmax.f32 %v2754, %v2756
        %2901 = vmax.xlane.f32.xlu0 %v2900
        %v2902 = vpop.xlane.xlu0 %2901
        %v2903 = vmax.f32 %v2758, %v2760
        %2904 = vmax.xlane.f32.xlu0 %v2903
        %v2905 = vpop.xlane.xlu0 %2904
        %v2906 = vmax.f32 %v2764, %v2766
        %2907 = vmax.xlane.f32.xlu0 %v2906
        %v2908 = vpop.xlane.xlu0 %2907
        %v2909 = vmax.f32 %v2768, %v2770
        %2910 = vmax.xlane.f32.xlu0 %v2909
        %v2911 = vpop.xlane.xlu0 %2910
        %v2912 = vmax.f32 %v2774, %v2776
        %2913 = vmax.xlane.f32.xlu0 %v2912
        %v2914 = vpop.xlane.xlu0 %2913
        %v2915 = vmax.f32 %v2778, %v2780
        %2916 = vmax.xlane.f32.xlu0 %v2915
        %v2917 = vpop.xlane.xlu0 %2916
        %v2918 = vmax.f32 %v2784, %v2786
        %2919 = vmax.xlane.f32.xlu0 %v2918
        %v2920 = vpop.xlane.xlu0 %2919
        %v2921 = vmax.f32 %v2788, %v2790
        %2922 = vmax.xlane.f32.xlu0 %v2921
        %v2923 = vpop.xlane.xlu0 %2922
        %v2924 = vmax.f32 %v2794, %v2796
        %2925 = vmax.xlane.f32.xlu0 %v2924
        %v2926 = vpop.xlane.xlu0 %2925
        %v2927 = vmax.f32 %v2798, %v2800
        %2928 = vmax.xlane.f32.xlu0 %v2927
        %v2929 = vpop.xlane.xlu0 %2928
        %v2930 = vmax.f32 %v2804, %v2806
        %2931 = vmax.xlane.f32.xlu0 %v2930
        %v2932 = vpop.xlane.xlu0 %2931
        %v2933 = vmax.f32 %v2808, %v2810
        %2934 = vmax.xlane.f32.xlu0 %v2933
        %v2935 = vpop.xlane.xlu0 %2934
        %v2936 = vmax.f32 %v2814, %v2816
        %2937 = vmax.xlane.f32.xlu0 %v2936
        %v2938 = vpop.xlane.xlu0 %2937
        %v2939 = vmax.f32 %v2818, %v2820
        %2940 = vmax.xlane.f32.xlu0 %v2939
        %v2941 = vpop.xlane.xlu0 %2940
        %v2942 = vmax.f32 %v2824, %v2826
        %2943 = vmax.xlane.f32.xlu0 %v2942
        %v2944 = vpop.xlane.xlu0 %2943
        %v2945 = vmax.f32 %v2828, %v2830
        %2946 = vmax.xlane.f32.xlu0 %v2945
        %v2947 = vpop.xlane.xlu0 %2946
        %v2948 = vmax.f32 %v2834, %v2836
        %2949 = vmax.xlane.f32.xlu0 %v2948
        %v2950 = vpop.xlane.xlu0 %2949
        %v2951 = vmax.f32 %v2838, %v2840
        %2952 = vmax.xlane.f32.xlu0 %v2951
        %v2953 = vpop.xlane.xlu0 %2952
        %v2954 = vmax.f32 %v2844, %v2846
        %2955 = vmax.xlane.f32.xlu0 %v2954
        %v2956 = vpop.xlane.xlu0 %2955
        %v2957 = vmax.f32 %v2848, %v2850
        %2958 = vmax.xlane.f32.xlu0 %v2957
        %v2959 = vpop.xlane.xlu0 %2958
        %v2960 = vmax.f32 %v2854, %v2856
        %2961 = vmax.xlane.f32.xlu0 %v2960
        %v2962 = vpop.xlane.xlu0 %2961
        %v2963 = vmax.f32 %v2858, %v2860
        %2964 = vmax.xlane.f32.xlu0 %v2963
        %v2965 = vpop.xlane.xlu0 %2964
        %v2966 = vmax.f32 %v2864, %v2866
        %2967 = vmax.xlane.f32.xlu0 %v2966
        %v2968 = vpop.xlane.xlu0 %2967
        %v2969 = vmax.f32 %v2868, %v2870
        %2970 = vmax.xlane.f32.xlu0 %v2969
        %v2971 = vpop.xlane.xlu0 %2970
        %v2972 = vmax.f32 %v2874, %v2876
        %2973 = vmax.xlane.f32.xlu0 %v2972
        %v2974 = vpop.xlane.xlu0 %2973
        %v2975 = vmax.f32 %v2878, %v2880
        %2976 = vmax.xlane.f32.xlu0 %v2975
        %v2977 = vpop.xlane.xlu0 %2976
        %v2978 = vsub.f32 %v2724, %v2884
        %v2979 = vsub.f32 %v2726, %v2884
        %v2980 = vsub.f32 %v2728, %v2887
        %v2981 = vsub.f32 %v2730, %v2887
        %v2982 = vsub.f32 %v2734, %v2890
        %v2983 = vsub.f32 %v2736, %v2890
        %v2984 = vsub.f32 %v2738, %v2893
        %v2985 = vsub.f32 %v2740, %v2893
        %v2986 = vsub.f32 %v2744, %v2896
        %v2987 = vsub.f32 %v2746, %v2896
        %v2988 = vsub.f32 %v2748, %v2899
        %v2989 = vsub.f32 %v2750, %v2899
        %v2990 = vsub.f32 %v2754, %v2902
        %v2991 = vsub.f32 %v2756, %v2902
        %v2992 = vsub.f32 %v2758, %v2905
        %v2993 = vsub.f32 %v2760, %v2905
        %v2994 = vsub.f32 %v2764, %v2908
        %v2995 = vsub.f32 %v2766, %v2908
        %v2996 = vsub.f32 %v2768, %v2911
        %v2997 = vsub.f32 %v2770, %v2911
        %v2998 = vsub.f32 %v2774, %v2914
        %v2999 = vsub.f32 %v2776, %v2914
        %v3000 = vsub.f32 %v2778, %v2917
        %v3001 = vsub.f32 %v2780, %v2917
        %v3002 = vsub.f32 %v2784, %v2920
        %v3003 = vsub.f32 %v2786, %v2920
        %v3004 = vsub.f32 %v2788, %v2923
        %v3005 = vsub.f32 %v2790, %v2923
        %v3006 = vsub.f32 %v2794, %v2926
        %v3007 = vsub.f32 %v2796, %v2926
        %v3008 = vsub.f32 %v2798, %v2929
        %v3009 = vsub.f32 %v2800, %v2929
        %v3010 = vsub.f32 %v2804, %v2932
        %v3011 = vsub.f32 %v2806, %v2932
        %v3012 = vsub.f32 %v2808, %v2935
        %v3013 = vsub.f32 %v2810, %v2935
        %v3014 = vsub.f32 %v2814, %v2938
        %v3015 = vsub.f32 %v2816, %v2938
        %v3016 = vsub.f32 %v2818, %v2941
        %v3017 = vsub.f32 %v2820, %v2941
        %v3018 = vsub.f32 %v2824, %v2944
        %v3019 = vsub.f32 %v2826, %v2944
        %v3020 = vsub.f32 %v2828, %v2947
        %v3021 = vsub.f32 %v2830, %v2947
        %v3022 = vsub.f32 %v2834, %v2950
        %v3023 = vsub.f32 %v2836, %v2950
        %v3024 = vsub.f32 %v2838, %v2953
        %v3025 = vsub.f32 %v2840, %v2953
        %v3026 = vsub.f32 %v2844, %v2956
        %v3027 = vsub.f32 %v2846, %v2956
        %v3028 = vsub.f32 %v2848, %v2959
        %v3029 = vsub.f32 %v2850, %v2959
        %v3030 = vsub.f32 %v2854, %v2962
        %v3031 = vsub.f32 %v2856, %v2962
        %v3032 = vsub.f32 %v2858, %v2965
        %v3033 = vsub.f32 %v2860, %v2965
        %v3034 = vsub.f32 %v2864, %v2968
        %v3035 = vsub.f32 %v2866, %v2968
        %v3036 = vsub.f32 %v2868, %v2971
        %v3037 = vsub.f32 %v2870, %v2971
        %v3038 = vsub.f32 %v2874, %v2974
        %v3039 = vsub.f32 %v2876, %v2974
        %v3040 = vsub.f32 %v2878, %v2977
        %v3041 = vsub.f32 %v2880, %v2977
        %v3042 = vmul.f32 %v2978, 1.442695
        %v3043 = vpow.pop %v3042
        %v3044 = vmul.f32 %v2979, 1.442695
        %v3045 = vpow.pop %v3044
        %v3046 = vmul.f32 %v2980, 1.442695
        %v3047 = vpow.pop %v3046
        %v3048 = vmul.f32 %v2981, 1.442695
        %v3049 = vpow.pop %v3048
        %v3050 = vmul.f32 %v2982, 1.442695
        %v3051 = vpow.pop %v3050
        %v3052 = vmul.f32 %v2983, 1.442695
        %v3053 = vpow.pop %v3052
        %v3054 = vmul.f32 %v2984, 1.442695
        %v3055 = vpow.pop %v3054
        %v3056 = vmul.f32 %v2985, 1.442695
        %v3057 = vpow.pop %v3056
        %v3058 = vmul.f32 %v2986, 1.442695
        %v3059 = vpow.pop %v3058
        %v3060 = vmul.f32 %v2987, 1.442695
        %v3061 = vpow.pop %v3060
        %v3062 = vmul.f32 %v2988, 1.442695
        %v3063 = vpow.pop %v3062
        %v3064 = vmul.f32 %v2989, 1.442695
        %v3065 = vpow.pop %v3064
        %v3066 = vmul.f32 %v2990, 1.442695
        %v3067 = vpow.pop %v3066
        %v3068 = vmul.f32 %v2991, 1.442695
        %v3069 = vpow.pop %v3068
        %v3070 = vmul.f32 %v2992, 1.442695
        %v3071 = vpow.pop %v3070
        %v3072 = vmul.f32 %v2993, 1.442695
        %v3073 = vpow.pop %v3072
        %v3074 = vmul.f32 %v2994, 1.442695
        %v3075 = vpow.pop %v3074
        %v3076 = vmul.f32 %v2995, 1.442695
        %v3077 = vpow.pop %v3076
        %v3078 = vmul.f32 %v2996, 1.442695
        %v3079 = vpow.pop %v3078
        %v3080 = vmul.f32 %v2997, 1.442695
        %v3081 = vpow.pop %v3080
        %v3082 = vmul.f32 %v2998, 1.442695
        %v3083 = vpow.pop %v3082
        %v3084 = vmul.f32 %v2999, 1.442695
        %v3085 = vpow.pop %v3084
        %v3086 = vmul.f32 %v3000, 1.442695
        %v3087 = vpow.pop %v3086
        %v3088 = vmul.f32 %v3001, 1.442695
        %v3089 = vpow.pop %v3088
        %v3090 = vmul.f32 %v3002, 1.442695
        %v3091 = vpow.pop %v3090
        %v3092 = vmul.f32 %v3003, 1.442695
        %v3093 = vpow.pop %v3092
        %v3094 = vmul.f32 %v3004, 1.442695
        %v3095 = vpow.pop %v3094
        %v3096 = vmul.f32 %v3005, 1.442695
        %v3097 = vpow.pop %v3096
        %v3098 = vmul.f32 %v3006, 1.442695
        %v3099 = vpow.pop %v3098
        %v3100 = vmul.f32 %v3007, 1.442695
        %v3101 = vpow.pop %v3100
        %v3102 = vmul.f32 %v3008, 1.442695
        %v3103 = vpow.pop %v3102
        %v3104 = vmul.f32 %v3009, 1.442695
        %v3105 = vpow.pop %v3104
        %v3106 = vmul.f32 %v3010, 1.442695
        %v3107 = vpow.pop %v3106
        %v3108 = vmul.f32 %v3011, 1.442695
        %v3109 = vpow.pop %v3108
        %v3110 = vmul.f32 %v3012, 1.442695
        %v3111 = vpow.pop %v3110
        %v3112 = vmul.f32 %v3013, 1.442695
        %v3113 = vpow.pop %v3112
        %v3114 = vmul.f32 %v3014, 1.442695
        %v3115 = vpow.pop %v3114
        %v3116 = vmul.f32 %v3015, 1.442695
        %v3117 = vpow.pop %v3116
        %v3118 = vmul.f32 %v3016, 1.442695
        %v3119 = vpow.pop %v3118
        %v3120 = vmul.f32 %v3017, 1.442695
        %v3121 = vpow.pop %v3120
        %v3122 = vmul.f32 %v3018, 1.442695
        %v3123 = vpow.pop %v3122
        %v3124 = vmul.f32 %v3019, 1.442695
        %v3125 = vpow.pop %v3124
        %v3126 = vmul.f32 %v3020, 1.442695
        %v3127 = vpow.pop %v3126
        %v3128 = vmul.f32 %v3021, 1.442695
        %v3129 = vpow.pop %v3128
        %v3130 = vmul.f32 %v3022, 1.442695
        %v3131 = vpow.pop %v3130
        %v3132 = vmul.f32 %v3023, 1.442695
        %v3133 = vpow.pop %v3132
        %v3134 = vmul.f32 %v3024, 1.442695
        %v3135 = vpow.pop %v3134
        %v3136 = vmul.f32 %v3025, 1.442695
        %v3137 = vpow.pop %v3136
        %v3138 = vmul.f32 %v3026, 1.442695
        %v3139 = vpow.pop %v3138
        %v3140 = vmul.f32 %v3027, 1.442695
        %v3141 = vpow.pop %v3140
        %v3142 = vmul.f32 %v3028, 1.442695
        %v3143 = vpow.pop %v3142
        %v3144 = vmul.f32 %v3029, 1.442695
        %v3145 = vpow.pop %v3144
        %v3146 = vmul.f32 %v3030, 1.442695
        %v3147 = vpow.pop %v3146
        %v3148 = vmul.f32 %v3031, 1.442695
        %v3149 = vpow.pop %v3148
        %v3150 = vmul.f32 %v3032, 1.442695
        %v3151 = vpow.pop %v3150
        %v3152 = vmul.f32 %v3033, 1.442695
        %v3153 = vpow.pop %v3152
        %v3154 = vmul.f32 %v3034, 1.442695
        %v3155 = vpow.pop %v3154
        %v3156 = vmul.f32 %v3035, 1.442695
        %v3157 = vpow.pop %v3156
        %v3158 = vmul.f32 %v3036, 1.442695
        %v3159 = vpow.pop %v3158
        %v3160 = vmul.f32 %v3037, 1.442695
        %v3161 = vpow.pop %v3160
        %v3162 = vmul.f32 %v3038, 1.442695
        %v3163 = vpow.pop %v3162
        %v3164 = vmul.f32 %v3039, 1.442695
        %v3165 = vpow.pop %v3164
        %v3166 = vmul.f32 %v3040, 1.442695
        %v3167 = vpow.pop %v3166
        %v3168 = vmul.f32 %v3041, 1.442695
        %v3169 = vpow.pop %v3168
        %v3170 = vadd.f32 %v3043, %v3045
        %3171 = vadd.xlane.f32.xlu0 %v3170
        %v3172 = vpop.xlane.xlu0 %3171
        %v3173 = vadd.f32 %v3047, %v3049
        %3174 = vadd.xlane.f32.xlu0 %v3173
        %v3175 = vpop.xlane.xlu0 %3174
        %v3176 = vadd.f32 %v3051, %v3053
        %3177 = vadd.xlane.f32.xlu0 %v3176
        %v3178 = vpop.xlane.xlu0 %3177
        %v3179 = vadd.f32 %v3055, %v3057
        %3180 = vadd.xlane.f32.xlu0 %v3179
        %v3181 = vpop.xlane.xlu0 %3180
        %v3182 = vadd.f32 %v3059, %v3061
        %3183 = vadd.xlane.f32.xlu0 %v3182
        %v3184 = vpop.xlane.xlu0 %3183
        %v3185 = vadd.f32 %v3063, %v3065
        %3186 = vadd.xlane.f32.xlu0 %v3185
        %v3187 = vpop.xlane.xlu0 %3186
        %v3188 = vadd.f32 %v3067, %v3069
        %3189 = vadd.xlane.f32.xlu0 %v3188
        %v3190 = vpop.xlane.xlu0 %3189
        %v3191 = vadd.f32 %v3071, %v3073
        %3192 = vadd.xlane.f32.xlu0 %v3191
        %v3193 = vpop.xlane.xlu0 %3192
        %v3194 = vadd.f32 %v3075, %v3077
        %3195 = vadd.xlane.f32.xlu0 %v3194
        %v3196 = vpop.xlane.xlu0 %3195
        %v3197 = vadd.f32 %v3079, %v3081
        %3198 = vadd.xlane.f32.xlu0 %v3197
        %v3199 = vpop.xlane.xlu0 %3198
        %v3200 = vadd.f32 %v3083, %v3085
        %3201 = vadd.xlane.f32.xlu0 %v3200
        %v3202 = vpop.xlane.xlu0 %3201
        %v3203 = vadd.f32 %v3087, %v3089
        %3204 = vadd.xlane.f32.xlu0 %v3203
        %v3205 = vpop.xlane.xlu0 %3204
        %v3206 = vadd.f32 %v3091, %v3093
        %3207 = vadd.xlane.f32.xlu0 %v3206
        %v3208 = vpop.xlane.xlu0 %3207
        %v3209 = vadd.f32 %v3095, %v3097
        %3210 = vadd.xlane.f32.xlu0 %v3209
        %v3211 = vpop.xlane.xlu0 %3210
        %v3212 = vadd.f32 %v3099, %v3101
        %3213 = vadd.xlane.f32.xlu0 %v3212
        %v3214 = vpop.xlane.xlu0 %3213
        %v3215 = vadd.f32 %v3103, %v3105
        %3216 = vadd.xlane.f32.xlu0 %v3215
        %v3217 = vpop.xlane.xlu0 %3216
        %v3218 = vadd.f32 %v3107, %v3109
        %3219 = vadd.xlane.f32.xlu0 %v3218
        %v3220 = vpop.xlane.xlu0 %3219
        %v3221 = vadd.f32 %v3111, %v3113
        %3222 = vadd.xlane.f32.xlu0 %v3221
        %v3223 = vpop.xlane.xlu0 %3222
        %v3224 = vadd.f32 %v3115, %v3117
        %3225 = vadd.xlane.f32.xlu0 %v3224
        %v3226 = vpop.xlane.xlu0 %3225
        %v3227 = vadd.f32 %v3119, %v3121
        %3228 = vadd.xlane.f32.xlu0 %v3227
        %v3229 = vpop.xlane.xlu0 %3228
        %v3230 = vadd.f32 %v3123, %v3125
        %3231 = vadd.xlane.f32.xlu0 %v3230
        %v3232 = vpop.xlane.xlu0 %3231
        %v3233 = vadd.f32 %v3127, %v3129
        %3234 = vadd.xlane.f32.xlu0 %v3233
        %v3235 = vpop.xlane.xlu0 %3234
        %v3236 = vadd.f32 %v3131, %v3133
        %3237 = vadd.xlane.f32.xlu0 %v3236
        %v3238 = vpop.xlane.xlu0 %3237
        %v3239 = vadd.f32 %v3135, %v3137
        %3240 = vadd.xlane.f32.xlu0 %v3239
        %v3241 = vpop.xlane.xlu0 %3240
        %v3242 = vadd.f32 %v3139, %v3141
        %3243 = vadd.xlane.f32.xlu0 %v3242
        %v3244 = vpop.xlane.xlu0 %3243
        %v3245 = vadd.f32 %v3143, %v3145
        %3246 = vadd.xlane.f32.xlu0 %v3245
        %v3247 = vpop.xlane.xlu0 %3246
        %v3248 = vadd.f32 %v3147, %v3149
        %3249 = vadd.xlane.f32.xlu0 %v3248
        %v3250 = vpop.xlane.xlu0 %3249
        %v3251 = vadd.f32 %v3151, %v3153
        %3252 = vadd.xlane.f32.xlu0 %v3251
        %v3253 = vpop.xlane.xlu0 %3252
        %v3254 = vadd.f32 %v3155, %v3157
        %3255 = vadd.xlane.f32.xlu0 %v3254
        %v3256 = vpop.xlane.xlu0 %3255
        %v3257 = vadd.f32 %v3159, %v3161
        %3258 = vadd.xlane.f32.xlu0 %v3257
        %v3259 = vpop.xlane.xlu0 %3258
        %v3260 = vadd.f32 %v3163, %v3165
        %3261 = vadd.xlane.f32.xlu0 %v3260
        %v3262 = vpop.xlane.xlu0 %3261
        %v3263 = vadd.f32 %v3167, %v3169
        %3264 = vadd.xlane.f32.xlu0 %v3263
        %v3265 = vpop.xlane.xlu0 %3264
        %v3266 = vrcp.pop %v3172
        %v3267 = vrcp.pop %v3175
        %v3268 = vrcp.pop %v3178
        %v3269 = vrcp.pop %v3181
        %v3270 = vrcp.pop %v3184
        %v3271 = vrcp.pop %v3187
        %v3272 = vrcp.pop %v3190
        %v3273 = vrcp.pop %v3193
        %v3274 = vrcp.pop %v3196
        %v3275 = vrcp.pop %v3199
        %v3276 = vrcp.pop %v3202
        %v3277 = vrcp.pop %v3205
        %v3278 = vrcp.pop %v3208
        %v3279 = vrcp.pop %v3211
        %v3280 = vrcp.pop %v3214
        %v3281 = vrcp.pop %v3217
        %v3282 = vrcp.pop %v3220
        %v3283 = vrcp.pop %v3223
        %v3284 = vrcp.pop %v3226
        %v3285 = vrcp.pop %v3229
        %v3286 = vrcp.pop %v3232
        %v3287 = vrcp.pop %v3235
        %v3288 = vrcp.pop %v3238
        %v3289 = vrcp.pop %v3241
        %v3290 = vrcp.pop %v3244
        %v3291 = vrcp.pop %v3247
        %v3292 = vrcp.pop %v3250
        %v3293 = vrcp.pop %v3253
        %v3294 = vrcp.pop %v3256
        %v3295 = vrcp.pop %v3259
        %v3296 = vrcp.pop %v3262
        %v3297 = vrcp.pop %v3265
        %v3298 = vmul.f32 %v3043, %v3266
        %v3299 = vmul.f32 %v3045, %v3266
        %v3300 = vmul.f32 %v3047, %v3267
        %v3301 = vmul.f32 %v3049, %v3267
        %v3302 = vmul.f32 %v3051, %v3268
        %v3303 = vmul.f32 %v3053, %v3268
        %v3304 = vmul.f32 %v3055, %v3269
        %v3305 = vmul.f32 %v3057, %v3269
        %v3306 = vmul.f32 %v3059, %v3270
        %v3307 = vmul.f32 %v3061, %v3270
        %v3308 = vmul.f32 %v3063, %v3271
        %v3309 = vmul.f32 %v3065, %v3271
        %v3310 = vmul.f32 %v3067, %v3272
        %v3311 = vmul.f32 %v3069, %v3272
        %v3312 = vmul.f32 %v3071, %v3273
        %v3313 = vmul.f32 %v3073, %v3273
        %v3314 = vmul.f32 %v3075, %v3274
        %v3315 = vmul.f32 %v3077, %v3274
        %v3316 = vmul.f32 %v3079, %v3275
        %v3317 = vmul.f32 %v3081, %v3275
        %v3318 = vmul.f32 %v3083, %v3276
        %v3319 = vmul.f32 %v3085, %v3276
        %v3320 = vmul.f32 %v3087, %v3277
        %v3321 = vmul.f32 %v3089, %v3277
        %v3322 = vmul.f32 %v3091, %v3278
        %v3323 = vmul.f32 %v3093, %v3278
        %v3324 = vmul.f32 %v3095, %v3279
        %v3325 = vmul.f32 %v3097, %v3279
        %v3326 = vmul.f32 %v3099, %v3280
        %v3327 = vmul.f32 %v3101, %v3280
        %v3328 = vmul.f32 %v3103, %v3281
        %v3329 = vmul.f32 %v3105, %v3281
        %v3330 = vmul.f32 %v3107, %v3282
        %v3331 = vmul.f32 %v3109, %v3282
        %v3332 = vmul.f32 %v3111, %v3283
        %v3333 = vmul.f32 %v3113, %v3283
        %v3334 = vmul.f32 %v3115, %v3284
        %v3335 = vmul.f32 %v3117, %v3284
        %v3336 = vmul.f32 %v3119, %v3285
        %v3337 = vmul.f32 %v3121, %v3285
        %v3338 = vmul.f32 %v3123, %v3286
        %v3339 = vmul.f32 %v3125, %v3286
        %v3340 = vmul.f32 %v3127, %v3287
        %v3341 = vmul.f32 %v3129, %v3287
        %v3342 = vmul.f32 %v3131, %v3288
        %v3343 = vmul.f32 %v3133, %v3288
        %v3344 = vmul.f32 %v3135, %v3289
        %v3345 = vmul.f32 %v3137, %v3289
        %v3346 = vmul.f32 %v3139, %v3290
        %v3347 = vmul.f32 %v3141, %v3290
        %v3348 = vmul.f32 %v3143, %v3291
        %v3349 = vmul.f32 %v3145, %v3291
        %v3350 = vmul.f32 %v3147, %v3292
        %v3351 = vmul.f32 %v3149, %v3292
        %v3352 = vmul.f32 %v3151, %v3293
        %v3353 = vmul.f32 %v3153, %v3293
        %v3354 = vmul.f32 %v3155, %v3294
        %v3355 = vmul.f32 %v3157, %v3294
        %v3356 = vmul.f32 %v3159, %v3295
        %v3357 = vmul.f32 %v3161, %v3295
        %v3358 = vmul.f32 %v3163, %v3296
        %v3359 = vmul.f32 %v3165, %v3296
        %v3360 = vmul.f32 %v3167, %v3297
        %v3361 = vmul.f32 %v3169, %v3297
        %v3362 = vpack.c.bf16 %v3300, %v3298
        %v3363 = vpack.c.bf16 %v3301, %v3299
        %v3364 = vpack.c.bf16 %v3304, %v3302
        %v3365 = vpack.c.bf16 %v3305, %v3303
        %v3366 = vpack.c.bf16 %v3308, %v3306
        %v3367 = vpack.c.bf16 %v3309, %v3307
        %v3368 = vpack.c.bf16 %v3312, %v3310
        %v3369 = vpack.c.bf16 %v3313, %v3311
        %v3370 = vpack.c.bf16 %v3316, %v3314
        %v3371 = vpack.c.bf16 %v3317, %v3315
        %v3372 = vpack.c.bf16 %v3320, %v3318
        %v3373 = vpack.c.bf16 %v3321, %v3319
        %v3374 = vpack.c.bf16 %v3324, %v3322
        %v3375 = vpack.c.bf16 %v3325, %v3323
        %v3376 = vpack.c.bf16 %v3328, %v3326
        %v3377 = vpack.c.bf16 %v3329, %v3327
        %v3378 = vpack.c.bf16 %v3332, %v3330
        %v3379 = vpack.c.bf16 %v3333, %v3331
        %v3380 = vpack.c.bf16 %v3336, %v3334
        %v3381 = vpack.c.bf16 %v3337, %v3335
        %v3382 = vpack.c.bf16 %v3340, %v3338
        %v3383 = vpack.c.bf16 %v3341, %v3339
        %v3384 = vpack.c.bf16 %v3344, %v3342
        %v3385 = vpack.c.bf16 %v3345, %v3343
        %v3386 = vpack.c.bf16 %v3348, %v3346
        %v3387 = vpack.c.bf16 %v3349, %v3347
        %v3388 = vpack.c.bf16 %v3352, %v3350
        %v3389 = vpack.c.bf16 %v3353, %v3351
        %v3390 = vpack.c.bf16 %v3356, %v3354
        %v3391 = vpack.c.bf16 %v3357, %v3355
        %v3392 = vpack.c.bf16 %v3360, %v3358
        %v3393 = vpack.c.bf16 %v3361, %v3359
        %3394 = vrot.lane.b32.xlu0 %v1406, 56
        %v3395 = vpop.permute.xlu0 %3394
        %3396 = vrot.lane.b32.xlu0 %v1407, 56
        %v3397 = vpop.permute.xlu0 %3396
        %3398 = vrot.lane.b32.xlu0 %v1408, 56
        %v3399 = vpop.permute.xlu0 %3398
        %3400 = vrot.lane.b32.xlu0 %v1409, 56
        %v3401 = vpop.permute.xlu0 %3400
        %3402 = vrot.lane.b32.xlu0 %v1410, 56
        %v3403 = vpop.permute.xlu0 %3402
        %3404 = vrot.lane.b32.xlu0 %v1411, 56
        %v3405 = vpop.permute.xlu0 %3404
        %3406 = vrot.lane.b32.xlu0 %v1412, 56
        %v3407 = vpop.permute.xlu0 %3406
        %3408 = vrot.lane.b32.xlu0 %v1413, 56
        %v3409 = vpop.permute.xlu0 %3408
        %3410 = vrot.lane.b32.xlu0 %v1414, 56
        %v3411 = vpop.permute.xlu0 %3410
        %3412 = vrot.lane.b32.xlu0 %v1415, 56
        %v3413 = vpop.permute.xlu0 %3412
        %3414 = vrot.lane.b32.xlu0 %v1416, 56
        %v3415 = vpop.permute.xlu0 %3414
        %3416 = vrot.lane.b32.xlu0 %v1417, 56
        %v3417 = vpop.permute.xlu0 %3416
        %3418 = vrot.lane.b32.xlu0 %v1418, 56
        %v3419 = vpop.permute.xlu0 %3418
        %3420 = vrot.lane.b32.xlu0 %v1419, 56
        %v3421 = vpop.permute.xlu0 %3420
        %3422 = vrot.lane.b32.xlu0 %v1420, 56
        %v3423 = vpop.permute.xlu0 %3422
        %3424 = vrot.lane.b32.xlu0 %v1421, 56
        %v3425 = vpop.permute.xlu0 %3424
        %3442 = vmatprep.subr.bf16.mxu0 0
        %3443 = vmatpush1.bf16.msra.mxu0 %v3395
        %3444 = vmatprep.subr.bf16.mxu0 0
        %3445 = vmatpush1.bf16.msra.mxu0 %v3397
        %3446 = vmatprep.subr.bf16.mxu0 0
        %3447 = vmatpush1.bf16.msra.mxu0 %v3399
        %3448 = vmatprep.subr.bf16.mxu0 0
        %3449 = vmatpush1.bf16.msra.mxu0 %v3401
        %3450 = vmatprep.subr.bf16.mxu0 0
        %3451 = vmatpush1.bf16.msra.mxu0 %v3403
        %3452 = vmatprep.subr.bf16.mxu0 0
        %3453 = vmatpush1.bf16.msra.mxu0 %v3405
        %3454 = vmatprep.subr.bf16.mxu0 0
        %3455 = vmatpush1.bf16.msra.mxu0 %v3407
        %3456 = vmatprep.subr.bf16.mxu0 0
        %3457 = vmatpush1.bf16.msra.mxu0 %v3409
        %3458 = vmatprep.subr.bf16.mxu0 0
        %3459 = vmatpush1.bf16.msra.mxu0 %v3411
        %3460 = vmatprep.subr.bf16.mxu0 0
        %3461 = vmatpush1.bf16.msra.mxu0 %v3413
        %3462 = vmatprep.subr.bf16.mxu0 0
        %3463 = vmatpush1.bf16.msra.mxu0 %v3415
        %3464 = vmatprep.subr.bf16.mxu0 0
        %3465 = vmatpush1.bf16.msra.mxu0 %v3417
        %3466 = vmatprep.subr.bf16.mxu0 0
        %3467 = vmatpush1.bf16.msra.mxu0 %v3419
        %3468 = vmatprep.subr.bf16.mxu0 0
        %3469 = vmatpush1.bf16.msra.mxu0 %v3421
        %3470 = vmatprep.subr.bf16.mxu0 0
        %3471 = vmatpush1.bf16.msra.mxu0 %v3423
        %3472 = vmatprep.subr.bf16.mxu0 0
        %3473 = vmatpush1.bf16.msra.mxu0 %v3425
        %3474 = vmatprep.mubr.bf16.mxu0 %v3363
        %3475 = vmatmul.mubr.bf16.gmra.mrb[0].mxu0 %v3362
        %v3476 = vpop.f32.mrb[0].mxu0
        %v3477 = vadd.f32 0.0, %v3476
        %v3478 = vpop.f32.mrb[0].mxu0
        %v3479 = vpop.f32.mrb[0].mxu0
        %v3480 = vadd.f32 0.0, %v3479
        %v3481 = vpop.f32.mrb[0].mxu0
        %3482 = vmatprep.mubr.bf16.mxu0 %v3365
        %3483 = vmatmul.mubr.bf16.gmra.mrb[0].mxu0 %v3364
        %v3484 = vpop.f32.mrb[0].mxu0
        %v3485 = vadd.f32 0.0, %v3484
        %v3486 = vpop.f32.mrb[0].mxu0
        %v3487 = vpop.f32.mrb[0].mxu0
        %v3488 = vadd.f32 0.0, %v3487
        %v3489 = vpop.f32.mrb[0].mxu0
        %3490 = vmatprep.mubr.bf16.mxu0 %v3367
        %3491 = vmatmul.mubr.bf16.gmra.mrb[0].mxu0 %v3366
        %v3492 = vpop.f32.mrb[0].mxu0
        %v3493 = vadd.f32 0.0, %v3492
        %v3494 = vpop.f32.mrb[0].mxu0
        %v3495 = vpop.f32.mrb[0].mxu0
        %v3496 = vadd.f32 0.0, %v3495
        %v3497 = vpop.f32.mrb[0].mxu0
        %3498 = vmatprep.mubr.bf16.mxu0 %v3369
        %3499 = vmatmul.mubr.bf16.gmra.mrb[0].mxu0 %v3368
        %v3500 = vpop.f32.mrb[0].mxu0
        %v3501 = vadd.f32 0.0, %v3500
        %v3502 = vpop.f32.mrb[0].mxu0
        %v3503 = vpop.f32.mrb[0].mxu0
        %v3504 = vadd.f32 0.0, %v3503
        %v3505 = vpop.f32.mrb[0].mxu0
        %3506 = vmatprep.mubr.bf16.mxu0 %v3371
        %3507 = vmatmul.mubr.bf16.gmra.mrb[0].mxu0 %v3370
        %v3508 = vpop.f32.mrb[0].mxu0
        %v3509 = vadd.f32 0.0, %v3508
        %v3510 = vpop.f32.mrb[0].mxu0
        %v3511 = vpop.f32.mrb[0].mxu0
        %v3512 = vadd.f32 0.0, %v3511
        %v3513 = vpop.f32.mrb[0].mxu0
        %3514 = vmatprep.mubr.bf16.mxu0 %v3373
        %3515 = vmatmul.mubr.bf16.gmra.mrb[0].mxu0 %v3372
        %v3516 = vpop.f32.mrb[0].mxu0
        %v3517 = vadd.f32 0.0, %v3516
        %v3518 = vpop.f32.mrb[0].mxu0
        %v3519 = vpop.f32.mrb[0].mxu0
        %v3520 = vadd.f32 0.0, %v3519
        %v3521 = vpop.f32.mrb[0].mxu0
        %3522 = vmatprep.mubr.bf16.mxu0 %v3375
        %3523 = vmatmul.mubr.bf16.gmra.mrb[0].mxu0 %v3374
        %v3524 = vpop.f32.mrb[0].mxu0
        %v3525 = vadd.f32 0.0, %v3524
        %v3526 = vpop.f32.mrb[0].mxu0
        %v3527 = vpop.f32.mrb[0].mxu0
        %v3528 = vadd.f32 0.0, %v3527
        %v3529 = vpop.f32.mrb[0].mxu0
        %3530 = vmatprep.mubr.bf16.mxu0 %v3377
        %3531 = vmatmul.mubr.bf16.gmra.mrb[0].mxu0 %v3376
        %v3532 = vpop.f32.mrb[0].mxu0
        %v3533 = vadd.f32 0.0, %v3532
        %v3534 = vpop.f32.mrb[0].mxu0
        %v3535 = vpop.f32.mrb[0].mxu0
        %v3536 = vadd.f32 0.0, %v3535
        %v3537 = vpop.f32.mrb[0].mxu0
        %3538 = vmatprep.mubr.bf16.mxu0 %v3379
        %3539 = vmatmul.mubr.bf16.gmra.mrb[0].mxu0 %v3378
        %v3540 = vpop.f32.mrb[0].mxu0
        %v3541 = vadd.f32 0.0, %v3540
        %v3542 = vpop.f32.mrb[0].mxu0
        %v3543 = vpop.f32.mrb[0].mxu0
        %v3544 = vadd.f32 0.0, %v3543
        %v3545 = vpop.f32.mrb[0].mxu0
        %3546 = vmatprep.mubr.bf16.mxu0 %v3381
        %3547 = vmatmul.mubr.bf16.gmra.mrb[0].mxu0 %v3380
        %v3548 = vpop.f32.mrb[0].mxu0
        %v3549 = vadd.f32 0.0, %v3548
        %v3550 = vpop.f32.mrb[0].mxu0
        %v3551 = vpop.f32.mrb[0].mxu0
        %v3552 = vadd.f32 0.0, %v3551
        %v3553 = vpop.f32.mrb[0].mxu0
        %3554 = vmatprep.mubr.bf16.mxu0 %v3383
        %3555 = vmatmul.mubr.bf16.gmra.mrb[0].mxu0 %v3382
        %v3556 = vpop.f32.mrb[0].mxu0
        %v3557 = vadd.f32 0.0, %v3556
        %v3558 = vpop.f32.mrb[0].mxu0
        %v3559 = vpop.f32.mrb[0].mxu0
        %v3560 = vadd.f32 0.0, %v3559
        %v3561 = vpop.f32.mrb[0].mxu0
        %3562 = vmatprep.mubr.bf16.mxu0 %v3385
        %3563 = vmatmul.mubr.bf16.gmra.mrb[0].mxu0 %v3384
        %v3564 = vpop.f32.mrb[0].mxu0
        %v3565 = vadd.f32 0.0, %v3564
        %v3566 = vpop.f32.mrb[0].mxu0
        %v3567 = vpop.f32.mrb[0].mxu0
        %v3568 = vadd.f32 0.0, %v3567
        %v3569 = vpop.f32.mrb[0].mxu0
        %3570 = vmatprep.mubr.bf16.mxu0 %v3387
        %3571 = vmatmul.mubr.bf16.gmra.mrb[0].mxu0 %v3386
        %v3572 = vpop.f32.mrb[0].mxu0
        %v3573 = vadd.f32 0.0, %v3572
        %v3574 = vpop.f32.mrb[0].mxu0
        %v3575 = vpop.f32.mrb[0].mxu0
        %v3576 = vadd.f32 0.0, %v3575
        %v3577 = vpop.f32.mrb[0].mxu0
        %3578 = vmatprep.mubr.bf16.mxu0 %v3389
        %3579 = vmatmul.mubr.bf16.gmra.mrb[0].mxu0 %v3388
        %v3580 = vpop.f32.mrb[0].mxu0
        %v3581 = vadd.f32 0.0, %v3580
        %v3582 = vpop.f32.mrb[0].mxu0
        %v3583 = vpop.f32.mrb[0].mxu0
        %v3584 = vadd.f32 0.0, %v3583
        %v3585 = vpop.f32.mrb[0].mxu0
        %3586 = vmatprep.mubr.bf16.mxu0 %v3391
        %3587 = vmatmul.mubr.bf16.gmra.mrb[0].mxu0 %v3390
        %v3588 = vpop.f32.mrb[0].mxu0
        %v3589 = vadd.f32 0.0, %v3588
        %v3590 = vpop.f32.mrb[0].mxu0
        %v3591 = vpop.f32.mrb[0].mxu0
        %v3592 = vadd.f32 0.0, %v3591
        %v3593 = vpop.f32.mrb[0].mxu0
        %3594 = vmatprep.mubr.bf16.mxu0 %v3393
        %3595 = vmatmul.mubr.bf16.gmra.mrb[0].mxu0 %v3392
        %v3596 = vpop.f32.mrb[0].mxu0
        %v3597 = vadd.f32 0.0, %v3596
        %v3598 = vpop.f32.mrb[0].mxu0
        %v3599 = vpop.f32.mrb[0].mxu0
        %v3600 = vadd.f32 0.0, %v3599
        %v3601 = vpop.f32.mrb[0].mxu0
        %3602 = vdwg.mxu0
        %3635 = vrot.lane.b32.xlu0 %v3477, 8
        %v3636 = vpop.permute.xlu0 %3635
        %3637 = vrot.lane.b32.xlu0 %v3480, 8
        %v3638 = vpop.permute.xlu0 %3637
        %3639 = vrot.lane.b32.xlu0 %v3485, 8
        %v3640 = vpop.permute.xlu0 %3639
        %3641 = vrot.lane.b32.xlu0 %v3488, 8
        %v3642 = vpop.permute.xlu0 %3641
        %3643 = vrot.lane.b32.xlu0 %v3493, 8
        %v3644 = vpop.permute.xlu0 %3643
        %3645 = vrot.lane.b32.xlu0 %v3496, 8
        %v3646 = vpop.permute.xlu0 %3645
        %3647 = vrot.lane.b32.xlu0 %v3501, 8
        %v3648 = vpop.permute.xlu0 %3647
        %3649 = vrot.lane.b32.xlu0 %v3504, 8
        %v3650 = vpop.permute.xlu0 %3649
        %3651 = vrot.lane.b32.xlu0 %v3509, 8
        %v3652 = vpop.permute.xlu0 %3651
        %3653 = vrot.lane.b32.xlu0 %v3512, 8
        %v3654 = vpop.permute.xlu0 %3653
        %3655 = vrot.lane.b32.xlu0 %v3517, 8
        %v3656 = vpop.permute.xlu0 %3655
        %3657 = vrot.lane.b32.xlu0 %v3520, 8
        %v3658 = vpop.permute.xlu0 %3657
        %3659 = vrot.lane.b32.xlu0 %v3525, 8
        %v3660 = vpop.permute.xlu0 %3659
        %3661 = vrot.lane.b32.xlu0 %v3528, 8
        %v3662 = vpop.permute.xlu0 %3661
        %3663 = vrot.lane.b32.xlu0 %v3533, 8
        %v3664 = vpop.permute.xlu0 %3663
        %3665 = vrot.lane.b32.xlu0 %v3536, 8
        %v3666 = vpop.permute.xlu0 %3665
        %3667 = vrot.lane.b32.xlu0 %v3541, 8
        %v3668 = vpop.permute.xlu0 %3667
        %3669 = vrot.lane.b32.xlu0 %v3544, 8
        %v3670 = vpop.permute.xlu0 %3669
        %3671 = vrot.lane.b32.xlu0 %v3549, 8
        %v3672 = vpop.permute.xlu0 %3671
        %3673 = vrot.lane.b32.xlu0 %v3552, 8
        %v3674 = vpop.permute.xlu0 %3673
        %3675 = vrot.lane.b32.xlu0 %v3557, 8
        %v3676 = vpop.permute.xlu0 %3675
        %3677 = vrot.lane.b32.xlu0 %v3560, 8
        %v3678 = vpop.permute.xlu0 %3677
        %3679 = vrot.lane.b32.xlu0 %v3565, 8
        %v3680 = vpop.permute.xlu0 %3679
        %3681 = vrot.lane.b32.xlu0 %v3568, 8
        %v3682 = vpop.permute.xlu0 %3681
        %3683 = vrot.lane.b32.xlu0 %v3573, 8
        %v3684 = vpop.permute.xlu0 %3683
        %3685 = vrot.lane.b32.xlu0 %v3576, 8
        %v3686 = vpop.permute.xlu0 %3685
        %3687 = vrot.lane.b32.xlu0 %v3581, 8
        %v3688 = vpop.permute.xlu0 %3687
        %3689 = vrot.lane.b32.xlu0 %v3584, 8
        %v3690 = vpop.permute.xlu0 %3689
        %3691 = vrot.lane.b32.xlu0 %v3589, 8
        %v3692 = vpop.permute.xlu0 %3691
        %3693 = vrot.lane.b32.xlu0 %v3592, 8
        %v3694 = vpop.permute.xlu0 %3693
        %3695 = vrot.lane.b32.xlu0 %v3597, 8
        %v3696 = vpop.permute.xlu0 %3695
        %3697 = vrot.lane.b32.xlu0 %v3600, 8
        %v3698 = vpop.permute.xlu0 %3697
        %vm3731 = vcmask 130112
        %3732 = vst.msk [vmem:[#allocation3] sm:$0xff] %vm3731, %v3636
        %3733 = vst.msk [vmem:[#allocation3 + $0x8] sm:$0xff] %vm3731, %v3638
        %3734 = vst.msk [vmem:[#allocation3 + $0x10] sm:$0xff] %vm3731, %v3640
        %3735 = vst.msk [vmem:[#allocation3 + $0x18] sm:$0xff] %vm3731, %v3642
        %3736 = vst.msk [vmem:[#allocation3 + $0x20] sm:$0xff] %vm3731, %v3644
        %3737 = vst.msk [vmem:[#allocation3 + $0x28] sm:$0xff] %vm3731, %v3646
        %3738 = vst.msk [vmem:[#allocation3 + $0x30] sm:$0xff] %vm3731, %v3648
        %3739 = vst.msk [vmem:[#allocation3 + $0x38] sm:$0xff] %vm3731, %v3650
        %3740 = vst.msk [vmem:[#allocation3 + $0x40] sm:$0xff] %vm3731, %v3652
        %3741 = vst.msk [vmem:[#allocation3 + $0x48] sm:$0xff] %vm3731, %v3654
        %3742 = vst.msk [vmem:[#allocation3 + $0x50] sm:$0xff] %vm3731, %v3656
        %3743 = vst.msk [vmem:[#allocation3 + $0x58] sm:$0xff] %vm3731, %v3658
        %3744 = vst.msk [vmem:[#allocation3 + $0x60] sm:$0xff] %vm3731, %v3660
        %3745 = vst.msk [vmem:[#allocation3 + $0x68] sm:$0xff] %vm3731, %v3662
        %3746 = vst.msk [vmem:[#allocation3 + $0x70] sm:$0xff] %vm3731, %v3664
        %3747 = vst.msk [vmem:[#allocation3 + $0x78] sm:$0xff] %vm3731, %v3666
        %3748 = vst.msk [vmem:[#allocation3 + $0x80] sm:$0xff] %vm3731, %v3668
        %3749 = vst.msk [vmem:[#allocation3 + $0x88] sm:$0xff] %vm3731, %v3670
        %3750 = vst.msk [vmem:[#allocation3 + $0x90] sm:$0xff] %vm3731, %v3672
        %3751 = vst.msk [vmem:[#allocation3 + $0x98] sm:$0xff] %vm3731, %v3674
        %3752 = vst.msk [vmem:[#allocation3 + $0xa0] sm:$0xff] %vm3731, %v3676
        %3753 = vst.msk [vmem:[#allocation3 + $0xa8] sm:$0xff] %vm3731, %v3678
        %3754 = vst.msk [vmem:[#allocation3 + $0xb0] sm:$0xff] %vm3731, %v3680
        %3755 = vst.msk [vmem:[#allocation3 + $0xb8] sm:$0xff] %vm3731, %v3682
        %3756 = vst.msk [vmem:[#allocation3 + $0xc0] sm:$0xff] %vm3731, %v3684
        %3757 = vst.msk [vmem:[#allocation3 + $0xc8] sm:$0xff] %vm3731, %v3686
        %3758 = vst.msk [vmem:[#allocation3 + $0xd0] sm:$0xff] %vm3731, %v3688
        %3759 = vst.msk [vmem:[#allocation3 + $0xd8] sm:$0xff] %vm3731, %v3690
        %3760 = vst.msk [vmem:[#allocation3 + $0xe0] sm:$0xff] %vm3731, %v3692
        %3761 = vst.msk [vmem:[#allocation3 + $0xe8] sm:$0xff] %vm3731, %v3694
        %3762 = vst.msk [vmem:[#allocation3 + $0xf0] sm:$0xff] %vm3731, %v3696
        %3763 = vst.msk [vmem:[#allocation3 + $0xf8] sm:$0xff] %vm3731, %v3698
        %3764 = vrot.lane.b32.xlu0 %v1390, 112
        %v3765 = vpop.permute.xlu0 %3764
        %3766 = vrot.lane.b32.xlu0 %v1391, 112
        %v3767 = vpop.permute.xlu0 %3766
        %3768 = vrot.lane.b32.xlu0 %v1392, 112
        %v3769 = vpop.permute.xlu0 %3768
        %3770 = vrot.lane.b32.xlu0 %v1393, 112
        %v3771 = vpop.permute.xlu0 %3770
        %3772 = vrot.lane.b32.xlu0 %v1394, 112
        %v3773 = vpop.permute.xlu0 %3772
        %3774 = vrot.lane.b32.xlu0 %v1395, 112
        %v3775 = vpop.permute.xlu0 %3774
        %3776 = vrot.lane.b32.xlu0 %v1396, 112
        %v3777 = vpop.permute.xlu0 %3776
        %3778 = vrot.lane.b32.xlu0 %v1397, 112
        %v3779 = vpop.permute.xlu0 %3778
        %3780 = vrot.lane.b32.xlu0 %v1398, 112
        %v3781 = vpop.permute.xlu0 %3780
        %3782 = vrot.lane.b32.xlu0 %v1399, 112
        %v3783 = vpop.permute.xlu0 %3782
        %3784 = vrot.lane.b32.xlu0 %v1400, 112
        %v3785 = vpop.permute.xlu0 %3784
        %3786 = vrot.lane.b32.xlu0 %v1401, 112
        %v3787 = vpop.permute.xlu0 %3786
        %3788 = vrot.lane.b32.xlu0 %v1402, 112
        %v3789 = vpop.permute.xlu0 %3788
        %3790 = vrot.lane.b32.xlu0 %v1403, 112
        %v3791 = vpop.permute.xlu0 %3790
        %3792 = vrot.lane.b32.xlu0 %v1404, 112
        %v3793 = vpop.permute.xlu0 %3792
        %3794 = vrot.lane.b32.xlu0 %v1405, 112
        %v3795 = vpop.permute.xlu0 %3794
        %3796 = vrot.lane.b32.xlu0 %v1406, 80
        %v3797 = vpop.permute.xlu0 %3796
        %3798 = vrot.lane.b32.xlu0 %v1407, 80
        %v3799 = vpop.permute.xlu0 %3798
        %3800 = vrot.lane.b32.xlu0 %v1408, 80
        %v3801 = vpop.permute.xlu0 %3800
        %3802 = vrot.lane.b32.xlu0 %v1409, 80
        %v3803 = vpop.permute.xlu0 %3802
        %3804 = vrot.lane.b32.xlu0 %v1410, 80
        %v3805 = vpop.permute.xlu0 %3804
        %3806 = vrot.lane.b32.xlu0 %v1411, 80
        %v3807 = vpop.permute.xlu0 %3806
        %3808 = vrot.lane.b32.xlu0 %v1412, 80
        %v3809 = vpop.permute.xlu0 %3808
        %3810 = vrot.lane.b32.xlu0 %v1413, 80
        %v3811 = vpop.permute.xlu0 %3810
        %3812 = vrot.lane.b32.xlu0 %v1414, 80
        %v3813 = vpop.permute.xlu0 %3812
        %3814 = vrot.lane.b32.xlu0 %v1415, 80
        %v3815 = vpop.permute.xlu0 %3814
        %3816 = vrot.lane.b32.xlu0 %v1416, 80
        %v3817 = vpop.permute.xlu0 %3816
        %3818 = vrot.lane.b32.xlu0 %v1417, 80
        %v3819 = vpop.permute.xlu0 %3818
        %3820 = vrot.lane.b32.xlu0 %v1418, 80
        %v3821 = vpop.permute.xlu0 %3820
        %3822 = vrot.lane.b32.xlu0 %v1419, 80
        %v3823 = vpop.permute.xlu0 %3822
        %3824 = vrot.lane.b32.xlu0 %v1420, 80
        %v3825 = vpop.permute.xlu0 %3824
        %3826 = vrot.lane.b32.xlu0 %v1421, 80
        %v3827 = vpop.permute.xlu0 %3826
        %v3829 = vsel %vm1470, %v3765, 0
        %v3832 = vsel %vm1470, %v3767, 0
        %v3835 = vsel %vm1470, %v3769, 0
        %v3838 = vsel %vm1470, %v3771, 0
        %v3841 = vsel %vm1470, %v3773, 0
        %v3844 = vsel %vm1470, %v3775, 0
        %v3847 = vsel %vm1470, %v3777, 0
        %v3850 = vsel %vm1470, %v3779, 0
        %v3853 = vsel %vm1470, %v3781, 0
        %v3856 = vsel %vm1470, %v3783, 0
        %v3859 = vsel %vm1470, %v3785, 0
        %v3862 = vsel %vm1470, %v3787, 0
        %v3865 = vsel %vm1470, %v3789, 0
        %v3868 = vsel %vm1470, %v3791, 0
        %v3871 = vsel %vm1470, %v3793, 0
        %v3874 = vsel %vm1470, %v3795, 0
        %v3877 = vsel %vm1470, %v3797, 0
        %v3880 = vsel %vm1470, %v3799, 0
        %v3883 = vsel %vm1470, %v3801, 0
        %v3886 = vsel %vm1470, %v3803, 0
        %v3889 = vsel %vm1470, %v3805, 0
        %v3892 = vsel %vm1470, %v3807, 0
        %v3895 = vsel %vm1470, %v3809, 0
        %v3898 = vsel %vm1470, %v3811, 0
        %v3901 = vsel %vm1470, %v3813, 0
        %v3904 = vsel %vm1470, %v3815, 0
        %v3907 = vsel %vm1470, %v3817, 0
        %v3910 = vsel %vm1470, %v3819, 0
        %v3913 = vsel %vm1470, %v3821, 0
        %v3916 = vsel %vm1470, %v3823, 0
        %v3919 = vsel %vm1470, %v3825, 0
        %v3922 = vsel %vm1470, %v3827, 0
        %3924 = vmatprep.subr.bf16.mxu0 0
        %3925 = vmatpush1.bf16.xpose.msra.mxu0 %v3877
        %3926 = vmatprep.subr.bf16.mxu0 0
        %3927 = vmatpush1.bf16.xpose.msra.mxu0 %v3880
        %3928 = vmatprep.subr.bf16.mxu0 0
        %3929 = vmatpush1.bf16.xpose.msra.mxu0 %v3883
        %3930 = vmatprep.subr.bf16.mxu0 0
        %3931 = vmatpush1.bf16.xpose.msra.mxu0 %v3886
        %3932 = vmatprep.subr.bf16.mxu0 0
        %3933 = vmatpush1.bf16.xpose.msra.mxu0 %v3889
        %3934 = vmatprep.subr.bf16.mxu0 0
        %3935 = vmatpush1.bf16.xpose.msra.mxu0 %v3892
        %3936 = vmatprep.subr.bf16.mxu0 0
        %3937 = vmatpush1.bf16.xpose.msra.mxu0 %v3895
        %3938 = vmatprep.subr.bf16.mxu0 0
        %3939 = vmatpush1.bf16.xpose.msra.mxu0 %v3898
        %3940 = vmatprep.subr.bf16.mxu0 0
        %3941 = vmatpush1.bf16.xpose.msra.mxu0 %v3901
        %3942 = vmatprep.subr.bf16.mxu0 0
        %3943 = vmatpush1.bf16.xpose.msra.mxu0 %v3904
        %3944 = vmatprep.subr.bf16.mxu0 0
        %3945 = vmatpush1.bf16.xpose.msra.mxu0 %v3907
        %3946 = vmatprep.subr.bf16.mxu0 0
        %3947 = vmatpush1.bf16.xpose.msra.mxu0 %v3910
        %3948 = vmatprep.subr.bf16.mxu0 0
        %3949 = vmatpush1.bf16.xpose.msra.mxu0 %v3913
        %3950 = vmatprep.subr.bf16.mxu0 0
        %3951 = vmatpush1.bf16.xpose.msra.mxu0 %v3916
        %3952 = vmatprep.subr.bf16.mxu0 0
        %3953 = vmatpush1.bf16.xpose.msra.mxu0 %v3919
        %3954 = vmatprep.subr.bf16.mxu0 0
        %3955 = vmatpush1.bf16.xpose.msra.mxu0 %v3922
        %3956 = vmatprep.mubr.bf16.mxu0 0
        %3957 = vmatmul.mubr.bf16.gmra.mrb[0].mxu0 %v3829
        %v3958 = vpop.f32.mrb[0].mxu0
        %v3959 = vadd.f32 0.0, %v3958
        %v3960 = vpop.f32.mrb[0].mxu0
        %v3961 = vadd.f32 0.0, %v3960
        %v3962 = vpop.f32.mrb[0].mxu0
        %v3963 = vadd.f32 0.0, %v3962
        %v3964 = vpop.f32.mrb[0].mxu0
        %v3965 = vadd.f32 0.0, %v3964
        %3966 = vmatprep.mubr.bf16.mxu0 0
        %3967 = vmatmul.mubr.bf16.gmra.mrb[0].mxu0 %v3832
        %v3968 = vpop.f32.mrb[0].mxu0
        %v3969 = vadd.f32 0.0, %v3968
        %v3970 = vpop.f32.mrb[0].mxu0
        %v3971 = vadd.f32 0.0, %v3970
        %v3972 = vpop.f32.mrb[0].mxu0
        %v3973 = vadd.f32 0.0, %v3972
        %v3974 = vpop.f32.mrb[0].mxu0
        %v3975 = vadd.f32 0.0, %v3974
        %3976 = vmatprep.mubr.bf16.mxu0 0
        %3977 = vmatmul.mubr.bf16.gmra.mrb[0].mxu0 %v3835
        %v3978 = vpop.f32.mrb[0].mxu0
        %v3979 = vadd.f32 0.0, %v3978
        %v3980 = vpop.f32.mrb[0].mxu0
        %v3981 = vadd.f32 0.0, %v3980
        %v3982 = vpop.f32.mrb[0].mxu0
        %v3983 = vadd.f32 0.0, %v3982
        %v3984 = vpop.f32.mrb[0].mxu0
        %v3985 = vadd.f32 0.0, %v3984
        %3986 = vmatprep.mubr.bf16.mxu0 0
        %3987 = vmatmul.mubr.bf16.gmra.mrb[0].mxu0 %v3838
        %v3988 = vpop.f32.mrb[0].mxu0
        %v3989 = vadd.f32 0.0, %v3988
        %v3990 = vpop.f32.mrb[0].mxu0
        %v3991 = vadd.f32 0.0, %v3990
        %v3992 = vpop.f32.mrb[0].mxu0
        %v3993 = vadd.f32 0.0, %v3992
        %v3994 = vpop.f32.mrb[0].mxu0
        %v3995 = vadd.f32 0.0, %v3994
        %3996 = vmatprep.mubr.bf16.mxu0 0
        %3997 = vmatmul.mubr.bf16.gmra.mrb[0].mxu0 %v3841
        %v3998 = vpop.f32.mrb[0].mxu0
        %v3999 = vadd.f32 0.0, %v3998
        %v4000 = vpop.f32.mrb[0].mxu0
        %v4001 = vadd.f32 0.0, %v4000
        %v4002 = vpop.f32.mrb[0].mxu0
        %v4003 = vadd.f32 0.0, %v4002
        %v4004 = vpop.f32.mrb[0].mxu0
        %v4005 = vadd.f32 0.0, %v4004
        %4006 = vmatprep.mubr.bf16.mxu0 0
        %4007 = vmatmul.mubr.bf16.gmra.mrb[0].mxu0 %v3844
        %v4008 = vpop.f32.mrb[0].mxu0
        %v4009 = vadd.f32 0.0, %v4008
        %v4010 = vpop.f32.mrb[0].mxu0
        %v4011 = vadd.f32 0.0, %v4010
        %v4012 = vpop.f32.mrb[0].mxu0
        %v4013 = vadd.f32 0.0, %v4012
        %v4014 = vpop.f32.mrb[0].mxu0
        %v4015 = vadd.f32 0.0, %v4014
        %4016 = vmatprep.mubr.bf16.mxu0 0
        %4017 = vmatmul.mubr.bf16.gmra.mrb[0].mxu0 %v3847
        %v4018 = vpop.f32.mrb[0].mxu0
        %v4019 = vadd.f32 0.0, %v4018
        %v4020 = vpop.f32.mrb[0].mxu0
        %v4021 = vadd.f32 0.0, %v4020
        %v4022 = vpop.f32.mrb[0].mxu0
        %v4023 = vadd.f32 0.0, %v4022
        %v4024 = vpop.f32.mrb[0].mxu0
        %v4025 = vadd.f32 0.0, %v4024
        %4026 = vmatprep.mubr.bf16.mxu0 0
        %4027 = vmatmul.mubr.bf16.gmra.mrb[0].mxu0 %v3850
        %v4028 = vpop.f32.mrb[0].mxu0
        %v4029 = vadd.f32 0.0, %v4028
        %v4030 = vpop.f32.mrb[0].mxu0
        %v4031 = vadd.f32 0.0, %v4030
        %v4032 = vpop.f32.mrb[0].mxu0
        %v4033 = vadd.f32 0.0, %v4032
        %v4034 = vpop.f32.mrb[0].mxu0
        %v4035 = vadd.f32 0.0, %v4034
        %4036 = vmatprep.mubr.bf16.mxu0 0
        %4037 = vmatmul.mubr.bf16.gmra.mrb[0].mxu0 %v3853
        %v4038 = vpop.f32.mrb[0].mxu0
        %v4039 = vadd.f32 0.0, %v4038
        %v4040 = vpop.f32.mrb[0].mxu0
        %v4041 = vadd.f32 0.0, %v4040
        %v4042 = vpop.f32.mrb[0].mxu0
        %v4043 = vadd.f32 0.0, %v4042
        %v4044 = vpop.f32.mrb[0].mxu0
        %v4045 = vadd.f32 0.0, %v4044
        %4046 = vmatprep.mubr.bf16.mxu0 0
        %4047 = vmatmul.mubr.bf16.gmra.mrb[0].mxu0 %v3856
        %v4048 = vpop.f32.mrb[0].mxu0
        %v4049 = vadd.f32 0.0, %v4048
        %v4050 = vpop.f32.mrb[0].mxu0
        %v4051 = vadd.f32 0.0, %v4050
        %v4052 = vpop.f32.mrb[0].mxu0
        %v4053 = vadd.f32 0.0, %v4052
        %v4054 = vpop.f32.mrb[0].mxu0
        %v4055 = vadd.f32 0.0, %v4054
        %4056 = vmatprep.mubr.bf16.mxu0 0
        %4057 = vmatmul.mubr.bf16.gmra.mrb[0].mxu0 %v3859
        %v4058 = vpop.f32.mrb[0].mxu0
        %v4059 = vadd.f32 0.0, %v4058
        %v4060 = vpop.f32.mrb[0].mxu0
        %v4061 = vadd.f32 0.0, %v4060
        %v4062 = vpop.f32.mrb[0].mxu0
        %v4063 = vadd.f32 0.0, %v4062
        %v4064 = vpop.f32.mrb[0].mxu0
        %v4065 = vadd.f32 0.0, %v4064
        %4066 = vmatprep.mubr.bf16.mxu0 0
        %4067 = vmatmul.mubr.bf16.gmra.mrb[0].mxu0 %v3862
        %v4068 = vpop.f32.mrb[0].mxu0
        %v4069 = vadd.f32 0.0, %v4068
        %v4070 = vpop.f32.mrb[0].mxu0
        %v4071 = vadd.f32 0.0, %v4070
        %v4072 = vpop.f32.mrb[0].mxu0
        %v4073 = vadd.f32 0.0, %v4072
        %v4074 = vpop.f32.mrb[0].mxu0
        %v4075 = vadd.f32 0.0, %v4074
        %4076 = vmatprep.mubr.bf16.mxu0 0
        %4077 = vmatmul.mubr.bf16.gmra.mrb[0].mxu0 %v3865
        %v4078 = vpop.f32.mrb[0].mxu0
        %v4079 = vadd.f32 0.0, %v4078
        %v4080 = vpop.f32.mrb[0].mxu0
        %v4081 = vadd.f32 0.0, %v4080
        %v4082 = vpop.f32.mrb[0].mxu0
        %v4083 = vadd.f32 0.0, %v4082
        %v4084 = vpop.f32.mrb[0].mxu0
        %v4085 = vadd.f32 0.0, %v4084
        %4086 = vmatprep.mubr.bf16.mxu0 0
        %4087 = vmatmul.mubr.bf16.gmra.mrb[0].mxu0 %v3868
        %v4088 = vpop.f32.mrb[0].mxu0
        %v4089 = vadd.f32 0.0, %v4088
        %v4090 = vpop.f32.mrb[0].mxu0
        %v4091 = vadd.f32 0.0, %v4090
        %v4092 = vpop.f32.mrb[0].mxu0
        %v4093 = vadd.f32 0.0, %v4092
        %v4094 = vpop.f32.mrb[0].mxu0
        %v4095 = vadd.f32 0.0, %v4094
        %4096 = vmatprep.mubr.bf16.mxu0 0
        %4097 = vmatmul.mubr.bf16.gmra.mrb[0].mxu0 %v3871
        %v4098 = vpop.f32.mrb[0].mxu0
        %v4099 = vadd.f32 0.0, %v4098
        %v4100 = vpop.f32.mrb[0].mxu0
        %v4101 = vadd.f32 0.0, %v4100
        %v4102 = vpop.f32.mrb[0].mxu0
        %v4103 = vadd.f32 0.0, %v4102
        %v4104 = vpop.f32.mrb[0].mxu0
        %v4105 = vadd.f32 0.0, %v4104
        %4106 = vmatprep.mubr.bf16.mxu0 0
        %4107 = vmatmul.mubr.bf16.gmra.mrb[0].mxu0 %v3874
        %v4108 = vpop.f32.mrb[0].mxu0
        %v4109 = vadd.f32 0.0, %v4108
        %v4110 = vpop.f32.mrb[0].mxu0
        %v4111 = vadd.f32 0.0, %v4110
        %v4112 = vpop.f32.mrb[0].mxu0
        %v4113 = vadd.f32 0.0, %v4112
        %v4114 = vpop.f32.mrb[0].mxu0
        %v4115 = vadd.f32 0.0, %v4114
        %4116 = vdwg.mxu0
        %v4117 = vmax.f32 %v3959, %v3961
        %4118 = vmax.xlane.f32.xlu0 %v4117
        %v4119 = vpop.xlane.xlu0 %4118
        %v4120 = vmax.f32 %v3963, %v3965
        %4121 = vmax.xlane.f32.xlu0 %v4120
        %v4122 = vpop.xlane.xlu0 %4121
        %v4123 = vmax.f32 %v3969, %v3971
        %4124 = vmax.xlane.f32.xlu0 %v4123
        %v4125 = vpop.xlane.xlu0 %4124
        %v4126 = vmax.f32 %v3973, %v3975
        %4127 = vmax.xlane.f32.xlu0 %v4126
        %v4128 = vpop.xlane.xlu0 %4127
        %v4129 = vmax.f32 %v3979, %v3981
        %4130 = vmax.xlane.f32.xlu0 %v4129
        %v4131 = vpop.xlane.xlu0 %4130
        %v4132 = vmax.f32 %v3983, %v3985
        %4133 = vmax.xlane.f32.xlu0 %v4132
        %v4134 = vpop.xlane.xlu0 %4133
        %v4135 = vmax.f32 %v3989, %v3991
        %4136 = vmax.xlane.f32.xlu0 %v4135
        %v4137 = vpop.xlane.xlu0 %4136
        %v4138 = vmax.f32 %v3993, %v3995
        %4139 = vmax.xlane.f32.xlu0 %v4138
        %v4140 = vpop.xlane.xlu0 %4139
        %v4141 = vmax.f32 %v3999, %v4001
        %4142 = vmax.xlane.f32.xlu0 %v4141
        %v4143 = vpop.xlane.xlu0 %4142
        %v4144 = vmax.f32 %v4003, %v4005
        %4145 = vmax.xlane.f32.xlu0 %v4144
        %v4146 = vpop.xlane.xlu0 %4145
        %v4147 = vmax.f32 %v4009, %v4011
        %4148 = vmax.xlane.f32.xlu0 %v4147
        %v4149 = vpop.xlane.xlu0 %4148
        %v4150 = vmax.f32 %v4013, %v4015
        %4151 = vmax.xlane.f32.xlu0 %v4150
        %v4152 = vpop.xlane.xlu0 %4151
        %v4153 = vmax.f32 %v4019, %v4021
        %4154 = vmax.xlane.f32.xlu0 %v4153
        %v4155 = vpop.xlane.xlu0 %4154
        %v4156 = vmax.f32 %v4023, %v4025
        %4157 = vmax.xlane.f32.xlu0 %v4156
        %v4158 = vpop.xlane.xlu0 %4157
        %v4159 = vmax.f32 %v4029, %v4031
        %4160 = vmax.xlane.f32.xlu0 %v4159
        %v4161 = vpop.xlane.xlu0 %4160
        %v4162 = vmax.f32 %v4033, %v4035
        %4163 = vmax.xlane.f32.xlu0 %v4162
        %v4164 = vpop.xlane.xlu0 %4163
        %v4165 = vmax.f32 %v4039, %v4041
        %4166 = vmax.xlane.f32.xlu0 %v4165
        %v4167 = vpop.xlane.xlu0 %4166
        %v4168 = vmax.f32 %v4043, %v4045
        %4169 = vmax.xlane.f32.xlu0 %v4168
        %v4170 = vpop.xlane.xlu0 %4169
        %v4171 = vmax.f32 %v4049, %v4051
        %4172 = vmax.xlane.f32.xlu0 %v4171
        %v4173 = vpop.xlane.xlu0 %4172
        %v4174 = vmax.f32 %v4053, %v4055
        %4175 = vmax.xlane.f32.xlu0 %v4174
        %v4176 = vpop.xlane.xlu0 %4175
        %v4177 = vmax.f32 %v4059, %v4061
        %4178 = vmax.xlane.f32.xlu0 %v4177
        %v4179 = vpop.xlane.xlu0 %4178
        %v4180 = vmax.f32 %v4063, %v4065
        %4181 = vmax.xlane.f32.xlu0 %v4180
        %v4182 = vpop.xlane.xlu0 %4181
        %v4183 = vmax.f32 %v4069, %v4071
        %4184 = vmax.xlane.f32.xlu0 %v4183
        %v4185 = vpop.xlane.xlu0 %4184
        %v4186 = vmax.f32 %v4073, %v4075
        %4187 = vmax.xlane.f32.xlu0 %v4186
        %v4188 = vpop.xlane.xlu0 %4187
        %v4189 = vmax.f32 %v4079, %v4081
        %4190 = vmax.xlane.f32.xlu0 %v4189
        %v4191 = vpop.xlane.xlu0 %4190
        %v4192 = vmax.f32 %v4083, %v4085
        %4193 = vmax.xlane.f32.xlu0 %v4192
        %v4194 = vpop.xlane.xlu0 %4193
        %v4195 = vmax.f32 %v4089, %v4091
        %4196 = vmax.xlane.f32.xlu0 %v4195
        %v4197 = vpop.xlane.xlu0 %4196
        %v4198 = vmax.f32 %v4093, %v4095
        %4199 = vmax.xlane.f32.xlu0 %v4198
        %v4200 = vpop.xlane.xlu0 %4199
        %v4201 = vmax.f32 %v4099, %v4101
        %4202 = vmax.xlane.f32.xlu0 %v4201
        %v4203 = vpop.xlane.xlu0 %4202
        %v4204 = vmax.f32 %v4103, %v4105
        %4205 = vmax.xlane.f32.xlu0 %v4204
        %v4206 = vpop.xlane.xlu0 %4205
        %v4207 = vmax.f32 %v4109, %v4111
        %4208 = vmax.xlane.f32.xlu0 %v4207
        %v4209 = vpop.xlane.xlu0 %4208
        %v4210 = vmax.f32 %v4113, %v4115
        %4211 = vmax.xlane.f32.xlu0 %v4210
        %v4212 = vpop.xlane.xlu0 %4211
        %v4213 = vsub.f32 %v3959, %v4119
        %v4214 = vsub.f32 %v3961, %v4119
        %v4215 = vsub.f32 %v3963, %v4122
        %v4216 = vsub.f32 %v3965, %v4122
        %v4217 = vsub.f32 %v3969, %v4125
        %v4218 = vsub.f32 %v3971, %v4125
        %v4219 = vsub.f32 %v3973, %v4128
        %v4220 = vsub.f32 %v3975, %v4128
        %v4221 = vsub.f32 %v3979, %v4131
        %v4222 = vsub.f32 %v3981, %v4131
        %v4223 = vsub.f32 %v3983, %v4134
        %v4224 = vsub.f32 %v3985, %v4134
        %v4225 = vsub.f32 %v3989, %v4137
        %v4226 = vsub.f32 %v3991, %v4137
        %v4227 = vsub.f32 %v3993, %v4140
        %v4228 = vsub.f32 %v3995, %v4140
        %v4229 = vsub.f32 %v3999, %v4143
        %v4230 = vsub.f32 %v4001, %v4143
        %v4231 = vsub.f32 %v4003, %v4146
        %v4232 = vsub.f32 %v4005, %v4146
        %v4233 = vsub.f32 %v4009, %v4149
        %v4234 = vsub.f32 %v4011, %v4149
        %v4235 = vsub.f32 %v4013, %v4152
        %v4236 = vsub.f32 %v4015, %v4152
        %v4237 = vsub.f32 %v4019, %v4155
        %v4238 = vsub.f32 %v4021, %v4155
        %v4239 = vsub.f32 %v4023, %v4158
        %v4240 = vsub.f32 %v4025, %v4158
        %v4241 = vsub.f32 %v4029, %v4161
        %v4242 = vsub.f32 %v4031, %v4161
        %v4243 = vsub.f32 %v4033, %v4164
        %v4244 = vsub.f32 %v4035, %v4164
        %v4245 = vsub.f32 %v4039, %v4167
        %v4246 = vsub.f32 %v4041, %v4167
        %v4247 = vsub.f32 %v4043, %v4170
        %v4248 = vsub.f32 %v4045, %v4170
        %v4249 = vsub.f32 %v4049, %v4173
        %v4250 = vsub.f32 %v4051, %v4173
        %v4251 = vsub.f32 %v4053, %v4176
        %v4252 = vsub.f32 %v4055, %v4176
        %v4253 = vsub.f32 %v4059, %v4179
        %v4254 = vsub.f32 %v4061, %v4179
        %v4255 = vsub.f32 %v4063, %v4182
        %v4256 = vsub.f32 %v4065, %v4182
        %v4257 = vsub.f32 %v4069, %v4185
        %v4258 = vsub.f32 %v4071, %v4185
        %v4259 = vsub.f32 %v4073, %v4188
        %v4260 = vsub.f32 %v4075, %v4188
        %v4261 = vsub.f32 %v4079, %v4191
        %v4262 = vsub.f32 %v4081, %v4191
        %v4263 = vsub.f32 %v4083, %v4194
        %v4264 = vsub.f32 %v4085, %v4194
        %v4265 = vsub.f32 %v4089, %v4197
        %v4266 = vsub.f32 %v4091, %v4197
        %v4267 = vsub.f32 %v4093, %v4200
        %v4268 = vsub.f32 %v4095, %v4200
        %v4269 = vsub.f32 %v4099, %v4203
        %v4270 = vsub.f32 %v4101, %v4203
        %v4271 = vsub.f32 %v4103, %v4206
        %v4272 = vsub.f32 %v4105, %v4206
        %v4273 = vsub.f32 %v4109, %v4209
        %v4274 = vsub.f32 %v4111, %v4209
        %v4275 = vsub.f32 %v4113, %v4212
        %v4276 = vsub.f32 %v4115, %v4212
        %v4277 = vmul.f32 %v4213, 1.442695
        %v4278 = vpow.pop %v4277
        %v4279 = vmul.f32 %v4214, 1.442695
        %v4280 = vpow.pop %v4279
        %v4281 = vmul.f32 %v4215, 1.442695
        %v4282 = vpow.pop %v4281
        %v4283 = vmul.f32 %v4216, 1.442695
        %v4284 = vpow.pop %v4283
        %v4285 = vmul.f32 %v4217, 1.442695
        %v4286 = vpow.pop %v4285
        %v4287 = vmul.f32 %v4218, 1.442695
        %v4288 = vpow.pop %v4287
        %v4289 = vmul.f32 %v4219, 1.442695
        %v4290 = vpow.pop %v4289
        %v4291 = vmul.f32 %v4220, 1.442695
        %v4292 = vpow.pop %v4291
        %v4293 = vmul.f32 %v4221, 1.442695
        %v4294 = vpow.pop %v4293
        %v4295 = vmul.f32 %v4222, 1.442695
        %v4296 = vpow.pop %v4295
        %v4297 = vmul.f32 %v4223, 1.442695
        %v4298 = vpow.pop %v4297
        %v4299 = vmul.f32 %v4224, 1.442695
        %v4300 = vpow.pop %v4299
        %v4301 = vmul.f32 %v4225, 1.442695
        %v4302 = vpow.pop %v4301
        %v4303 = vmul.f32 %v4226, 1.442695
        %v4304 = vpow.pop %v4303
        %v4305 = vmul.f32 %v4227, 1.442695
        %v4306 = vpow.pop %v4305
        %v4307 = vmul.f32 %v4228, 1.442695
        %v4308 = vpow.pop %v4307
        %v4309 = vmul.f32 %v4229, 1.442695
        %v4310 = vpow.pop %v4309
        %v4311 = vmul.f32 %v4230, 1.442695
        %v4312 = vpow.pop %v4311
        %v4313 = vmul.f32 %v4231, 1.442695
        %v4314 = vpow.pop %v4313
        %v4315 = vmul.f32 %v4232, 1.442695
        %v4316 = vpow.pop %v4315
        %v4317 = vmul.f32 %v4233, 1.442695
        %v4318 = vpow.pop %v4317
        %v4319 = vmul.f32 %v4234, 1.442695
        %v4320 = vpow.pop %v4319
        %v4321 = vmul.f32 %v4235, 1.442695
        %v4322 = vpow.pop %v4321
        %v4323 = vmul.f32 %v4236, 1.442695
        %v4324 = vpow.pop %v4323
        %v4325 = vmul.f32 %v4237, 1.442695
        %v4326 = vpow.pop %v4325
        %v4327 = vmul.f32 %v4238, 1.442695
        %v4328 = vpow.pop %v4327
        %v4329 = vmul.f32 %v4239, 1.442695
        %v4330 = vpow.pop %v4329
        %v4331 = vmul.f32 %v4240, 1.442695
        %v4332 = vpow.pop %v4331
        %v4333 = vmul.f32 %v4241, 1.442695
        %v4334 = vpow.pop %v4333
        %v4335 = vmul.f32 %v4242, 1.442695
        %v4336 = vpow.pop %v4335
        %v4337 = vmul.f32 %v4243, 1.442695
        %v4338 = vpow.pop %v4337
        %v4339 = vmul.f32 %v4244, 1.442695
        %v4340 = vpow.pop %v4339
        %v4341 = vmul.f32 %v4245, 1.442695
        %v4342 = vpow.pop %v4341
        %v4343 = vmul.f32 %v4246, 1.442695
        %v4344 = vpow.pop %v4343
        %v4345 = vmul.f32 %v4247, 1.442695
        %v4346 = vpow.pop %v4345
        %v4347 = vmul.f32 %v4248, 1.442695
        %v4348 = vpow.pop %v4347
        %v4349 = vmul.f32 %v4249, 1.442695
        %v4350 = vpow.pop %v4349
        %v4351 = vmul.f32 %v4250, 1.442695
        %v4352 = vpow.pop %v4351
        %v4353 = vmul.f32 %v4251, 1.442695
        %v4354 = vpow.pop %v4353
        %v4355 = vmul.f32 %v4252, 1.442695
        %v4356 = vpow.pop %v4355
        %v4357 = vmul.f32 %v4253, 1.442695
        %v4358 = vpow.pop %v4357
        %v4359 = vmul.f32 %v4254, 1.442695
        %v4360 = vpow.pop %v4359
        %v4361 = vmul.f32 %v4255, 1.442695
        %v4362 = vpow.pop %v4361
        %v4363 = vmul.f32 %v4256, 1.442695
        %v4364 = vpow.pop %v4363
        %v4365 = vmul.f32 %v4257, 1.442695
        %v4366 = vpow.pop %v4365
        %v4367 = vmul.f32 %v4258, 1.442695
        %v4368 = vpow.pop %v4367
        %v4369 = vmul.f32 %v4259, 1.442695
        %v4370 = vpow.pop %v4369
        %v4371 = vmul.f32 %v4260, 1.442695
        %v4372 = vpow.pop %v4371
        %v4373 = vmul.f32 %v4261, 1.442695
        %v4374 = vpow.pop %v4373
        %v4375 = vmul.f32 %v4262, 1.442695
        %v4376 = vpow.pop %v4375
        %v4377 = vmul.f32 %v4263, 1.442695
        %v4378 = vpow.pop %v4377
        %v4379 = vmul.f32 %v4264, 1.442695
        %v4380 = vpow.pop %v4379
        %v4381 = vmul.f32 %v4265, 1.442695
        %v4382 = vpow.pop %v4381
        %v4383 = vmul.f32 %v4266, 1.442695
        %v4384 = vpow.pop %v4383
        %v4385 = vmul.f32 %v4267, 1.442695
        %v4386 = vpow.pop %v4385
        %v4387 = vmul.f32 %v4268, 1.442695
        %v4388 = vpow.pop %v4387
        %v4389 = vmul.f32 %v4269, 1.442695
        %v4390 = vpow.pop %v4389
        %v4391 = vmul.f32 %v4270, 1.442695
        %v4392 = vpow.pop %v4391
        %v4393 = vmul.f32 %v4271, 1.442695
        %v4394 = vpow.pop %v4393
        %v4395 = vmul.f32 %v4272, 1.442695
        %v4396 = vpow.pop %v4395
        %v4397 = vmul.f32 %v4273, 1.442695
        %v4398 = vpow.pop %v4397
        %v4399 = vmul.f32 %v4274, 1.442695
        %v4400 = vpow.pop %v4399
        %v4401 = vmul.f32 %v4275, 1.442695
        %v4402 = vpow.pop %v4401
        %v4403 = vmul.f32 %v4276, 1.442695
        %v4404 = vpow.pop %v4403
        %v4405 = vadd.f32 %v4278, %v4280
        %4406 = vadd.xlane.f32.xlu0 %v4405
        %v4407 = vpop.xlane.xlu0 %4406
        %v4408 = vadd.f32 %v4282, %v4284
        %4409 = vadd.xlane.f32.xlu0 %v4408
        %v4410 = vpop.xlane.xlu0 %4409
        %v4411 = vadd.f32 %v4286, %v4288
        %4412 = vadd.xlane.f32.xlu0 %v4411
        %v4413 = vpop.xlane.xlu0 %4412
        %v4414 = vadd.f32 %v4290, %v4292
        %4415 = vadd.xlane.f32.xlu0 %v4414
        %v4416 = vpop.xlane.xlu0 %4415
        %v4417 = vadd.f32 %v4294, %v4296
        %4418 = vadd.xlane.f32.xlu0 %v4417
        %v4419 = vpop.xlane.xlu0 %4418
        %v4420 = vadd.f32 %v4298, %v4300
        %4421 = vadd.xlane.f32.xlu0 %v4420
        %v4422 = vpop.xlane.xlu0 %4421
        %v4423 = vadd.f32 %v4302, %v4304
        %4424 = vadd.xlane.f32.xlu0 %v4423
        %v4425 = vpop.xlane.xlu0 %4424
        %v4426 = vadd.f32 %v4306, %v4308
        %4427 = vadd.xlane.f32.xlu0 %v4426
        %v4428 = vpop.xlane.xlu0 %4427
        %v4429 = vadd.f32 %v4310, %v4312
        %4430 = vadd.xlane.f32.xlu0 %v4429
        %v4431 = vpop.xlane.xlu0 %4430
        %v4432 = vadd.f32 %v4314, %v4316
        %4433 = vadd.xlane.f32.xlu0 %v4432
        %v4434 = vpop.xlane.xlu0 %4433
        %v4435 = vadd.f32 %v4318, %v4320
        %4436 = vadd.xlane.f32.xlu0 %v4435
        %v4437 = vpop.xlane.xlu0 %4436
        %v4438 = vadd.f32 %v4322, %v4324
        %4439 = vadd.xlane.f32.xlu0 %v4438
        %v4440 = vpop.xlane.xlu0 %4439
        %v4441 = vadd.f32 %v4326, %v4328
        %4442 = vadd.xlane.f32.xlu0 %v4441
        %v4443 = vpop.xlane.xlu0 %4442
        %v4444 = vadd.f32 %v4330, %v4332
        %4445 = vadd.xlane.f32.xlu0 %v4444
        %v4446 = vpop.xlane.xlu0 %4445
        %v4447 = vadd.f32 %v4334, %v4336
        %4448 = vadd.xlane.f32.xlu0 %v4447
        %v4449 = vpop.xlane.xlu0 %4448
        %v4450 = vadd.f32 %v4338, %v4340
        %4451 = vadd.xlane.f32.xlu0 %v4450
        %v4452 = vpop.xlane.xlu0 %4451
        %v4453 = vadd.f32 %v4342, %v4344
        %4454 = vadd.xlane.f32.xlu0 %v4453
        %v4455 = vpop.xlane.xlu0 %4454
        %v4456 = vadd.f32 %v4346, %v4348
        %4457 = vadd.xlane.f32.xlu0 %v4456
        %v4458 = vpop.xlane.xlu0 %4457
        %v4459 = vadd.f32 %v4350, %v4352
        %4460 = vadd.xlane.f32.xlu0 %v4459
        %v4461 = vpop.xlane.xlu0 %4460
        %v4462 = vadd.f32 %v4354, %v4356
        %4463 = vadd.xlane.f32.xlu0 %v4462
        %v4464 = vpop.xlane.xlu0 %4463
        %v4465 = vadd.f32 %v4358, %v4360
        %4466 = vadd.xlane.f32.xlu0 %v4465
        %v4467 = vpop.xlane.xlu0 %4466
        %v4468 = vadd.f32 %v4362, %v4364
        %4469 = vadd.xlane.f32.xlu0 %v4468
        %v4470 = vpop.xlane.xlu0 %4469
        %v4471 = vadd.f32 %v4366, %v4368
        %4472 = vadd.xlane.f32.xlu0 %v4471
        %v4473 = vpop.xlane.xlu0 %4472
        %v4474 = vadd.f32 %v4370, %v4372
        %4475 = vadd.xlane.f32.xlu0 %v4474
        %v4476 = vpop.xlane.xlu0 %4475
        %v4477 = vadd.f32 %v4374, %v4376
        %4478 = vadd.xlane.f32.xlu0 %v4477
        %v4479 = vpop.xlane.xlu0 %4478
        %v4480 = vadd.f32 %v4378, %v4380
        %4481 = vadd.xlane.f32.xlu0 %v4480
        %v4482 = vpop.xlane.xlu0 %4481
        %v4483 = vadd.f32 %v4382, %v4384
        %4484 = vadd.xlane.f32.xlu0 %v4483
        %v4485 = vpop.xlane.xlu0 %4484
        %v4486 = vadd.f32 %v4386, %v4388
        %4487 = vadd.xlane.f32.xlu0 %v4486
        %v4488 = vpop.xlane.xlu0 %4487
        %v4489 = vadd.f32 %v4390, %v4392
        %4490 = vadd.xlane.f32.xlu0 %v4489
        %v4491 = vpop.xlane.xlu0 %4490
        %v4492 = vadd.f32 %v4394, %v4396
        %4493 = vadd.xlane.f32.xlu0 %v4492
        %v4494 = vpop.xlane.xlu0 %4493
        %v4495 = vadd.f32 %v4398, %v4400
        %4496 = vadd.xlane.f32.xlu0 %v4495
        %v4497 = vpop.xlane.xlu0 %4496
        %v4498 = vadd.f32 %v4402, %v4404
        %4499 = vadd.xlane.f32.xlu0 %v4498
        %v4500 = vpop.xlane.xlu0 %4499
        %v4501 = vrcp.pop %v4407
        %v4502 = vrcp.pop %v4410
        %v4503 = vrcp.pop %v4413
        %v4504 = vrcp.pop %v4416
        %v4505 = vrcp.pop %v4419
        %v4506 = vrcp.pop %v4422
        %v4507 = vrcp.pop %v4425
        %v4508 = vrcp.pop %v4428
        %v4509 = vrcp.pop %v4431
        %v4510 = vrcp.pop %v4434
        %v4511 = vrcp.pop %v4437
        %v4512 = vrcp.pop %v4440
        %v4513 = vrcp.pop %v4443
        %v4514 = vrcp.pop %v4446
        %v4515 = vrcp.pop %v4449
        %v4516 = vrcp.pop %v4452
        %v4517 = vrcp.pop %v4455
        %v4518 = vrcp.pop %v4458
        %v4519 = vrcp.pop %v4461
        %v4520 = vrcp.pop %v4464
        %v4521 = vrcp.pop %v4467
        %v4522 = vrcp.pop %v4470
        %v4523 = vrcp.pop %v4473
        %v4524 = vrcp.pop %v4476
        %v4525 = vrcp.pop %v4479
        %v4526 = vrcp.pop %v4482
        %v4527 = vrcp.pop %v4485
        %v4528 = vrcp.pop %v4488
        %v4529 = vrcp.pop %v4491
        %v4530 = vrcp.pop %v4494
        %v4531 = vrcp.pop %v4497
        %v4532 = vrcp.pop %v4500
        %v4533 = vmul.f32 %v4278, %v4501
        %v4534 = vmul.f32 %v4280, %v4501
        %v4535 = vmul.f32 %v4282, %v4502
        %v4536 = vmul.f32 %v4284, %v4502
        %v4537 = vmul.f32 %v4286, %v4503
        %v4538 = vmul.f32 %v4288, %v4503
        %v4539 = vmul.f32 %v4290, %v4504
        %v4540 = vmul.f32 %v4292, %v4504
        %v4541 = vmul.f32 %v4294, %v4505
        %v4542 = vmul.f32 %v4296, %v4505
        %v4543 = vmul.f32 %v4298, %v4506
        %v4544 = vmul.f32 %v4300, %v4506
        %v4545 = vmul.f32 %v4302, %v4507
        %v4546 = vmul.f32 %v4304, %v4507
        %v4547 = vmul.f32 %v4306, %v4508
        %v4548 = vmul.f32 %v4308, %v4508
        %v4549 = vmul.f32 %v4310, %v4509
        %v4550 = vmul.f32 %v4312, %v4509
        %v4551 = vmul.f32 %v4314, %v4510
        %v4552 = vmul.f32 %v4316, %v4510
        %v4553 = vmul.f32 %v4318, %v4511
        %v4554 = vmul.f32 %v4320, %v4511
        %v4555 = vmul.f32 %v4322, %v4512
        %v4556 = vmul.f32 %v4324, %v4512
        %v4557 = vmul.f32 %v4326, %v4513
        %v4558 = vmul.f32 %v4328, %v4513
        %v4559 = vmul.f32 %v4330, %v4514
        %v4560 = vmul.f32 %v4332, %v4514
        %v4561 = vmul.f32 %v4334, %v4515
        %v4562 = vmul.f32 %v4336, %v4515
        %v4563 = vmul.f32 %v4338, %v4516
        %v4564 = vmul.f32 %v4340, %v4516
        %v4565 = vmul.f32 %v4342, %v4517
        %v4566 = vmul.f32 %v4344, %v4517
        %v4567 = vmul.f32 %v4346, %v4518
        %v4568 = vmul.f32 %v4348, %v4518
        %v4569 = vmul.f32 %v4350, %v4519
        %v4570 = vmul.f32 %v4352, %v4519
        %v4571 = vmul.f32 %v4354, %v4520
        %v4572 = vmul.f32 %v4356, %v4520
        %v4573 = vmul.f32 %v4358, %v4521
        %v4574 = vmul.f32 %v4360, %v4521
        %v4575 = vmul.f32 %v4362, %v4522
        %v4576 = vmul.f32 %v4364, %v4522
        %v4577 = vmul.f32 %v4366, %v4523
        %v4578 = vmul.f32 %v4368, %v4523
        %v4579 = vmul.f32 %v4370, %v4524
        %v4580 = vmul.f32 %v4372, %v4524
        %v4581 = vmul.f32 %v4374, %v4525
        %v4582 = vmul.f32 %v4376, %v4525
        %v4583 = vmul.f32 %v4378, %v4526
        %v4584 = vmul.f32 %v4380, %v4526
        %v4585 = vmul.f32 %v4382, %v4527
        %v4586 = vmul.f32 %v4384, %v4527
        %v4587 = vmul.f32 %v4386, %v4528
        %v4588 = vmul.f32 %v4388, %v4528
        %v4589 = vmul.f32 %v4390, %v4529
        %v4590 = vmul.f32 %v4392, %v4529
        %v4591 = vmul.f32 %v4394, %v4530
        %v4592 = vmul.f32 %v4396, %v4530
        %v4593 = vmul.f32 %v4398, %v4531
        %v4594 = vmul.f32 %v4400, %v4531
        %v4595 = vmul.f32 %v4402, %v4532
        %v4596 = vmul.f32 %v4404, %v4532
        %v4597 = vpack.c.bf16 %v4535, %v4533
        %v4598 = vpack.c.bf16 %v4536, %v4534
        %v4599 = vpack.c.bf16 %v4539, %v4537
        %v4600 = vpack.c.bf16 %v4540, %v4538
        %v4601 = vpack.c.bf16 %v4543, %v4541
        %v4602 = vpack.c.bf16 %v4544, %v4542
        %v4603 = vpack.c.bf16 %v4547, %v4545
        %v4604 = vpack.c.bf16 %v4548, %v4546
        %v4605 = vpack.c.bf16 %v4551, %v4549
        %v4606 = vpack.c.bf16 %v4552, %v4550
        %v4607 = vpack.c.bf16 %v4555, %v4553
        %v4608 = vpack.c.bf16 %v4556, %v4554
        %v4609 = vpack.c.bf16 %v4559, %v4557
        %v4610 = vpack.c.bf16 %v4560, %v4558
        %v4611 = vpack.c.bf16 %v4563, %v4561
        %v4612 = vpack.c.bf16 %v4564, %v4562
        %v4613 = vpack.c.bf16 %v4567, %v4565
        %v4614 = vpack.c.bf16 %v4568, %v4566
        %v4615 = vpack.c.bf16 %v4571, %v4569
        %v4616 = vpack.c.bf16 %v4572, %v4570
        %v4617 = vpack.c.bf16 %v4575, %v4573
        %v4618 = vpack.c.bf16 %v4576, %v4574
        %v4619 = vpack.c.bf16 %v4579, %v4577
        %v4620 = vpack.c.bf16 %v4580, %v4578
        %v4621 = vpack.c.bf16 %v4583, %v4581
        %v4622 = vpack.c.bf16 %v4584, %v4582
        %v4623 = vpack.c.bf16 %v4587, %v4585
        %v4624 = vpack.c.bf16 %v4588, %v4586
        %v4625 = vpack.c.bf16 %v4591, %v4589
        %v4626 = vpack.c.bf16 %v4592, %v4590
        %v4627 = vpack.c.bf16 %v4595, %v4593
        %v4628 = vpack.c.bf16 %v4596, %v4594
        %4629 = vrot.lane.b32.xlu0 %v1406, 48
        %v4630 = vpop.permute.xlu0 %4629
        %4631 = vrot.lane.b32.xlu0 %v1407, 48
        %v4632 = vpop.permute.xlu0 %4631
        %4633 = vrot.lane.b32.xlu0 %v1408, 48
        %v4634 = vpop.permute.xlu0 %4633
        %4635 = vrot.lane.b32.xlu0 %v1409, 48
        %v4636 = vpop.permute.xlu0 %4635
        %4637 = vrot.lane.b32.xlu0 %v1410, 48
        %v4638 = vpop.permute.xlu0 %4637
        %4639 = vrot.lane.b32.xlu0 %v1411, 48
        %v4640 = vpop.permute.xlu0 %4639
        %4641 = vrot.lane.b32.xlu0 %v1412, 48
        %v4642 = vpop.permute.xlu0 %4641
        %4643 = vrot.lane.b32.xlu0 %v1413, 48
        %v4644 = vpop.permute.xlu0 %4643
        %4645 = vrot.lane.b32.xlu0 %v1414, 48
        %v4646 = vpop.permute.xlu0 %4645
        %4647 = vrot.lane.b32.xlu0 %v1415, 48
        %v4648 = vpop.permute.xlu0 %4647
        %4649 = vrot.lane.b32.xlu0 %v1416, 48
        %v4650 = vpop.permute.xlu0 %4649
        %4651 = vrot.lane.b32.xlu0 %v1417, 48
        %v4652 = vpop.permute.xlu0 %4651
        %4653 = vrot.lane.b32.xlu0 %v1418, 48
        %v4654 = vpop.permute.xlu0 %4653
        %4655 = vrot.lane.b32.xlu0 %v1419, 48
        %v4656 = vpop.permute.xlu0 %4655
        %4657 = vrot.lane.b32.xlu0 %v1420, 48
        %v4658 = vpop.permute.xlu0 %4657
        %4659 = vrot.lane.b32.xlu0 %v1421, 48
        %v4660 = vpop.permute.xlu0 %4659
        %4677 = vmatprep.subr.bf16.mxu0 0
        %4678 = vmatpush1.bf16.msra.mxu0 %v4630
        %4679 = vmatprep.subr.bf16.mxu0 0
        %4680 = vmatpush1.bf16.msra.mxu0 %v4632
        %4681 = vmatprep.subr.bf16.mxu0 0
        %4682 = vmatpush1.bf16.msra.mxu0 %v4634
        %4683 = vmatprep.subr.bf16.mxu0 0
        %4684 = vmatpush1.bf16.msra.mxu0 %v4636
        %4685 = vmatprep.subr.bf16.mxu0 0
        %4686 = vmatpush1.bf16.msra.mxu0 %v4638
        %4687 = vmatprep.subr.bf16.mxu0 0
        %4688 = vmatpush1.bf16.msra.mxu0 %v4640
        %4689 = vmatprep.subr.bf16.mxu0 0
        %4690 = vmatpush1.bf16.msra.mxu0 %v4642
        %4691 = vmatprep.subr.bf16.mxu0 0
        %4692 = vmatpush1.bf16.msra.mxu0 %v4644
        %4693 = vmatprep.subr.bf16.mxu0 0
        %4694 = vmatpush1.bf16.msra.mxu0 %v4646
        %4695 = vmatprep.subr.bf16.mxu0 0
        %4696 = vmatpush1.bf16.msra.mxu0 %v4648
        %4697 = vmatprep.subr.bf16.mxu0 0
        %4698 = vmatpush1.bf16.msra.mxu0 %v4650
        %4699 = vmatprep.subr.bf16.mxu0 0
        %4700 = vmatpush1.bf16.msra.mxu0 %v4652
        %4701 = vmatprep.subr.bf16.mxu0 0
        %4702 = vmatpush1.bf16.msra.mxu0 %v4654
        %4703 = vmatprep.subr.bf16.mxu0 0
        %4704 = vmatpush1.bf16.msra.mxu0 %v4656
        %4705 = vmatprep.subr.bf16.mxu0 0
        %4706 = vmatpush1.bf16.msra.mxu0 %v4658
        %4707 = vmatprep.subr.bf16.mxu0 0
        %4708 = vmatpush1.bf16.msra.mxu0 %v4660
        %4709 = vmatprep.mubr.bf16.mxu0 %v4598
        %4710 = vmatmul.mubr.bf16.gmra.mrb[0].mxu0 %v4597
        %v4711 = vpop.f32.mrb[0].mxu0
        %v4712 = vadd.f32 0.0, %v4711
        %v4713 = vpop.f32.mrb[0].mxu0
        %v4714 = vpop.f32.mrb[0].mxu0
        %v4715 = vadd.f32 0.0, %v4714
        %v4716 = vpop.f32.mrb[0].mxu0
        %4717 = vmatprep.mubr.bf16.mxu0 %v4600
        %4718 = vmatmul.mubr.bf16.gmra.mrb[0].mxu0 %v4599
        %v4719 = vpop.f32.mrb[0].mxu0
        %v4720 = vadd.f32 0.0, %v4719
        %v4721 = vpop.f32.mrb[0].mxu0
        %v4722 = vpop.f32.mrb[0].mxu0
        %v4723 = vadd.f32 0.0, %v4722
        %v4724 = vpop.f32.mrb[0].mxu0
        %4725 = vmatprep.mubr.bf16.mxu0 %v4602
        %4726 = vmatmul.mubr.bf16.gmra.mrb[0].mxu0 %v4601
        %v4727 = vpop.f32.mrb[0].mxu0
        %v4728 = vadd.f32 0.0, %v4727
        %v4729 = vpop.f32.mrb[0].mxu0
        %v4730 = vpop.f32.mrb[0].mxu0
        %v4731 = vadd.f32 0.0, %v4730
        %v4732 = vpop.f32.mrb[0].mxu0
        %4733 = vmatprep.mubr.bf16.mxu0 %v4604
        %4734 = vmatmul.mubr.bf16.gmra.mrb[0].mxu0 %v4603
        %v4735 = vpop.f32.mrb[0].mxu0
        %v4736 = vadd.f32 0.0, %v4735
        %v4737 = vpop.f32.mrb[0].mxu0
        %v4738 = vpop.f32.mrb[0].mxu0
        %v4739 = vadd.f32 0.0, %v4738
        %v4740 = vpop.f32.mrb[0].mxu0
        %4741 = vmatprep.mubr.bf16.mxu0 %v4606
        %4742 = vmatmul.mubr.bf16.gmra.mrb[0].mxu0 %v4605
        %v4743 = vpop.f32.mrb[0].mxu0
        %v4744 = vadd.f32 0.0, %v4743
        %v4745 = vpop.f32.mrb[0].mxu0
        %v4746 = vpop.f32.mrb[0].mxu0
        %v4747 = vadd.f32 0.0, %v4746
        %v4748 = vpop.f32.mrb[0].mxu0
        %4749 = vmatprep.mubr.bf16.mxu0 %v4608
        %4750 = vmatmul.mubr.bf16.gmra.mrb[0].mxu0 %v4607
        %v4751 = vpop.f32.mrb[0].mxu0
        %v4752 = vadd.f32 0.0, %v4751
        %v4753 = vpop.f32.mrb[0].mxu0
        %v4754 = vpop.f32.mrb[0].mxu0
        %v4755 = vadd.f32 0.0, %v4754
        %v4756 = vpop.f32.mrb[0].mxu0
        %4757 = vmatprep.mubr.bf16.mxu0 %v4610
        %4758 = vmatmul.mubr.bf16.gmra.mrb[0].mxu0 %v4609
        %v4759 = vpop.f32.mrb[0].mxu0
        %v4760 = vadd.f32 0.0, %v4759
        %v4761 = vpop.f32.mrb[0].mxu0
        %v4762 = vpop.f32.mrb[0].mxu0
        %v4763 = vadd.f32 0.0, %v4762
        %v4764 = vpop.f32.mrb[0].mxu0
        %4765 = vmatprep.mubr.bf16.mxu0 %v4612
        %4766 = vmatmul.mubr.bf16.gmra.mrb[0].mxu0 %v4611
        %v4767 = vpop.f32.mrb[0].mxu0
        %v4768 = vadd.f32 0.0, %v4767
        %v4769 = vpop.f32.mrb[0].mxu0
        %v4770 = vpop.f32.mrb[0].mxu0
        %v4771 = vadd.f32 0.0, %v4770
        %v4772 = vpop.f32.mrb[0].mxu0
        %4773 = vmatprep.mubr.bf16.mxu0 %v4614
        %4774 = vmatmul.mubr.bf16.gmra.mrb[0].mxu0 %v4613
        %v4775 = vpop.f32.mrb[0].mxu0
        %v4776 = vadd.f32 0.0, %v4775
        %v4777 = vpop.f32.mrb[0].mxu0
        %v4778 = vpop.f32.mrb[0].mxu0
        %v4779 = vadd.f32 0.0, %v4778
        %v4780 = vpop.f32.mrb[0].mxu0
        %4781 = vmatprep.mubr.bf16.mxu0 %v4616
        %4782 = vmatmul.mubr.bf16.gmra.mrb[0].mxu0 %v4615
        %v4783 = vpop.f32.mrb[0].mxu0
        %v4784 = vadd.f32 0.0, %v4783
        %v4785 = vpop.f32.mrb[0].mxu0
        %v4786 = vpop.f32.mrb[0].mxu0
        %v4787 = vadd.f32 0.0, %v4786
        %v4788 = vpop.f32.mrb[0].mxu0
        %4789 = vmatprep.mubr.bf16.mxu0 %v4618
        %4790 = vmatmul.mubr.bf16.gmra.mrb[0].mxu0 %v4617
        %v4791 = vpop.f32.mrb[0].mxu0
        %v4792 = vadd.f32 0.0, %v4791
        %v4793 = vpop.f32.mrb[0].mxu0
        %v4794 = vpop.f32.mrb[0].mxu0
        %v4795 = vadd.f32 0.0, %v4794
        %v4796 = vpop.f32.mrb[0].mxu0
        %4797 = vmatprep.mubr.bf16.mxu0 %v4620
        %4798 = vmatmul.mubr.bf16.gmra.mrb[0].mxu0 %v4619
        %v4799 = vpop.f32.mrb[0].mxu0
        %v4800 = vadd.f32 0.0, %v4799
        %v4801 = vpop.f32.mrb[0].mxu0
        %v4802 = vpop.f32.mrb[0].mxu0
        %v4803 = vadd.f32 0.0, %v4802
        %v4804 = vpop.f32.mrb[0].mxu0
        %4805 = vmatprep.mubr.bf16.mxu0 %v4622
        %4806 = vmatmul.mubr.bf16.gmra.mrb[0].mxu0 %v4621
        %v4807 = vpop.f32.mrb[0].mxu0
        %v4808 = vadd.f32 0.0, %v4807
        %v4809 = vpop.f32.mrb[0].mxu0
        %v4810 = vpop.f32.mrb[0].mxu0
        %v4811 = vadd.f32 0.0, %v4810
        %v4812 = vpop.f32.mrb[0].mxu0
        %4813 = vmatprep.mubr.bf16.mxu0 %v4624
        %4814 = vmatmul.mubr.bf16.gmra.mrb[0].mxu0 %v4623
        %v4815 = vpop.f32.mrb[0].mxu0
        %v4816 = vadd.f32 0.0, %v4815
        %v4817 = vpop.f32.mrb[0].mxu0
        %v4818 = vpop.f32.mrb[0].mxu0
        %v4819 = vadd.f32 0.0, %v4818
        %v4820 = vpop.f32.mrb[0].mxu0
        %4821 = vmatprep.mubr.bf16.mxu0 %v4626
        %4822 = vmatmul.mubr.bf16.gmra.mrb[0].mxu0 %v4625
        %v4823 = vpop.f32.mrb[0].mxu0
        %v4824 = vadd.f32 0.0, %v4823
        %v4825 = vpop.f32.mrb[0].mxu0
        %v4826 = vpop.f32.mrb[0].mxu0
        %v4827 = vadd.f32 0.0, %v4826
        %v4828 = vpop.f32.mrb[0].mxu0
        %4829 = vmatprep.mubr.bf16.mxu0 %v4628
        %4830 = vmatmul.mubr.bf16.gmra.mrb[0].mxu0 %v4627
        %v4831 = vpop.f32.mrb[0].mxu0
        %v4832 = vadd.f32 0.0, %v4831
        %v4833 = vpop.f32.mrb[0].mxu0
        %v4834 = vpop.f32.mrb[0].mxu0
        %v4835 = vadd.f32 0.0, %v4834
        %v4836 = vpop.f32.mrb[0].mxu0
        %4837 = vdwg.mxu0
        %4870 = vrot.lane.b32.xlu0 %v4712, 16
        %v4871 = vpop.permute.xlu0 %4870
        %4872 = vrot.lane.b32.xlu0 %v4715, 16
        %v4873 = vpop.permute.xlu0 %4872
        %4874 = vrot.lane.b32.xlu0 %v4720, 16
        %v4875 = vpop.permute.xlu0 %4874
        %4876 = vrot.lane.b32.xlu0 %v4723, 16
        %v4877 = vpop.permute.xlu0 %4876
        %4878 = vrot.lane.b32.xlu0 %v4728, 16
        %v4879 = vpop.permute.xlu0 %4878
        %4880 = vrot.lane.b32.xlu0 %v4731, 16
        %v4881 = vpop.permute.xlu0 %4880
        %4882 = vrot.lane.b32.xlu0 %v4736, 16
        %v4883 = vpop.permute.xlu0 %4882
        %4884 = vrot.lane.b32.xlu0 %v4739, 16
        %v4885 = vpop.permute.xlu0 %4884
        %4886 = vrot.lane.b32.xlu0 %v4744, 16
        %v4887 = vpop.permute.xlu0 %4886
        %4888 = vrot.lane.b32.xlu0 %v4747, 16
        %v4889 = vpop.permute.xlu0 %4888
        %4890 = vrot.lane.b32.xlu0 %v4752, 16
        %v4891 = vpop.permute.xlu0 %4890
        %4892 = vrot.lane.b32.xlu0 %v4755, 16
        %v4893 = vpop.permute.xlu0 %4892
        %4894 = vrot.lane.b32.xlu0 %v4760, 16
        %v4895 = vpop.permute.xlu0 %4894
        %4896 = vrot.lane.b32.xlu0 %v4763, 16
        %v4897 = vpop.permute.xlu0 %4896
        %4898 = vrot.lane.b32.xlu0 %v4768, 16
        %v4899 = vpop.permute.xlu0 %4898
        %4900 = vrot.lane.b32.xlu0 %v4771, 16
        %v4901 = vpop.permute.xlu0 %4900
        %4902 = vrot.lane.b32.xlu0 %v4776, 16
        %v4903 = vpop.permute.xlu0 %4902
        %4904 = vrot.lane.b32.xlu0 %v4779, 16
        %v4905 = vpop.permute.xlu0 %4904
        %4906 = vrot.lane.b32.xlu0 %v4784, 16
        %v4907 = vpop.permute.xlu0 %4906
        %4908 = vrot.lane.b32.xlu0 %v4787, 16
        %v4909 = vpop.permute.xlu0 %4908
        %4910 = vrot.lane.b32.xlu0 %v4792, 16
        %v4911 = vpop.permute.xlu0 %4910
        %4912 = vrot.lane.b32.xlu0 %v4795, 16
        %v4913 = vpop.permute.xlu0 %4912
        %4914 = vrot.lane.b32.xlu0 %v4800, 16
        %v4915 = vpop.permute.xlu0 %4914
        %4916 = vrot.lane.b32.xlu0 %v4803, 16
        %v4917 = vpop.permute.xlu0 %4916
        %4918 = vrot.lane.b32.xlu0 %v4808, 16
        %v4919 = vpop.permute.xlu0 %4918
        %4920 = vrot.lane.b32.xlu0 %v4811, 16
        %v4921 = vpop.permute.xlu0 %4920
        %4922 = vrot.lane.b32.xlu0 %v4816, 16
        %v4923 = vpop.permute.xlu0 %4922
        %4924 = vrot.lane.b32.xlu0 %v4819, 16
        %v4925 = vpop.permute.xlu0 %4924
        %4926 = vrot.lane.b32.xlu0 %v4824, 16
        %v4927 = vpop.permute.xlu0 %4926
        %4928 = vrot.lane.b32.xlu0 %v4827, 16
        %v4929 = vpop.permute.xlu0 %4928
        %4930 = vrot.lane.b32.xlu0 %v4832, 16
        %v4931 = vpop.permute.xlu0 %4930
        %4932 = vrot.lane.b32.xlu0 %v4835, 16
        %v4933 = vpop.permute.xlu0 %4932
        %vm4966 = vcmask 195712
        %4967 = vst.msk [vmem:[#allocation3] sm:$0xff] %vm4966, %v4871
        %4968 = vst.msk [vmem:[#allocation3 + $0x8] sm:$0xff] %vm4966, %v4873
        %4969 = vst.msk [vmem:[#allocation3 + $0x10] sm:$0xff] %vm4966, %v4875
        %4970 = vst.msk [vmem:[#allocation3 + $0x18] sm:$0xff] %vm4966, %v4877
        %4971 = vst.msk [vmem:[#allocation3 + $0x20] sm:$0xff] %vm4966, %v4879
        %4972 = vst.msk [vmem:[#allocation3 + $0x28] sm:$0xff] %vm4966, %v4881
        %4973 = vst.msk [vmem:[#allocation3 + $0x30] sm:$0xff] %vm4966, %v4883
        %4974 = vst.msk [vmem:[#allocation3 + $0x38] sm:$0xff] %vm4966, %v4885
        %4975 = vst.msk [vmem:[#allocation3 + $0x40] sm:$0xff] %vm4966, %v4887
        %4976 = vst.msk [vmem:[#allocation3 + $0x48] sm:$0xff] %vm4966, %v4889
        %4977 = vst.msk [vmem:[#allocation3 + $0x50] sm:$0xff] %vm4966, %v4891
        %4978 = vst.msk [vmem:[#allocation3 + $0x58] sm:$0xff] %vm4966, %v4893
        %4979 = vst.msk [vmem:[#allocation3 + $0x60] sm:$0xff] %vm4966, %v4895
        %4980 = vst.msk [vmem:[#allocation3 + $0x68] sm:$0xff] %vm4966, %v4897
        %4981 = vst.msk [vmem:[#allocation3 + $0x70] sm:$0xff] %vm4966, %v4899
        %4982 = vst.msk [vmem:[#allocation3 + $0x78] sm:$0xff] %vm4966, %v4901
        %4983 = vst.msk [vmem:[#allocation3 + $0x80] sm:$0xff] %vm4966, %v4903
        %4984 = vst.msk [vmem:[#allocation3 + $0x88] sm:$0xff] %vm4966, %v4905
        %4985 = vst.msk [vmem:[#allocation3 + $0x90] sm:$0xff] %vm4966, %v4907
        %4986 = vst.msk [vmem:[#allocation3 + $0x98] sm:$0xff] %vm4966, %v4909
        %4987 = vst.msk [vmem:[#allocation3 + $0xa0] sm:$0xff] %vm4966, %v4911
        %4988 = vst.msk [vmem:[#allocation3 + $0xa8] sm:$0xff] %vm4966, %v4913
        %4989 = vst.msk [vmem:[#allocation3 + $0xb0] sm:$0xff] %vm4966, %v4915
        %4990 = vst.msk [vmem:[#allocation3 + $0xb8] sm:$0xff] %vm4966, %v4917
        %4991 = vst.msk [vmem:[#allocation3 + $0xc0] sm:$0xff] %vm4966, %v4919
        %4992 = vst.msk [vmem:[#allocation3 + $0xc8] sm:$0xff] %vm4966, %v4921
        %4993 = vst.msk [vmem:[#allocation3 + $0xd0] sm:$0xff] %vm4966, %v4923
        %4994 = vst.msk [vmem:[#allocation3 + $0xd8] sm:$0xff] %vm4966, %v4925
        %4995 = vst.msk [vmem:[#allocation3 + $0xe0] sm:$0xff] %vm4966, %v4927
        %4996 = vst.msk [vmem:[#allocation3 + $0xe8] sm:$0xff] %vm4966, %v4929
        %4997 = vst.msk [vmem:[#allocation3 + $0xf0] sm:$0xff] %vm4966, %v4931
        %4998 = vst.msk [vmem:[#allocation3 + $0xf8] sm:$0xff] %vm4966, %v4933
        %4999 = vrot.lane.b32.xlu0 %v1390, 104
        %v5000 = vpop.permute.xlu0 %4999
        %5001 = vrot.lane.b32.xlu0 %v1391, 104
        %v5002 = vpop.permute.xlu0 %5001
        %5003 = vrot.lane.b32.xlu0 %v1392, 104
        %v5004 = vpop.permute.xlu0 %5003
        %5005 = vrot.lane.b32.xlu0 %v1393, 104
        %v5006 = vpop.permute.xlu0 %5005
        %5007 = vrot.lane.b32.xlu0 %v1394, 104
        %v5008 = vpop.permute.xlu0 %5007
        %5009 = vrot.lane.b32.xlu0 %v1395, 104
        %v5010 = vpop.permute.xlu0 %5009
        %5011 = vrot.lane.b32.xlu0 %v1396, 104
        %v5012 = vpop.permute.xlu0 %5011
        %5013 = vrot.lane.b32.xlu0 %v1397, 104
        %v5014 = vpop.permute.xlu0 %5013
        %5015 = vrot.lane.b32.xlu0 %v1398, 104
        %v5016 = vpop.permute.xlu0 %5015
        %5017 = vrot.lane.b32.xlu0 %v1399, 104
        %v5018 = vpop.permute.xlu0 %5017
        %5019 = vrot.lane.b32.xlu0 %v1400, 104
        %v5020 = vpop.permute.xlu0 %5019
        %5021 = vrot.lane.b32.xlu0 %v1401, 104
        %v5022 = vpop.permute.xlu0 %5021
        %5023 = vrot.lane.b32.xlu0 %v1402, 104
        %v5024 = vpop.permute.xlu0 %5023
        %5025 = vrot.lane.b32.xlu0 %v1403, 104
        %v5026 = vpop.permute.xlu0 %5025
        %5027 = vrot.lane.b32.xlu0 %v1404, 104
        %v5028 = vpop.permute.xlu0 %5027
        %5029 = vrot.lane.b32.xlu0 %v1405, 104
        %v5030 = vpop.permute.xlu0 %5029
        %5031 = vrot.lane.b32.xlu0 %v1406, 72
        %v5032 = vpop.permute.xlu0 %5031
        %5033 = vrot.lane.b32.xlu0 %v1407, 72
        %v5034 = vpop.permute.xlu0 %5033
        %5035 = vrot.lane.b32.xlu0 %v1408, 72
        %v5036 = vpop.permute.xlu0 %5035
        %5037 = vrot.lane.b32.xlu0 %v1409, 72
        %v5038 = vpop.permute.xlu0 %5037
        %5039 = vrot.lane.b32.xlu0 %v1410, 72
        %v5040 = vpop.permute.xlu0 %5039
        %5041 = vrot.lane.b32.xlu0 %v1411, 72
        %v5042 = vpop.permute.xlu0 %5041
        %5043 = vrot.lane.b32.xlu0 %v1412, 72
        %v5044 = vpop.permute.xlu0 %5043
        %5045 = vrot.lane.b32.xlu0 %v1413, 72
        %v5046 = vpop.permute.xlu0 %5045
        %5047 = vrot.lane.b32.xlu0 %v1414, 72
        %v5048 = vpop.permute.xlu0 %5047
        %5049 = vrot.lane.b32.xlu0 %v1415, 72
        %v5050 = vpop.permute.xlu0 %5049
        %5051 = vrot.lane.b32.xlu0 %v1416, 72
        %v5052 = vpop.permute.xlu0 %5051
        %5053 = vrot.lane.b32.xlu0 %v1417, 72
        %v5054 = vpop.permute.xlu0 %5053
        %5055 = vrot.lane.b32.xlu0 %v1418, 72
        %v5056 = vpop.permute.xlu0 %5055
        %5057 = vrot.lane.b32.xlu0 %v1419, 72
        %v5058 = vpop.permute.xlu0 %5057
        %5059 = vrot.lane.b32.xlu0 %v1420, 72
        %v5060 = vpop.permute.xlu0 %5059
        %5061 = vrot.lane.b32.xlu0 %v1421, 72
        %v5062 = vpop.permute.xlu0 %5061
        %v5064 = vsel %vm1470, %v5000, 0
        %v5067 = vsel %vm1470, %v5002, 0
        %v5070 = vsel %vm1470, %v5004, 0
        %v5073 = vsel %vm1470, %v5006, 0
        %v5076 = vsel %vm1470, %v5008, 0
        %v5079 = vsel %vm1470, %v5010, 0
        %v5082 = vsel %vm1470, %v5012, 0
        %v5085 = vsel %vm1470, %v5014, 0
        %v5088 = vsel %vm1470, %v5016, 0
        %v5091 = vsel %vm1470, %v5018, 0
        %v5094 = vsel %vm1470, %v5020, 0
        %v5097 = vsel %vm1470, %v5022, 0
        %v5100 = vsel %vm1470, %v5024, 0
        %v5103 = vsel %vm1470, %v5026, 0
        %v5106 = vsel %vm1470, %v5028, 0
        %v5109 = vsel %vm1470, %v5030, 0
        %v5112 = vsel %vm1470, %v5032, 0
        %v5115 = vsel %vm1470, %v5034, 0
        %v5118 = vsel %vm1470, %v5036, 0
        %v5121 = vsel %vm1470, %v5038, 0
        %v5124 = vsel %vm1470, %v5040, 0
        %v5127 = vsel %vm1470, %v5042, 0
        %v5130 = vsel %vm1470, %v5044, 0
        %v5133 = vsel %vm1470, %v5046, 0
        %v5136 = vsel %vm1470, %v5048, 0
        %v5139 = vsel %vm1470, %v5050, 0
        %v5142 = vsel %vm1470, %v5052, 0
        %v5145 = vsel %vm1470, %v5054, 0
        %v5148 = vsel %vm1470, %v5056, 0
        %v5151 = vsel %vm1470, %v5058, 0
        %v5154 = vsel %vm1470, %v5060, 0
        %v5157 = vsel %vm1470, %v5062, 0
        %5159 = vmatprep.subr.bf16.mxu0 0
        %5160 = vmatpush1.bf16.xpose.msra.mxu0 %v5112
        %5161 = vmatprep.subr.bf16.mxu0 0
        %5162 = vmatpush1.bf16.xpose.msra.mxu0 %v5115
        %5163 = vmatprep.subr.bf16.mxu0 0
        %5164 = vmatpush1.bf16.xpose.msra.mxu0 %v5118
        %5165 = vmatprep.subr.bf16.mxu0 0
        %5166 = vmatpush1.bf16.xpose.msra.mxu0 %v5121
        %5167 = vmatprep.subr.bf16.mxu0 0
        %5168 = vmatpush1.bf16.xpose.msra.mxu0 %v5124
        %5169 = vmatprep.subr.bf16.mxu0 0
        %5170 = vmatpush1.bf16.xpose.msra.mxu0 %v5127
        %5171 = vmatprep.subr.bf16.mxu0 0
        %5172 = vmatpush1.bf16.xpose.msra.mxu0 %v5130
        %5173 = vmatprep.subr.bf16.mxu0 0
        %5174 = vmatpush1.bf16.xpose.msra.mxu0 %v5133
        %5175 = vmatprep.subr.bf16.mxu0 0
        %5176 = vmatpush1.bf16.xpose.msra.mxu0 %v5136
        %5177 = vmatprep.subr.bf16.mxu0 0
        %5178 = vmatpush1.bf16.xpose.msra.mxu0 %v5139
        %5179 = vmatprep.subr.bf16.mxu0 0
        %5180 = vmatpush1.bf16.xpose.msra.mxu0 %v5142
        %5181 = vmatprep.subr.bf16.mxu0 0
        %5182 = vmatpush1.bf16.xpose.msra.mxu0 %v5145
        %5183 = vmatprep.subr.bf16.mxu0 0
        %5184 = vmatpush1.bf16.xpose.msra.mxu0 %v5148
        %5185 = vmatprep.subr.bf16.mxu0 0
        %5186 = vmatpush1.bf16.xpose.msra.mxu0 %v5151
        %5187 = vmatprep.subr.bf16.mxu0 0
        %5188 = vmatpush1.bf16.xpose.msra.mxu0 %v5154
        %5189 = vmatprep.subr.bf16.mxu0 0
        %5190 = vmatpush1.bf16.xpose.msra.mxu0 %v5157
        %5191 = vmatprep.mubr.bf16.mxu0 0
        %5192 = vmatmul.mubr.bf16.gmra.mrb[0].mxu0 %v5064
        %v5193 = vpop.f32.mrb[0].mxu0
        %v5194 = vadd.f32 0.0, %v5193
        %v5195 = vpop.f32.mrb[0].mxu0
        %v5196 = vadd.f32 0.0, %v5195
        %v5197 = vpop.f32.mrb[0].mxu0
        %v5198 = vadd.f32 0.0, %v5197
        %v5199 = vpop.f32.mrb[0].mxu0
        %v5200 = vadd.f32 0.0, %v5199
        %5201 = vmatprep.mubr.bf16.mxu0 0
        %5202 = vmatmul.mubr.bf16.gmra.mrb[0].mxu0 %v5067
        %v5203 = vpop.f32.mrb[0].mxu0
        %v5204 = vadd.f32 0.0, %v5203
        %v5205 = vpop.f32.mrb[0].mxu0
        %v5206 = vadd.f32 0.0, %v5205
        %v5207 = vpop.f32.mrb[0].mxu0
        %v5208 = vadd.f32 0.0, %v5207
        %v5209 = vpop.f32.mrb[0].mxu0
        %v5210 = vadd.f32 0.0, %v5209
        %5211 = vmatprep.mubr.bf16.mxu0 0
        %5212 = vmatmul.mubr.bf16.gmra.mrb[0].mxu0 %v5070
        %v5213 = vpop.f32.mrb[0].mxu0
        %v5214 = vadd.f32 0.0, %v5213
        %v5215 = vpop.f32.mrb[0].mxu0
        %v5216 = vadd.f32 0.0, %v5215
        %v5217 = vpop.f32.mrb[0].mxu0
        %v5218 = vadd.f32 0.0, %v5217
        %v5219 = vpop.f32.mrb[0].mxu0
        %v5220 = vadd.f32 0.0, %v5219
        %5221 = vmatprep.mubr.bf16.mxu0 0
        %5222 = vmatmul.mubr.bf16.gmra.mrb[0].mxu0 %v5073
        %v5223 = vpop.f32.mrb[0].mxu0
        %v5224 = vadd.f32 0.0, %v5223
        %v5225 = vpop.f32.mrb[0].mxu0
        %v5226 = vadd.f32 0.0, %v5225
        %v5227 = vpop.f32.mrb[0].mxu0
        %v5228 = vadd.f32 0.0, %v5227
        %v5229 = vpop.f32.mrb[0].mxu0
        %v5230 = vadd.f32 0.0, %v5229
        %5231 = vmatprep.mubr.bf16.mxu0 0
        %5232 = vmatmul.mubr.bf16.gmra.mrb[0].mxu0 %v5076
        %v5233 = vpop.f32.mrb[0].mxu0
        %v5234 = vadd.f32 0.0, %v5233
        %v5235 = vpop.f32.mrb[0].mxu0
        %v5236 = vadd.f32 0.0, %v5235
        %v5237 = vpop.f32.mrb[0].mxu0
        %v5238 = vadd.f32 0.0, %v5237
        %v5239 = vpop.f32.mrb[0].mxu0
        %v5240 = vadd.f32 0.0, %v5239
        %5241 = vmatprep.mubr.bf16.mxu0 0
        %5242 = vmatmul.mubr.bf16.gmra.mrb[0].mxu0 %v5079
        %v5243 = vpop.f32.mrb[0].mxu0
        %v5244 = vadd.f32 0.0, %v5243
        %v5245 = vpop.f32.mrb[0].mxu0
        %v5246 = vadd.f32 0.0, %v5245
        %v5247 = vpop.f32.mrb[0].mxu0
        %v5248 = vadd.f32 0.0, %v5247
        %v5249 = vpop.f32.mrb[0].mxu0
        %v5250 = vadd.f32 0.0, %v5249
        %5251 = vmatprep.mubr.bf16.mxu0 0
        %5252 = vmatmul.mubr.bf16.gmra.mrb[0].mxu0 %v5082
        %v5253 = vpop.f32.mrb[0].mxu0
        %v5254 = vadd.f32 0.0, %v5253
        %v5255 = vpop.f32.mrb[0].mxu0
        %v5256 = vadd.f32 0.0, %v5255
        %v5257 = vpop.f32.mrb[0].mxu0
        %v5258 = vadd.f32 0.0, %v5257
        %v5259 = vpop.f32.mrb[0].mxu0
        %v5260 = vadd.f32 0.0, %v5259
        %5261 = vmatprep.mubr.bf16.mxu0 0
        %5262 = vmatmul.mubr.bf16.gmra.mrb[0].mxu0 %v5085
        %v5263 = vpop.f32.mrb[0].mxu0
        %v5264 = vadd.f32 0.0, %v5263
        %v5265 = vpop.f32.mrb[0].mxu0
        %v5266 = vadd.f32 0.0, %v5265
        %v5267 = vpop.f32.mrb[0].mxu0
        %v5268 = vadd.f32 0.0, %v5267
        %v5269 = vpop.f32.mrb[0].mxu0
        %v5270 = vadd.f32 0.0, %v5269
        %5271 = vmatprep.mubr.bf16.mxu0 0
        %5272 = vmatmul.mubr.bf16.gmra.mrb[0].mxu0 %v5088
        %v5273 = vpop.f32.mrb[0].mxu0
        %v5274 = vadd.f32 0.0, %v5273
        %v5275 = vpop.f32.mrb[0].mxu0
        %v5276 = vadd.f32 0.0, %v5275
        %v5277 = vpop.f32.mrb[0].mxu0
        %v5278 = vadd.f32 0.0, %v5277
        %v5279 = vpop.f32.mrb[0].mxu0
        %v5280 = vadd.f32 0.0, %v5279
        %5281 = vmatprep.mubr.bf16.mxu0 0
        %5282 = vmatmul.mubr.bf16.gmra.mrb[0].mxu0 %v5091
        %v5283 = vpop.f32.mrb[0].mxu0
        %v5284 = vadd.f32 0.0, %v5283
        %v5285 = vpop.f32.mrb[0].mxu0
        %v5286 = vadd.f32 0.0, %v5285
        %v5287 = vpop.f32.mrb[0].mxu0
        %v5288 = vadd.f32 0.0, %v5287
        %v5289 = vpop.f32.mrb[0].mxu0
        %v5290 = vadd.f32 0.0, %v5289
        %5291 = vmatprep.mubr.bf16.mxu0 0
        %5292 = vmatmul.mubr.bf16.gmra.mrb[0].mxu0 %v5094
        %v5293 = vpop.f32.mrb[0].mxu0
        %v5294 = vadd.f32 0.0, %v5293
        %v5295 = vpop.f32.mrb[0].mxu0
        %v5296 = vadd.f32 0.0, %v5295
        %v5297 = vpop.f32.mrb[0].mxu0
        %v5298 = vadd.f32 0.0, %v5297
        %v5299 = vpop.f32.mrb[0].mxu0
        %v5300 = vadd.f32 0.0, %v5299
        %5301 = vmatprep.mubr.bf16.mxu0 0
        %5302 = vmatmul.mubr.bf16.gmra.mrb[0].mxu0 %v5097
        %v5303 = vpop.f32.mrb[0].mxu0
        %v5304 = vadd.f32 0.0, %v5303
        %v5305 = vpop.f32.mrb[0].mxu0
        %v5306 = vadd.f32 0.0, %v5305
        %v5307 = vpop.f32.mrb[0].mxu0
        %v5308 = vadd.f32 0.0, %v5307
        %v5309 = vpop.f32.mrb[0].mxu0
        %v5310 = vadd.f32 0.0, %v5309
        %5311 = vmatprep.mubr.bf16.mxu0 0
        %5312 = vmatmul.mubr.bf16.gmra.mrb[0].mxu0 %v5100
        %v5313 = vpop.f32.mrb[0].mxu0
        %v5314 = vadd.f32 0.0, %v5313
        %v5315 = vpop.f32.mrb[0].mxu0
        %v5316 = vadd.f32 0.0, %v5315
        %v5317 = vpop.f32.mrb[0].mxu0
        %v5318 = vadd.f32 0.0, %v5317
        %v5319 = vpop.f32.mrb[0].mxu0
        %v5320 = vadd.f32 0.0, %v5319
        %5321 = vmatprep.mubr.bf16.mxu0 0
        %5322 = vmatmul.mubr.bf16.gmra.mrb[0].mxu0 %v5103
        %v5323 = vpop.f32.mrb[0].mxu0
        %v5324 = vadd.f32 0.0, %v5323
        %v5325 = vpop.f32.mrb[0].mxu0
        %v5326 = vadd.f32 0.0, %v5325
        %v5327 = vpop.f32.mrb[0].mxu0
        %v5328 = vadd.f32 0.0, %v5327
        %v5329 = vpop.f32.mrb[0].mxu0
        %v5330 = vadd.f32 0.0, %v5329
        %5331 = vmatprep.mubr.bf16.mxu0 0
        %5332 = vmatmul.mubr.bf16.gmra.mrb[0].mxu0 %v5106
        %v5333 = vpop.f32.mrb[0].mxu0
        %v5334 = vadd.f32 0.0, %v5333
        %v5335 = vpop.f32.mrb[0].mxu0
        %v5336 = vadd.f32 0.0, %v5335
        %v5337 = vpop.f32.mrb[0].mxu0
        %v5338 = vadd.f32 0.0, %v5337
        %v5339 = vpop.f32.mrb[0].mxu0
        %v5340 = vadd.f32 0.0, %v5339
        %5341 = vmatprep.mubr.bf16.mxu0 0
        %5342 = vmatmul.mubr.bf16.gmra.mrb[0].mxu0 %v5109
        %v5343 = vpop.f32.mrb[0].mxu0
        %v5344 = vadd.f32 0.0, %v5343
        %v5345 = vpop.f32.mrb[0].mxu0
        %v5346 = vadd.f32 0.0, %v5345
        %v5347 = vpop.f32.mrb[0].mxu0
        %v5348 = vadd.f32 0.0, %v5347
        %v5349 = vpop.f32.mrb[0].mxu0
        %v5350 = vadd.f32 0.0, %v5349
        %5351 = vdwg.mxu0
        %v5352 = vmax.f32 %v5194, %v5196
        %5353 = vmax.xlane.f32.xlu0 %v5352
        %v5354 = vpop.xlane.xlu0 %5353
        %v5355 = vmax.f32 %v5198, %v5200
        %5356 = vmax.xlane.f32.xlu0 %v5355
        %v5357 = vpop.xlane.xlu0 %5356
        %v5358 = vmax.f32 %v5204, %v5206
        %5359 = vmax.xlane.f32.xlu0 %v5358
        %v5360 = vpop.xlane.xlu0 %5359
        %v5361 = vmax.f32 %v5208, %v5210
        %5362 = vmax.xlane.f32.xlu0 %v5361
        %v5363 = vpop.xlane.xlu0 %5362
        %v5364 = vmax.f32 %v5214, %v5216
        %5365 = vmax.xlane.f32.xlu0 %v5364
        %v5366 = vpop.xlane.xlu0 %5365
        %v5367 = vmax.f32 %v5218, %v5220
        %5368 = vmax.xlane.f32.xlu0 %v5367
        %v5369 = vpop.xlane.xlu0 %5368
        %v5370 = vmax.f32 %v5224, %v5226
        %5371 = vmax.xlane.f32.xlu0 %v5370
        %v5372 = vpop.xlane.xlu0 %5371
        %v5373 = vmax.f32 %v5228, %v5230
        %5374 = vmax.xlane.f32.xlu0 %v5373
        %v5375 = vpop.xlane.xlu0 %5374
        %v5376 = vmax.f32 %v5234, %v5236
        %5377 = vmax.xlane.f32.xlu0 %v5376
        %v5378 = vpop.xlane.xlu0 %5377
        %v5379 = vmax.f32 %v5238, %v5240
        %5380 = vmax.xlane.f32.xlu0 %v5379
        %v5381 = vpop.xlane.xlu0 %5380
        %v5382 = vmax.f32 %v5244, %v5246
        %5383 = vmax.xlane.f32.xlu0 %v5382
        %v5384 = vpop.xlane.xlu0 %5383
        %v5385 = vmax.f32 %v5248, %v5250
        %5386 = vmax.xlane.f32.xlu0 %v5385
        %v5387 = vpop.xlane.xlu0 %5386
        %v5388 = vmax.f32 %v5254, %v5256
        %5389 = vmax.xlane.f32.xlu0 %v5388
        %v5390 = vpop.xlane.xlu0 %5389
        %v5391 = vmax.f32 %v5258, %v5260
        %5392 = vmax.xlane.f32.xlu0 %v5391
        %v5393 = vpop.xlane.xlu0 %5392
        %v5394 = vmax.f32 %v5264, %v5266
        %5395 = vmax.xlane.f32.xlu0 %v5394
        %v5396 = vpop.xlane.xlu0 %5395
        %v5397 = vmax.f32 %v5268, %v5270
        %5398 = vmax.xlane.f32.xlu0 %v5397
        %v5399 = vpop.xlane.xlu0 %5398
        %v5400 = vmax.f32 %v5274, %v5276
        %5401 = vmax.xlane.f32.xlu0 %v5400
        %v5402 = vpop.xlane.xlu0 %5401
        %v5403 = vmax.f32 %v5278, %v5280
        %5404 = vmax.xlane.f32.xlu0 %v5403
        %v5405 = vpop.xlane.xlu0 %5404
        %v5406 = vmax.f32 %v5284, %v5286
        %5407 = vmax.xlane.f32.xlu0 %v5406
        %v5408 = vpop.xlane.xlu0 %5407
        %v5409 = vmax.f32 %v5288, %v5290
        %5410 = vmax.xlane.f32.xlu0 %v5409
        %v5411 = vpop.xlane.xlu0 %5410
        %v5412 = vmax.f32 %v5294, %v5296
        %5413 = vmax.xlane.f32.xlu0 %v5412
        %v5414 = vpop.xlane.xlu0 %5413
        %v5415 = vmax.f32 %v5298, %v5300
        %5416 = vmax.xlane.f32.xlu0 %v5415
        %v5417 = vpop.xlane.xlu0 %5416
        %v5418 = vmax.f32 %v5304, %v5306
        %5419 = vmax.xlane.f32.xlu0 %v5418
        %v5420 = vpop.xlane.xlu0 %5419
        %v5421 = vmax.f32 %v5308, %v5310
        %5422 = vmax.xlane.f32.xlu0 %v5421
        %v5423 = vpop.xlane.xlu0 %5422
        %v5424 = vmax.f32 %v5314, %v5316
        %5425 = vmax.xlane.f32.xlu0 %v5424
        %v5426 = vpop.xlane.xlu0 %5425
        %v5427 = vmax.f32 %v5318, %v5320
        %5428 = vmax.xlane.f32.xlu0 %v5427
        %v5429 = vpop.xlane.xlu0 %5428
        %v5430 = vmax.f32 %v5324, %v5326
        %5431 = vmax.xlane.f32.xlu0 %v5430
        %v5432 = vpop.xlane.xlu0 %5431
        %v5433 = vmax.f32 %v5328, %v5330
        %5434 = vmax.xlane.f32.xlu0 %v5433
        %v5435 = vpop.xlane.xlu0 %5434
        %v5436 = vmax.f32 %v5334, %v5336
        %5437 = vmax.xlane.f32.xlu0 %v5436
        %v5438 = vpop.xlane.xlu0 %5437
        %v5439 = vmax.f32 %v5338, %v5340
        %5440 = vmax.xlane.f32.xlu0 %v5439
        %v5441 = vpop.xlane.xlu0 %5440
        %v5442 = vmax.f32 %v5344, %v5346
        %5443 = vmax.xlane.f32.xlu0 %v5442
        %v5444 = vpop.xlane.xlu0 %5443
        %v5445 = vmax.f32 %v5348, %v5350
        %5446 = vmax.xlane.f32.xlu0 %v5445
        %v5447 = vpop.xlane.xlu0 %5446
        %v5448 = vsub.f32 %v5194, %v5354
        %v5449 = vsub.f32 %v5196, %v5354
        %v5450 = vsub.f32 %v5198, %v5357
        %v5451 = vsub.f32 %v5200, %v5357
        %v5452 = vsub.f32 %v5204, %v5360
        %v5453 = vsub.f32 %v5206, %v5360
        %v5454 = vsub.f32 %v5208, %v5363
        %v5455 = vsub.f32 %v5210, %v5363
        %v5456 = vsub.f32 %v5214, %v5366
        %v5457 = vsub.f32 %v5216, %v5366
        %v5458 = vsub.f32 %v5218, %v5369
        %v5459 = vsub.f32 %v5220, %v5369
        %v5460 = vsub.f32 %v5224, %v5372
        %v5461 = vsub.f32 %v5226, %v5372
        %v5462 = vsub.f32 %v5228, %v5375
        %v5463 = vsub.f32 %v5230, %v5375
        %v5464 = vsub.f32 %v5234, %v5378
        %v5465 = vsub.f32 %v5236, %v5378
        %v5466 = vsub.f32 %v5238, %v5381
        %v5467 = vsub.f32 %v5240, %v5381
        %v5468 = vsub.f32 %v5244, %v5384
        %v5469 = vsub.f32 %v5246, %v5384
        %v5470 = vsub.f32 %v5248, %v5387
        %v5471 = vsub.f32 %v5250, %v5387
        %v5472 = vsub.f32 %v5254, %v5390
        %v5473 = vsub.f32 %v5256, %v5390
        %v5474 = vsub.f32 %v5258, %v5393
        %v5475 = vsub.f32 %v5260, %v5393
        %v5476 = vsub.f32 %v5264, %v5396
        %v5477 = vsub.f32 %v5266, %v5396
        %v5478 = vsub.f32 %v5268, %v5399
        %v5479 = vsub.f32 %v5270, %v5399
        %v5480 = vsub.f32 %v5274, %v5402
        %v5481 = vsub.f32 %v5276, %v5402
        %v5482 = vsub.f32 %v5278, %v5405
        %v5483 = vsub.f32 %v5280, %v5405
        %v5484 = vsub.f32 %v5284, %v5408
        %v5485 = vsub.f32 %v5286, %v5408
        %v5486 = vsub.f32 %v5288, %v5411
        %v5487 = vsub.f32 %v5290, %v5411
        %v5488 = vsub.f32 %v5294, %v5414
        %v5489 = vsub.f32 %v5296, %v5414
        %v5490 = vsub.f32 %v5298, %v5417
        %v5491 = vsub.f32 %v5300, %v5417
        %v5492 = vsub.f32 %v5304, %v5420
        %v5493 = vsub.f32 %v5306, %v5420
        %v5494 = vsub.f32 %v5308, %v5423
        %v5495 = vsub.f32 %v5310, %v5423
        %v5496 = vsub.f32 %v5314, %v5426
        %v5497 = vsub.f32 %v5316, %v5426
        %v5498 = vsub.f32 %v5318, %v5429
        %v5499 = vsub.f32 %v5320, %v5429
        %v5500 = vsub.f32 %v5324, %v5432
        %v5501 = vsub.f32 %v5326, %v5432
        %v5502 = vsub.f32 %v5328, %v5435
        %v5503 = vsub.f32 %v5330, %v5435
        %v5504 = vsub.f32 %v5334, %v5438
        %v5505 = vsub.f32 %v5336, %v5438
        %v5506 = vsub.f32 %v5338, %v5441
        %v5507 = vsub.f32 %v5340, %v5441
        %v5508 = vsub.f32 %v5344, %v5444
        %v5509 = vsub.f32 %v5346, %v5444
        %v5510 = vsub.f32 %v5348, %v5447
        %v5511 = vsub.f32 %v5350, %v5447
        %v5512 = vmul.f32 %v5448, 1.442695
        %v5513 = vpow.pop %v5512
        %v5514 = vmul.f32 %v5449, 1.442695
        %v5515 = vpow.pop %v5514
        %v5516 = vmul.f32 %v5450, 1.442695
        %v5517 = vpow.pop %v5516
        %v5518 = vmul.f32 %v5451, 1.442695
        %v5519 = vpow.pop %v5518
        %v5520 = vmul.f32 %v5452, 1.442695
        %v5521 = vpow.pop %v5520
        %v5522 = vmul.f32 %v5453, 1.442695
        %v5523 = vpow.pop %v5522
        %v5524 = vmul.f32 %v5454, 1.442695
        %v5525 = vpow.pop %v5524
        %v5526 = vmul.f32 %v5455, 1.442695
        %v5527 = vpow.pop %v5526
        %v5528 = vmul.f32 %v5456, 1.442695
        %v5529 = vpow.pop %v5528
        %v5530 = vmul.f32 %v5457, 1.442695
        %v5531 = vpow.pop %v5530
        %v5532 = vmul.f32 %v5458, 1.442695
        %v5533 = vpow.pop %v5532
        %v5534 = vmul.f32 %v5459, 1.442695
        %v5535 = vpow.pop %v5534
        %v5536 = vmul.f32 %v5460, 1.442695
        %v5537 = vpow.pop %v5536
        %v5538 = vmul.f32 %v5461, 1.442695
        %v5539 = vpow.pop %v5538
        %v5540 = vmul.f32 %v5462, 1.442695
        %v5541 = vpow.pop %v5540
        %v5542 = vmul.f32 %v5463, 1.442695
        %v5543 = vpow.pop %v5542
        %v5544 = vmul.f32 %v5464, 1.442695
        %v5545 = vpow.pop %v5544
        %v5546 = vmul.f32 %v5465, 1.442695
        %v5547 = vpow.pop %v5546
        %v5548 = vmul.f32 %v5466, 1.442695
        %v5549 = vpow.pop %v5548
        %v5550 = vmul.f32 %v5467, 1.442695
        %v5551 = vpow.pop %v5550
        %v5552 = vmul.f32 %v5468, 1.442695
        %v5553 = vpow.pop %v5552
        %v5554 = vmul.f32 %v5469, 1.442695
        %v5555 = vpow.pop %v5554
        %v5556 = vmul.f32 %v5470, 1.442695
        %v5557 = vpow.pop %v5556
        %v5558 = vmul.f32 %v5471, 1.442695
        %v5559 = vpow.pop %v5558
        %v5560 = vmul.f32 %v5472, 1.442695
        %v5561 = vpow.pop %v5560
        %v5562 = vmul.f32 %v5473, 1.442695
        %v5563 = vpow.pop %v5562
        %v5564 = vmul.f32 %v5474, 1.442695
        %v5565 = vpow.pop %v5564
        %v5566 = vmul.f32 %v5475, 1.442695
        %v5567 = vpow.pop %v5566
        %v5568 = vmul.f32 %v5476, 1.442695
        %v5569 = vpow.pop %v5568
        %v5570 = vmul.f32 %v5477, 1.442695
        %v5571 = vpow.pop %v5570
        %v5572 = vmul.f32 %v5478, 1.442695
        %v5573 = vpow.pop %v5572
        %v5574 = vmul.f32 %v5479, 1.442695
        %v5575 = vpow.pop %v5574
        %v5576 = vmul.f32 %v5480, 1.442695
        %v5577 = vpow.pop %v5576
        %v5578 = vmul.f32 %v5481, 1.442695
        %v5579 = vpow.pop %v5578
        %v5580 = vmul.f32 %v5482, 1.442695
        %v5581 = vpow.pop %v5580
        %v5582 = vmul.f32 %v5483, 1.442695
        %v5583 = vpow.pop %v5582
        %v5584 = vmul.f32 %v5484, 1.442695
        %v5585 = vpow.pop %v5584
        %v5586 = vmul.f32 %v5485, 1.442695
        %v5587 = vpow.pop %v5586
        %v5588 = vmul.f32 %v5486, 1.442695
        %v5589 = vpow.pop %v5588
        %v5590 = vmul.f32 %v5487, 1.442695
        %v5591 = vpow.pop %v5590
        %v5592 = vmul.f32 %v5488, 1.442695
        %v5593 = vpow.pop %v5592
        %v5594 = vmul.f32 %v5489, 1.442695
        %v5595 = vpow.pop %v5594
        %v5596 = vmul.f32 %v5490, 1.442695
        %v5597 = vpow.pop %v5596
        %v5598 = vmul.f32 %v5491, 1.442695
        %v5599 = vpow.pop %v5598
        %v5600 = vmul.f32 %v5492, 1.442695
        %v5601 = vpow.pop %v5600
        %v5602 = vmul.f32 %v5493, 1.442695
        %v5603 = vpow.pop %v5602
        %v5604 = vmul.f32 %v5494, 1.442695
        %v5605 = vpow.pop %v5604
        %v5606 = vmul.f32 %v5495, 1.442695
        %v5607 = vpow.pop %v5606
        %v5608 = vmul.f32 %v5496, 1.442695
        %v5609 = vpow.pop %v5608
        %v5610 = vmul.f32 %v5497, 1.442695
        %v5611 = vpow.pop %v5610
        %v5612 = vmul.f32 %v5498, 1.442695
        %v5613 = vpow.pop %v5612
        %v5614 = vmul.f32 %v5499, 1.442695
        %v5615 = vpow.pop %v5614
        %v5616 = vmul.f32 %v5500, 1.442695
        %v5617 = vpow.pop %v5616
        %v5618 = vmul.f32 %v5501, 1.442695
        %v5619 = vpow.pop %v5618
        %v5620 = vmul.f32 %v5502, 1.442695
        %v5621 = vpow.pop %v5620
        %v5622 = vmul.f32 %v5503, 1.442695
        %v5623 = vpow.pop %v5622
        %v5624 = vmul.f32 %v5504, 1.442695
        %v5625 = vpow.pop %v5624
        %v5626 = vmul.f32 %v5505, 1.442695
        %v5627 = vpow.pop %v5626
        %v5628 = vmul.f32 %v5506, 1.442695
        %v5629 = vpow.pop %v5628
        %v5630 = vmul.f32 %v5507, 1.442695
        %v5631 = vpow.pop %v5630
        %v5632 = vmul.f32 %v5508, 1.442695
        %v5633 = vpow.pop %v5632
        %v5634 = vmul.f32 %v5509, 1.442695
        %v5635 = vpow.pop %v5634
        %v5636 = vmul.f32 %v5510, 1.442695
        %v5637 = vpow.pop %v5636
        %v5638 = vmul.f32 %v5511, 1.442695
        %v5639 = vpow.pop %v5638
        %v5640 = vadd.f32 %v5513, %v5515
        %5641 = vadd.xlane.f32.xlu0 %v5640
        %v5642 = vpop.xlane.xlu0 %5641
        %v5643 = vadd.f32 %v5517, %v5519
        %5644 = vadd.xlane.f32.xlu0 %v5643
        %v5645 = vpop.xlane.xlu0 %5644
        %v5646 = vadd.f32 %v5521, %v5523
        %5647 = vadd.xlane.f32.xlu0 %v5646
        %v5648 = vpop.xlane.xlu0 %5647
        %v5649 = vadd.f32 %v5525, %v5527
        %5650 = vadd.xlane.f32.xlu0 %v5649
        %v5651 = vpop.xlane.xlu0 %5650
        %v5652 = vadd.f32 %v5529, %v5531
        %5653 = vadd.xlane.f32.xlu0 %v5652
        %v5654 = vpop.xlane.xlu0 %5653
        %v5655 = vadd.f32 %v5533, %v5535
        %5656 = vadd.xlane.f32.xlu0 %v5655
        %v5657 = vpop.xlane.xlu0 %5656
        %v5658 = vadd.f32 %v5537, %v5539
        %5659 = vadd.xlane.f32.xlu0 %v5658
        %v5660 = vpop.xlane.xlu0 %5659
        %v5661 = vadd.f32 %v5541, %v5543
        %5662 = vadd.xlane.f32.xlu0 %v5661
        %v5663 = vpop.xlane.xlu0 %5662
        %v5664 = vadd.f32 %v5545, %v5547
        %5665 = vadd.xlane.f32.xlu0 %v5664
        %v5666 = vpop.xlane.xlu0 %5665
        %v5667 = vadd.f32 %v5549, %v5551
        %5668 = vadd.xlane.f32.xlu0 %v5667
        %v5669 = vpop.xlane.xlu0 %5668
        %v5670 = vadd.f32 %v5553, %v5555
        %5671 = vadd.xlane.f32.xlu0 %v5670
        %v5672 = vpop.xlane.xlu0 %5671
        %v5673 = vadd.f32 %v5557, %v5559
        %5674 = vadd.xlane.f32.xlu0 %v5673
        %v5675 = vpop.xlane.xlu0 %5674
        %v5676 = vadd.f32 %v5561, %v5563
        %5677 = vadd.xlane.f32.xlu0 %v5676
        %v5678 = vpop.xlane.xlu0 %5677
        %v5679 = vadd.f32 %v5565, %v5567
        %5680 = vadd.xlane.f32.xlu0 %v5679
        %v5681 = vpop.xlane.xlu0 %5680
        %v5682 = vadd.f32 %v5569, %v5571
        %5683 = vadd.xlane.f32.xlu0 %v5682
        %v5684 = vpop.xlane.xlu0 %5683
        %v5685 = vadd.f32 %v5573, %v5575
        %5686 = vadd.xlane.f32.xlu0 %v5685
        %v5687 = vpop.xlane.xlu0 %5686
        %v5688 = vadd.f32 %v5577, %v5579
        %5689 = vadd.xlane.f32.xlu0 %v5688
        %v5690 = vpop.xlane.xlu0 %5689
        %v5691 = vadd.f32 %v5581, %v5583
        %5692 = vadd.xlane.f32.xlu0 %v5691
        %v5693 = vpop.xlane.xlu0 %5692
        %v5694 = vadd.f32 %v5585, %v5587
        %5695 = vadd.xlane.f32.xlu0 %v5694
        %v5696 = vpop.xlane.xlu0 %5695
        %v5697 = vadd.f32 %v5589, %v5591
        %5698 = vadd.xlane.f32.xlu0 %v5697
        %v5699 = vpop.xlane.xlu0 %5698
        %v5700 = vadd.f32 %v5593, %v5595
        %5701 = vadd.xlane.f32.xlu0 %v5700
        %v5702 = vpop.xlane.xlu0 %5701
        %v5703 = vadd.f32 %v5597, %v5599
        %5704 = vadd.xlane.f32.xlu0 %v5703
        %v5705 = vpop.xlane.xlu0 %5704
        %v5706 = vadd.f32 %v5601, %v5603
        %5707 = vadd.xlane.f32.xlu0 %v5706
        %v5708 = vpop.xlane.xlu0 %5707
        %v5709 = vadd.f32 %v5605, %v5607
        %5710 = vadd.xlane.f32.xlu0 %v5709
        %v5711 = vpop.xlane.xlu0 %5710
        %v5712 = vadd.f32 %v5609, %v5611
        %5713 = vadd.xlane.f32.xlu0 %v5712
        %v5714 = vpop.xlane.xlu0 %5713
        %v5715 = vadd.f32 %v5613, %v5615
        %5716 = vadd.xlane.f32.xlu0 %v5715
        %v5717 = vpop.xlane.xlu0 %5716
        %v5718 = vadd.f32 %v5617, %v5619
        %5719 = vadd.xlane.f32.xlu0 %v5718
        %v5720 = vpop.xlane.xlu0 %5719
        %v5721 = vadd.f32 %v5621, %v5623
        %5722 = vadd.xlane.f32.xlu0 %v5721
        %v5723 = vpop.xlane.xlu0 %5722
        %v5724 = vadd.f32 %v5625, %v5627
        %5725 = vadd.xlane.f32.xlu0 %v5724
        %v5726 = vpop.xlane.xlu0 %5725
        %v5727 = vadd.f32 %v5629, %v5631
        %5728 = vadd.xlane.f32.xlu0 %v5727
        %v5729 = vpop.xlane.xlu0 %5728
        %v5730 = vadd.f32 %v5633, %v5635
        %5731 = vadd.xlane.f32.xlu0 %v5730
        %v5732 = vpop.xlane.xlu0 %5731
        %v5733 = vadd.f32 %v5637, %v5639
        %5734 = vadd.xlane.f32.xlu0 %v5733
        %v5735 = vpop.xlane.xlu0 %5734
        %v5736 = vrcp.pop %v5642
        %v5737 = vrcp.pop %v5645
        %v5738 = vrcp.pop %v5648
        %v5739 = vrcp.pop %v5651
        %v5740 = vrcp.pop %v5654
        %v5741 = vrcp.pop %v5657
        %v5742 = vrcp.pop %v5660
        %v5743 = vrcp.pop %v5663
        %v5744 = vrcp.pop %v5666
        %v5745 = vrcp.pop %v5669
        %v5746 = vrcp.pop %v5672
        %v5747 = vrcp.pop %v5675
        %v5748 = vrcp.pop %v5678
        %v5749 = vrcp.pop %v5681
        %v5750 = vrcp.pop %v5684
        %v5751 = vrcp.pop %v5687
        %v5752 = vrcp.pop %v5690
        %v5753 = vrcp.pop %v5693
        %v5754 = vrcp.pop %v5696
        %v5755 = vrcp.pop %v5699
        %v5756 = vrcp.pop %v5702
        %v5757 = vrcp.pop %v5705
        %v5758 = vrcp.pop %v5708
        %v5759 = vrcp.pop %v5711
        %v5760 = vrcp.pop %v5714
        %v5761 = vrcp.pop %v5717
        %v5762 = vrcp.pop %v5720
        %v5763 = vrcp.pop %v5723
        %v5764 = vrcp.pop %v5726
        %v5765 = vrcp.pop %v5729
        %v5766 = vrcp.pop %v5732
        %v5767 = vrcp.pop %v5735
        %v5768 = vmul.f32 %v5513, %v5736
        %v5769 = vmul.f32 %v5515, %v5736
        %v5770 = vmul.f32 %v5517, %v5737
        %v5771 = vmul.f32 %v5519, %v5737
        %v5772 = vmul.f32 %v5521, %v5738
        %v5773 = vmul.f32 %v5523, %v5738
        %v5774 = vmul.f32 %v5525, %v5739
        %v5775 = vmul.f32 %v5527, %v5739
        %v5776 = vmul.f32 %v5529, %v5740
        %v5777 = vmul.f32 %v5531, %v5740
        %v5778 = vmul.f32 %v5533, %v5741
        %v5779 = vmul.f32 %v5535, %v5741
        %v5780 = vmul.f32 %v5537, %v5742
        %v5781 = vmul.f32 %v5539, %v5742
        %v5782 = vmul.f32 %v5541, %v5743
        %v5783 = vmul.f32 %v5543, %v5743
        %v5784 = vmul.f32 %v5545, %v5744
        %v5785 = vmul.f32 %v5547, %v5744
        %v5786 = vmul.f32 %v5549, %v5745
        %v5787 = vmul.f32 %v5551, %v5745
        %v5788 = vmul.f32 %v5553, %v5746
        %v5789 = vmul.f32 %v5555, %v5746
        %v5790 = vmul.f32 %v5557, %v5747
        %v5791 = vmul.f32 %v5559, %v5747
        %v5792 = vmul.f32 %v5561, %v5748
        %v5793 = vmul.f32 %v5563, %v5748
        %v5794 = vmul.f32 %v5565, %v5749
        %v5795 = vmul.f32 %v5567, %v5749
        %v5796 = vmul.f32 %v5569, %v5750
        %v5797 = vmul.f32 %v5571, %v5750
        %v5798 = vmul.f32 %v5573, %v5751
        %v5799 = vmul.f32 %v5575, %v5751
        %v5800 = vmul.f32 %v5577, %v5752
        %v5801 = vmul.f32 %v5579, %v5752
        %v5802 = vmul.f32 %v5581, %v5753
        %v5803 = vmul.f32 %v5583, %v5753
        %v5804 = vmul.f32 %v5585, %v5754
        %v5805 = vmul.f32 %v5587, %v5754
        %v5806 = vmul.f32 %v5589, %v5755
        %v5807 = vmul.f32 %v5591, %v5755
        %v5808 = vmul.f32 %v5593, %v5756
        %v5809 = vmul.f32 %v5595, %v5756
        %v5810 = vmul.f32 %v5597, %v5757
        %v5811 = vmul.f32 %v5599, %v5757
        %v5812 = vmul.f32 %v5601, %v5758
        %v5813 = vmul.f32 %v5603, %v5758
        %v5814 = vmul.f32 %v5605, %v5759
        %v5815 = vmul.f32 %v5607, %v5759
        %v5816 = vmul.f32 %v5609, %v5760
        %v5817 = vmul.f32 %v5611, %v5760
        %v5818 = vmul.f32 %v5613, %v5761
        %v5819 = vmul.f32 %v5615, %v5761
        %v5820 = vmul.f32 %v5617, %v5762
        %v5821 = vmul.f32 %v5619, %v5762
        %v5822 = vmul.f32 %v5621, %v5763
        %v5823 = vmul.f32 %v5623, %v5763
        %v5824 = vmul.f32 %v5625, %v5764
        %v5825 = vmul.f32 %v5627, %v5764
        %v5826 = vmul.f32 %v5629, %v5765
        %v5827 = vmul.f32 %v5631, %v5765
        %v5828 = vmul.f32 %v5633, %v5766
        %v5829 = vmul.f32 %v5635, %v5766
        %v5830 = vmul.f32 %v5637, %v5767
        %v5831 = vmul.f32 %v5639, %v5767
        %v5832 = vpack.c.bf16 %v5770, %v5768
        %v5833 = vpack.c.bf16 %v5771, %v5769
        %v5834 = vpack.c.bf16 %v5774, %v5772
        %v5835 = vpack.c.bf16 %v5775, %v5773
        %v5836 = vpack.c.bf16 %v5778, %v5776
        %v5837 = vpack.c.bf16 %v5779, %v5777
        %v5838 = vpack.c.bf16 %v5782, %v5780
        %v5839 = vpack.c.bf16 %v5783, %v5781
        %v5840 = vpack.c.bf16 %v5786, %v5784
        %v5841 = vpack.c.bf16 %v5787, %v5785
        %v5842 = vpack.c.bf16 %v5790, %v5788
        %v5843 = vpack.c.bf16 %v5791, %v5789
        %v5844 = vpack.c.bf16 %v5794, %v5792
        %v5845 = vpack.c.bf16 %v5795, %v5793
        %v5846 = vpack.c.bf16 %v5798, %v5796
        %v5847 = vpack.c.bf16 %v5799, %v5797
        %v5848 = vpack.c.bf16 %v5802, %v5800
        %v5849 = vpack.c.bf16 %v5803, %v5801
        %v5850 = vpack.c.bf16 %v5806, %v5804
        %v5851 = vpack.c.bf16 %v5807, %v5805
        %v5852 = vpack.c.bf16 %v5810, %v5808
        %v5853 = vpack.c.bf16 %v5811, %v5809
        %v5854 = vpack.c.bf16 %v5814, %v5812
        %v5855 = vpack.c.bf16 %v5815, %v5813
        %v5856 = vpack.c.bf16 %v5818, %v5816
        %v5857 = vpack.c.bf16 %v5819, %v5817
        %v5858 = vpack.c.bf16 %v5822, %v5820
        %v5859 = vpack.c.bf16 %v5823, %v5821
        %v5860 = vpack.c.bf16 %v5826, %v5824
        %v5861 = vpack.c.bf16 %v5827, %v5825
        %v5862 = vpack.c.bf16 %v5830, %v5828
        %v5863 = vpack.c.bf16 %v5831, %v5829
        %5864 = vrot.lane.b32.xlu0 %v1406, 40
        %v5865 = vpop.permute.xlu0 %5864
        %5866 = vrot.lane.b32.xlu0 %v1407, 40
        %v5867 = vpop.permute.xlu0 %5866
        %5868 = vrot.lane.b32.xlu0 %v1408, 40
        %v5869 = vpop.permute.xlu0 %5868
        %5870 = vrot.lane.b32.xlu0 %v1409, 40
        %v5871 = vpop.permute.xlu0 %5870
        %5872 = vrot.lane.b32.xlu0 %v1410, 40
        %v5873 = vpop.permute.xlu0 %5872
        %5874 = vrot.lane.b32.xlu0 %v1411, 40
        %v5875 = vpop.permute.xlu0 %5874
        %5876 = vrot.lane.b32.xlu0 %v1412, 40
        %v5877 = vpop.permute.xlu0 %5876
        %5878 = vrot.lane.b32.xlu0 %v1413, 40
        %v5879 = vpop.permute.xlu0 %5878
        %5880 = vrot.lane.b32.xlu0 %v1414, 40
        %v5881 = vpop.permute.xlu0 %5880
        %5882 = vrot.lane.b32.xlu0 %v1415, 40
        %v5883 = vpop.permute.xlu0 %5882
        %5884 = vrot.lane.b32.xlu0 %v1416, 40
        %v5885 = vpop.permute.xlu0 %5884
        %5886 = vrot.lane.b32.xlu0 %v1417, 40
        %v5887 = vpop.permute.xlu0 %5886
        %5888 = vrot.lane.b32.xlu0 %v1418, 40
        %v5889 = vpop.permute.xlu0 %5888
        %5890 = vrot.lane.b32.xlu0 %v1419, 40
        %v5891 = vpop.permute.xlu0 %5890
        %5892 = vrot.lane.b32.xlu0 %v1420, 40
        %v5893 = vpop.permute.xlu0 %5892
        %5894 = vrot.lane.b32.xlu0 %v1421, 40
        %v5895 = vpop.permute.xlu0 %5894
        %5912 = vmatprep.subr.bf16.mxu0 0
        %5913 = vmatpush1.bf16.msra.mxu0 %v5865
        %5914 = vmatprep.subr.bf16.mxu0 0
        %5915 = vmatpush1.bf16.msra.mxu0 %v5867
        %5916 = vmatprep.subr.bf16.mxu0 0
        %5917 = vmatpush1.bf16.msra.mxu0 %v5869
        %5918 = vmatprep.subr.bf16.mxu0 0
        %5919 = vmatpush1.bf16.msra.mxu0 %v5871
        %5920 = vmatprep.subr.bf16.mxu0 0
        %5921 = vmatpush1.bf16.msra.mxu0 %v5873
        %5922 = vmatprep.subr.bf16.mxu0 0
        %5923 = vmatpush1.bf16.msra.mxu0 %v5875
        %5924 = vmatprep.subr.bf16.mxu0 0
        %5925 = vmatpush1.bf16.msra.mxu0 %v5877
        %5926 = vmatprep.subr.bf16.mxu0 0
        %5927 = vmatpush1.bf16.msra.mxu0 %v5879
        %5928 = vmatprep.subr.bf16.mxu0 0
        %5929 = vmatpush1.bf16.msra.mxu0 %v5881
        %5930 = vmatprep.subr.bf16.mxu0 0
        %5931 = vmatpush1.bf16.msra.mxu0 %v5883
        %5932 = vmatprep.subr.bf16.mxu0 0
        %5933 = vmatpush1.bf16.msra.mxu0 %v5885
        %5934 = vmatprep.subr.bf16.mxu0 0
        %5935 = vmatpush1.bf16.msra.mxu0 %v5887
        %5936 = vmatprep.subr.bf16.mxu0 0
        %5937 = vmatpush1.bf16.msra.mxu0 %v5889
        %5938 = vmatprep.subr.bf16.mxu0 0
        %5939 = vmatpush1.bf16.msra.mxu0 %v5891
        %5940 = vmatprep.subr.bf16.mxu0 0
        %5941 = vmatpush1.bf16.msra.mxu0 %v5893
        %5942 = vmatprep.subr.bf16.mxu0 0
        %5943 = vmatpush1.bf16.msra.mxu0 %v5895
        %5944 = vmatprep.mubr.bf16.mxu0 %v5833
        %5945 = vmatmul.mubr.bf16.gmra.mrb[0].mxu0 %v5832
        %v5946 = vpop.f32.mrb[0].mxu0
        %v5947 = vadd.f32 0.0, %v5946
        %v5948 = vpop.f32.mrb[0].mxu0
        %v5949 = vpop.f32.mrb[0].mxu0
        %v5950 = vadd.f32 0.0, %v5949
        %v5951 = vpop.f32.mrb[0].mxu0
        %5952 = vmatprep.mubr.bf16.mxu0 %v5835
        %5953 = vmatmul.mubr.bf16.gmra.mrb[0].mxu0 %v5834
        %v5954 = vpop.f32.mrb[0].mxu0
        %v5955 = vadd.f32 0.0, %v5954
        %v5956 = vpop.f32.mrb[0].mxu0
        %v5957 = vpop.f32.mrb[0].mxu0
        %v5958 = vadd.f32 0.0, %v5957
        %v5959 = vpop.f32.mrb[0].mxu0
        %5960 = vmatprep.mubr.bf16.mxu0 %v5837
        %5961 = vmatmul.mubr.bf16.gmra.mrb[0].mxu0 %v5836
        %v5962 = vpop.f32.mrb[0].mxu0
        %v5963 = vadd.f32 0.0, %v5962
        %v5964 = vpop.f32.mrb[0].mxu0
        %v5965 = vpop.f32.mrb[0].mxu0
        %v5966 = vadd.f32 0.0, %v5965
        %v5967 = vpop.f32.mrb[0].mxu0
        %5968 = vmatprep.mubr.bf16.mxu0 %v5839
        %5969 = vmatmul.mubr.bf16.gmra.mrb[0].mxu0 %v5838
        %v5970 = vpop.f32.mrb[0].mxu0
        %v5971 = vadd.f32 0.0, %v5970
        %v5972 = vpop.f32.mrb[0].mxu0
        %v5973 = vpop.f32.mrb[0].mxu0
        %v5974 = vadd.f32 0.0, %v5973
        %v5975 = vpop.f32.mrb[0].mxu0
        %5976 = vmatprep.mubr.bf16.mxu0 %v5841
        %5977 = vmatmul.mubr.bf16.gmra.mrb[0].mxu0 %v5840
        %v5978 = vpop.f32.mrb[0].mxu0
        %v5979 = vadd.f32 0.0, %v5978
        %v5980 = vpop.f32.mrb[0].mxu0
        %v5981 = vpop.f32.mrb[0].mxu0
        %v5982 = vadd.f32 0.0, %v5981
        %v5983 = vpop.f32.mrb[0].mxu0
        %5984 = vmatprep.mubr.bf16.mxu0 %v5843
        %5985 = vmatmul.mubr.bf16.gmra.mrb[0].mxu0 %v5842
        %v5986 = vpop.f32.mrb[0].mxu0
        %v5987 = vadd.f32 0.0, %v5986
        %v5988 = vpop.f32.mrb[0].mxu0
        %v5989 = vpop.f32.mrb[0].mxu0
        %v5990 = vadd.f32 0.0, %v5989
        %v5991 = vpop.f32.mrb[0].mxu0
        %5992 = vmatprep.mubr.bf16.mxu0 %v5845
        %5993 = vmatmul.mubr.bf16.gmra.mrb[0].mxu0 %v5844
        %v5994 = vpop.f32.mrb[0].mxu0
        %v5995 = vadd.f32 0.0, %v5994
        %v5996 = vpop.f32.mrb[0].mxu0
        %v5997 = vpop.f32.mrb[0].mxu0
        %v5998 = vadd.f32 0.0, %v5997
        %v5999 = vpop.f32.mrb[0].mxu0
        %6000 = vmatprep.mubr.bf16.mxu0 %v5847
        %6001 = vmatmul.mubr.bf16.gmra.mrb[0].mxu0 %v5846
        %v6002 = vpop.f32.mrb[0].mxu0
        %v6003 = vadd.f32 0.0, %v6002
        %v6004 = vpop.f32.mrb[0].mxu0
        %v6005 = vpop.f32.mrb[0].mxu0
        %v6006 = vadd.f32 0.0, %v6005
        %v6007 = vpop.f32.mrb[0].mxu0
        %6008 = vmatprep.mubr.bf16.mxu0 %v5849
        %6009 = vmatmul.mubr.bf16.gmra.mrb[0].mxu0 %v5848
        %v6010 = vpop.f32.mrb[0].mxu0
        %v6011 = vadd.f32 0.0, %v6010
        %v6012 = vpop.f32.mrb[0].mxu0
        %v6013 = vpop.f32.mrb[0].mxu0
        %v6014 = vadd.f32 0.0, %v6013
        %v6015 = vpop.f32.mrb[0].mxu0
        %6016 = vmatprep.mubr.bf16.mxu0 %v5851
        %6017 = vmatmul.mubr.bf16.gmra.mrb[0].mxu0 %v5850
        %v6018 = vpop.f32.mrb[0].mxu0
        %v6019 = vadd.f32 0.0, %v6018
        %v6020 = vpop.f32.mrb[0].mxu0
        %v6021 = vpop.f32.mrb[0].mxu0
        %v6022 = vadd.f32 0.0, %v6021
        %v6023 = vpop.f32.mrb[0].mxu0
        %6024 = vmatprep.mubr.bf16.mxu0 %v5853
        %6025 = vmatmul.mubr.bf16.gmra.mrb[0].mxu0 %v5852
        %v6026 = vpop.f32.mrb[0].mxu0
        %v6027 = vadd.f32 0.0, %v6026
        %v6028 = vpop.f32.mrb[0].mxu0
        %v6029 = vpop.f32.mrb[0].mxu0
        %v6030 = vadd.f32 0.0, %v6029
        %v6031 = vpop.f32.mrb[0].mxu0
        %6032 = vmatprep.mubr.bf16.mxu0 %v5855
        %6033 = vmatmul.mubr.bf16.gmra.mrb[0].mxu0 %v5854
        %v6034 = vpop.f32.mrb[0].mxu0
        %v6035 = vadd.f32 0.0, %v6034
        %v6036 = vpop.f32.mrb[0].mxu0
        %v6037 = vpop.f32.mrb[0].mxu0
        %v6038 = vadd.f32 0.0, %v6037
        %v6039 = vpop.f32.mrb[0].mxu0
        %6040 = vmatprep.mubr.bf16.mxu0 %v5857
        %6041 = vmatmul.mubr.bf16.gmra.mrb[0].mxu0 %v5856
        %v6042 = vpop.f32.mrb[0].mxu0
        %v6043 = vadd.f32 0.0, %v6042
        %v6044 = vpop.f32.mrb[0].mxu0
        %v6045 = vpop.f32.mrb[0].mxu0
        %v6046 = vadd.f32 0.0, %v6045
        %v6047 = vpop.f32.mrb[0].mxu0
        %6048 = vmatprep.mubr.bf16.mxu0 %v5859
        %6049 = vmatmul.mubr.bf16.gmra.mrb[0].mxu0 %v5858
        %v6050 = vpop.f32.mrb[0].mxu0
        %v6051 = vadd.f32 0.0, %v6050
        %v6052 = vpop.f32.mrb[0].mxu0
        %v6053 = vpop.f32.mrb[0].mxu0
        %v6054 = vadd.f32 0.0, %v6053
        %v6055 = vpop.f32.mrb[0].mxu0
        %6056 = vmatprep.mubr.bf16.mxu0 %v5861
        %6057 = vmatmul.mubr.bf16.gmra.mrb[0].mxu0 %v5860
        %v6058 = vpop.f32.mrb[0].mxu0
        %v6059 = vadd.f32 0.0, %v6058
        %v6060 = vpop.f32.mrb[0].mxu0
        %v6061 = vpop.f32.mrb[0].mxu0
        %v6062 = vadd.f32 0.0, %v6061
        %v6063 = vpop.f32.mrb[0].mxu0
        %6064 = vmatprep.mubr.bf16.mxu0 %v5863
        %6065 = vmatmul.mubr.bf16.gmra.mrb[0].mxu0 %v5862
        %v6066 = vpop.f32.mrb[0].mxu0
        %v6067 = vadd.f32 0.0, %v6066
        %v6068 = vpop.f32.mrb[0].mxu0
        %v6069 = vpop.f32.mrb[0].mxu0
        %v6070 = vadd.f32 0.0, %v6069
        %v6071 = vpop.f32.mrb[0].mxu0
        %6072 = vdwg.mxu0
        %6105 = vrot.lane.b32.xlu0 %v5947, 24
        %v6106 = vpop.permute.xlu0 %6105
        %6107 = vrot.lane.b32.xlu0 %v5950, 24
        %v6108 = vpop.permute.xlu0 %6107
        %6109 = vrot.lane.b32.xlu0 %v5955, 24
        %v6110 = vpop.permute.xlu0 %6109
        %6111 = vrot.lane.b32.xlu0 %v5958, 24
        %v6112 = vpop.permute.xlu0 %6111
        %6113 = vrot.lane.b32.xlu0 %v5963, 24
        %v6114 = vpop.permute.xlu0 %6113
        %6115 = vrot.lane.b32.xlu0 %v5966, 24
        %v6116 = vpop.permute.xlu0 %6115
        %6117 = vrot.lane.b32.xlu0 %v5971, 24
        %v6118 = vpop.permute.xlu0 %6117
        %6119 = vrot.lane.b32.xlu0 %v5974, 24
        %v6120 = vpop.permute.xlu0 %6119
        %6121 = vrot.lane.b32.xlu0 %v5979, 24
        %v6122 = vpop.permute.xlu0 %6121
        %6123 = vrot.lane.b32.xlu0 %v5982, 24
        %v6124 = vpop.permute.xlu0 %6123
        %6125 = vrot.lane.b32.xlu0 %v5987, 24
        %v6126 = vpop.permute.xlu0 %6125
        %6127 = vrot.lane.b32.xlu0 %v5990, 24
        %v6128 = vpop.permute.xlu0 %6127
        %6129 = vrot.lane.b32.xlu0 %v5995, 24
        %v6130 = vpop.permute.xlu0 %6129
        %6131 = vrot.lane.b32.xlu0 %v5998, 24
        %v6132 = vpop.permute.xlu0 %6131
        %6133 = vrot.lane.b32.xlu0 %v6003, 24
        %v6134 = vpop.permute.xlu0 %6133
        %6135 = vrot.lane.b32.xlu0 %v6006, 24
        %v6136 = vpop.permute.xlu0 %6135
        %6137 = vrot.lane.b32.xlu0 %v6011, 24
        %v6138 = vpop.permute.xlu0 %6137
        %6139 = vrot.lane.b32.xlu0 %v6014, 24
        %v6140 = vpop.permute.xlu0 %6139
        %6141 = vrot.lane.b32.xlu0 %v6019, 24
        %v6142 = vpop.permute.xlu0 %6141
        %6143 = vrot.lane.b32.xlu0 %v6022, 24
        %v6144 = vpop.permute.xlu0 %6143
        %6145 = vrot.lane.b32.xlu0 %v6027, 24
        %v6146 = vpop.permute.xlu0 %6145
        %6147 = vrot.lane.b32.xlu0 %v6030, 24
        %v6148 = vpop.permute.xlu0 %6147
        %6149 = vrot.lane.b32.xlu0 %v6035, 24
        %v6150 = vpop.permute.xlu0 %6149
        %6151 = vrot.lane.b32.xlu0 %v6038, 24
        %v6152 = vpop.permute.xlu0 %6151
        %6153 = vrot.lane.b32.xlu0 %v6043, 24
        %v6154 = vpop.permute.xlu0 %6153
        %6155 = vrot.lane.b32.xlu0 %v6046, 24
        %v6156 = vpop.permute.xlu0 %6155
        %6157 = vrot.lane.b32.xlu0 %v6051, 24
        %v6158 = vpop.permute.xlu0 %6157
        %6159 = vrot.lane.b32.xlu0 %v6054, 24
        %v6160 = vpop.permute.xlu0 %6159
        %6161 = vrot.lane.b32.xlu0 %v6059, 24
        %v6162 = vpop.permute.xlu0 %6161
        %6163 = vrot.lane.b32.xlu0 %v6062, 24
        %v6164 = vpop.permute.xlu0 %6163
        %6165 = vrot.lane.b32.xlu0 %v6067, 24
        %v6166 = vpop.permute.xlu0 %6165
        %6167 = vrot.lane.b32.xlu0 %v6070, 24
        %v6168 = vpop.permute.xlu0 %6167
        %vm6201 = vcmask 261312
        %6202 = vst.msk [vmem:[#allocation3] sm:$0xff] %vm6201, %v6106
        %6203 = vst.msk [vmem:[#allocation3 + $0x8] sm:$0xff] %vm6201, %v6108
        %6204 = vst.msk [vmem:[#allocation3 + $0x10] sm:$0xff] %vm6201, %v6110
        %6205 = vst.msk [vmem:[#allocation3 + $0x18] sm:$0xff] %vm6201, %v6112
        %6206 = vst.msk [vmem:[#allocation3 + $0x20] sm:$0xff] %vm6201, %v6114
        %6207 = vst.msk [vmem:[#allocation3 + $0x28] sm:$0xff] %vm6201, %v6116
        %6208 = vst.msk [vmem:[#allocation3 + $0x30] sm:$0xff] %vm6201, %v6118
        %6209 = vst.msk [vmem:[#allocation3 + $0x38] sm:$0xff] %vm6201, %v6120
        %6210 = vst.msk [vmem:[#allocation3 + $0x40] sm:$0xff] %vm6201, %v6122
        %6211 = vst.msk [vmem:[#allocation3 + $0x48] sm:$0xff] %vm6201, %v6124
        %6212 = vst.msk [vmem:[#allocation3 + $0x50] sm:$0xff] %vm6201, %v6126
        %6213 = vst.msk [vmem:[#allocation3 + $0x58] sm:$0xff] %vm6201, %v6128
        %6214 = vst.msk [vmem:[#allocation3 + $0x60] sm:$0xff] %vm6201, %v6130
        %6215 = vst.msk [vmem:[#allocation3 + $0x68] sm:$0xff] %vm6201, %v6132
        %6216 = vst.msk [vmem:[#allocation3 + $0x70] sm:$0xff] %vm6201, %v6134
        %6217 = vst.msk [vmem:[#allocation3 + $0x78] sm:$0xff] %vm6201, %v6136
        %6218 = vst.msk [vmem:[#allocation3 + $0x80] sm:$0xff] %vm6201, %v6138
        %6219 = vst.msk [vmem:[#allocation3 + $0x88] sm:$0xff] %vm6201, %v6140
        %6220 = vst.msk [vmem:[#allocation3 + $0x90] sm:$0xff] %vm6201, %v6142
        %6221 = vst.msk [vmem:[#allocation3 + $0x98] sm:$0xff] %vm6201, %v6144
        %6222 = vst.msk [vmem:[#allocation3 + $0xa0] sm:$0xff] %vm6201, %v6146
        %6223 = vst.msk [vmem:[#allocation3 + $0xa8] sm:$0xff] %vm6201, %v6148
        %6224 = vst.msk [vmem:[#allocation3 + $0xb0] sm:$0xff] %vm6201, %v6150
        %6225 = vst.msk [vmem:[#allocation3 + $0xb8] sm:$0xff] %vm6201, %v6152
        %6226 = vst.msk [vmem:[#allocation3 + $0xc0] sm:$0xff] %vm6201, %v6154
        %6227 = vst.msk [vmem:[#allocation3 + $0xc8] sm:$0xff] %vm6201, %v6156
        %6228 = vst.msk [vmem:[#allocation3 + $0xd0] sm:$0xff] %vm6201, %v6158
        %6229 = vst.msk [vmem:[#allocation3 + $0xd8] sm:$0xff] %vm6201, %v6160
        %6230 = vst.msk [vmem:[#allocation3 + $0xe0] sm:$0xff] %vm6201, %v6162
        %6231 = vst.msk [vmem:[#allocation3 + $0xe8] sm:$0xff] %vm6201, %v6164
        %6232 = vst.msk [vmem:[#allocation3 + $0xf0] sm:$0xff] %vm6201, %v6166
        %6233 = vst.msk [vmem:[#allocation3 + $0xf8] sm:$0xff] %vm6201, %v6168
        %v6234 = vld [vmem:[#allocation3] sm:$0xff]
        %v6235 = vld [vmem:[#allocation3 + $0x8] sm:$0xff]
        %v6236 = vld [vmem:[#allocation3 + $0x10] sm:$0xff]
        %v6237 = vld [vmem:[#allocation3 + $0x18] sm:$0xff]
        %v6238 = vld [vmem:[#allocation3 + $0x20] sm:$0xff]
        %v6239 = vld [vmem:[#allocation3 + $0x28] sm:$0xff]
        %v6240 = vld [vmem:[#allocation3 + $0x30] sm:$0xff]
        %v6241 = vld [vmem:[#allocation3 + $0x38] sm:$0xff]
        %v6242 = vld [vmem:[#allocation3 + $0x40] sm:$0xff]
        %v6243 = vld [vmem:[#allocation3 + $0x48] sm:$0xff]
        %v6244 = vld [vmem:[#allocation3 + $0x50] sm:$0xff]
        %v6245 = vld [vmem:[#allocation3 + $0x58] sm:$0xff]
        %v6246 = vld [vmem:[#allocation3 + $0x60] sm:$0xff]
        %v6247 = vld [vmem:[#allocation3 + $0x68] sm:$0xff]
        %v6248 = vld [vmem:[#allocation3 + $0x70] sm:$0xff]
        %v6249 = vld [vmem:[#allocation3 + $0x78] sm:$0xff]
        %v6250 = vld [vmem:[#allocation3 + $0x80] sm:$0xff]
        %v6251 = vld [vmem:[#allocation3 + $0x88] sm:$0xff]
        %v6252 = vld [vmem:[#allocation3 + $0x90] sm:$0xff]
        %v6253 = vld [vmem:[#allocation3 + $0x98] sm:$0xff]
        %v6254 = vld [vmem:[#allocation3 + $0xa0] sm:$0xff]
        %v6255 = vld [vmem:[#allocation3 + $0xa8] sm:$0xff]
        %v6256 = vld [vmem:[#allocation3 + $0xb0] sm:$0xff]
        %v6257 = vld [vmem:[#allocation3 + $0xb8] sm:$0xff]
        %v6258 = vld [vmem:[#allocation3 + $0xc0] sm:$0xff]
        %v6259 = vld [vmem:[#allocation3 + $0xc8] sm:$0xff]
        %v6260 = vld [vmem:[#allocation3 + $0xd0] sm:$0xff]
        %v6261 = vld [vmem:[#allocation3 + $0xd8] sm:$0xff]
        %v6262 = vld [vmem:[#allocation3 + $0xe0] sm:$0xff]
        %v6263 = vld [vmem:[#allocation3 + $0xe8] sm:$0xff]
        %v6264 = vld [vmem:[#allocation3 + $0xf0] sm:$0xff]
        %v6265 = vld [vmem:[#allocation3 + $0xf8] sm:$0xff]
        %v6266 = vpack.c.bf16 %v6235, %v6234
        %v6267 = vpack.c.bf16 %v6237, %v6236
        %v6268 = vpack.c.bf16 %v6239, %v6238
        %v6269 = vpack.c.bf16 %v6241, %v6240
        %v6270 = vpack.c.bf16 %v6243, %v6242
        %v6271 = vpack.c.bf16 %v6245, %v6244
        %v6272 = vpack.c.bf16 %v6247, %v6246
        %v6273 = vpack.c.bf16 %v6249, %v6248
        %v6274 = vpack.c.bf16 %v6251, %v6250
        %v6275 = vpack.c.bf16 %v6253, %v6252
        %v6276 = vpack.c.bf16 %v6255, %v6254
        %v6277 = vpack.c.bf16 %v6257, %v6256
        %v6278 = vpack.c.bf16 %v6259, %v6258
        %v6279 = vpack.c.bf16 %v6261, %v6260
        %v6280 = vpack.c.bf16 %v6263, %v6262
        %v6281 = vpack.c.bf16 %v6265, %v6264
        %v6282 = vld [vmem:[%s753] sm:$0xf]
        %v6283 = vld [vmem:[%s753 + $0x4] sm:$0xf]
        %v6284 = vld [vmem:[%s753 + $0x8] sm:$0xf]
        %v6285 = vld [vmem:[%s753 + $0xc] sm:$0xf]
        %v6286 = vld [vmem:[%s642] sm:$0x1]
        %v6288 = vlaneseq
        %v6289 = vshrl.u32 %v6288, 7
        %v6290 = vsub.s32 0, %v6289
        %v6291 = vrot.slane %v6286, %v6290
        %v6297 = vunpack.c.l.b16 %v6282
        %v6298 = vunpack.c.l.b16 %v6283
        %v6299 = vunpack.c.l.b16 %v6284
        %v6300 = vunpack.c.l.b16 %v6285
        %v6301 = vpack.c.b16 %v6298, %v6297
        %v6302 = vpack.c.b16 %v6300, %v6299
        %v6306 = vsel %vm1148, %v6266, 0
        %v6309 = vsel %vm1148, %v6267, 0
        %v6312 = vsel %vm1148, %v6268, 0
        %v6315 = vsel %vm1148, %v6269, 0
        %v6318 = vsel %vm1148, %v6270, 0
        %v6321 = vsel %vm1148, %v6271, 0
        %v6324 = vsel %vm1148, %v6272, 0
        %v6327 = vsel %vm1148, %v6273, 0
        %v6330 = vsel %vm1148, %v6274, 0
        %v6333 = vsel %vm1148, %v6275, 0
        %v6336 = vsel %vm1148, %v6276, 0
        %v6339 = vsel %vm1148, %v6277, 0
        %v6342 = vsel %vm1148, %v6278, 0
        %v6345 = vsel %vm1148, %v6279, 0
        %v6348 = vsel %vm1148, %v6280, 0
        %v6351 = vsel %vm1148, %v6281, 0
        %6353 = vmatprep.subr.bf16.mxu0 0
        %6354 = vmatpush1.bf16.msra.mxu0 %v6301
        %6355 = vmatprep.subr.bf16.mxu0 0
        %6356 = vmatpush1.bf16.msra.mxu0 %v6302
        %6357 = vmatprep.subr.bf16.mxu0 0
        %6358 = vmatpush1.bf16.msra.mxu0 0
        %6359 = vmatprep.subr.bf16.mxu0 0
        %6360 = vmatpush1.bf16.msra.mxu0 0
        %6361 = vmatprep.subr.bf16.mxu0 0
        %6362 = vmatpush1.bf16.msra.mxu0 0
        %6363 = vmatprep.subr.bf16.mxu0 0
        %6364 = vmatpush1.bf16.msra.mxu0 0
        %6365 = vmatprep.subr.bf16.mxu0 0
        %6366 = vmatpush1.bf16.msra.mxu0 0
        %6367 = vmatprep.subr.bf16.mxu0 0
        %6368 = vmatpush1.bf16.msra.mxu0 0
        %6369 = vmatprep.subr.bf16.mxu0 0
        %6370 = vmatpush1.bf16.msra.mxu0 0
        %6371 = vmatprep.subr.bf16.mxu0 0
        %6372 = vmatpush1.bf16.msra.mxu0 0
        %6373 = vmatprep.subr.bf16.mxu0 0
        %6374 = vmatpush1.bf16.msra.mxu0 0
        %6375 = vmatprep.subr.bf16.mxu0 0
        %6376 = vmatpush1.bf16.msra.mxu0 0
        %6377 = vmatprep.subr.bf16.mxu0 0
        %6378 = vmatpush1.bf16.msra.mxu0 0
        %6379 = vmatprep.subr.bf16.mxu0 0
        %6380 = vmatpush1.bf16.msra.mxu0 0
        %6381 = vmatprep.subr.bf16.mxu0 0
        %6382 = vmatpush1.bf16.msra.mxu0 0
        %6383 = vmatprep.subr.bf16.mxu0 0
        %6384 = vmatpush1.bf16.msra.mxu0 0
        %6385 = vmatprep.mubr.bf16.mxu0 0
        %6386 = vmatmul.mubr.bf16.gmra.mrb[0].mxu0 %v6306
        %v6387 = vpop.f32.mrb[0].mxu0
        %v6388 = vadd.f32 %v6291, %v6387
        %v6389 = vpop.f32.mrb[0].mxu0
        %v6390 = vpop.f32.mrb[0].mxu0
        %v6391 = vadd.f32 %v6291, %v6390
        %v6392 = vpop.f32.mrb[0].mxu0
        %6393 = vmatprep.mubr.bf16.mxu0 0
        %6394 = vmatmul.mubr.bf16.gmra.mrb[0].mxu0 %v6309
        %v6395 = vpop.f32.mrb[0].mxu0
        %v6396 = vadd.f32 %v6291, %v6395
        %v6397 = vpop.f32.mrb[0].mxu0
        %v6398 = vpop.f32.mrb[0].mxu0
        %v6399 = vadd.f32 %v6291, %v6398
        %v6400 = vpop.f32.mrb[0].mxu0
        %6401 = vmatprep.mubr.bf16.mxu0 0
        %6402 = vmatmul.mubr.bf16.gmra.mrb[0].mxu0 %v6312
        %v6403 = vpop.f32.mrb[0].mxu0
        %v6404 = vadd.f32 %v6291, %v6403
        %v6405 = vpop.f32.mrb[0].mxu0
        %v6406 = vpop.f32.mrb[0].mxu0
        %v6407 = vadd.f32 %v6291, %v6406
        %v6408 = vpop.f32.mrb[0].mxu0
        %6409 = vmatprep.mubr.bf16.mxu0 0
        %6410 = vmatmul.mubr.bf16.gmra.mrb[0].mxu0 %v6315
        %v6411 = vpop.f32.mrb[0].mxu0
        %v6412 = vadd.f32 %v6291, %v6411
        %v6413 = vpop.f32.mrb[0].mxu0
        %v6414 = vpop.f32.mrb[0].mxu0
        %v6415 = vadd.f32 %v6291, %v6414
        %v6416 = vpop.f32.mrb[0].mxu0
        %6417 = vmatprep.mubr.bf16.mxu0 0
        %6418 = vmatmul.mubr.bf16.gmra.mrb[0].mxu0 %v6318
        %v6419 = vpop.f32.mrb[0].mxu0
        %v6420 = vadd.f32 %v6291, %v6419
        %v6421 = vpop.f32.mrb[0].mxu0
        %v6422 = vpop.f32.mrb[0].mxu0
        %v6423 = vadd.f32 %v6291, %v6422
        %v6424 = vpop.f32.mrb[0].mxu0
        %6425 = vmatprep.mubr.bf16.mxu0 0
        %6426 = vmatmul.mubr.bf16.gmra.mrb[0].mxu0 %v6321
        %v6427 = vpop.f32.mrb[0].mxu0
        %v6428 = vadd.f32 %v6291, %v6427
        %v6429 = vpop.f32.mrb[0].mxu0
        %v6430 = vpop.f32.mrb[0].mxu0
        %v6431 = vadd.f32 %v6291, %v6430
        %v6432 = vpop.f32.mrb[0].mxu0
        %6433 = vmatprep.mubr.bf16.mxu0 0
        %6434 = vmatmul.mubr.bf16.gmra.mrb[0].mxu0 %v6324
        %v6435 = vpop.f32.mrb[0].mxu0
        %v6436 = vadd.f32 %v6291, %v6435
        %v6437 = vpop.f32.mrb[0].mxu0
        %v6438 = vpop.f32.mrb[0].mxu0
        %v6439 = vadd.f32 %v6291, %v6438
        %v6440 = vpop.f32.mrb[0].mxu0
        %6441 = vmatprep.mubr.bf16.mxu0 0
        %6442 = vmatmul.mubr.bf16.gmra.mrb[0].mxu0 %v6327
        %v6443 = vpop.f32.mrb[0].mxu0
        %v6444 = vadd.f32 %v6291, %v6443
        %v6445 = vpop.f32.mrb[0].mxu0
        %v6446 = vpop.f32.mrb[0].mxu0
        %v6447 = vadd.f32 %v6291, %v6446
        %v6448 = vpop.f32.mrb[0].mxu0
        %6449 = vmatprep.mubr.bf16.mxu0 0
        %6450 = vmatmul.mubr.bf16.gmra.mrb[0].mxu0 %v6330
        %v6451 = vpop.f32.mrb[0].mxu0
        %v6452 = vadd.f32 %v6291, %v6451
        %v6453 = vpop.f32.mrb[0].mxu0
        %v6454 = vpop.f32.mrb[0].mxu0
        %v6455 = vadd.f32 %v6291, %v6454
        %v6456 = vpop.f32.mrb[0].mxu0
        %6457 = vmatprep.mubr.bf16.mxu0 0
        %6458 = vmatmul.mubr.bf16.gmra.mrb[0].mxu0 %v6333
        %v6459 = vpop.f32.mrb[0].mxu0
        %v6460 = vadd.f32 %v6291, %v6459
        %v6461 = vpop.f32.mrb[0].mxu0
        %v6462 = vpop.f32.mrb[0].mxu0
        %v6463 = vadd.f32 %v6291, %v6462
        %v6464 = vpop.f32.mrb[0].mxu0
        %6465 = vmatprep.mubr.bf16.mxu0 0
        %6466 = vmatmul.mubr.bf16.gmra.mrb[0].mxu0 %v6336
        %v6467 = vpop.f32.mrb[0].mxu0
        %v6468 = vadd.f32 %v6291, %v6467
        %v6469 = vpop.f32.mrb[0].mxu0
        %v6470 = vpop.f32.mrb[0].mxu0
        %v6471 = vadd.f32 %v6291, %v6470
        %v6472 = vpop.f32.mrb[0].mxu0
        %6473 = vmatprep.mubr.bf16.mxu0 0
        %6474 = vmatmul.mubr.bf16.gmra.mrb[0].mxu0 %v6339
        %v6475 = vpop.f32.mrb[0].mxu0
        %v6476 = vadd.f32 %v6291, %v6475
        %v6477 = vpop.f32.mrb[0].mxu0
        %v6478 = vpop.f32.mrb[0].mxu0
        %v6479 = vadd.f32 %v6291, %v6478
        %v6480 = vpop.f32.mrb[0].mxu0
        %6481 = vmatprep.mubr.bf16.mxu0 0
        %6482 = vmatmul.mubr.bf16.gmra.mrb[0].mxu0 %v6342
        %v6483 = vpop.f32.mrb[0].mxu0
        %v6484 = vadd.f32 %v6291, %v6483
        %v6485 = vpop.f32.mrb[0].mxu0
        %v6486 = vpop.f32.mrb[0].mxu0
        %v6487 = vadd.f32 %v6291, %v6486
        %v6488 = vpop.f32.mrb[0].mxu0
        %6489 = vmatprep.mubr.bf16.mxu0 0
        %6490 = vmatmul.mubr.bf16.gmra.mrb[0].mxu0 %v6345
        %v6491 = vpop.f32.mrb[0].mxu0
        %v6492 = vadd.f32 %v6291, %v6491
        %v6493 = vpop.f32.mrb[0].mxu0
        %v6494 = vpop.f32.mrb[0].mxu0
        %v6495 = vadd.f32 %v6291, %v6494
        %v6496 = vpop.f32.mrb[0].mxu0
        %6497 = vmatprep.mubr.bf16.mxu0 0
        %6498 = vmatmul.mubr.bf16.gmra.mrb[0].mxu0 %v6348
        %v6499 = vpop.f32.mrb[0].mxu0
        %v6500 = vadd.f32 %v6291, %v6499
        %v6501 = vpop.f32.mrb[0].mxu0
        %v6502 = vpop.f32.mrb[0].mxu0
        %v6503 = vadd.f32 %v6291, %v6502
        %v6504 = vpop.f32.mrb[0].mxu0
        %6505 = vmatprep.mubr.bf16.mxu0 0
        %6506 = vmatmul.mubr.bf16.gmra.mrb[0].mxu0 %v6351
        %v6507 = vpop.f32.mrb[0].mxu0
        %v6508 = vadd.f32 %v6291, %v6507
        %v6509 = vpop.f32.mrb[0].mxu0
        %v6510 = vpop.f32.mrb[0].mxu0
        %v6511 = vadd.f32 %v6291, %v6510
        %v6512 = vpop.f32.mrb[0].mxu0
        %6513 = vdwg.mxu0
        %v6514 = vadd.f32 %v1077, %v6388
        %v6515 = vadd.f32 %v1078, %v6391
        %v6516 = vadd.f32 %v1079, %v6396
        %v6517 = vadd.f32 %v1080, %v6399
        %v6518 = vadd.f32 %v1081, %v6404
        %v6519 = vadd.f32 %v1082, %v6407
        %v6520 = vadd.f32 %v1083, %v6412
        %v6521 = vadd.f32 %v1084, %v6415
        %v6522 = vadd.f32 %v1085, %v6420
        %v6523 = vadd.f32 %v1086, %v6423
        %v6524 = vadd.f32 %v1087, %v6428
        %v6525 = vadd.f32 %v1088, %v6431
        %v6526 = vadd.f32 %v1089, %v6436
        %v6527 = vadd.f32 %v1090, %v6439
        %v6528 = vadd.f32 %v1091, %v6444
        %v6529 = vadd.f32 %v1092, %v6447
        %v6530 = vadd.f32 %v1093, %v6452
        %v6531 = vadd.f32 %v1094, %v6455
        %v6532 = vadd.f32 %v1095, %v6460
        %v6533 = vadd.f32 %v1096, %v6463
        %v6534 = vadd.f32 %v1097, %v6468
        %v6535 = vadd.f32 %v1098, %v6471
        %v6536 = vadd.f32 %v1099, %v6476
        %v6537 = vadd.f32 %v1100, %v6479
        %v6538 = vadd.f32 %v1101, %v6484
        %v6539 = vadd.f32 %v1102, %v6487
        %v6540 = vadd.f32 %v1103, %v6492
        %v6541 = vadd.f32 %v1104, %v6495
        %v6542 = vadd.f32 %v1105, %v6500
        %v6543 = vadd.f32 %v1106, %v6503
        %v6544 = vadd.f32 %v1107, %v6508
        %v6545 = vadd.f32 %v1108, %v6511
        %v6546 = vld [vmem:[%s769] sm:$0x1]
        %v6547 = vld [vmem:[%s772] sm:$0x1]
        %v6548 = vsel %vm1148, %v6514, 0.0
        %6549 = vadd.xlane.f32.xlu0 %v6548
        %v6550 = vpop.xlane.xlu0 %6549
        %v6551 = vsel %vm1148, %v6515, 0.0
        %6552 = vadd.xlane.f32.xlu0 %v6551
        %v6553 = vpop.xlane.xlu0 %6552
        %v6554 = vsel %vm1148, %v6516, 0.0
        %6555 = vadd.xlane.f32.xlu0 %v6554
        %v6556 = vpop.xlane.xlu0 %6555
        %v6557 = vsel %vm1148, %v6517, 0.0
        %6558 = vadd.xlane.f32.xlu0 %v6557
        %v6559 = vpop.xlane.xlu0 %6558
        %v6560 = vsel %vm1148, %v6518, 0.0
        %6561 = vadd.xlane.f32.xlu0 %v6560
        %v6562 = vpop.xlane.xlu0 %6561
        %v6563 = vsel %vm1148, %v6519, 0.0
        %6564 = vadd.xlane.f32.xlu0 %v6563
        %v6565 = vpop.xlane.xlu0 %6564
        %v6566 = vsel %vm1148, %v6520, 0.0
        %6567 = vadd.xlane.f32.xlu0 %v6566
        %v6568 = vpop.xlane.xlu0 %6567
        %v6569 = vsel %vm1148, %v6521, 0.0
        %6570 = vadd.xlane.f32.xlu0 %v6569
        %v6571 = vpop.xlane.xlu0 %6570
        %v6572 = vsel %vm1148, %v6522, 0.0
        %6573 = vadd.xlane.f32.xlu0 %v6572
        %v6574 = vpop.xlane.xlu0 %6573
        %v6575 = vsel %vm1148, %v6523, 0.0
        %6576 = vadd.xlane.f32.xlu0 %v6575
        %v6577 = vpop.xlane.xlu0 %6576
        %v6578 = vsel %vm1148, %v6524, 0.0
        %6579 = vadd.xlane.f32.xlu0 %v6578
        %v6580 = vpop.xlane.xlu0 %6579
        %v6581 = vsel %vm1148, %v6525, 0.0
        %6582 = vadd.xlane.f32.xlu0 %v6581
        %v6583 = vpop.xlane.xlu0 %6582
        %v6584 = vsel %vm1148, %v6526, 0.0
        %6585 = vadd.xlane.f32.xlu0 %v6584
        %v6586 = vpop.xlane.xlu0 %6585
        %v6587 = vsel %vm1148, %v6527, 0.0
        %6588 = vadd.xlane.f32.xlu0 %v6587
        %v6589 = vpop.xlane.xlu0 %6588
        %v6590 = vsel %vm1148, %v6528, 0.0
        %6591 = vadd.xlane.f32.xlu0 %v6590
        %v6592 = vpop.xlane.xlu0 %6591
        %v6593 = vsel %vm1148, %v6529, 0.0
        %6594 = vadd.xlane.f32.xlu0 %v6593
        %v6595 = vpop.xlane.xlu0 %6594
        %v6596 = vsel %vm1148, %v6530, 0.0
        %6597 = vadd.xlane.f32.xlu0 %v6596
        %v6598 = vpop.xlane.xlu0 %6597
        %v6599 = vsel %vm1148, %v6531, 0.0
        %6600 = vadd.xlane.f32.xlu0 %v6599
        %v6601 = vpop.xlane.xlu0 %6600
        %v6602 = vsel %vm1148, %v6532, 0.0
        %6603 = vadd.xlane.f32.xlu0 %v6602
        %v6604 = vpop.xlane.xlu0 %6603
        %v6605 = vsel %vm1148, %v6533, 0.0
        %6606 = vadd.xlane.f32.xlu0 %v6605
        %v6607 = vpop.xlane.xlu0 %6606
        %v6608 = vsel %vm1148, %v6534, 0.0
        %6609 = vadd.xlane.f32.xlu0 %v6608
        %v6610 = vpop.xlane.xlu0 %6609
        %v6611 = vsel %vm1148, %v6535, 0.0
        %6612 = vadd.xlane.f32.xlu0 %v6611
        %v6613 = vpop.xlane.xlu0 %6612
        %v6614 = vsel %vm1148, %v6536, 0.0
        %6615 = vadd.xlane.f32.xlu0 %v6614
        %v6616 = vpop.xlane.xlu0 %6615
        %v6617 = vsel %vm1148, %v6537, 0.0
        %6618 = vadd.xlane.f32.xlu0 %v6617
        %v6619 = vpop.xlane.xlu0 %6618
        %v6620 = vsel %vm1148, %v6538, 0.0
        %6621 = vadd.xlane.f32.xlu0 %v6620
        %v6622 = vpop.xlane.xlu0 %6621
        %v6623 = vsel %vm1148, %v6539, 0.0
        %6624 = vadd.xlane.f32.xlu0 %v6623
        %v6625 = vpop.xlane.xlu0 %6624
        %v6626 = vsel %vm1148, %v6540, 0.0
        %6627 = vadd.xlane.f32.xlu0 %v6626
        %v6628 = vpop.xlane.xlu0 %6627
        %v6629 = vsel %vm1148, %v6541, 0.0
        %6630 = vadd.xlane.f32.xlu0 %v6629
        %v6631 = vpop.xlane.xlu0 %6630
        %v6632 = vsel %vm1148, %v6542, 0.0
        %6633 = vadd.xlane.f32.xlu0 %v6632
        %v6634 = vpop.xlane.xlu0 %6633
        %v6635 = vsel %vm1148, %v6543, 0.0
        %6636 = vadd.xlane.f32.xlu0 %v6635
        %v6637 = vpop.xlane.xlu0 %6636
        %v6638 = vsel %vm1148, %v6544, 0.0
        %6639 = vadd.xlane.f32.xlu0 %v6638
        %v6640 = vpop.xlane.xlu0 %6639
        %v6641 = vsel %vm1148, %v6545, 0.0
        %6642 = vadd.xlane.f32.xlu0 %v6641
        %v6643 = vpop.xlane.xlu0 %6642
        %v6644 = vrcp.pop 32.0
        %v6645 = vmul.f32 %v6550, %v6644
        %v6646 = vmul.f32 %v6553, %v6644
        %v6647 = vmul.f32 %v6556, %v6644
        %v6648 = vmul.f32 %v6559, %v6644
        %v6649 = vmul.f32 %v6562, %v6644
        %v6650 = vmul.f32 %v6565, %v6644
        %v6651 = vmul.f32 %v6568, %v6644
        %v6652 = vmul.f32 %v6571, %v6644
        %v6653 = vmul.f32 %v6574, %v6644
        %v6654 = vmul.f32 %v6577, %v6644
        %v6655 = vmul.f32 %v6580, %v6644
        %v6656 = vmul.f32 %v6583, %v6644
        %v6657 = vmul.f32 %v6586, %v6644
        %v6658 = vmul.f32 %v6589, %v6644
        %v6659 = vmul.f32 %v6592, %v6644
        %v6660 = vmul.f32 %v6595, %v6644
        %v6661 = vmul.f32 %v6598, %v6644
        %v6662 = vmul.f32 %v6601, %v6644
        %v6663 = vmul.f32 %v6604, %v6644
        %v6664 = vmul.f32 %v6607, %v6644
        %v6665 = vmul.f32 %v6610, %v6644
        %v6666 = vmul.f32 %v6613, %v6644
        %v6667 = vmul.f32 %v6616, %v6644
        %v6668 = vmul.f32 %v6619, %v6644
        %v6669 = vmul.f32 %v6622, %v6644
        %v6670 = vmul.f32 %v6625, %v6644
        %v6671 = vmul.f32 %v6628, %v6644
        %v6672 = vmul.f32 %v6631, %v6644
        %v6673 = vmul.f32 %v6634, %v6644
        %v6674 = vmul.f32 %v6637, %v6644
        %v6675 = vmul.f32 %v6640, %v6644
        %v6676 = vmul.f32 %v6643, %v6644
        %v6677 = vsub.f32 %v6514, %v6645
        %v6678 = vsub.f32 %v6515, %v6646
        %v6679 = vsub.f32 %v6516, %v6647
        %v6680 = vsub.f32 %v6517, %v6648
        %v6681 = vsub.f32 %v6518, %v6649
        %v6682 = vsub.f32 %v6519, %v6650
        %v6683 = vsub.f32 %v6520, %v6651
        %v6684 = vsub.f32 %v6521, %v6652
        %v6685 = vsub.f32 %v6522, %v6653
        %v6686 = vsub.f32 %v6523, %v6654
        %v6687 = vsub.f32 %v6524, %v6655
        %v6688 = vsub.f32 %v6525, %v6656
        %v6689 = vsub.f32 %v6526, %v6657
        %v6690 = vsub.f32 %v6527, %v6658
        %v6691 = vsub.f32 %v6528, %v6659
        %v6692 = vsub.f32 %v6529, %v6660
        %v6693 = vsub.f32 %v6530, %v6661
        %v6694 = vsub.f32 %v6531, %v6662
        %v6695 = vsub.f32 %v6532, %v6663
        %v6696 = vsub.f32 %v6533, %v6664
        %v6697 = vsub.f32 %v6534, %v6665
        %v6698 = vsub.f32 %v6535, %v6666
        %v6699 = vsub.f32 %v6536, %v6667
        %v6700 = vsub.f32 %v6537, %v6668
        %v6701 = vsub.f32 %v6538, %v6669
        %v6702 = vsub.f32 %v6539, %v6670
        %v6703 = vsub.f32 %v6540, %v6671
        %v6704 = vsub.f32 %v6541, %v6672
        %v6705 = vsub.f32 %v6542, %v6673
        %v6706 = vsub.f32 %v6543, %v6674
        %v6707 = vsub.f32 %v6544, %v6675
        %v6708 = vsub.f32 %v6545, %v6676
        %v6709 = vmul.f32 %v6677, %v6677
        %v6710 = vmul.f32 %v6678, %v6678
        %v6711 = vmul.f32 %v6679, %v6679
        %v6712 = vmul.f32 %v6680, %v6680
        %v6713 = vmul.f32 %v6681, %v6681
        %v6714 = vmul.f32 %v6682, %v6682
        %v6715 = vmul.f32 %v6683, %v6683
        %v6716 = vmul.f32 %v6684, %v6684
        %v6717 = vmul.f32 %v6685, %v6685
        %v6718 = vmul.f32 %v6686, %v6686
        %v6719 = vmul.f32 %v6687, %v6687
        %v6720 = vmul.f32 %v6688, %v6688
        %v6721 = vmul.f32 %v6689, %v6689
        %v6722 = vmul.f32 %v6690, %v6690
        %v6723 = vmul.f32 %v6691, %v6691
        %v6724 = vmul.f32 %v6692, %v6692
        %v6725 = vmul.f32 %v6693, %v6693
        %v6726 = vmul.f32 %v6694, %v6694
        %v6727 = vmul.f32 %v6695, %v6695
        %v6728 = vmul.f32 %v6696, %v6696
        %v6729 = vmul.f32 %v6697, %v6697
        %v6730 = vmul.f32 %v6698, %v6698
        %v6731 = vmul.f32 %v6699, %v6699
        %v6732 = vmul.f32 %v6700, %v6700
        %v6733 = vmul.f32 %v6701, %v6701
        %v6734 = vmul.f32 %v6702, %v6702
        %v6735 = vmul.f32 %v6703, %v6703
        %v6736 = vmul.f32 %v6704, %v6704
        %v6737 = vmul.f32 %v6705, %v6705
        %v6738 = vmul.f32 %v6706, %v6706
        %v6739 = vmul.f32 %v6707, %v6707
        %v6740 = vmul.f32 %v6708, %v6708
        %v6741 = vsel %vm1148, %v6709, 0.0
        %6742 = vadd.xlane.f32.xlu0 %v6741
        %v6743 = vpop.xlane.xlu0 %6742
        %v6744 = vsel %vm1148, %v6710, 0.0
        %6745 = vadd.xlane.f32.xlu0 %v6744
        %v6746 = vpop.xlane.xlu0 %6745
        %v6747 = vsel %vm1148, %v6711, 0.0
        %6748 = vadd.xlane.f32.xlu0 %v6747
        %v6749 = vpop.xlane.xlu0 %6748
        %v6750 = vsel %vm1148, %v6712, 0.0
        %6751 = vadd.xlane.f32.xlu0 %v6750
        %v6752 = vpop.xlane.xlu0 %6751
        %v6753 = vsel %vm1148, %v6713, 0.0
        %6754 = vadd.xlane.f32.xlu0 %v6753
        %v6755 = vpop.xlane.xlu0 %6754
        %v6756 = vsel %vm1148, %v6714, 0.0
        %6757 = vadd.xlane.f32.xlu0 %v6756
        %v6758 = vpop.xlane.xlu0 %6757
        %v6759 = vsel %vm1148, %v6715, 0.0
        %6760 = vadd.xlane.f32.xlu0 %v6759
        %v6761 = vpop.xlane.xlu0 %6760
        %v6762 = vsel %vm1148, %v6716, 0.0
        %6763 = vadd.xlane.f32.xlu0 %v6762
        %v6764 = vpop.xlane.xlu0 %6763
        %v6765 = vsel %vm1148, %v6717, 0.0
        %6766 = vadd.xlane.f32.xlu0 %v6765
        %v6767 = vpop.xlane.xlu0 %6766
        %v6768 = vsel %vm1148, %v6718, 0.0
        %6769 = vadd.xlane.f32.xlu0 %v6768
        %v6770 = vpop.xlane.xlu0 %6769
        %v6771 = vsel %vm1148, %v6719, 0.0
        %6772 = vadd.xlane.f32.xlu0 %v6771
        %v6773 = vpop.xlane.xlu0 %6772
        %v6774 = vsel %vm1148, %v6720, 0.0
        %6775 = vadd.xlane.f32.xlu0 %v6774
        %v6776 = vpop.xlane.xlu0 %6775
        %v6777 = vsel %vm1148, %v6721, 0.0
        %6778 = vadd.xlane.f32.xlu0 %v6777
        %v6779 = vpop.xlane.xlu0 %6778
        %v6780 = vsel %vm1148, %v6722, 0.0
        %6781 = vadd.xlane.f32.xlu0 %v6780
        %v6782 = vpop.xlane.xlu0 %6781
        %v6783 = vsel %vm1148, %v6723, 0.0
        %6784 = vadd.xlane.f32.xlu0 %v6783
        %v6785 = vpop.xlane.xlu0 %6784
        %v6786 = vsel %vm1148, %v6724, 0.0
        %6787 = vadd.xlane.f32.xlu0 %v6786
        %v6788 = vpop.xlane.xlu0 %6787
        %v6789 = vsel %vm1148, %v6725, 0.0
        %6790 = vadd.xlane.f32.xlu0 %v6789
        %v6791 = vpop.xlane.xlu0 %6790
        %v6792 = vsel %vm1148, %v6726, 0.0
        %6793 = vadd.xlane.f32.xlu0 %v6792
        %v6794 = vpop.xlane.xlu0 %6793
        %v6795 = vsel %vm1148, %v6727, 0.0
        %6796 = vadd.xlane.f32.xlu0 %v6795
        %v6797 = vpop.xlane.xlu0 %6796
        %v6798 = vsel %vm1148, %v6728, 0.0
        %6799 = vadd.xlane.f32.xlu0 %v6798
        %v6800 = vpop.xlane.xlu0 %6799
        %v6801 = vsel %vm1148, %v6729, 0.0
        %6802 = vadd.xlane.f32.xlu0 %v6801
        %v6803 = vpop.xlane.xlu0 %6802
        %v6804 = vsel %vm1148, %v6730, 0.0
        %6805 = vadd.xlane.f32.xlu0 %v6804
        %v6806 = vpop.xlane.xlu0 %6805
        %v6807 = vsel %vm1148, %v6731, 0.0
        %6808 = vadd.xlane.f32.xlu0 %v6807
        %v6809 = vpop.xlane.xlu0 %6808
        %v6810 = vsel %vm1148, %v6732, 0.0
        %6811 = vadd.xlane.f32.xlu0 %v6810
        %v6812 = vpop.xlane.xlu0 %6811
        %v6813 = vsel %vm1148, %v6733, 0.0
        %6814 = vadd.xlane.f32.xlu0 %v6813
        %v6815 = vpop.xlane.xlu0 %6814
        %v6816 = vsel %vm1148, %v6734, 0.0
        %6817 = vadd.xlane.f32.xlu0 %v6816
        %v6818 = vpop.xlane.xlu0 %6817
        %v6819 = vsel %vm1148, %v6735, 0.0
        %6820 = vadd.xlane.f32.xlu0 %v6819
        %v6821 = vpop.xlane.xlu0 %6820
        %v6822 = vsel %vm1148, %v6736, 0.0
        %6823 = vadd.xlane.f32.xlu0 %v6822
        %v6824 = vpop.xlane.xlu0 %6823
        %v6825 = vsel %vm1148, %v6737, 0.0
        %6826 = vadd.xlane.f32.xlu0 %v6825
        %v6827 = vpop.xlane.xlu0 %6826
        %v6828 = vsel %vm1148, %v6738, 0.0
        %6829 = vadd.xlane.f32.xlu0 %v6828
        %v6830 = vpop.xlane.xlu0 %6829
        %v6831 = vsel %vm1148, %v6739, 0.0
        %6832 = vadd.xlane.f32.xlu0 %v6831
        %v6833 = vpop.xlane.xlu0 %6832
        %v6834 = vsel %vm1148, %v6740, 0.0
        %6835 = vadd.xlane.f32.xlu0 %v6834
        %v6836 = vpop.xlane.xlu0 %6835
        %v6837 = vmul.f32 %v6743, %v6644
        %v6838 = vmul.f32 %v6746, %v6644
        %v6839 = vmul.f32 %v6749, %v6644
        %v6840 = vmul.f32 %v6752, %v6644
        %v6841 = vmul.f32 %v6755, %v6644
        %v6842 = vmul.f32 %v6758, %v6644
        %v6843 = vmul.f32 %v6761, %v6644
        %v6844 = vmul.f32 %v6764, %v6644
        %v6845 = vmul.f32 %v6767, %v6644
        %v6846 = vmul.f32 %v6770, %v6644
        %v6847 = vmul.f32 %v6773, %v6644
        %v6848 = vmul.f32 %v6776, %v6644
        %v6849 = vmul.f32 %v6779, %v6644
        %v6850 = vmul.f32 %v6782, %v6644
        %v6851 = vmul.f32 %v6785, %v6644
        %v6852 = vmul.f32 %v6788, %v6644
        %v6853 = vmul.f32 %v6791, %v6644
        %v6854 = vmul.f32 %v6794, %v6644
        %v6855 = vmul.f32 %v6797, %v6644
        %v6856 = vmul.f32 %v6800, %v6644
        %v6857 = vmul.f32 %v6803, %v6644
        %v6858 = vmul.f32 %v6806, %v6644
        %v6859 = vmul.f32 %v6809, %v6644
        %v6860 = vmul.f32 %v6812, %v6644
        %v6861 = vmul.f32 %v6815, %v6644
        %v6862 = vmul.f32 %v6818, %v6644
        %v6863 = vmul.f32 %v6821, %v6644
        %v6864 = vmul.f32 %v6824, %v6644
        %v6865 = vmul.f32 %v6827, %v6644
        %v6866 = vmul.f32 %v6830, %v6644
        %v6867 = vmul.f32 %v6833, %v6644
        %v6868 = vmul.f32 %v6836, %v6644
        %v6869 = vadd.f32 %v6837, 1e-05
        %v6870 = vadd.f32 %v6838, 1e-05
        %v6871 = vadd.f32 %v6839, 1e-05
        %v6872 = vadd.f32 %v6840, 1e-05
        %v6873 = vadd.f32 %v6841, 1e-05
        %v6874 = vadd.f32 %v6842, 1e-05
        %v6875 = vadd.f32 %v6843, 1e-05
        %v6876 = vadd.f32 %v6844, 1e-05
        %v6877 = vadd.f32 %v6845, 1e-05
        %v6878 = vadd.f32 %v6846, 1e-05
        %v6879 = vadd.f32 %v6847, 1e-05
        %v6880 = vadd.f32 %v6848, 1e-05
        %v6881 = vadd.f32 %v6849, 1e-05
        %v6882 = vadd.f32 %v6850, 1e-05
        %v6883 = vadd.f32 %v6851, 1e-05
        %v6884 = vadd.f32 %v6852, 1e-05
        %v6885 = vadd.f32 %v6853, 1e-05
        %v6886 = vadd.f32 %v6854, 1e-05
        %v6887 = vadd.f32 %v6855, 1e-05
        %v6888 = vadd.f32 %v6856, 1e-05
        %v6889 = vadd.f32 %v6857, 1e-05
        %v6890 = vadd.f32 %v6858, 1e-05
        %v6891 = vadd.f32 %v6859, 1e-05
        %v6892 = vadd.f32 %v6860, 1e-05
        %v6893 = vadd.f32 %v6861, 1e-05
        %v6894 = vadd.f32 %v6862, 1e-05
        %v6895 = vadd.f32 %v6863, 1e-05
        %v6896 = vadd.f32 %v6864, 1e-05
        %v6897 = vadd.f32 %v6865, 1e-05
        %v6898 = vadd.f32 %v6866, 1e-05
        %v6899 = vadd.f32 %v6867, 1e-05
        %v6900 = vadd.f32 %v6868, 1e-05
        %v6901 = vrsqrt.pop %v6869
        %v6902 = vrsqrt.pop %v6870
        %v6903 = vrsqrt.pop %v6871
        %v6904 = vrsqrt.pop %v6872
        %v6905 = vrsqrt.pop %v6873
        %v6906 = vrsqrt.pop %v6874
        %v6907 = vrsqrt.pop %v6875
        %v6908 = vrsqrt.pop %v6876
        %v6909 = vrsqrt.pop %v6877
        %v6910 = vrsqrt.pop %v6878
        %v6911 = vrsqrt.pop %v6879
        %v6912 = vrsqrt.pop %v6880
        %v6913 = vrsqrt.pop %v6881
        %v6914 = vrsqrt.pop %v6882
        %v6915 = vrsqrt.pop %v6883
        %v6916 = vrsqrt.pop %v6884
        %v6917 = vrsqrt.pop %v6885
        %v6918 = vrsqrt.pop %v6886
        %v6919 = vrsqrt.pop %v6887
        %v6920 = vrsqrt.pop %v6888
        %v6921 = vrsqrt.pop %v6889
        %v6922 = vrsqrt.pop %v6890
        %v6923 = vrsqrt.pop %v6891
        %v6924 = vrsqrt.pop %v6892
        %v6925 = vrsqrt.pop %v6893
        %v6926 = vrsqrt.pop %v6894
        %v6927 = vrsqrt.pop %v6895
        %v6928 = vrsqrt.pop %v6896
        %v6929 = vrsqrt.pop %v6897
        %v6930 = vrsqrt.pop %v6898
        %v6931 = vrsqrt.pop %v6899
        %v6932 = vrsqrt.pop %v6900
        %v6933 = vmul.f32 %v6677, %v6901
        %v6934 = vmul.f32 %v6678, %v6902
        %v6935 = vmul.f32 %v6679, %v6903
        %v6936 = vmul.f32 %v6680, %v6904
        %v6937 = vmul.f32 %v6681, %v6905
        %v6938 = vmul.f32 %v6682, %v6906
        %v6939 = vmul.f32 %v6683, %v6907
        %v6940 = vmul.f32 %v6684, %v6908
        %v6941 = vmul.f32 %v6685, %v6909
        %v6942 = vmul.f32 %v6686, %v6910
        %v6943 = vmul.f32 %v6687, %v6911
        %v6944 = vmul.f32 %v6688, %v6912
        %v6945 = vmul.f32 %v6689, %v6913
        %v6946 = vmul.f32 %v6690, %v6914
        %v6947 = vmul.f32 %v6691, %v6915
        %v6948 = vmul.f32 %v6692, %v6916
        %v6949 = vmul.f32 %v6693, %v6917
        %v6950 = vmul.f32 %v6694, %v6918
        %v6951 = vmul.f32 %v6695, %v6919
        %v6952 = vmul.f32 %v6696, %v6920
        %v6953 = vmul.f32 %v6697, %v6921
        %v6954 = vmul.f32 %v6698, %v6922
        %v6955 = vmul.f32 %v6699, %v6923
        %v6956 = vmul.f32 %v6700, %v6924
        %v6957 = vmul.f32 %v6701, %v6925
        %v6958 = vmul.f32 %v6702, %v6926
        %v6959 = vmul.f32 %v6703, %v6927
        %v6960 = vmul.f32 %v6704, %v6928
        %v6961 = vmul.f32 %v6705, %v6929
        %v6962 = vmul.f32 %v6706, %v6930
        %v6963 = vmul.f32 %v6707, %v6931
        %v6964 = vmul.f32 %v6708, %v6932
        %v6966 = vlaneseq
        %v6967 = vshrl.u32 %v6966, 7
        %v6968 = vsub.s32 0, %v6967
        %v6969 = vrot.slane %v6546, %v6968
        %v6971 = vmul.f32 %v6933, %v6969
        %v6972 = vmul.f32 %v6934, %v6969
        %v6973 = vmul.f32 %v6935, %v6969
        %v6974 = vmul.f32 %v6936, %v6969
        %v6975 = vmul.f32 %v6937, %v6969
        %v6976 = vmul.f32 %v6938, %v6969
        %v6977 = vmul.f32 %v6939, %v6969
        %v6978 = vmul.f32 %v6940, %v6969
        %v6979 = vmul.f32 %v6941, %v6969
        %v6980 = vmul.f32 %v6942, %v6969
        %v6981 = vmul.f32 %v6943, %v6969
        %v6982 = vmul.f32 %v6944, %v6969
        %v6983 = vmul.f32 %v6945, %v6969
        %v6984 = vmul.f32 %v6946, %v6969
        %v6985 = vmul.f32 %v6947, %v6969
        %v6986 = vmul.f32 %v6948, %v6969
        %v6987 = vmul.f32 %v6949, %v6969
        %v6988 = vmul.f32 %v6950, %v6969
        %v6989 = vmul.f32 %v6951, %v6969
        %v6990 = vmul.f32 %v6952, %v6969
        %v6991 = vmul.f32 %v6953, %v6969
        %v6992 = vmul.f32 %v6954, %v6969
        %v6993 = vmul.f32 %v6955, %v6969
        %v6994 = vmul.f32 %v6956, %v6969
        %v6995 = vmul.f32 %v6957, %v6969
        %v6996 = vmul.f32 %v6958, %v6969
        %v6997 = vmul.f32 %v6959, %v6969
        %v6998 = vmul.f32 %v6960, %v6969
        %v6999 = vmul.f32 %v6961, %v6969
        %v7000 = vmul.f32 %v6962, %v6969
        %v7001 = vmul.f32 %v6963, %v6969
        %v7002 = vmul.f32 %v6964, %v6969
        %v7004 = vlaneseq
        %v7005 = vshrl.u32 %v7004, 7
        %v7006 = vsub.s32 0, %v7005
        %v7007 = vrot.slane %v6547, %v7006
        %v7009 = vadd.f32 %v6971, %v7007
        %v7010 = vadd.f32 %v6972, %v7007
        %v7011 = vadd.f32 %v6973, %v7007
        %v7012 = vadd.f32 %v6974, %v7007
        %v7013 = vadd.f32 %v6975, %v7007
        %v7014 = vadd.f32 %v6976, %v7007
        %v7015 = vadd.f32 %v6977, %v7007
        %v7016 = vadd.f32 %v6978, %v7007
        %v7017 = vadd.f32 %v6979, %v7007
        %v7018 = vadd.f32 %v6980, %v7007
        %v7019 = vadd.f32 %v6981, %v7007
        %v7020 = vadd.f32 %v6982, %v7007
        %v7021 = vadd.f32 %v6983, %v7007
        %v7022 = vadd.f32 %v6984, %v7007
        %v7023 = vadd.f32 %v6985, %v7007
        %v7024 = vadd.f32 %v6986, %v7007
        %v7025 = vadd.f32 %v6987, %v7007
        %v7026 = vadd.f32 %v6988, %v7007
        %v7027 = vadd.f32 %v6989, %v7007
        %v7028 = vadd.f32 %v6990, %v7007
        %v7029 = vadd.f32 %v6991, %v7007
        %v7030 = vadd.f32 %v6992, %v7007
        %v7031 = vadd.f32 %v6993, %v7007
        %v7032 = vadd.f32 %v6994, %v7007
        %v7033 = vadd.f32 %v6995, %v7007
        %v7034 = vadd.f32 %v6996, %v7007
        %v7035 = vadd.f32 %v6997, %v7007
        %v7036 = vadd.f32 %v6998, %v7007
        %v7037 = vadd.f32 %v6999, %v7007
        %v7038 = vadd.f32 %v7000, %v7007
        %v7039 = vadd.f32 %v7001, %v7007
        %v7040 = vadd.f32 %v7002, %v7007
        %v7041 = vpack.c.bf16 %v7010, %v7009
        %v7042 = vpack.c.bf16 %v7012, %v7011
        %v7043 = vpack.c.bf16 %v7014, %v7013
        %v7044 = vpack.c.bf16 %v7016, %v7015
        %v7045 = vpack.c.bf16 %v7018, %v7017
        %v7046 = vpack.c.bf16 %v7020, %v7019
        %v7047 = vpack.c.bf16 %v7022, %v7021
        %v7048 = vpack.c.bf16 %v7024, %v7023
        %v7049 = vpack.c.bf16 %v7026, %v7025
        %v7050 = vpack.c.bf16 %v7028, %v7027
        %v7051 = vpack.c.bf16 %v7030, %v7029
        %v7052 = vpack.c.bf16 %v7032, %v7031
        %v7053 = vpack.c.bf16 %v7034, %v7033
        %v7054 = vpack.c.bf16 %v7036, %v7035
        %v7055 = vpack.c.bf16 %v7038, %v7037
        %v7056 = vpack.c.bf16 %v7040, %v7039
        %v7057 = vld [vmem:[%s758] sm:$0xf]
        %v7058 = vld [vmem:[%s758 + $0x4] sm:$0xf]
        %v7059 = vld [vmem:[%s758 + $0x8] sm:$0xf]
        %v7060 = vld [vmem:[%s758 + $0xc] sm:$0xf]
        %v7061 = vld [vmem:[%s650] sm:$0x1]
        %v7063 = vlaneseq
        %v7064 = vshrl.u32 %v7063, 7
        %v7065 = vsub.s32 0, %v7064
        %v7066 = vrot.slane %v7061, %v7065
        %v7072 = vunpack.c.l.b16 %v7057
        %v7073 = vunpack.c.l.b16 %v7058
        %v7074 = vunpack.c.l.b16 %v7059
        %v7075 = vunpack.c.l.b16 %v7060
        %v7076 = vpack.c.b16 %v7073, %v7072
        %v7077 = vpack.c.b16 %v7075, %v7074
        %v7081 = vsel %vm1148, %v7041, 0
        %v7084 = vsel %vm1148, %v7042, 0
        %v7087 = vsel %vm1148, %v7043, 0
        %v7090 = vsel %vm1148, %v7044, 0
        %v7093 = vsel %vm1148, %v7045, 0
        %v7096 = vsel %vm1148, %v7046, 0
        %v7099 = vsel %vm1148, %v7047, 0
        %v7102 = vsel %vm1148, %v7048, 0
        %v7105 = vsel %vm1148, %v7049, 0
        %v7108 = vsel %vm1148, %v7050, 0
        %v7111 = vsel %vm1148, %v7051, 0
        %v7114 = vsel %vm1148, %v7052, 0
        %v7117 = vsel %vm1148, %v7053, 0
        %v7120 = vsel %vm1148, %v7054, 0
        %v7123 = vsel %vm1148, %v7055, 0
        %v7126 = vsel %vm1148, %v7056, 0
        %7128 = vmatprep.subr.bf16.mxu0 0
        %7129 = vmatpush1.bf16.msra.mxu0 %v7076
        %7130 = vmatprep.subr.bf16.mxu0 0
        %7131 = vmatpush1.bf16.msra.mxu0 %v7077
        %7132 = vmatprep.subr.bf16.mxu0 0
        %7133 = vmatpush1.bf16.msra.mxu0 0
        %7134 = vmatprep.subr.bf16.mxu0 0
        %7135 = vmatpush1.bf16.msra.mxu0 0
        %7136 = vmatprep.subr.bf16.mxu0 0
        %7137 = vmatpush1.bf16.msra.mxu0 0
        %7138 = vmatprep.subr.bf16.mxu0 0
        %7139 = vmatpush1.bf16.msra.mxu0 0
        %7140 = vmatprep.subr.bf16.mxu0 0
        %7141 = vmatpush1.bf16.msra.mxu0 0
        %7142 = vmatprep.subr.bf16.mxu0 0
        %7143 = vmatpush1.bf16.msra.mxu0 0
        %7144 = vmatprep.subr.bf16.mxu0 0
        %7145 = vmatpush1.bf16.msra.mxu0 0
        %7146 = vmatprep.subr.bf16.mxu0 0
        %7147 = vmatpush1.bf16.msra.mxu0 0
        %7148 = vmatprep.subr.bf16.mxu0 0
        %7149 = vmatpush1.bf16.msra.mxu0 0
        %7150 = vmatprep.subr.bf16.mxu0 0
        %7151 = vmatpush1.bf16.msra.mxu0 0
        %7152 = vmatprep.subr.bf16.mxu0 0
        %7153 = vmatpush1.bf16.msra.mxu0 0
        %7154 = vmatprep.subr.bf16.mxu0 0
        %7155 = vmatpush1.bf16.msra.mxu0 0
        %7156 = vmatprep.subr.bf16.mxu0 0
        %7157 = vmatpush1.bf16.msra.mxu0 0
        %7158 = vmatprep.subr.bf16.mxu0 0
        %7159 = vmatpush1.bf16.msra.mxu0 0
        %7160 = vmatprep.mubr.bf16.mxu0 0
        %7161 = vmatmul.mubr.bf16.gmra.mrb[0].mxu0 %v7081
        %v7162 = vpop.f32.mrb[0].mxu0
        %v7163 = vadd.f32 %v7066, %v7162
        %v7164 = vpop.f32.mrb[0].mxu0
        %v7165 = vpop.f32.mrb[0].mxu0
        %v7166 = vadd.f32 %v7066, %v7165
        %v7167 = vpop.f32.mrb[0].mxu0
        %7168 = vmatprep.mubr.bf16.mxu0 0
        %7169 = vmatmul.mubr.bf16.gmra.mrb[0].mxu0 %v7084
        %v7170 = vpop.f32.mrb[0].mxu0
        %v7171 = vadd.f32 %v7066, %v7170
        %v7172 = vpop.f32.mrb[0].mxu0
        %v7173 = vpop.f32.mrb[0].mxu0
        %v7174 = vadd.f32 %v7066, %v7173
        %v7175 = vpop.f32.mrb[0].mxu0
        %7176 = vmatprep.mubr.bf16.mxu0 0
        %7177 = vmatmul.mubr.bf16.gmra.mrb[0].mxu0 %v7087
        %v7178 = vpop.f32.mrb[0].mxu0
        %v7179 = vadd.f32 %v7066, %v7178
        %v7180 = vpop.f32.mrb[0].mxu0
        %v7181 = vpop.f32.mrb[0].mxu0
        %v7182 = vadd.f32 %v7066, %v7181
        %v7183 = vpop.f32.mrb[0].mxu0
        %7184 = vmatprep.mubr.bf16.mxu0 0
        %7185 = vmatmul.mubr.bf16.gmra.mrb[0].mxu0 %v7090
        %v7186 = vpop.f32.mrb[0].mxu0
        %v7187 = vadd.f32 %v7066, %v7186
        %v7188 = vpop.f32.mrb[0].mxu0
        %v7189 = vpop.f32.mrb[0].mxu0
        %v7190 = vadd.f32 %v7066, %v7189
        %v7191 = vpop.f32.mrb[0].mxu0
        %7192 = vmatprep.mubr.bf16.mxu0 0
        %7193 = vmatmul.mubr.bf16.gmra.mrb[0].mxu0 %v7093
        %v7194 = vpop.f32.mrb[0].mxu0
        %v7195 = vadd.f32 %v7066, %v7194
        %v7196 = vpop.f32.mrb[0].mxu0
        %v7197 = vpop.f32.mrb[0].mxu0
        %v7198 = vadd.f32 %v7066, %v7197
        %v7199 = vpop.f32.mrb[0].mxu0
        %7200 = vmatprep.mubr.bf16.mxu0 0
        %7201 = vmatmul.mubr.bf16.gmra.mrb[0].mxu0 %v7096
        %v7202 = vpop.f32.mrb[0].mxu0
        %v7203 = vadd.f32 %v7066, %v7202
        %v7204 = vpop.f32.mrb[0].mxu0
        %v7205 = vpop.f32.mrb[0].mxu0
        %v7206 = vadd.f32 %v7066, %v7205
        %v7207 = vpop.f32.mrb[0].mxu0
        %7208 = vmatprep.mubr.bf16.mxu0 0
        %7209 = vmatmul.mubr.bf16.gmra.mrb[0].mxu0 %v7099
        %v7210 = vpop.f32.mrb[0].mxu0
        %v7211 = vadd.f32 %v7066, %v7210
        %v7212 = vpop.f32.mrb[0].mxu0
        %v7213 = vpop.f32.mrb[0].mxu0
        %v7214 = vadd.f32 %v7066, %v7213
        %v7215 = vpop.f32.mrb[0].mxu0
        %7216 = vmatprep.mubr.bf16.mxu0 0
        %7217 = vmatmul.mubr.bf16.gmra.mrb[0].mxu0 %v7102
        %v7218 = vpop.f32.mrb[0].mxu0
        %v7219 = vadd.f32 %v7066, %v7218
        %v7220 = vpop.f32.mrb[0].mxu0
        %v7221 = vpop.f32.mrb[0].mxu0
        %v7222 = vadd.f32 %v7066, %v7221
        %v7223 = vpop.f32.mrb[0].mxu0
        %7224 = vmatprep.mubr.bf16.mxu0 0
        %7225 = vmatmul.mubr.bf16.gmra.mrb[0].mxu0 %v7105
        %v7226 = vpop.f32.mrb[0].mxu0
        %v7227 = vadd.f32 %v7066, %v7226
        %v7228 = vpop.f32.mrb[0].mxu0
        %v7229 = vpop.f32.mrb[0].mxu0
        %v7230 = vadd.f32 %v7066, %v7229
        %v7231 = vpop.f32.mrb[0].mxu0
        %7232 = vmatprep.mubr.bf16.mxu0 0
        %7233 = vmatmul.mubr.bf16.gmra.mrb[0].mxu0 %v7108
        %v7234 = vpop.f32.mrb[0].mxu0
        %v7235 = vadd.f32 %v7066, %v7234
        %v7236 = vpop.f32.mrb[0].mxu0
        %v7237 = vpop.f32.mrb[0].mxu0
        %v7238 = vadd.f32 %v7066, %v7237
        %v7239 = vpop.f32.mrb[0].mxu0
        %7240 = vmatprep.mubr.bf16.mxu0 0
        %7241 = vmatmul.mubr.bf16.gmra.mrb[0].mxu0 %v7111
        %v7242 = vpop.f32.mrb[0].mxu0
        %v7243 = vadd.f32 %v7066, %v7242
        %v7244 = vpop.f32.mrb[0].mxu0
        %v7245 = vpop.f32.mrb[0].mxu0
        %v7246 = vadd.f32 %v7066, %v7245
        %v7247 = vpop.f32.mrb[0].mxu0
        %7248 = vmatprep.mubr.bf16.mxu0 0
        %7249 = vmatmul.mubr.bf16.gmra.mrb[0].mxu0 %v7114
        %v7250 = vpop.f32.mrb[0].mxu0
        %v7251 = vadd.f32 %v7066, %v7250
        %v7252 = vpop.f32.mrb[0].mxu0
        %v7253 = vpop.f32.mrb[0].mxu0
        %v7254 = vadd.f32 %v7066, %v7253
        %v7255 = vpop.f32.mrb[0].mxu0
        %7256 = vmatprep.mubr.bf16.mxu0 0
        %7257 = vmatmul.mubr.bf16.gmra.mrb[0].mxu0 %v7117
        %v7258 = vpop.f32.mrb[0].mxu0
        %v7259 = vadd.f32 %v7066, %v7258
        %v7260 = vpop.f32.mrb[0].mxu0
        %v7261 = vpop.f32.mrb[0].mxu0
        %v7262 = vadd.f32 %v7066, %v7261
        %v7263 = vpop.f32.mrb[0].mxu0
        %7264 = vmatprep.mubr.bf16.mxu0 0
        %7265 = vmatmul.mubr.bf16.gmra.mrb[0].mxu0 %v7120
        %v7266 = vpop.f32.mrb[0].mxu0
        %v7267 = vadd.f32 %v7066, %v7266
        %v7268 = vpop.f32.mrb[0].mxu0
        %v7269 = vpop.f32.mrb[0].mxu0
        %v7270 = vadd.f32 %v7066, %v7269
        %v7271 = vpop.f32.mrb[0].mxu0
        %7272 = vmatprep.mubr.bf16.mxu0 0
        %7273 = vmatmul.mubr.bf16.gmra.mrb[0].mxu0 %v7123
        %v7274 = vpop.f32.mrb[0].mxu0
        %v7275 = vadd.f32 %v7066, %v7274
        %v7276 = vpop.f32.mrb[0].mxu0
        %v7277 = vpop.f32.mrb[0].mxu0
        %v7278 = vadd.f32 %v7066, %v7277
        %v7279 = vpop.f32.mrb[0].mxu0
        %7280 = vmatprep.mubr.bf16.mxu0 0
        %7281 = vmatmul.mubr.bf16.gmra.mrb[0].mxu0 %v7126
        %v7282 = vpop.f32.mrb[0].mxu0
        %v7283 = vadd.f32 %v7066, %v7282
        %v7284 = vpop.f32.mrb[0].mxu0
        %v7285 = vpop.f32.mrb[0].mxu0
        %v7286 = vadd.f32 %v7066, %v7285
        %v7287 = vpop.f32.mrb[0].mxu0
        %7288 = vdwg.mxu0
        %v7289 = vmax.f32 %v7163, 0.0
        %v7290 = vmax.f32 %v7166, 0.0
        %v7291 = vmax.f32 %v7171, 0.0
        %v7292 = vmax.f32 %v7174, 0.0
        %v7293 = vmax.f32 %v7179, 0.0
        %v7294 = vmax.f32 %v7182, 0.0
        %v7295 = vmax.f32 %v7187, 0.0
        %v7296 = vmax.f32 %v7190, 0.0
        %v7297 = vmax.f32 %v7195, 0.0
        %v7298 = vmax.f32 %v7198, 0.0
        %v7299 = vmax.f32 %v7203, 0.0
        %v7300 = vmax.f32 %v7206, 0.0
        %v7301 = vmax.f32 %v7211, 0.0
        %v7302 = vmax.f32 %v7214, 0.0
        %v7303 = vmax.f32 %v7219, 0.0
        %v7304 = vmax.f32 %v7222, 0.0
        %v7305 = vmax.f32 %v7227, 0.0
        %v7306 = vmax.f32 %v7230, 0.0
        %v7307 = vmax.f32 %v7235, 0.0
        %v7308 = vmax.f32 %v7238, 0.0
        %v7309 = vmax.f32 %v7243, 0.0
        %v7310 = vmax.f32 %v7246, 0.0
        %v7311 = vmax.f32 %v7251, 0.0
        %v7312 = vmax.f32 %v7254, 0.0
        %v7313 = vmax.f32 %v7259, 0.0
        %v7314 = vmax.f32 %v7262, 0.0
        %v7315 = vmax.f32 %v7267, 0.0
        %v7316 = vmax.f32 %v7270, 0.0
        %v7317 = vmax.f32 %v7275, 0.0
        %v7318 = vmax.f32 %v7278, 0.0
        %v7319 = vmax.f32 %v7283, 0.0
        %v7320 = vmax.f32 %v7286, 0.0
        %v7321 = vpack.c.bf16 %v7290, %v7289
        %v7322 = vpack.c.bf16 %v7292, %v7291
        %v7323 = vpack.c.bf16 %v7294, %v7293
        %v7324 = vpack.c.bf16 %v7296, %v7295
        %v7325 = vpack.c.bf16 %v7298, %v7297
        %v7326 = vpack.c.bf16 %v7300, %v7299
        %v7327 = vpack.c.bf16 %v7302, %v7301
        %v7328 = vpack.c.bf16 %v7304, %v7303
        %v7329 = vpack.c.bf16 %v7306, %v7305
        %v7330 = vpack.c.bf16 %v7308, %v7307
        %v7331 = vpack.c.bf16 %v7310, %v7309
        %v7332 = vpack.c.bf16 %v7312, %v7311
        %v7333 = vpack.c.bf16 %v7314, %v7313
        %v7334 = vpack.c.bf16 %v7316, %v7315
        %v7335 = vpack.c.bf16 %v7318, %v7317
        %v7336 = vpack.c.bf16 %v7320, %v7319
        %v7337 = vld [vmem:[%s763] sm:$0xf]
        %v7338 = vld [vmem:[%s763 + $0x4] sm:$0xf]
        %v7339 = vld [vmem:[%s763 + $0x8] sm:$0xf]
        %v7340 = vld [vmem:[%s763 + $0xc] sm:$0xf]
        %v7341 = vld [vmem:[%s763 + $0x10] sm:$0xf]
        %v7342 = vld [vmem:[%s763 + $0x14] sm:$0xf]
        %v7343 = vld [vmem:[%s763 + $0x18] sm:$0xf]
        %v7344 = vld [vmem:[%s763 + $0x1c] sm:$0xf]
        %v7345 = vld [vmem:[%s766] sm:$0x1]
        %v7347 = vlaneseq
        %v7348 = vshrl.u32 %v7347, 7
        %v7349 = vsub.s32 0, %v7348
        %v7350 = vrot.slane %v7345, %v7349
        %v7360 = vunpack.c.l.b16 %v7337
        %v7361 = vunpack.c.l.b16 %v7338
        %v7362 = vunpack.c.l.b16 %v7339
        %v7363 = vunpack.c.l.b16 %v7340
        %v7364 = vunpack.c.l.b16 %v7341
        %v7365 = vunpack.c.l.b16 %v7342
        %v7366 = vunpack.c.l.b16 %v7343
        %v7367 = vunpack.c.l.b16 %v7344
        %v7368 = vpack.c.b16 %v7361, %v7360
        %v7369 = vpack.c.b16 %v7363, %v7362
        %v7370 = vpack.c.b16 %v7365, %v7364
        %v7371 = vpack.c.b16 %v7367, %v7366
        %vm7376 = vcmask 523264
        %v7378 = vsel %vm7376, %v7321, 0
        %v7381 = vsel %vm7376, %v7322, 0
        %v7384 = vsel %vm7376, %v7323, 0
        %v7387 = vsel %vm7376, %v7324, 0
        %v7390 = vsel %vm7376, %v7325, 0
        %v7393 = vsel %vm7376, %v7326, 0
        %v7396 = vsel %vm7376, %v7327, 0
        %v7399 = vsel %vm7376, %v7328, 0
        %v7402 = vsel %vm7376, %v7329, 0
        %v7405 = vsel %vm7376, %v7330, 0
        %v7408 = vsel %vm7376, %v7331, 0
        %v7411 = vsel %vm7376, %v7332, 0
        %v7414 = vsel %vm7376, %v7333, 0
        %v7417 = vsel %vm7376, %v7334, 0
        %v7420 = vsel %vm7376, %v7335, 0
        %v7423 = vsel %vm7376, %v7336, 0
        %7425 = vmatprep.subr.bf16.mxu0 0
        %7426 = vmatpush1.bf16.msra.mxu0 %v7368
        %7427 = vmatprep.subr.bf16.mxu0 0
        %7428 = vmatpush1.bf16.msra.mxu0 %v7369
        %7429 = vmatprep.subr.bf16.mxu0 0
        %7430 = vmatpush1.bf16.msra.mxu0 %v7370
        %7431 = vmatprep.subr.bf16.mxu0 0
        %7432 = vmatpush1.bf16.msra.mxu0 %v7371
        %7433 = vmatprep.subr.bf16.mxu0 0
        %7434 = vmatpush1.bf16.msra.mxu0 0
        %7435 = vmatprep.subr.bf16.mxu0 0
        %7436 = vmatpush1.bf16.msra.mxu0 0
        %7437 = vmatprep.subr.bf16.mxu0 0
        %7438 = vmatpush1.bf16.msra.mxu0 0
        %7439 = vmatprep.subr.bf16.mxu0 0
        %7440 = vmatpush1.bf16.msra.mxu0 0
        %7441 = vmatprep.subr.bf16.mxu0 0
        %7442 = vmatpush1.bf16.msra.mxu0 0
        %7443 = vmatprep.subr.bf16.mxu0 0
        %7444 = vmatpush1.bf16.msra.mxu0 0
        %7445 = vmatprep.subr.bf16.mxu0 0
        %7446 = vmatpush1.bf16.msra.mxu0 0
        %7447 = vmatprep.subr.bf16.mxu0 0
        %7448 = vmatpush1.bf16.msra.mxu0 0
        %7449 = vmatprep.subr.bf16.mxu0 0
        %7450 = vmatpush1.bf16.msra.mxu0 0
        %7451 = vmatprep.subr.bf16.mxu0 0
        %7452 = vmatpush1.bf16.msra.mxu0 0
        %7453 = vmatprep.subr.bf16.mxu0 0
        %7454 = vmatpush1.bf16.msra.mxu0 0
        %7455 = vmatprep.subr.bf16.mxu0 0
        %7456 = vmatpush1.bf16.msra.mxu0 0
        %7457 = vmatprep.mubr.bf16.mxu0 0
        %7458 = vmatmul.mubr.bf16.gmra.mrb[0].mxu0 %v7378
        %v7459 = vpop.f32.mrb[0].mxu0
        %v7460 = vadd.f32 %v7350, %v7459
        %v7461 = vpop.f32.mrb[0].mxu0
        %v7462 = vpop.f32.mrb[0].mxu0
        %v7463 = vadd.f32 %v7350, %v7462
        %v7464 = vpop.f32.mrb[0].mxu0
        %7465 = vmatprep.mubr.bf16.mxu0 0
        %7466 = vmatmul.mubr.bf16.gmra.mrb[0].mxu0 %v7381
        %v7467 = vpop.f32.mrb[0].mxu0
        %v7468 = vadd.f32 %v7350, %v7467
        %v7469 = vpop.f32.mrb[0].mxu0
        %v7470 = vpop.f32.mrb[0].mxu0
        %v7471 = vadd.f32 %v7350, %v7470
        %v7472 = vpop.f32.mrb[0].mxu0
        %7473 = vmatprep.mubr.bf16.mxu0 0
        %7474 = vmatmul.mubr.bf16.gmra.mrb[0].mxu0 %v7384
        %v7475 = vpop.f32.mrb[0].mxu0
        %v7476 = vadd.f32 %v7350, %v7475
        %v7477 = vpop.f32.mrb[0].mxu0
        %v7478 = vpop.f32.mrb[0].mxu0
        %v7479 = vadd.f32 %v7350, %v7478
        %v7480 = vpop.f32.mrb[0].mxu0
        %7481 = vmatprep.mubr.bf16.mxu0 0
        %7482 = vmatmul.mubr.bf16.gmra.mrb[0].mxu0 %v7387
        %v7483 = vpop.f32.mrb[0].mxu0
        %v7484 = vadd.f32 %v7350, %v7483
        %v7485 = vpop.f32.mrb[0].mxu0
        %v7486 = vpop.f32.mrb[0].mxu0
        %v7487 = vadd.f32 %v7350, %v7486
        %v7488 = vpop.f32.mrb[0].mxu0
        %7489 = vmatprep.mubr.bf16.mxu0 0
        %7490 = vmatmul.mubr.bf16.gmra.mrb[0].mxu0 %v7390
        %v7491 = vpop.f32.mrb[0].mxu0
        %v7492 = vadd.f32 %v7350, %v7491
        %v7493 = vpop.f32.mrb[0].mxu0
        %v7494 = vpop.f32.mrb[0].mxu0
        %v7495 = vadd.f32 %v7350, %v7494
        %v7496 = vpop.f32.mrb[0].mxu0
        %7497 = vmatprep.mubr.bf16.mxu0 0
        %7498 = vmatmul.mubr.bf16.gmra.mrb[0].mxu0 %v7393
        %v7499 = vpop.f32.mrb[0].mxu0
        %v7500 = vadd.f32 %v7350, %v7499
        %v7501 = vpop.f32.mrb[0].mxu0
        %v7502 = vpop.f32.mrb[0].mxu0
        %v7503 = vadd.f32 %v7350, %v7502
        %v7504 = vpop.f32.mrb[0].mxu0
        %7505 = vmatprep.mubr.bf16.mxu0 0
        %7506 = vmatmul.mubr.bf16.gmra.mrb[0].mxu0 %v7396
        %v7507 = vpop.f32.mrb[0].mxu0
        %v7508 = vadd.f32 %v7350, %v7507
        %v7509 = vpop.f32.mrb[0].mxu0
        %v7510 = vpop.f32.mrb[0].mxu0
        %v7511 = vadd.f32 %v7350, %v7510
        %v7512 = vpop.f32.mrb[0].mxu0
        %7513 = vmatprep.mubr.bf16.mxu0 0
        %7514 = vmatmul.mubr.bf16.gmra.mrb[0].mxu0 %v7399
        %v7515 = vpop.f32.mrb[0].mxu0
        %v7516 = vadd.f32 %v7350, %v7515
        %v7517 = vpop.f32.mrb[0].mxu0
        %v7518 = vpop.f32.mrb[0].mxu0
        %v7519 = vadd.f32 %v7350, %v7518
        %v7520 = vpop.f32.mrb[0].mxu0
        %7521 = vmatprep.mubr.bf16.mxu0 0
        %7522 = vmatmul.mubr.bf16.gmra.mrb[0].mxu0 %v7402
        %v7523 = vpop.f32.mrb[0].mxu0
        %v7524 = vadd.f32 %v7350, %v7523
        %v7525 = vpop.f32.mrb[0].mxu0
        %v7526 = vpop.f32.mrb[0].mxu0
        %v7527 = vadd.f32 %v7350, %v7526
        %v7528 = vpop.f32.mrb[0].mxu0
        %7529 = vmatprep.mubr.bf16.mxu0 0
        %7530 = vmatmul.mubr.bf16.gmra.mrb[0].mxu0 %v7405
        %v7531 = vpop.f32.mrb[0].mxu0
        %v7532 = vadd.f32 %v7350, %v7531
        %v7533 = vpop.f32.mrb[0].mxu0
        %v7534 = vpop.f32.mrb[0].mxu0
        %v7535 = vadd.f32 %v7350, %v7534
        %v7536 = vpop.f32.mrb[0].mxu0
        %7537 = vmatprep.mubr.bf16.mxu0 0
        %7538 = vmatmul.mubr.bf16.gmra.mrb[0].mxu0 %v7408
        %v7539 = vpop.f32.mrb[0].mxu0
        %v7540 = vadd.f32 %v7350, %v7539
        %v7541 = vpop.f32.mrb[0].mxu0
        %v7542 = vpop.f32.mrb[0].mxu0
        %v7543 = vadd.f32 %v7350, %v7542
        %v7544 = vpop.f32.mrb[0].mxu0
        %7545 = vmatprep.mubr.bf16.mxu0 0
        %7546 = vmatmul.mubr.bf16.gmra.mrb[0].mxu0 %v7411
        %v7547 = vpop.f32.mrb[0].mxu0
        %v7548 = vadd.f32 %v7350, %v7547
        %v7549 = vpop.f32.mrb[0].mxu0
        %v7550 = vpop.f32.mrb[0].mxu0
        %v7551 = vadd.f32 %v7350, %v7550
        %v7552 = vpop.f32.mrb[0].mxu0
        %7553 = vmatprep.mubr.bf16.mxu0 0
        %7554 = vmatmul.mubr.bf16.gmra.mrb[0].mxu0 %v7414
        %v7555 = vpop.f32.mrb[0].mxu0
        %v7556 = vadd.f32 %v7350, %v7555
        %v7557 = vpop.f32.mrb[0].mxu0
        %v7558 = vpop.f32.mrb[0].mxu0
        %v7559 = vadd.f32 %v7350, %v7558
        %v7560 = vpop.f32.mrb[0].mxu0
        %7561 = vmatprep.mubr.bf16.mxu0 0
        %7562 = vmatmul.mubr.bf16.gmra.mrb[0].mxu0 %v7417
        %v7563 = vpop.f32.mrb[0].mxu0
        %v7564 = vadd.f32 %v7350, %v7563
        %v7565 = vpop.f32.mrb[0].mxu0
        %v7566 = vpop.f32.mrb[0].mxu0
        %v7567 = vadd.f32 %v7350, %v7566
        %v7568 = vpop.f32.mrb[0].mxu0
        %7569 = vmatprep.mubr.bf16.mxu0 0
        %7570 = vmatmul.mubr.bf16.gmra.mrb[0].mxu0 %v7420
        %v7571 = vpop.f32.mrb[0].mxu0
        %v7572 = vadd.f32 %v7350, %v7571
        %v7573 = vpop.f32.mrb[0].mxu0
        %v7574 = vpop.f32.mrb[0].mxu0
        %v7575 = vadd.f32 %v7350, %v7574
        %v7576 = vpop.f32.mrb[0].mxu0
        %7577 = vmatprep.mubr.bf16.mxu0 0
        %7578 = vmatmul.mubr.bf16.gmra.mrb[0].mxu0 %v7423
        %v7579 = vpop.f32.mrb[0].mxu0
        %v7580 = vadd.f32 %v7350, %v7579
        %v7581 = vpop.f32.mrb[0].mxu0
        %v7582 = vpop.f32.mrb[0].mxu0
        %v7583 = vadd.f32 %v7350, %v7582
        %v7584 = vpop.f32.mrb[0].mxu0
        %7585 = vdwg.mxu0
        %v7586 = vadd.f32 %v7009, %v7460
        %v7587 = vadd.f32 %v7010, %v7463
        %v7588 = vadd.f32 %v7011, %v7468
        %v7589 = vadd.f32 %v7012, %v7471
        %v7590 = vadd.f32 %v7013, %v7476
        %v7591 = vadd.f32 %v7014, %v7479
        %v7592 = vadd.f32 %v7015, %v7484
        %v7593 = vadd.f32 %v7016, %v7487
        %v7594 = vadd.f32 %v7017, %v7492
        %v7595 = vadd.f32 %v7018, %v7495
        %v7596 = vadd.f32 %v7019, %v7500
        %v7597 = vadd.f32 %v7020, %v7503
        %v7598 = vadd.f32 %v7021, %v7508
        %v7599 = vadd.f32 %v7022, %v7511
        %v7600 = vadd.f32 %v7023, %v7516
        %v7601 = vadd.f32 %v7024, %v7519
        %v7602 = vadd.f32 %v7025, %v7524
        %v7603 = vadd.f32 %v7026, %v7527
        %v7604 = vadd.f32 %v7027, %v7532
        %v7605 = vadd.f32 %v7028, %v7535
        %v7606 = vadd.f32 %v7029, %v7540
        %v7607 = vadd.f32 %v7030, %v7543
        %v7608 = vadd.f32 %v7031, %v7548
        %v7609 = vadd.f32 %v7032, %v7551
        %v7610 = vadd.f32 %v7033, %v7556
        %v7611 = vadd.f32 %v7034, %v7559
        %v7612 = vadd.f32 %v7035, %v7564
        %v7613 = vadd.f32 %v7036, %v7567
        %v7614 = vadd.f32 %v7037, %v7572
        %v7615 = vadd.f32 %v7038, %v7575
        %v7616 = vadd.f32 %v7039, %v7580
        %v7617 = vadd.f32 %v7040, %v7583
        %v7618 = vld [vmem:[%s775] sm:$0x1]
        %v7619 = vld [vmem:[%s778] sm:$0x1]
        %v7620 = vsel %vm1148, %v7586, 0.0
        %7621 = vadd.xlane.f32.xlu0 %v7620
        %v7622 = vpop.xlane.xlu0 %7621
        %v7623 = vsel %vm1148, %v7587, 0.0
        %7624 = vadd.xlane.f32.xlu0 %v7623
        %v7625 = vpop.xlane.xlu0 %7624
        %v7626 = vsel %vm1148, %v7588, 0.0
        %7627 = vadd.xlane.f32.xlu0 %v7626
        %v7628 = vpop.xlane.xlu0 %7627
        %v7629 = vsel %vm1148, %v7589, 0.0
        %7630 = vadd.xlane.f32.xlu0 %v7629
        %v7631 = vpop.xlane.xlu0 %7630
        %v7632 = vsel %vm1148, %v7590, 0.0
        %7633 = vadd.xlane.f32.xlu0 %v7632
        %v7634 = vpop.xlane.xlu0 %7633
        %v7635 = vsel %vm1148, %v7591, 0.0
        %7636 = vadd.xlane.f32.xlu0 %v7635
        %v7637 = vpop.xlane.xlu0 %7636
        %v7638 = vsel %vm1148, %v7592, 0.0
        %7639 = vadd.xlane.f32.xlu0 %v7638
        %v7640 = vpop.xlane.xlu0 %7639
        %v7641 = vsel %vm1148, %v7593, 0.0
        %7642 = vadd.xlane.f32.xlu0 %v7641
        %v7643 = vpop.xlane.xlu0 %7642
        %v7644 = vsel %vm1148, %v7594, 0.0
        %7645 = vadd.xlane.f32.xlu0 %v7644
        %v7646 = vpop.xlane.xlu0 %7645
        %v7647 = vsel %vm1148, %v7595, 0.0
        %7648 = vadd.xlane.f32.xlu0 %v7647
        %v7649 = vpop.xlane.xlu0 %7648
        %v7650 = vsel %vm1148, %v7596, 0.0
        %7651 = vadd.xlane.f32.xlu0 %v7650
        %v7652 = vpop.xlane.xlu0 %7651
        %v7653 = vsel %vm1148, %v7597, 0.0
        %7654 = vadd.xlane.f32.xlu0 %v7653
        %v7655 = vpop.xlane.xlu0 %7654
        %v7656 = vsel %vm1148, %v7598, 0.0
        %7657 = vadd.xlane.f32.xlu0 %v7656
        %v7658 = vpop.xlane.xlu0 %7657
        %v7659 = vsel %vm1148, %v7599, 0.0
        %7660 = vadd.xlane.f32.xlu0 %v7659
        %v7661 = vpop.xlane.xlu0 %7660
        %v7662 = vsel %vm1148, %v7600, 0.0
        %7663 = vadd.xlane.f32.xlu0 %v7662
        %v7664 = vpop.xlane.xlu0 %7663
        %v7665 = vsel %vm1148, %v7601, 0.0
        %7666 = vadd.xlane.f32.xlu0 %v7665
        %v7667 = vpop.xlane.xlu0 %7666
        %v7668 = vsel %vm1148, %v7602, 0.0
        %7669 = vadd.xlane.f32.xlu0 %v7668
        %v7670 = vpop.xlane.xlu0 %7669
        %v7671 = vsel %vm1148, %v7603, 0.0
        %7672 = vadd.xlane.f32.xlu0 %v7671
        %v7673 = vpop.xlane.xlu0 %7672
        %v7674 = vsel %vm1148, %v7604, 0.0
        %7675 = vadd.xlane.f32.xlu0 %v7674
        %v7676 = vpop.xlane.xlu0 %7675
        %v7677 = vsel %vm1148, %v7605, 0.0
        %7678 = vadd.xlane.f32.xlu0 %v7677
        %v7679 = vpop.xlane.xlu0 %7678
        %v7680 = vsel %vm1148, %v7606, 0.0
        %7681 = vadd.xlane.f32.xlu0 %v7680
        %v7682 = vpop.xlane.xlu0 %7681
        %v7683 = vsel %vm1148, %v7607, 0.0
        %7684 = vadd.xlane.f32.xlu0 %v7683
        %v7685 = vpop.xlane.xlu0 %7684
        %v7686 = vsel %vm1148, %v7608, 0.0
        %7687 = vadd.xlane.f32.xlu0 %v7686
        %v7688 = vpop.xlane.xlu0 %7687
        %v7689 = vsel %vm1148, %v7609, 0.0
        %7690 = vadd.xlane.f32.xlu0 %v7689
        %v7691 = vpop.xlane.xlu0 %7690
        %v7692 = vsel %vm1148, %v7610, 0.0
        %7693 = vadd.xlane.f32.xlu0 %v7692
        %v7694 = vpop.xlane.xlu0 %7693
        %v7695 = vsel %vm1148, %v7611, 0.0
        %7696 = vadd.xlane.f32.xlu0 %v7695
        %v7697 = vpop.xlane.xlu0 %7696
        %v7698 = vsel %vm1148, %v7612, 0.0
        %7699 = vadd.xlane.f32.xlu0 %v7698
        %v7700 = vpop.xlane.xlu0 %7699
        %v7701 = vsel %vm1148, %v7613, 0.0
        %7702 = vadd.xlane.f32.xlu0 %v7701
        %v7703 = vpop.xlane.xlu0 %7702
        %v7704 = vsel %vm1148, %v7614, 0.0
        %7705 = vadd.xlane.f32.xlu0 %v7704
        %v7706 = vpop.xlane.xlu0 %7705
        %v7707 = vsel %vm1148, %v7615, 0.0
        %7708 = vadd.xlane.f32.xlu0 %v7707
        %v7709 = vpop.xlane.xlu0 %7708
        %v7710 = vsel %vm1148, %v7616, 0.0
        %7711 = vadd.xlane.f32.xlu0 %v7710
        %v7712 = vpop.xlane.xlu0 %7711
        %v7713 = vsel %vm1148, %v7617, 0.0
        %7714 = vadd.xlane.f32.xlu0 %v7713
        %v7715 = vpop.xlane.xlu0 %7714
        %v7716 = vmul.f32 %v7622, %v6644
        %v7717 = vmul.f32 %v7625, %v6644
        %v7718 = vmul.f32 %v7628, %v6644
        %v7719 = vmul.f32 %v7631, %v6644
        %v7720 = vmul.f32 %v7634, %v6644
        %v7721 = vmul.f32 %v7637, %v6644
        %v7722 = vmul.f32 %v7640, %v6644
        %v7723 = vmul.f32 %v7643, %v6644
        %v7724 = vmul.f32 %v7646, %v6644
        %v7725 = vmul.f32 %v7649, %v6644
        %v7726 = vmul.f32 %v7652, %v6644
        %v7727 = vmul.f32 %v7655, %v6644
        %v7728 = vmul.f32 %v7658, %v6644
        %v7729 = vmul.f32 %v7661, %v6644
        %v7730 = vmul.f32 %v7664, %v6644
        %v7731 = vmul.f32 %v7667, %v6644
        %v7732 = vmul.f32 %v7670, %v6644
        %v7733 = vmul.f32 %v7673, %v6644
        %v7734 = vmul.f32 %v7676, %v6644
        %v7735 = vmul.f32 %v7679, %v6644
        %v7736 = vmul.f32 %v7682, %v6644
        %v7737 = vmul.f32 %v7685, %v6644
        %v7738 = vmul.f32 %v7688, %v6644
        %v7739 = vmul.f32 %v7691, %v6644
        %v7740 = vmul.f32 %v7694, %v6644
        %v7741 = vmul.f32 %v7697, %v6644
        %v7742 = vmul.f32 %v7700, %v6644
        %v7743 = vmul.f32 %v7703, %v6644
        %v7744 = vmul.f32 %v7706, %v6644
        %v7745 = vmul.f32 %v7709, %v6644
        %v7746 = vmul.f32 %v7712, %v6644
        %v7747 = vmul.f32 %v7715, %v6644
        %v7748 = vsub.f32 %v7586, %v7716
        %v7749 = vsub.f32 %v7587, %v7717
        %v7750 = vsub.f32 %v7588, %v7718
        %v7751 = vsub.f32 %v7589, %v7719
        %v7752 = vsub.f32 %v7590, %v7720
        %v7753 = vsub.f32 %v7591, %v7721
        %v7754 = vsub.f32 %v7592, %v7722
        %v7755 = vsub.f32 %v7593, %v7723
        %v7756 = vsub.f32 %v7594, %v7724
        %v7757 = vsub.f32 %v7595, %v7725
        %v7758 = vsub.f32 %v7596, %v7726
        %v7759 = vsub.f32 %v7597, %v7727
        %v7760 = vsub.f32 %v7598, %v7728
        %v7761 = vsub.f32 %v7599, %v7729
        %v7762 = vsub.f32 %v7600, %v7730
        %v7763 = vsub.f32 %v7601, %v7731
        %v7764 = vsub.f32 %v7602, %v7732
        %v7765 = vsub.f32 %v7603, %v7733
        %v7766 = vsub.f32 %v7604, %v7734
        %v7767 = vsub.f32 %v7605, %v7735
        %v7768 = vsub.f32 %v7606, %v7736
        %v7769 = vsub.f32 %v7607, %v7737
        %v7770 = vsub.f32 %v7608, %v7738
        %v7771 = vsub.f32 %v7609, %v7739
        %v7772 = vsub.f32 %v7610, %v7740
        %v7773 = vsub.f32 %v7611, %v7741
        %v7774 = vsub.f32 %v7612, %v7742
        %v7775 = vsub.f32 %v7613, %v7743
        %v7776 = vsub.f32 %v7614, %v7744
        %v7777 = vsub.f32 %v7615, %v7745
        %v7778 = vsub.f32 %v7616, %v7746
        %v7779 = vsub.f32 %v7617, %v7747
        %v7780 = vmul.f32 %v7748, %v7748
        %v7781 = vmul.f32 %v7749, %v7749
        %v7782 = vmul.f32 %v7750, %v7750
        %v7783 = vmul.f32 %v7751, %v7751
        %v7784 = vmul.f32 %v7752, %v7752
        %v7785 = vmul.f32 %v7753, %v7753
        %v7786 = vmul.f32 %v7754, %v7754
        %v7787 = vmul.f32 %v7755, %v7755
        %v7788 = vmul.f32 %v7756, %v7756
        %v7789 = vmul.f32 %v7757, %v7757
        %v7790 = vmul.f32 %v7758, %v7758
        %v7791 = vmul.f32 %v7759, %v7759
        %v7792 = vmul.f32 %v7760, %v7760
        %v7793 = vmul.f32 %v7761, %v7761
        %v7794 = vmul.f32 %v7762, %v7762
        %v7795 = vmul.f32 %v7763, %v7763
        %v7796 = vmul.f32 %v7764, %v7764
        %v7797 = vmul.f32 %v7765, %v7765
        %v7798 = vmul.f32 %v7766, %v7766
        %v7799 = vmul.f32 %v7767, %v7767
        %v7800 = vmul.f32 %v7768, %v7768
        %v7801 = vmul.f32 %v7769, %v7769
        %v7802 = vmul.f32 %v7770, %v7770
        %v7803 = vmul.f32 %v7771, %v7771
        %v7804 = vmul.f32 %v7772, %v7772
        %v7805 = vmul.f32 %v7773, %v7773
        %v7806 = vmul.f32 %v7774, %v7774
        %v7807 = vmul.f32 %v7775, %v7775
        %v7808 = vmul.f32 %v7776, %v7776
        %v7809 = vmul.f32 %v7777, %v7777
        %v7810 = vmul.f32 %v7778, %v7778
        %v7811 = vmul.f32 %v7779, %v7779
        %v7812 = vsel %vm1148, %v7780, 0.0
        %7813 = vadd.xlane.f32.xlu0 %v7812
        %v7814 = vpop.xlane.xlu0 %7813
        %v7815 = vsel %vm1148, %v7781, 0.0
        %7816 = vadd.xlane.f32.xlu0 %v7815
        %v7817 = vpop.xlane.xlu0 %7816
        %v7818 = vsel %vm1148, %v7782, 0.0
        %7819 = vadd.xlane.f32.xlu0 %v7818
        %v7820 = vpop.xlane.xlu0 %7819
        %v7821 = vsel %vm1148, %v7783, 0.0
        %7822 = vadd.xlane.f32.xlu0 %v7821
        %v7823 = vpop.xlane.xlu0 %7822
        %v7824 = vsel %vm1148, %v7784, 0.0
        %7825 = vadd.xlane.f32.xlu0 %v7824
        %v7826 = vpop.xlane.xlu0 %7825
        %v7827 = vsel %vm1148, %v7785, 0.0
        %7828 = vadd.xlane.f32.xlu0 %v7827
        %v7829 = vpop.xlane.xlu0 %7828
        %v7830 = vsel %vm1148, %v7786, 0.0
        %7831 = vadd.xlane.f32.xlu0 %v7830
        %v7832 = vpop.xlane.xlu0 %7831
        %v7833 = vsel %vm1148, %v7787, 0.0
        %7834 = vadd.xlane.f32.xlu0 %v7833
        %v7835 = vpop.xlane.xlu0 %7834
        %v7836 = vsel %vm1148, %v7788, 0.0
        %7837 = vadd.xlane.f32.xlu0 %v7836
        %v7838 = vpop.xlane.xlu0 %7837
        %v7839 = vsel %vm1148, %v7789, 0.0
        %7840 = vadd.xlane.f32.xlu0 %v7839
        %v7841 = vpop.xlane.xlu0 %7840
        %v7842 = vsel %vm1148, %v7790, 0.0
        %7843 = vadd.xlane.f32.xlu0 %v7842
        %v7844 = vpop.xlane.xlu0 %7843
        %v7845 = vsel %vm1148, %v7791, 0.0
        %7846 = vadd.xlane.f32.xlu0 %v7845
        %v7847 = vpop.xlane.xlu0 %7846
        %v7848 = vsel %vm1148, %v7792, 0.0
        %7849 = vadd.xlane.f32.xlu0 %v7848
        %v7850 = vpop.xlane.xlu0 %7849
        %v7851 = vsel %vm1148, %v7793, 0.0
        %7852 = vadd.xlane.f32.xlu0 %v7851
        %v7853 = vpop.xlane.xlu0 %7852
        %v7854 = vsel %vm1148, %v7794, 0.0
        %7855 = vadd.xlane.f32.xlu0 %v7854
        %v7856 = vpop.xlane.xlu0 %7855
        %v7857 = vsel %vm1148, %v7795, 0.0
        %7858 = vadd.xlane.f32.xlu0 %v7857
        %v7859 = vpop.xlane.xlu0 %7858
        %v7860 = vsel %vm1148, %v7796, 0.0
        %7861 = vadd.xlane.f32.xlu0 %v7860
        %v7862 = vpop.xlane.xlu0 %7861
        %v7863 = vsel %vm1148, %v7797, 0.0
        %7864 = vadd.xlane.f32.xlu0 %v7863
        %v7865 = vpop.xlane.xlu0 %7864
        %v7866 = vsel %vm1148, %v7798, 0.0
        %7867 = vadd.xlane.f32.xlu0 %v7866
        %v7868 = vpop.xlane.xlu0 %7867
        %v7869 = vsel %vm1148, %v7799, 0.0
        %7870 = vadd.xlane.f32.xlu0 %v7869
        %v7871 = vpop.xlane.xlu0 %7870
        %v7872 = vsel %vm1148, %v7800, 0.0
        %7873 = vadd.xlane.f32.xlu0 %v7872
        %v7874 = vpop.xlane.xlu0 %7873
        %v7875 = vsel %vm1148, %v7801, 0.0
        %7876 = vadd.xlane.f32.xlu0 %v7875
        %v7877 = vpop.xlane.xlu0 %7876
        %v7878 = vsel %vm1148, %v7802, 0.0
        %7879 = vadd.xlane.f32.xlu0 %v7878
        %v7880 = vpop.xlane.xlu0 %7879
        %v7881 = vsel %vm1148, %v7803, 0.0
        %7882 = vadd.xlane.f32.xlu0 %v7881
        %v7883 = vpop.xlane.xlu0 %7882
        %v7884 = vsel %vm1148, %v7804, 0.0
        %7885 = vadd.xlane.f32.xlu0 %v7884
        %v7886 = vpop.xlane.xlu0 %7885
        %v7887 = vsel %vm1148, %v7805, 0.0
        %7888 = vadd.xlane.f32.xlu0 %v7887
        %v7889 = vpop.xlane.xlu0 %7888
        %v7890 = vsel %vm1148, %v7806, 0.0
        %7891 = vadd.xlane.f32.xlu0 %v7890
        %v7892 = vpop.xlane.xlu0 %7891
        %v7893 = vsel %vm1148, %v7807, 0.0
        %7894 = vadd.xlane.f32.xlu0 %v7893
        %v7895 = vpop.xlane.xlu0 %7894
        %v7896 = vsel %vm1148, %v7808, 0.0
        %7897 = vadd.xlane.f32.xlu0 %v7896
        %v7898 = vpop.xlane.xlu0 %7897
        %v7899 = vsel %vm1148, %v7809, 0.0
        %7900 = vadd.xlane.f32.xlu0 %v7899
        %v7901 = vpop.xlane.xlu0 %7900
        %v7902 = vsel %vm1148, %v7810, 0.0
        %7903 = vadd.xlane.f32.xlu0 %v7902
        %v7904 = vpop.xlane.xlu0 %7903
        %v7905 = vsel %vm1148, %v7811, 0.0
        %7906 = vadd.xlane.f32.xlu0 %v7905
        %v7907 = vpop.xlane.xlu0 %7906
        %v7908 = vmul.f32 %v7814, %v6644
        %v7909 = vmul.f32 %v7817, %v6644
        %v7910 = vmul.f32 %v7820, %v6644
        %v7911 = vmul.f32 %v7823, %v6644
        %v7912 = vmul.f32 %v7826, %v6644
        %v7913 = vmul.f32 %v7829, %v6644
        %v7914 = vmul.f32 %v7832, %v6644
        %v7915 = vmul.f32 %v7835, %v6644
        %v7916 = vmul.f32 %v7838, %v6644
        %v7917 = vmul.f32 %v7841, %v6644
        %v7918 = vmul.f32 %v7844, %v6644
        %v7919 = vmul.f32 %v7847, %v6644
        %v7920 = vmul.f32 %v7850, %v6644
        %v7921 = vmul.f32 %v7853, %v6644
        %v7922 = vmul.f32 %v7856, %v6644
        %v7923 = vmul.f32 %v7859, %v6644
        %v7924 = vmul.f32 %v7862, %v6644
        %v7925 = vmul.f32 %v7865, %v6644
        %v7926 = vmul.f32 %v7868, %v6644
        %v7927 = vmul.f32 %v7871, %v6644
        %v7928 = vmul.f32 %v7874, %v6644
        %v7929 = vmul.f32 %v7877, %v6644
        %v7930 = vmul.f32 %v7880, %v6644
        %v7931 = vmul.f32 %v7883, %v6644
        %v7932 = vmul.f32 %v7886, %v6644
        %v7933 = vmul.f32 %v7889, %v6644
        %v7934 = vmul.f32 %v7892, %v6644
        %v7935 = vmul.f32 %v7895, %v6644
        %v7936 = vmul.f32 %v7898, %v6644
        %v7937 = vmul.f32 %v7901, %v6644
        %v7938 = vmul.f32 %v7904, %v6644
        %v7939 = vmul.f32 %v7907, %v6644
        %v7940 = vadd.f32 %v7908, 1e-05
        %v7941 = vadd.f32 %v7909, 1e-05
        %v7942 = vadd.f32 %v7910, 1e-05
        %v7943 = vadd.f32 %v7911, 1e-05
        %v7944 = vadd.f32 %v7912, 1e-05
        %v7945 = vadd.f32 %v7913, 1e-05
        %v7946 = vadd.f32 %v7914, 1e-05
        %v7947 = vadd.f32 %v7915, 1e-05
        %v7948 = vadd.f32 %v7916, 1e-05
        %v7949 = vadd.f32 %v7917, 1e-05
        %v7950 = vadd.f32 %v7918, 1e-05
        %v7951 = vadd.f32 %v7919, 1e-05
        %v7952 = vadd.f32 %v7920, 1e-05
        %v7953 = vadd.f32 %v7921, 1e-05
        %v7954 = vadd.f32 %v7922, 1e-05
        %v7955 = vadd.f32 %v7923, 1e-05
        %v7956 = vadd.f32 %v7924, 1e-05
        %v7957 = vadd.f32 %v7925, 1e-05
        %v7958 = vadd.f32 %v7926, 1e-05
        %v7959 = vadd.f32 %v7927, 1e-05
        %v7960 = vadd.f32 %v7928, 1e-05
        %v7961 = vadd.f32 %v7929, 1e-05
        %v7962 = vadd.f32 %v7930, 1e-05
        %v7963 = vadd.f32 %v7931, 1e-05
        %v7964 = vadd.f32 %v7932, 1e-05
        %v7965 = vadd.f32 %v7933, 1e-05
        %v7966 = vadd.f32 %v7934, 1e-05
        %v7967 = vadd.f32 %v7935, 1e-05
        %v7968 = vadd.f32 %v7936, 1e-05
        %v7969 = vadd.f32 %v7937, 1e-05
        %v7970 = vadd.f32 %v7938, 1e-05
        %v7971 = vadd.f32 %v7939, 1e-05
        %v7972 = vrsqrt.pop %v7940
        %v7973 = vrsqrt.pop %v7941
        %v7974 = vrsqrt.pop %v7942
        %v7975 = vrsqrt.pop %v7943
        %v7976 = vrsqrt.pop %v7944
        %v7977 = vrsqrt.pop %v7945
        %v7978 = vrsqrt.pop %v7946
        %v7979 = vrsqrt.pop %v7947
        %v7980 = vrsqrt.pop %v7948
        %v7981 = vrsqrt.pop %v7949
        %v7982 = vrsqrt.pop %v7950
        %v7983 = vrsqrt.pop %v7951
        %v7984 = vrsqrt.pop %v7952
        %v7985 = vrsqrt.pop %v7953
        %v7986 = vrsqrt.pop %v7954
        %v7987 = vrsqrt.pop %v7955
        %v7988 = vrsqrt.pop %v7956
        %v7989 = vrsqrt.pop %v7957
        %v7990 = vrsqrt.pop %v7958
        %v7991 = vrsqrt.pop %v7959
        %v7992 = vrsqrt.pop %v7960
        %v7993 = vrsqrt.pop %v7961
        %v7994 = vrsqrt.pop %v7962
        %v7995 = vrsqrt.pop %v7963
        %v7996 = vrsqrt.pop %v7964
        %v7997 = vrsqrt.pop %v7965
        %v7998 = vrsqrt.pop %v7966
        %v7999 = vrsqrt.pop %v7967
        %v8000 = vrsqrt.pop %v7968
        %v8001 = vrsqrt.pop %v7969
        %v8002 = vrsqrt.pop %v7970
        %v8003 = vrsqrt.pop %v7971
        %v8004 = vmul.f32 %v7748, %v7972
        %v8005 = vmul.f32 %v7749, %v7973
        %v8006 = vmul.f32 %v7750, %v7974
        %v8007 = vmul.f32 %v7751, %v7975
        %v8008 = vmul.f32 %v7752, %v7976
        %v8009 = vmul.f32 %v7753, %v7977
        %v8010 = vmul.f32 %v7754, %v7978
        %v8011 = vmul.f32 %v7755, %v7979
        %v8012 = vmul.f32 %v7756, %v7980
        %v8013 = vmul.f32 %v7757, %v7981
        %v8014 = vmul.f32 %v7758, %v7982
        %v8015 = vmul.f32 %v7759, %v7983
        %v8016 = vmul.f32 %v7760, %v7984
        %v8017 = vmul.f32 %v7761, %v7985
        %v8018 = vmul.f32 %v7762, %v7986
        %v8019 = vmul.f32 %v7763, %v7987
        %v8020 = vmul.f32 %v7764, %v7988
        %v8021 = vmul.f32 %v7765, %v7989
        %v8022 = vmul.f32 %v7766, %v7990
        %v8023 = vmul.f32 %v7767, %v7991
        %v8024 = vmul.f32 %v7768, %v7992
        %v8025 = vmul.f32 %v7769, %v7993
        %v8026 = vmul.f32 %v7770, %v7994
        %v8027 = vmul.f32 %v7771, %v7995
        %v8028 = vmul.f32 %v7772, %v7996
        %v8029 = vmul.f32 %v7773, %v7997
        %v8030 = vmul.f32 %v7774, %v7998
        %v8031 = vmul.f32 %v7775, %v7999
        %v8032 = vmul.f32 %v7776, %v8000
        %v8033 = vmul.f32 %v7777, %v8001
        %v8034 = vmul.f32 %v7778, %v8002
        %v8035 = vmul.f32 %v7779, %v8003
        %v8037 = vlaneseq
        %v8038 = vshrl.u32 %v8037, 7
        %v8039 = vsub.s32 0, %v8038
        %v8040 = vrot.slane %v7618, %v8039
        %v8042 = vmul.f32 %v8004, %v8040
        %v8043 = vmul.f32 %v8005, %v8040
        %v8044 = vmul.f32 %v8006, %v8040
        %v8045 = vmul.f32 %v8007, %v8040
        %v8046 = vmul.f32 %v8008, %v8040
        %v8047 = vmul.f32 %v8009, %v8040
        %v8048 = vmul.f32 %v8010, %v8040
        %v8049 = vmul.f32 %v8011, %v8040
        %v8050 = vmul.f32 %v8012, %v8040
        %v8051 = vmul.f32 %v8013, %v8040
        %v8052 = vmul.f32 %v8014, %v8040
        %v8053 = vmul.f32 %v8015, %v8040
        %v8054 = vmul.f32 %v8016, %v8040
        %v8055 = vmul.f32 %v8017, %v8040
        %v8056 = vmul.f32 %v8018, %v8040
        %v8057 = vmul.f32 %v8019, %v8040
        %v8058 = vmul.f32 %v8020, %v8040
        %v8059 = vmul.f32 %v8021, %v8040
        %v8060 = vmul.f32 %v8022, %v8040
        %v8061 = vmul.f32 %v8023, %v8040
        %v8062 = vmul.f32 %v8024, %v8040
        %v8063 = vmul.f32 %v8025, %v8040
        %v8064 = vmul.f32 %v8026, %v8040
        %v8065 = vmul.f32 %v8027, %v8040
        %v8066 = vmul.f32 %v8028, %v8040
        %v8067 = vmul.f32 %v8029, %v8040
        %v8068 = vmul.f32 %v8030, %v8040
        %v8069 = vmul.f32 %v8031, %v8040
        %v8070 = vmul.f32 %v8032, %v8040
        %v8071 = vmul.f32 %v8033, %v8040
        %v8072 = vmul.f32 %v8034, %v8040
        %v8073 = vmul.f32 %v8035, %v8040
        %v8075 = vlaneseq
        %v8076 = vshrl.u32 %v8075, 7
        %v8077 = vsub.s32 0, %v8076
        %v8078 = vrot.slane %v7619, %v8077
        %v8080 = vadd.f32 %v8042, %v8078
        %v8081 = vadd.f32 %v8043, %v8078
        %v8082 = vadd.f32 %v8044, %v8078
        %v8083 = vadd.f32 %v8045, %v8078
        %v8084 = vadd.f32 %v8046, %v8078
        %v8085 = vadd.f32 %v8047, %v8078
        %v8086 = vadd.f32 %v8048, %v8078
        %v8087 = vadd.f32 %v8049, %v8078
        %v8088 = vadd.f32 %v8050, %v8078
        %v8089 = vadd.f32 %v8051, %v8078
        %v8090 = vadd.f32 %v8052, %v8078
        %v8091 = vadd.f32 %v8053, %v8078
        %v8092 = vadd.f32 %v8054, %v8078
        %v8093 = vadd.f32 %v8055, %v8078
        %v8094 = vadd.f32 %v8056, %v8078
        %v8095 = vadd.f32 %v8057, %v8078
        %v8096 = vadd.f32 %v8058, %v8078
        %v8097 = vadd.f32 %v8059, %v8078
        %v8098 = vadd.f32 %v8060, %v8078
        %v8099 = vadd.f32 %v8061, %v8078
        %v8100 = vadd.f32 %v8062, %v8078
        %v8101 = vadd.f32 %v8063, %v8078
        %v8102 = vadd.f32 %v8064, %v8078
        %v8103 = vadd.f32 %v8065, %v8078
        %v8104 = vadd.f32 %v8066, %v8078
        %v8105 = vadd.f32 %v8067, %v8078
        %v8106 = vadd.f32 %v8068, %v8078
        %v8107 = vadd.f32 %v8069, %v8078
        %v8108 = vadd.f32 %v8070, %v8078
        %v8109 = vadd.f32 %v8071, %v8078
        %v8110 = vadd.f32 %v8072, %v8078
        %v8111 = vadd.f32 %v8073, %v8078
        %8112 = vst.msk [vmem:[#allocation2] sm:$0xff] %vm1148, %v8080
        %8113 = vst.msk [vmem:[#allocation2 + $0x8] sm:$0xff] %vm1148, %v8081
        %8114 = vst.msk [vmem:[#allocation2 + $0x10] sm:$0xff] %vm1148, %v8082
        %8115 = vst.msk [vmem:[#allocation2 + $0x18] sm:$0xff] %vm1148, %v8083
        %8116 = vst.msk [vmem:[#allocation2 + $0x20] sm:$0xff] %vm1148, %v8084
        %8117 = vst.msk [vmem:[#allocation2 + $0x28] sm:$0xff] %vm1148, %v8085
        %8118 = vst.msk [vmem:[#allocation2 + $0x30] sm:$0xff] %vm1148, %v8086
        %8119 = vst.msk [vmem:[#allocation2 + $0x38] sm:$0xff] %vm1148, %v8087
        %8120 = vst.msk [vmem:[#allocation2 + $0x40] sm:$0xff] %vm1148, %v8088
        %8121 = vst.msk [vmem:[#allocation2 + $0x48] sm:$0xff] %vm1148, %v8089
        %8122 = vst.msk [vmem:[#allocation2 + $0x50] sm:$0xff] %vm1148, %v8090
        %8123 = vst.msk [vmem:[#allocation2 + $0x58] sm:$0xff] %vm1148, %v8091
        %8124 = vst.msk [vmem:[#allocation2 + $0x60] sm:$0xff] %vm1148, %v8092
        %8125 = vst.msk [vmem:[#allocation2 + $0x68] sm:$0xff] %vm1148, %v8093
        %8126 = vst.msk [vmem:[#allocation2 + $0x70] sm:$0xff] %vm1148, %v8094
        %8127 = vst.msk [vmem:[#allocation2 + $0x78] sm:$0xff] %vm1148, %v8095
        %8128 = vst.msk [vmem:[#allocation2 + $0x80] sm:$0xff] %vm1148, %v8096
        %8129 = vst.msk [vmem:[#allocation2 + $0x88] sm:$0xff] %vm1148, %v8097
        %8130 = vst.msk [vmem:[#allocation2 + $0x90] sm:$0xff] %vm1148, %v8098
        %8131 = vst.msk [vmem:[#allocation2 + $0x98] sm:$0xff] %vm1148, %v8099
        %8132 = vst.msk [vmem:[#allocation2 + $0xa0] sm:$0xff] %vm1148, %v8100
        %8133 = vst.msk [vmem:[#allocation2 + $0xa8] sm:$0xff] %vm1148, %v8101
        %8134 = vst.msk [vmem:[#allocation2 + $0xb0] sm:$0xff] %vm1148, %v8102
        %8135 = vst.msk [vmem:[#allocation2 + $0xb8] sm:$0xff] %vm1148, %v8103
        %8136 = vst.msk [vmem:[#allocation2 + $0xc0] sm:$0xff] %vm1148, %v8104
        %8137 = vst.msk [vmem:[#allocation2 + $0xc8] sm:$0xff] %vm1148, %v8105
        %8138 = vst.msk [vmem:[#allocation2 + $0xd0] sm:$0xff] %vm1148, %v8106
        %8139 = vst.msk [vmem:[#allocation2 + $0xd8] sm:$0xff] %vm1148, %v8107
        %8140 = vst.msk [vmem:[#allocation2 + $0xe0] sm:$0xff] %vm1148, %v8108
        %8141 = vst.msk [vmem:[#allocation2 + $0xe8] sm:$0xff] %vm1148, %v8109
        %8142 = vst.msk [vmem:[#allocation2 + $0xf0] sm:$0xff] %vm1148, %v8110
        %8143 = vst.msk [vmem:[#allocation2 + $0xf8] sm:$0xff] %vm1148, %v8111
        %p8144 = scmp.eq.s32.totalorder %s38, 1
        // Predicated region
        $region105: #{tpu_custom_call.1} parent=79 // pred_check
          %p8145 = pneg %p8144
        $region106: #{tpu_custom_call.1} parent=79 // pred_check_branch
          %8147 = sbr.rel (%p8145) target = $region108
        $region107: #{tpu_custom_call.1} parent=79 // pred_region
          %v8148 = vld [vmem:[#allocation2] sm:$0xff]
          %v8149 = vld [vmem:[#allocation2 + $0x8] sm:$0xff]
          %v8150 = vld [vmem:[#allocation2 + $0x10] sm:$0xff]
          %v8151 = vld [vmem:[#allocation2 + $0x18] sm:$0xff]
          %v8152 = vld [vmem:[#allocation2 + $0x20] sm:$0xff]
          %v8153 = vld [vmem:[#allocation2 + $0x28] sm:$0xff]
          %v8154 = vld [vmem:[#allocation2 + $0x30] sm:$0xff]
          %v8155 = vld [vmem:[#allocation2 + $0x38] sm:$0xff]
          %v8156 = vld [vmem:[#allocation2 + $0x40] sm:$0xff]
          %v8157 = vld [vmem:[#allocation2 + $0x48] sm:$0xff]
          %v8158 = vld [vmem:[#allocation2 + $0x50] sm:$0xff]
          %v8159 = vld [vmem:[#allocation2 + $0x58] sm:$0xff]
          %v8160 = vld [vmem:[#allocation2 + $0x60] sm:$0xff]
          %v8161 = vld [vmem:[#allocation2 + $0x68] sm:$0xff]
          %v8162 = vld [vmem:[#allocation2 + $0x70] sm:$0xff]
          %v8163 = vld [vmem:[#allocation2 + $0x78] sm:$0xff]
          %v8164 = vld [vmem:[#allocation2 + $0x80] sm:$0xff]
          %v8165 = vld [vmem:[#allocation2 + $0x88] sm:$0xff]
          %v8166 = vld [vmem:[#allocation2 + $0x90] sm:$0xff]
          %v8167 = vld [vmem:[#allocation2 + $0x98] sm:$0xff]
          %v8168 = vld [vmem:[#allocation2 + $0xa0] sm:$0xff]
          %v8169 = vld [vmem:[#allocation2 + $0xa8] sm:$0xff]
          %v8170 = vld [vmem:[#allocation2 + $0xb0] sm:$0xff]
          %v8171 = vld [vmem:[#allocation2 + $0xb8] sm:$0xff]
          %v8172 = vld [vmem:[#allocation2 + $0xc0] sm:$0xff]
          %v8173 = vld [vmem:[#allocation2 + $0xc8] sm:$0xff]
          %v8174 = vld [vmem:[#allocation2 + $0xd0] sm:$0xff]
          %v8175 = vld [vmem:[#allocation2 + $0xd8] sm:$0xff]
          %v8176 = vld [vmem:[#allocation2 + $0xe0] sm:$0xff]
          %v8177 = vld [vmem:[#allocation2 + $0xe8] sm:$0xff]
          %v8178 = vld [vmem:[#allocation2 + $0xf0] sm:$0xff]
          %v8179 = vld [vmem:[#allocation2 + $0xf8] sm:$0xff]
          %8180 = vxpose.xlu0.b32.start [1/16] %v8148, 128
          %8181 = vxpose.xlu0.b32.cont [2/16] %v8149, 128
          %8182 = vxpose.xlu0.b32.cont [3/16] %v8150, 128
          %8183 = vxpose.xlu0.b32.cont [4/16] %v8151, 128
          %8184 = vxpose.xlu0.b32.cont [5/16] %v8152, 128
          %8185 = vxpose.xlu0.b32.cont [6/16] %v8153, 128
          %8186 = vxpose.xlu0.b32.cont [7/16] %v8154, 128
          %8187 = vxpose.xlu0.b32.cont [8/16] %v8155, 128
          %8188 = vxpose.xlu0.b32.cont [9/16] %v8156, 128
          %8189 = vxpose.xlu0.b32.cont [10/16] %v8157, 128
          %8190 = vxpose.xlu0.b32.cont [11/16] %v8158, 128
          %8191 = vxpose.xlu0.b32.cont [12/16] %v8159, 128
          %8192 = vxpose.xlu0.b32.cont [13/16] %v8160, 128
          %8193 = vxpose.xlu0.b32.cont [14/16] %v8161, 128
          %8194 = vxpose.xlu0.b32.cont [15/16] %v8162, 128
          %8195 = vxpose.xlu0.b32.end [16/16] %v8163, 128
          %v8196 = vpop.trf.xlu0
          %v8197 = vpop.trf.xlu0
          %v8198 = vpop.trf.xlu0
          %v8199 = vpop.trf.xlu0
          %v8200 = vpop.trf.xlu0
          %v8201 = vpop.trf.xlu0
          %v8202 = vpop.trf.xlu0
          %v8203 = vpop.trf.xlu0
          %v8204 = vpop.trf.xlu0
          %v8205 = vpop.trf.xlu0
          %v8206 = vpop.trf.xlu0
          %v8207 = vpop.trf.xlu0
          %v8208 = vpop.trf.xlu0
          %v8209 = vpop.trf.xlu0
          %v8210 = vpop.trf.xlu0
          %v8211 = vpop.trf.xlu0
          %8212 = vxpose.xlu0.b32.start [1/16] %v8164, 128
          %8213 = vxpose.xlu0.b32.cont [2/16] %v8165, 128
          %8214 = vxpose.xlu0.b32.cont [3/16] %v8166, 128
          %8215 = vxpose.xlu0.b32.cont [4/16] %v8167, 128
          %8216 = vxpose.xlu0.b32.cont [5/16] %v8168, 128
          %8217 = vxpose.xlu0.b32.cont [6/16] %v8169, 128
          %8218 = vxpose.xlu0.b32.cont [7/16] %v8170, 128
          %8219 = vxpose.xlu0.b32.cont [8/16] %v8171, 128
          %8220 = vxpose.xlu0.b32.cont [9/16] %v8172, 128
          %8221 = vxpose.xlu0.b32.cont [10/16] %v8173, 128
          %8222 = vxpose.xlu0.b32.cont [11/16] %v8174, 128
          %8223 = vxpose.xlu0.b32.cont [12/16] %v8175, 128
          %8224 = vxpose.xlu0.b32.cont [13/16] %v8176, 128
          %8225 = vxpose.xlu0.b32.cont [14/16] %v8177, 128
          %8226 = vxpose.xlu0.b32.cont [15/16] %v8178, 128
          %8227 = vxpose.xlu0.b32.end [16/16] %v8179, 128
          %v8228 = vpop.trf.xlu0
          %v8229 = vpop.trf.xlu0
          %v8230 = vpop.trf.xlu0
          %v8231 = vpop.trf.xlu0
          %v8232 = vpop.trf.xlu0
          %v8233 = vpop.trf.xlu0
          %v8234 = vpop.trf.xlu0
          %v8235 = vpop.trf.xlu0
          %v8236 = vpop.trf.xlu0
          %v8237 = vpop.trf.xlu0
          %v8238 = vpop.trf.xlu0
          %v8239 = vpop.trf.xlu0
          %v8240 = vpop.trf.xlu0
          %v8241 = vpop.trf.xlu0
          %v8242 = vpop.trf.xlu0
          %v8243 = vpop.trf.xlu0
          %v8244 = vadd.f32 %v8196, %v8228
          %8245 = vadd.xlane.f32.xlu0 %v8244
          %v8246 = vpop.xlane.xlu0 %8245
          %v8247 = vadd.f32 %v8197, %v8229
          %8248 = vadd.xlane.f32.xlu0 %v8247
          %v8249 = vpop.xlane.xlu0 %8248
          %v8250 = vadd.f32 %v8198, %v8230
          %8251 = vadd.xlane.f32.xlu0 %v8250
          %v8252 = vpop.xlane.xlu0 %8251
          %v8253 = vadd.f32 %v8199, %v8231
          %8254 = vadd.xlane.f32.xlu0 %v8253
          %v8255 = vpop.xlane.xlu0 %8254
          %v8256 = vrcp.pop 256.0
          %v8257 = vmul.f32 %v8246, %v8256
          %v8258 = vmul.f32 %v8249, %v8256
          %v8259 = vmul.f32 %v8252, %v8256
          %v8260 = vmul.f32 %v8255, %v8256
          %v8261 = vsub.f32 %v8196, %v8257
          %v8262 = vsub.f32 %v8228, %v8257
          %v8263 = vsub.f32 %v8197, %v8258
          %v8264 = vsub.f32 %v8229, %v8258
          %v8265 = vsub.f32 %v8198, %v8259
          %v8266 = vsub.f32 %v8230, %v8259
          %v8267 = vsub.f32 %v8199, %v8260
          %v8268 = vsub.f32 %v8231, %v8260
          %v8269 = vmul.f32 %v8261, %v8261
          %v8270 = vmul.f32 %v8262, %v8262
          %v8271 = vmul.f32 %v8263, %v8263
          %v8272 = vmul.f32 %v8264, %v8264
          %v8273 = vmul.f32 %v8265, %v8265
          %v8274 = vmul.f32 %v8266, %v8266
          %v8275 = vmul.f32 %v8267, %v8267
          %v8276 = vmul.f32 %v8268, %v8268
          %v8277 = vadd.f32 %v8269, %v8270
          %8278 = vadd.xlane.f32.xlu0 %v8277
          %v8279 = vpop.xlane.xlu0 %8278
          %v8280 = vadd.f32 %v8271, %v8272
          %8281 = vadd.xlane.f32.xlu0 %v8280
          %v8282 = vpop.xlane.xlu0 %8281
          %v8283 = vadd.f32 %v8273, %v8274
          %8284 = vadd.xlane.f32.xlu0 %v8283
          %v8285 = vpop.xlane.xlu0 %8284
          %v8286 = vadd.f32 %v8275, %v8276
          %8287 = vadd.xlane.f32.xlu0 %v8286
          %v8288 = vpop.xlane.xlu0 %8287
          %v8289 = vmul.f32 %v8279, %v8256
          %v8290 = vmul.f32 %v8282, %v8256
          %v8291 = vmul.f32 %v8285, %v8256
          %v8292 = vmul.f32 %v8288, %v8256
          %v8293 = vadd.f32 %v8289, 1e-05
          %v8294 = vadd.f32 %v8290, 1e-05
          %v8295 = vadd.f32 %v8291, 1e-05
          %v8296 = vadd.f32 %v8292, 1e-05
          %v8297 = vrsqrt.pop %v8293
          %v8298 = vrsqrt.pop %v8294
          %v8299 = vrsqrt.pop %v8295
          %v8300 = vrsqrt.pop %v8296
          %v8301 = vmul.f32 %v8261, %v8297
          %v8302 = vmul.f32 %v8262, %v8297
          %v8303 = vmul.f32 %v8263, %v8298
          %v8304 = vmul.f32 %v8264, %v8298
          %v8305 = vmul.f32 %v8265, %v8299
          %v8306 = vmul.f32 %v8266, %v8299
          %v8307 = vmul.f32 %v8267, %v8300
          %v8308 = vmul.f32 %v8268, %v8300
          %8309 = vst [vmem:[%s743] sm:$0xff] %v8301
          %8310 = vst [vmem:[%s743 + $0x8] sm:$0xff] %v8302
          %8311 = vst [vmem:[%s743 + $0x10] sm:$0xff] %v8303
          %8312 = vst [vmem:[%s743 + $0x18] sm:$0xff] %v8304
          %8313 = vst [vmem:[%s743 + $0x20] sm:$0xff] %v8305
          %8314 = vst [vmem:[%s743 + $0x28] sm:$0xff] %v8306
          %8315 = vst [vmem:[%s743 + $0x30] sm:$0xff] %v8307
          %8316 = vst [vmem:[%s743 + $0x38] sm:$0xff] %v8308
        $region108: #{tpu_custom_call.1} parent=79 // pred_fallthru
          _
        %s8317 = sand.u32 %s433, 1
        %s8318 = scalar_lea.sflag [#allocation6], %s8317
        %s8319 = sand.u32 %s433, 1
        %s8320 = smul.addr %s8319, 64
        %s8321 = scalar_lea.vmem [#allocation12], %s8320
        // Predicated region
        $region109: #{tpu_custom_call.1} parent=79 // pred_check
          %p8322 = pneg %p443
        $region110: #{tpu_custom_call.1} parent=79 // pred_check_branch
          %8324 = sbr.rel (%p8322) target = $region112
        $region111: #{tpu_custom_call.1} parent=79 // pred_region
          %s8326 = ssub.s32 1024, 1024
          %8327 = vsyncadd %s8318, %s8326
          %s8328 = smul.addr %s37, 8
          %s8329 = smul.addr %s8328, 128
          %s8330 = scalar_lea.hbm %s15, %s8329
          %s8331 = sshll.u32 %s8321, 4
          %s8332 = int_to_ptr.vmem [resolvable:$true] %s8331
          %8337 = dma.vmem_to_hbm [thread:$0]  %s8332, 1024, %s8330, %s8318, 256, 256, 16
        $region112: #{tpu_custom_call.1} parent=79 // pred_fallthru
          _
      $region80: #{tpu_custom_call.1} parent=5 // pred_fallthru
        _
      %p8338 = scmp.le.s32.totalorder 2, %s28
      // Predicated region
      $region113: #{tpu_custom_call.1} parent=5 // pred_check
        %p8339 = pneg %p8338
      $region114: #{tpu_custom_call.1} parent=5 // pred_check_branch
        %8341 = sbr.rel (%p8339) target = $region116
      $region115: #{tpu_custom_call.1} parent=5 // pred_region
        %s8342 = ssub.s32 %s28, 2
        // Predicated region
        $region117: #{tpu_custom_call.1} parent=115 // pred_check
          %p8343 = pneg %p449
        $region118: #{tpu_custom_call.1} parent=115 // pred_check_branch
          %8345 = sbr.rel (%p8343) target = $region120
        $region119: #{tpu_custom_call.1} parent=115 // pred_region
          %s8346 = sand.u32 %s434, 1
          %s8347 = scalar_lea.sflag [#allocation6], %s8346
          %s8348 = sand.u32 %s434, 1
          %s8349 = smul.addr %s8348, 64
          %s8350 = scalar_lea.vmem [#allocation12], %s8349
          %8351 = dma.done %s8347, 1024
        $region120: #{tpu_custom_call.1} parent=115 // pred_fallthru
          _
      $region116: #{tpu_custom_call.1} parent=5 // pred_fallthru
        _
    $region6: #{tpu_custom_call.1} parent=1 // loop_footer
      %s32 = sadd.s32 1, %s28
    $region7: #{tpu_custom_call.1} parent=1 // loop_footer_branch
      %27 = sbr.rel target = $region3
    $region8: #{tpu_custom_call.1} parent=1 // loop_exit
      _
    %8352 = vsyncpa [#allocation5], 1
    %s8353 = scalar_lea.sflag [#allocation5], 1
    %8354 = vsyncpa %s8353, 1
    %8355 = vsyncpa [#allocation8], 1
    %8356 = vsyncpa [#allocation6], 1
    %s8357 = scalar_lea.sflag [#allocation6], 1
    %8358 = vsyncpa %s8357, 1

</llo_original>
